<compile_context>
chip_gen: v6e
topology: v6e:2x2x1
jax: 0.10.0
libtpu: 0.0.40
codegen_flags: <defaults>
</compile_context>

<pallas_src>
import functools

import jax
import jax.numpy as jnp
from jax.experimental import pallas as pl
from jax.experimental.pallas import tpu as pltpu


# ---------------------------------------------------------------------------
# One-time pltpu.roll probe (defensive): detect availability / shift direction
# of the native sublane rotate.  Falls back to jnp.roll (slice+concat) if the
# native rotate is unavailable on this backend.
# ---------------------------------------------------------------------------
def _roll_probe_kernel(o_ref):
    o_ref[...] = pltpu.roll(
        jax.lax.broadcasted_iota(jnp.int32, (256, 8), 0), shift=1, axis=0)


@functools.lru_cache(maxsize=1)
def _roll_impl():
    """Returns (use_pltpu_roll, sign). sign maps jnp.roll-style shifts."""
    try:
        out = pl.pallas_call(
            _roll_probe_kernel,
            out_shape=jax.ShapeDtypeStruct((256, 8), jnp.int32),
        )()
        first = int(out[1, 0])
        if first == 0:      # element i moved to i + shift (jnp.roll convention)
            return True, 1
        if first == 2:      # opposite convention
            return True, -1
    except Exception:
        pass
    return False, 1         # fall back to jnp.roll semantics


def _roll_rows(v, shift, size, use_pltpu_roll, sign):
    """Circular shift of rows (axis 0), jnp.roll semantics (i -> i + shift)."""
    shift = (sign * shift) % size
    if shift == 0:
        return v
    if use_pltpu_roll:
        return pltpu.roll(v, shift=shift, axis=0)
    return jnp.roll(v, shift, axis=0)


# ---------------------------------------------------------------------------
# Kernel
# ---------------------------------------------------------------------------
def _basic_block_kernel(x_ref, w1_ref, s1_ref, b1_ref, w2_ref, s2_ref, b2_ref,
                        out_ref, *, H, W, compute_dtype, use_pltpu_roll,
                        roll_sign):
    # x_ref : (1, H*W, Cin)  NHWC input flattened spatially (also the residual)
    # w*_ref: (9, C, C)      conv weights, tap-major (kh*3 + kw), compute dtype
    # s*/b* : (1, C)         folded BN scale / bias (f32)
    # out   : (1, H*W, C)
    HW = H * W

    x_f32 = x_ref[0].astype(jnp.float32)       # residual path, loaded once
    x_c = x_f32.astype(compute_dtype)          # conv1 MXU operand

    # Row-index masks implementing the zero padding of the 3x3 taps.
    row = jax.lax.broadcasted_iota(jnp.int32, (HW, 1), 0)
    col = row % W
    m_top = row >= W                # source row h-1 is in bounds
    m_bot = row < (H - 1) * W       # source row h+1 is in bounds
    m_left = col >= 1               # source col w-1 is in bounds
    m_right = col < (W - 1)         # source col w+1 is in bounds

    def conv3x3(inp, w_ref):
        # Centre tap initialises the accumulator (no zero-fill, roll or mask).
        acc = jnp.dot(inp, w_ref[4], preferred_element_type=jnp.float32)
        for kh in range(3):
            for kw in range(3):
                if kh == 1 and kw == 1:
                    continue
                dy, dx = kh - 1, kw - 1
                part = jnp.dot(inp, w_ref[kh * 3 + kw],
                               preferred_element_type=jnp.float32)
                # Output row r takes source row r + dy*W + dx.
                part = _roll_rows(part, -(dy * W + dx), HW,
                                  use_pltpu_roll, roll_sign)
                mask = None
                if dy == -1:
                    mask = m_top
                elif dy == 1:
                    mask = m_bot
                if dx == -1:
                    mask = m_left if mask is None else (mask & m_left)
                elif dx == 1:
                    mask = m_right if mask is None else (mask & m_right)
                acc = acc + jnp.where(mask, part, 0.0)
        return acc

    # conv1 -> bn1 (folded affine) -> relu
    y = jnp.maximum(conv3x3(x_c, w1_ref) * s1_ref[...] + b1_ref[...], 0.0)
    # conv2 (intermediate stays in registers, no padded scratch) -> bn2
    acc2 = conv3x3(y.astype(compute_dtype), w2_ref)
    # + residual -> relu
    out = jnp.maximum(acc2 * s2_ref[...] + b2_ref[...] + x_f32, 0.0)
    # Note: output keeps channels on the lane axis; for real ResNet stages
    # (C >= 128) the stores are naturally lane-dense.
    out_ref[0] = out.astype(out_ref.dtype)


# ---------------------------------------------------------------------------
# Wrapper
# ---------------------------------------------------------------------------
def basic_block_forward(x_nchw, params, eps=1e-5, compute_dtype=jnp.bfloat16):
    """Pallas BasicBlock forward. x_nchw: (N, C, H, W) float32 (PyTorch layout)."""
    (w1, g1, be1, m1, v1, w2, g2, be2, m2, v2) = params

    x = jnp.transpose(x_nchw, (0, 2, 3, 1)).astype(jnp.float32)   # NCHW -> NHWC
    N, H, W, Cin = x.shape
    Cout = w1.shape[0]
    assert Cin == Cout, "no-downsample BasicBlock requires inplanes == planes"

    # Single (unpadded) input; also serves as the residual inside the kernel.
    x_flat = x.reshape(N, H * W, Cin)

    # Fold BN (inference) into per-channel scale / bias.
    inv1 = g1 / jnp.sqrt(v1 + eps)
    s1 = inv1.reshape(1, Cout)
    b1 = (be1 - m1 * inv1).reshape(1, Cout)
    inv2 = g2 / jnp.sqrt(v2 + eps)
    s2 = inv2.reshape(1, Cout)
    b2 = (be2 - m2 * inv2).reshape(1, Cout)

    # torch conv weight (Cout, Cin, kh, kw) -> tap-major (9, Cin, Cout), cast
    # to the MXU compute dtype (bf16 by default; f32 accumulate in-kernel).
    w1r = jnp.transpose(w1, (2, 3, 1, 0)).reshape(9, Cin, Cout).astype(compute_dtype)
    w2r = jnp.transpose(w2, (2, 3, 1, 0)).reshape(9, Cout, Cout).astype(compute_dtype)

    use_roll, roll_sign = _roll_impl()
    kernel = functools.partial(_basic_block_kernel, H=H, W=W,
                               compute_dtype=compute_dtype,
                               use_pltpu_roll=use_roll, roll_sign=roll_sign)

    out_flat = pl.pallas_call(
        kernel,
        out_shape=jax.ShapeDtypeStruct((N, H * W, Cout), jnp.float32),
        grid_spec=pltpu.PrefetchScalarGridSpec(
            num_scalar_prefetch=0,
            grid=(N,),
            in_specs=[
                pl.BlockSpec((1, H * W, Cin), lambda n: (n, 0, 0)),
                pl.BlockSpec((9, Cin, Cout), lambda n: (0, 0, 0)),
                pl.BlockSpec((1, Cout), lambda n: (0, 0)),
                pl.BlockSpec((1, Cout), lambda n: (0, 0)),
                pl.BlockSpec((9, Cout, Cout), lambda n: (0, 0, 0)),
                pl.BlockSpec((1, Cout), lambda n: (0, 0)),
                pl.BlockSpec((1, Cout), lambda n: (0, 0)),
            ],
            out_specs=pl.BlockSpec((1, H * W, Cout), lambda n: (n, 0, 0)),
        ),
        compiler_params=pltpu.CompilerParams(
            dimension_semantics=("parallel",),
            vmem_limit_bytes=64 * 1024 * 1024),
    )(x_flat, w1r, s1, b1, w2r, s2, b2)

    out_nhwc = out_flat.reshape(N, H, W, Cout)
    return jnp.transpose(out_nhwc, (0, 3, 1, 2))   # NHWC -> NCHW


# ---------------------------------------------------------------------------
# Pure-JAX reference (eval-mode BN) and parameter init
# ---------------------------------------------------------------------------
def basic_block_reference(x_nchw, params, eps=1e-5):
    (w1, g1, be1, m1, v1, w2, g2, be2, m2, v2) = params

    def conv(inp_nhwc, w_oihw):
        return jax.lax.conv_general_dilated(
            inp_nhwc, jnp.transpose(w_oihw, (2, 3, 1, 0)),
            window_strides=(1, 1), padding="SAME",
            dimension_numbers=("NHWC", "HWIO", "NHWC"))

    xh = jnp.transpose(x_nchw, (0, 2, 3, 1)).astype(jnp.float32)
    o = conv(xh, w1)
    o = (o - m1) / jnp.sqrt(v1 + eps) * g1 + be1
    o = jnp.maximum(o, 0.0)
    o = conv(o, w2)
    o = (o - m2) / jnp.sqrt(v2 + eps) * g2 + be2
    o = o + xh
    o = jnp.maximum(o, 0.0)
    return jnp.transpose(o, (0, 3, 1, 2))


def init_params(key, inplanes, planes):
    ks = jax.random.split(key, 10)
    w1 = 0.1 * jax.random.normal(ks[0], (planes, inplanes, 3, 3), jnp.float32)
    g1 = 0.5 + jax.random.uniform(ks[1], (planes,), jnp.float32)
    be1 = 0.1 * jax.random.normal(ks[2], (planes,), jnp.float32)
    m1 = 0.1 * jax.random.normal(ks[3], (planes,), jnp.float32)
    v1 = 0.5 + jax.random.uniform(ks[4], (planes,), jnp.float32)
    w2 = 0.1 * jax.random.normal(ks[5], (planes, planes, 3, 3), jnp.float32)
    g2 = 0.5 + jax.random.uniform(ks[6], (planes,), jnp.float32)
    be2 = 0.1 * jax.random.normal(ks[7], (planes,), jnp.float32)
    m2 = 0.1 * jax.random.normal(ks[8], (planes,), jnp.float32)
    v2 = 0.5 + jax.random.uniform(ks[9], (planes,), jnp.float32)
    return (w1, g1, be1, m1, v1, w2, g2, be2, m2, v2)


if __name__ == "__main__":
    key = jax.random.PRNGKey(0)
    kx, kp = jax.random.split(key)

    N, C, H, W = 2, 8, 16, 16          # inplanes = planes = 8
    x = jax.random.normal(kx, (N, C, H, W), jnp.float32)
    params = init_params(kp, C, C)

    ref = jax.block_until_ready(basic_block_reference(x, params))

    # Exact path: f32 MXU operands, tight tolerance.
    out_f32 = jax.block_until_ready(
        basic_block_forward(x, params, compute_dtype=jnp.float32))
    assert out_f32.shape == (N, C, H, W)
    assert jnp.allclose(out_f32, ref, atol=1e-4, rtol=1e-4), (
        float(jnp.max(jnp.abs(out_f32 - ref))))

    # Fast path: bf16 MXU operands (f32 accumulation), loose tolerance.
    out_bf16 = jax.block_until_ready(
        basic_block_forward(x, params, compute_dtype=jnp.bfloat16))
    assert jnp.allclose(out_bf16, ref, atol=1e-1, rtol=1e-1), (
        float(jnp.max(jnp.abs(out_bf16 - ref))))

    print("KERNEL_OK")
</pallas_src>

<mosaic_0001>
module attributes {stable_mosaic.version = 11 : i64} {
  func.func @_basic_block_kernel(%arg0: i32, %arg1: memref<1x256x8xf32, #tpu.memory_space<vmem>>, %arg2: memref<9x8x8xf32, #tpu.memory_space<vmem>>, %arg3: memref<1x8xf32, #tpu.memory_space<vmem>>, %arg4: memref<1x8xf32, #tpu.memory_space<vmem>>, %arg5: memref<9x8x8xf32, #tpu.memory_space<vmem>>, %arg6: memref<1x8xf32, #tpu.memory_space<vmem>>, %arg7: memref<1x8xf32, #tpu.memory_space<vmem>>, %arg8: memref<1x256x8xf32, #tpu.memory_space<vmem>>) attributes {dimension_semantics = [#tpu.dimension_semantics<parallel>], iteration_bounds = array<i64: 2>, scalar_prefetch = 0 : i64, scratch_operands = 0 : i64, tpu.core_type = #tpu.core_type<tc>, window_params = [{transform_indices = @transform_0, window_bounds = array<i64: 1, 256, 8>}, {pipeline_mode = #tpu.pipeline_mode<synchronous>, transform_indices = @transform_1, window_bounds = array<i64: 9, 8, 8>}, {pipeline_mode = #tpu.pipeline_mode<synchronous>, transform_indices = @transform_2, window_bounds = array<i64: 1, 8>}, {pipeline_mode = #tpu.pipeline_mode<synchronous>, transform_indices = @transform_3, window_bounds = array<i64: 1, 8>}, {pipeline_mode = #tpu.pipeline_mode<synchronous>, transform_indices = @transform_4, window_bounds = array<i64: 9, 8, 8>}, {pipeline_mode = #tpu.pipeline_mode<synchronous>, transform_indices = @transform_5, window_bounds = array<i64: 1, 8>}, {pipeline_mode = #tpu.pipeline_mode<synchronous>, transform_indices = @transform_6, window_bounds = array<i64: 1, 8>}, {transform_indices = @transform_7, window_bounds = array<i64: 1, 256, 8>}]} {
    %c0 = arith.constant 0 : index
    %c0_0 = arith.constant 0 : index
    %c0_1 = arith.constant 0 : index
    %0 = vector.load %arg1[%c0, %c0_0, %c0_1] : memref<1x256x8xf32, #tpu.memory_space<vmem>>, vector<1x256x8xf32>
    %1 = vector.shape_cast %0 : vector<1x256x8xf32> to vector<256x8xf32>
    %2 = tpu.iota {dimensions = array<i32: 0>} : vector<256x1xi32>
    %c16_i32 = arith.constant 16 : i32
    %c0_i32 = arith.constant 0 : i32
    %3 = arith.cmpi eq, %c16_i32, %c0_i32 : i32
    %c1_i32 = arith.constant 1 : i32
    %4 = arith.select %3, %c1_i32, %c16_i32 : i32
    %5 = vector.broadcast %4 : i32 to vector<256x1xi32>
    %6 = arith.remsi %2, %5 : vector<256x1xi32>
    %c0_i32_2 = arith.constant 0 : i32
    %7 = vector.broadcast %c0_i32_2 : i32 to vector<256x1xi32>
    %8 = arith.cmpi ne, %6, %7 : vector<256x1xi32>
    %c0_i32_3 = arith.constant 0 : i32
    %9 = vector.broadcast %c0_i32_3 : i32 to vector<256x1xi32>
    %10 = arith.cmpi slt, %6, %9 : vector<256x1xi32>
    %c0_i32_4 = arith.constant 0 : i32
    %11 = arith.cmpi slt, %4, %c0_i32_4 : i32
    %12 = vector.broadcast %11 : i1 to vector<256x1xi1>
    %13 = vector.broadcast %12 : vector<256x1xi1> to vector<256x1xi1>
    %14 = arith.xori %10, %13 : vector<256x1xi1>
    %15 = arith.andi %14, %8 : vector<256x1xi1>
    %16 = vector.broadcast %4 : i32 to vector<256x1xi32>
    %17 = arith.addi %6, %16 : vector<256x1xi32>
    %18 = arith.select %15, %17, %6 : vector<256x1xi1>, vector<256x1xi32>
    %c16_i32_5 = arith.constant 16 : i32
    %19 = vector.broadcast %c16_i32_5 : i32 to vector<256x1xi32>
    %20 = arith.cmpi sge, %2, %19 : vector<256x1xi32>
    %c240_i32 = arith.constant 240 : i32
    %21 = vector.broadcast %c240_i32 : i32 to vector<256x1xi32>
    %22 = arith.cmpi slt, %2, %21 : vector<256x1xi32>
    %c1_i32_6 = arith.constant 1 : i32
    %23 = vector.broadcast %c1_i32_6 : i32 to vector<256x1xi32>
    %24 = arith.cmpi sge, %18, %23 : vector<256x1xi32>
    %c15_i32 = arith.constant 15 : i32
    %25 = vector.broadcast %c15_i32 : i32 to vector<256x1xi32>
    %26 = arith.cmpi slt, %18, %25 : vector<256x1xi32>
    %c4 = arith.constant 4 : index
    %c0_7 = arith.constant 0 : index
    %c0_8 = arith.constant 0 : index
    %27 = vector.load %arg2[%c4, %c0_7, %c0_8] : memref<9x8x8xf32, #tpu.memory_space<vmem>>, vector<1x8x8xf32>
    %28 = vector.shape_cast %27 : vector<1x8x8xf32> to vector<8x8xf32>
    %cst = arith.constant dense<0.000000e+00> : vector<256x8xf32>
    %29 = tpu.matmul %1, %28, %cst {dimension_numbers = #tpu.dot_dimension_numbers<[1], [0], [0], [1], [0, 0, 1, 1], [], []>} : vector<256x8xf32>, vector<8x8xf32>, vector<256x8xf32> -> vector<256x8xf32>
    %c0_9 = arith.constant 0 : index
    %c0_10 = arith.constant 0 : index
    %c0_11 = arith.constant 0 : index
    %30 = vector.load %arg2[%c0_9, %c0_10, %c0_11] : memref<9x8x8xf32, #tpu.memory_space<vmem>>, vector<1x8x8xf32>
    %31 = vector.shape_cast %30 : vector<1x8x8xf32> to vector<8x8xf32>
    %cst_12 = arith.constant dense<0.000000e+00> : vector<256x8xf32>
    %32 = tpu.matmul %1, %31, %cst_12 {dimension_numbers = #tpu.dot_dimension_numbers<[1], [0], [0], [1], [0, 0, 1, 1], [], []>} : vector<256x8xf32>, vector<8x8xf32>, vector<256x8xf32> -> vector<256x8xf32>
    %33 = vector.extract_strided_slice %32 {offsets = [239, 0], sizes = [17, 8], strides = [1, 1]} : vector<256x8xf32> to vector<17x8xf32>
    %34 = vector.extract_strided_slice %32 {offsets = [0, 0], sizes = [239, 8], strides = [1, 1]} : vector<256x8xf32> to vector<239x8xf32>
    %35 = tpu.concatenate %33, %34 in 0 : vector<17x8xf32>, vector<239x8xf32> -> vector<256x8xf32>
    %36 = arith.andi %20, %24 : vector<256x1xi1>
    %cst_13 = arith.constant 0.000000e+00 : f32
    %37 = vector.shape_cast %36 : vector<256x1xi1> to vector<256x1xi1>
    %38 = vector.broadcast %37 : vector<256x1xi1> to vector<256x8xi1>
    %39 = vector.broadcast %cst_13 : f32 to vector<256x8xf32>
    %40 = arith.select %38, %35, %39 : vector<256x8xi1>, vector<256x8xf32>
    %41 = arith.addf %29, %40 : vector<256x8xf32>
    %c1 = arith.constant 1 : index
    %c0_14 = arith.constant 0 : index
    %c0_15 = arith.constant 0 : index
    %42 = vector.load %arg2[%c1, %c0_14, %c0_15] : memref<9x8x8xf32, #tpu.memory_space<vmem>>, vector<1x8x8xf32>
    %43 = vector.shape_cast %42 : vector<1x8x8xf32> to vector<8x8xf32>
    %cst_16 = arith.constant dense<0.000000e+00> : vector<256x8xf32>
    %44 = tpu.matmul %1, %43, %cst_16 {dimension_numbers = #tpu.dot_dimension_numbers<[1], [0], [0], [1], [0, 0, 1, 1], [], []>} : vector<256x8xf32>, vector<8x8xf32>, vector<256x8xf32> -> vector<256x8xf32>
    %45 = vector.extract_strided_slice %44 {offsets = [240, 0], sizes = [16, 8], strides = [1, 1]} : vector<256x8xf32> to vector<16x8xf32>
    %46 = vector.extract_strided_slice %44 {offsets = [0, 0], sizes = [240, 8], strides = [1, 1]} : vector<256x8xf32> to vector<240x8xf32>
    %47 = tpu.concatenate %45, %46 in 0 : vector<16x8xf32>, vector<240x8xf32> -> vector<256x8xf32>
    %cst_17 = arith.constant 0.000000e+00 : f32
    %48 = vector.shape_cast %20 : vector<256x1xi1> to vector<256x1xi1>
    %49 = vector.broadcast %48 : vector<256x1xi1> to vector<256x8xi1>
    %50 = vector.broadcast %cst_17 : f32 to vector<256x8xf32>
    %51 = arith.select %49, %47, %50 : vector<256x8xi1>, vector<256x8xf32>
    %52 = arith.addf %41, %51 : vector<256x8xf32>
    %c2 = arith.constant 2 : index
    %c0_18 = arith.constant 0 : index
    %c0_19 = arith.constant 0 : index
    %53 = vector.load %arg2[%c2, %c0_18, %c0_19] : memref<9x8x8xf32, #tpu.memory_space<vmem>>, vector<1x8x8xf32>
    %54 = vector.shape_cast %53 : vector<1x8x8xf32> to vector<8x8xf32>
    %cst_20 = arith.constant dense<0.000000e+00> : vector<256x8xf32>
    %55 = tpu.matmul %1, %54, %cst_20 {dimension_numbers = #tpu.dot_dimension_numbers<[1], [0], [0], [1], [0, 0, 1, 1], [], []>} : vector<256x8xf32>, vector<8x8xf32>, vector<256x8xf32> -> vector<256x8xf32>
    %56 = vector.extract_strided_slice %55 {offsets = [241, 0], sizes = [15, 8], strides = [1, 1]} : vector<256x8xf32> to vector<15x8xf32>
    %57 = vector.extract_strided_slice %55 {offsets = [0, 0], sizes = [241, 8], strides = [1, 1]} : vector<256x8xf32> to vector<241x8xf32>
    %58 = tpu.concatenate %56, %57 in 0 : vector<15x8xf32>, vector<241x8xf32> -> vector<256x8xf32>
    %59 = arith.andi %20, %26 : vector<256x1xi1>
    %cst_21 = arith.constant 0.000000e+00 : f32
    %60 = vector.shape_cast %59 : vector<256x1xi1> to vector<256x1xi1>
    %61 = vector.broadcast %60 : vector<256x1xi1> to vector<256x8xi1>
    %62 = vector.broadcast %cst_21 : f32 to vector<256x8xf32>
    %63 = arith.select %61, %58, %62 : vector<256x8xi1>, vector<256x8xf32>
    %64 = arith.addf %52, %63 : vector<256x8xf32>
    %c3 = arith.constant 3 : index
    %c0_22 = arith.constant 0 : index
    %c0_23 = arith.constant 0 : index
    %65 = vector.load %arg2[%c3, %c0_22, %c0_23] : memref<9x8x8xf32, #tpu.memory_space<vmem>>, vector<1x8x8xf32>
    %66 = vector.shape_cast %65 : vector<1x8x8xf32> to vector<8x8xf32>
    %cst_24 = arith.constant dense<0.000000e+00> : vector<256x8xf32>
    %67 = tpu.matmul %1, %66, %cst_24 {dimension_numbers = #tpu.dot_dimension_numbers<[1], [0], [0], [1], [0, 0, 1, 1], [], []>} : vector<256x8xf32>, vector<8x8xf32>, vector<256x8xf32> -> vector<256x8xf32>
    %68 = vector.extract_strided_slice %67 {offsets = [255, 0], sizes = [1, 8], strides = [1, 1]} : vector<256x8xf32> to vector<1x8xf32>
    %69 = vector.extract_strided_slice %67 {offsets = [0, 0], sizes = [255, 8], strides = [1, 1]} : vector<256x8xf32> to vector<255x8xf32>
    %70 = tpu.concatenate %68, %69 in 0 : vector<1x8xf32>, vector<255x8xf32> -> vector<256x8xf32>
    %cst_25 = arith.constant 0.000000e+00 : f32
    %71 = vector.shape_cast %24 : vector<256x1xi1> to vector<256x1xi1>
    %72 = vector.broadcast %71 : vector<256x1xi1> to vector<256x8xi1>
    %73 = vector.broadcast %cst_25 : f32 to vector<256x8xf32>
    %74 = arith.select %72, %70, %73 : vector<256x8xi1>, vector<256x8xf32>
    %75 = arith.addf %64, %74 : vector<256x8xf32>
    %c5 = arith.constant 5 : index
    %c0_26 = arith.constant 0 : index
    %c0_27 = arith.constant 0 : index
    %76 = vector.load %arg2[%c5, %c0_26, %c0_27] : memref<9x8x8xf32, #tpu.memory_space<vmem>>, vector<1x8x8xf32>
    %77 = vector.shape_cast %76 : vector<1x8x8xf32> to vector<8x8xf32>
    %cst_28 = arith.constant dense<0.000000e+00> : vector<256x8xf32>
    %78 = tpu.matmul %1, %77, %cst_28 {dimension_numbers = #tpu.dot_dimension_numbers<[1], [0], [0], [1], [0, 0, 1, 1], [], []>} : vector<256x8xf32>, vector<8x8xf32>, vector<256x8xf32> -> vector<256x8xf32>
    %79 = vector.extract_strided_slice %78 {offsets = [1, 0], sizes = [255, 8], strides = [1, 1]} : vector<256x8xf32> to vector<255x8xf32>
    %80 = vector.extract_strided_slice %78 {offsets = [0, 0], sizes = [1, 8], strides = [1, 1]} : vector<256x8xf32> to vector<1x8xf32>
    %81 = tpu.concatenate %79, %80 in 0 : vector<255x8xf32>, vector<1x8xf32> -> vector<256x8xf32>
    %cst_29 = arith.constant 0.000000e+00 : f32
    %82 = vector.shape_cast %26 : vector<256x1xi1> to vector<256x1xi1>
    %83 = vector.broadcast %82 : vector<256x1xi1> to vector<256x8xi1>
    %84 = vector.broadcast %cst_29 : f32 to vector<256x8xf32>
    %85 = arith.select %83, %81, %84 : vector<256x8xi1>, vector<256x8xf32>
    %86 = arith.addf %75, %85 : vector<256x8xf32>
    %c6 = arith.constant 6 : index
    %c0_30 = arith.constant 0 : index
    %c0_31 = arith.constant 0 : index
    %87 = vector.load %arg2[%c6, %c0_30, %c0_31] : memref<9x8x8xf32, #tpu.memory_space<vmem>>, vector<1x8x8xf32>
    %88 = vector.shape_cast %87 : vector<1x8x8xf32> to vector<8x8xf32>
    %cst_32 = arith.constant dense<0.000000e+00> : vector<256x8xf32>
    %89 = tpu.matmul %1, %88, %cst_32 {dimension_numbers = #tpu.dot_dimension_numbers<[1], [0], [0], [1], [0, 0, 1, 1], [], []>} : vector<256x8xf32>, vector<8x8xf32>, vector<256x8xf32> -> vector<256x8xf32>
    %90 = vector.extract_strided_slice %89 {offsets = [15, 0], sizes = [241, 8], strides = [1, 1]} : vector<256x8xf32> to vector<241x8xf32>
    %91 = vector.extract_strided_slice %89 {offsets = [0, 0], sizes = [15, 8], strides = [1, 1]} : vector<256x8xf32> to vector<15x8xf32>
    %92 = tpu.concatenate %90, %91 in 0 : vector<241x8xf32>, vector<15x8xf32> -> vector<256x8xf32>
    %93 = arith.andi %22, %24 : vector<256x1xi1>
    %cst_33 = arith.constant 0.000000e+00 : f32
    %94 = vector.shape_cast %93 : vector<256x1xi1> to vector<256x1xi1>
    %95 = vector.broadcast %94 : vector<256x1xi1> to vector<256x8xi1>
    %96 = vector.broadcast %cst_33 : f32 to vector<256x8xf32>
    %97 = arith.select %95, %92, %96 : vector<256x8xi1>, vector<256x8xf32>
    %98 = arith.addf %86, %97 : vector<256x8xf32>
    %c7 = arith.constant 7 : index
    %c0_34 = arith.constant 0 : index
    %c0_35 = arith.constant 0 : index
    %99 = vector.load %arg2[%c7, %c0_34, %c0_35] : memref<9x8x8xf32, #tpu.memory_space<vmem>>, vector<1x8x8xf32>
    %100 = vector.shape_cast %99 : vector<1x8x8xf32> to vector<8x8xf32>
    %cst_36 = arith.constant dense<0.000000e+00> : vector<256x8xf32>
    %101 = tpu.matmul %1, %100, %cst_36 {dimension_numbers = #tpu.dot_dimension_numbers<[1], [0], [0], [1], [0, 0, 1, 1], [], []>} : vector<256x8xf32>, vector<8x8xf32>, vector<256x8xf32> -> vector<256x8xf32>
    %102 = vector.extract_strided_slice %101 {offsets = [16, 0], sizes = [240, 8], strides = [1, 1]} : vector<256x8xf32> to vector<240x8xf32>
    %103 = vector.extract_strided_slice %101 {offsets = [0, 0], sizes = [16, 8], strides = [1, 1]} : vector<256x8xf32> to vector<16x8xf32>
    %104 = tpu.concatenate %102, %103 in 0 : vector<240x8xf32>, vector<16x8xf32> -> vector<256x8xf32>
    %cst_37 = arith.constant 0.000000e+00 : f32
    %105 = vector.shape_cast %22 : vector<256x1xi1> to vector<256x1xi1>
    %106 = vector.broadcast %105 : vector<256x1xi1> to vector<256x8xi1>
    %107 = vector.broadcast %cst_37 : f32 to vector<256x8xf32>
    %108 = arith.select %106, %104, %107 : vector<256x8xi1>, vector<256x8xf32>
    %109 = arith.addf %98, %108 : vector<256x8xf32>
    %c8 = arith.constant 8 : index
    %c0_38 = arith.constant 0 : index
    %c0_39 = arith.constant 0 : index
    %110 = vector.load %arg2[%c8, %c0_38, %c0_39] : memref<9x8x8xf32, #tpu.memory_space<vmem>>, vector<1x8x8xf32>
    %111 = vector.shape_cast %110 : vector<1x8x8xf32> to vector<8x8xf32>
    %cst_40 = arith.constant dense<0.000000e+00> : vector<256x8xf32>
    %112 = tpu.matmul %1, %111, %cst_40 {dimension_numbers = #tpu.dot_dimension_numbers<[1], [0], [0], [1], [0, 0, 1, 1], [], []>} : vector<256x8xf32>, vector<8x8xf32>, vector<256x8xf32> -> vector<256x8xf32>
    %113 = vector.extract_strided_slice %112 {offsets = [17, 0], sizes = [239, 8], strides = [1, 1]} : vector<256x8xf32> to vector<239x8xf32>
    %114 = vector.extract_strided_slice %112 {offsets = [0, 0], sizes = [17, 8], strides = [1, 1]} : vector<256x8xf32> to vector<17x8xf32>
    %115 = tpu.concatenate %113, %114 in 0 : vector<239x8xf32>, vector<17x8xf32> -> vector<256x8xf32>
    %116 = arith.andi %22, %26 : vector<256x1xi1>
    %cst_41 = arith.constant 0.000000e+00 : f32
    %117 = vector.shape_cast %116 : vector<256x1xi1> to vector<256x1xi1>
    %118 = vector.broadcast %117 : vector<256x1xi1> to vector<256x8xi1>
    %119 = vector.broadcast %cst_41 : f32 to vector<256x8xf32>
    %120 = arith.select %118, %115, %119 : vector<256x8xi1>, vector<256x8xf32>
    %121 = arith.addf %109, %120 : vector<256x8xf32>
    %c0_42 = arith.constant 0 : index
    %c0_43 = arith.constant 0 : index
    %122 = vector.load %arg3[%c0_42, %c0_43] : memref<1x8xf32, #tpu.memory_space<vmem>>, vector<1x8xf32>
    %123 = vector.broadcast %122 : vector<1x8xf32> to vector<256x8xf32>
    %124 = arith.mulf %121, %123 : vector<256x8xf32>
    %c0_44 = arith.constant 0 : index
    %c0_45 = arith.constant 0 : index
    %125 = vector.load %arg4[%c0_44, %c0_45] : memref<1x8xf32, #tpu.memory_space<vmem>>, vector<1x8xf32>
    %126 = vector.broadcast %125 : vector<1x8xf32> to vector<256x8xf32>
    %127 = arith.addf %124, %126 : vector<256x8xf32>
    %cst_46 = arith.constant 0.000000e+00 : f32
    %128 = vector.broadcast %cst_46 : f32 to vector<256x8xf32>
    %129 = arith.maximumf %127, %128 : vector<256x8xf32>
    %c4_47 = arith.constant 4 : index
    %c0_48 = arith.constant 0 : index
    %c0_49 = arith.constant 0 : index
    %130 = vector.load %arg5[%c4_47, %c0_48, %c0_49] : memref<9x8x8xf32, #tpu.memory_space<vmem>>, vector<1x8x8xf32>
    %131 = vector.shape_cast %130 : vector<1x8x8xf32> to vector<8x8xf32>
    %cst_50 = arith.constant dense<0.000000e+00> : vector<256x8xf32>
    %132 = tpu.matmul %129, %131, %cst_50 {dimension_numbers = #tpu.dot_dimension_numbers<[1], [0], [0], [1], [0, 0, 1, 1], [], []>} : vector<256x8xf32>, vector<8x8xf32>, vector<256x8xf32> -> vector<256x8xf32>
    %c0_51 = arith.constant 0 : index
    %c0_52 = arith.constant 0 : index
    %c0_53 = arith.constant 0 : index
    %133 = vector.load %arg5[%c0_51, %c0_52, %c0_53] : memref<9x8x8xf32, #tpu.memory_space<vmem>>, vector<1x8x8xf32>
    %134 = vector.shape_cast %133 : vector<1x8x8xf32> to vector<8x8xf32>
    %cst_54 = arith.constant dense<0.000000e+00> : vector<256x8xf32>
    %135 = tpu.matmul %129, %134, %cst_54 {dimension_numbers = #tpu.dot_dimension_numbers<[1], [0], [0], [1], [0, 0, 1, 1], [], []>} : vector<256x8xf32>, vector<8x8xf32>, vector<256x8xf32> -> vector<256x8xf32>
    %136 = vector.extract_strided_slice %135 {offsets = [239, 0], sizes = [17, 8], strides = [1, 1]} : vector<256x8xf32> to vector<17x8xf32>
    %137 = vector.extract_strided_slice %135 {offsets = [0, 0], sizes = [239, 8], strides = [1, 1]} : vector<256x8xf32> to vector<239x8xf32>
    %138 = tpu.concatenate %136, %137 in 0 : vector<17x8xf32>, vector<239x8xf32> -> vector<256x8xf32>
    %139 = arith.andi %20, %24 : vector<256x1xi1>
    %cst_55 = arith.constant 0.000000e+00 : f32
    %140 = vector.shape_cast %139 : vector<256x1xi1> to vector<256x1xi1>
    %141 = vector.broadcast %140 : vector<256x1xi1> to vector<256x8xi1>
    %142 = vector.broadcast %cst_55 : f32 to vector<256x8xf32>
    %143 = arith.select %141, %138, %142 : vector<256x8xi1>, vector<256x8xf32>
    %144 = arith.addf %132, %143 : vector<256x8xf32>
    %c1_56 = arith.constant 1 : index
    %c0_57 = arith.constant 0 : index
    %c0_58 = arith.constant 0 : index
    %145 = vector.load %arg5[%c1_56, %c0_57, %c0_58] : memref<9x8x8xf32, #tpu.memory_space<vmem>>, vector<1x8x8xf32>
    %146 = vector.shape_cast %145 : vector<1x8x8xf32> to vector<8x8xf32>
    %cst_59 = arith.constant dense<0.000000e+00> : vector<256x8xf32>
    %147 = tpu.matmul %129, %146, %cst_59 {dimension_numbers = #tpu.dot_dimension_numbers<[1], [0], [0], [1], [0, 0, 1, 1], [], []>} : vector<256x8xf32>, vector<8x8xf32>, vector<256x8xf32> -> vector<256x8xf32>
    %148 = vector.extract_strided_slice %147 {offsets = [240, 0], sizes = [16, 8], strides = [1, 1]} : vector<256x8xf32> to vector<16x8xf32>
    %149 = vector.extract_strided_slice %147 {offsets = [0, 0], sizes = [240, 8], strides = [1, 1]} : vector<256x8xf32> to vector<240x8xf32>
    %150 = tpu.concatenate %148, %149 in 0 : vector<16x8xf32>, vector<240x8xf32> -> vector<256x8xf32>
    %cst_60 = arith.constant 0.000000e+00 : f32
    %151 = vector.shape_cast %20 : vector<256x1xi1> to vector<256x1xi1>
    %152 = vector.broadcast %151 : vector<256x1xi1> to vector<256x8xi1>
    %153 = vector.broadcast %cst_60 : f32 to vector<256x8xf32>
    %154 = arith.select %152, %150, %153 : vector<256x8xi1>, vector<256x8xf32>
    %155 = arith.addf %144, %154 : vector<256x8xf32>
    %c2_61 = arith.constant 2 : index
    %c0_62 = arith.constant 0 : index
    %c0_63 = arith.constant 0 : index
    %156 = vector.load %arg5[%c2_61, %c0_62, %c0_63] : memref<9x8x8xf32, #tpu.memory_space<vmem>>, vector<1x8x8xf32>
    %157 = vector.shape_cast %156 : vector<1x8x8xf32> to vector<8x8xf32>
    %cst_64 = arith.constant dense<0.000000e+00> : vector<256x8xf32>
    %158 = tpu.matmul %129, %157, %cst_64 {dimension_numbers = #tpu.dot_dimension_numbers<[1], [0], [0], [1], [0, 0, 1, 1], [], []>} : vector<256x8xf32>, vector<8x8xf32>, vector<256x8xf32> -> vector<256x8xf32>
    %159 = vector.extract_strided_slice %158 {offsets = [241, 0], sizes = [15, 8], strides = [1, 1]} : vector<256x8xf32> to vector<15x8xf32>
    %160 = vector.extract_strided_slice %158 {offsets = [0, 0], sizes = [241, 8], strides = [1, 1]} : vector<256x8xf32> to vector<241x8xf32>
    %161 = tpu.concatenate %159, %160 in 0 : vector<15x8xf32>, vector<241x8xf32> -> vector<256x8xf32>
    %162 = arith.andi %20, %26 : vector<256x1xi1>
    %cst_65 = arith.constant 0.000000e+00 : f32
    %163 = vector.shape_cast %162 : vector<256x1xi1> to vector<256x1xi1>
    %164 = vector.broadcast %163 : vector<256x1xi1> to vector<256x8xi1>
    %165 = vector.broadcast %cst_65 : f32 to vector<256x8xf32>
    %166 = arith.select %164, %161, %165 : vector<256x8xi1>, vector<256x8xf32>
    %167 = arith.addf %155, %166 : vector<256x8xf32>
    %c3_66 = arith.constant 3 : index
    %c0_67 = arith.constant 0 : index
    %c0_68 = arith.constant 0 : index
    %168 = vector.load %arg5[%c3_66, %c0_67, %c0_68] : memref<9x8x8xf32, #tpu.memory_space<vmem>>, vector<1x8x8xf32>
    %169 = vector.shape_cast %168 : vector<1x8x8xf32> to vector<8x8xf32>
    %cst_69 = arith.constant dense<0.000000e+00> : vector<256x8xf32>
    %170 = tpu.matmul %129, %169, %cst_69 {dimension_numbers = #tpu.dot_dimension_numbers<[1], [0], [0], [1], [0, 0, 1, 1], [], []>} : vector<256x8xf32>, vector<8x8xf32>, vector<256x8xf32> -> vector<256x8xf32>
    %171 = vector.extract_strided_slice %170 {offsets = [255, 0], sizes = [1, 8], strides = [1, 1]} : vector<256x8xf32> to vector<1x8xf32>
    %172 = vector.extract_strided_slice %170 {offsets = [0, 0], sizes = [255, 8], strides = [1, 1]} : vector<256x8xf32> to vector<255x8xf32>
    %173 = tpu.concatenate %171, %172 in 0 : vector<1x8xf32>, vector<255x8xf32> -> vector<256x8xf32>
    %cst_70 = arith.constant 0.000000e+00 : f32
    %174 = vector.shape_cast %24 : vector<256x1xi1> to vector<256x1xi1>
    %175 = vector.broadcast %174 : vector<256x1xi1> to vector<256x8xi1>
    %176 = vector.broadcast %cst_70 : f32 to vector<256x8xf32>
    %177 = arith.select %175, %173, %176 : vector<256x8xi1>, vector<256x8xf32>
    %178 = arith.addf %167, %177 : vector<256x8xf32>
    %c5_71 = arith.constant 5 : index
    %c0_72 = arith.constant 0 : index
    %c0_73 = arith.constant 0 : index
    %179 = vector.load %arg5[%c5_71, %c0_72, %c0_73] : memref<9x8x8xf32, #tpu.memory_space<vmem>>, vector<1x8x8xf32>
    %180 = vector.shape_cast %179 : vector<1x8x8xf32> to vector<8x8xf32>
    %cst_74 = arith.constant dense<0.000000e+00> : vector<256x8xf32>
    %181 = tpu.matmul %129, %180, %cst_74 {dimension_numbers = #tpu.dot_dimension_numbers<[1], [0], [0], [1], [0, 0, 1, 1], [], []>} : vector<256x8xf32>, vector<8x8xf32>, vector<256x8xf32> -> vector<256x8xf32>
    %182 = vector.extract_strided_slice %181 {offsets = [1, 0], sizes = [255, 8], strides = [1, 1]} : vector<256x8xf32> to vector<255x8xf32>
    %183 = vector.extract_strided_slice %181 {offsets = [0, 0], sizes = [1, 8], strides = [1, 1]} : vector<256x8xf32> to vector<1x8xf32>
    %184 = tpu.concatenate %182, %183 in 0 : vector<255x8xf32>, vector<1x8xf32> -> vector<256x8xf32>
    %cst_75 = arith.constant 0.000000e+00 : f32
    %185 = vector.shape_cast %26 : vector<256x1xi1> to vector<256x1xi1>
    %186 = vector.broadcast %185 : vector<256x1xi1> to vector<256x8xi1>
    %187 = vector.broadcast %cst_75 : f32 to vector<256x8xf32>
    %188 = arith.select %186, %184, %187 : vector<256x8xi1>, vector<256x8xf32>
    %189 = arith.addf %178, %188 : vector<256x8xf32>
    %c6_76 = arith.constant 6 : index
    %c0_77 = arith.constant 0 : index
    %c0_78 = arith.constant 0 : index
    %190 = vector.load %arg5[%c6_76, %c0_77, %c0_78] : memref<9x8x8xf32, #tpu.memory_space<vmem>>, vector<1x8x8xf32>
    %191 = vector.shape_cast %190 : vector<1x8x8xf32> to vector<8x8xf32>
    %cst_79 = arith.constant dense<0.000000e+00> : vector<256x8xf32>
    %192 = tpu.matmul %129, %191, %cst_79 {dimension_numbers = #tpu.dot_dimension_numbers<[1], [0], [0], [1], [0, 0, 1, 1], [], []>} : vector<256x8xf32>, vector<8x8xf32>, vector<256x8xf32> -> vector<256x8xf32>
    %193 = vector.extract_strided_slice %192 {offsets = [15, 0], sizes = [241, 8], strides = [1, 1]} : vector<256x8xf32> to vector<241x8xf32>
    %194 = vector.extract_strided_slice %192 {offsets = [0, 0], sizes = [15, 8], strides = [1, 1]} : vector<256x8xf32> to vector<15x8xf32>
    %195 = tpu.concatenate %193, %194 in 0 : vector<241x8xf32>, vector<15x8xf32> -> vector<256x8xf32>
    %196 = arith.andi %22, %24 : vector<256x1xi1>
    %cst_80 = arith.constant 0.000000e+00 : f32
    %197 = vector.shape_cast %196 : vector<256x1xi1> to vector<256x1xi1>
    %198 = vector.broadcast %197 : vector<256x1xi1> to vector<256x8xi1>
    %199 = vector.broadcast %cst_80 : f32 to vector<256x8xf32>
    %200 = arith.select %198, %195, %199 : vector<256x8xi1>, vector<256x8xf32>
    %201 = arith.addf %189, %200 : vector<256x8xf32>
    %c7_81 = arith.constant 7 : index
    %c0_82 = arith.constant 0 : index
    %c0_83 = arith.constant 0 : index
    %202 = vector.load %arg5[%c7_81, %c0_82, %c0_83] : memref<9x8x8xf32, #tpu.memory_space<vmem>>, vector<1x8x8xf32>
    %203 = vector.shape_cast %202 : vector<1x8x8xf32> to vector<8x8xf32>
    %cst_84 = arith.constant dense<0.000000e+00> : vector<256x8xf32>
    %204 = tpu.matmul %129, %203, %cst_84 {dimension_numbers = #tpu.dot_dimension_numbers<[1], [0], [0], [1], [0, 0, 1, 1], [], []>} : vector<256x8xf32>, vector<8x8xf32>, vector<256x8xf32> -> vector<256x8xf32>
    %205 = vector.extract_strided_slice %204 {offsets = [16, 0], sizes = [240, 8], strides = [1, 1]} : vector<256x8xf32> to vector<240x8xf32>
    %206 = vector.extract_strided_slice %204 {offsets = [0, 0], sizes = [16, 8], strides = [1, 1]} : vector<256x8xf32> to vector<16x8xf32>
    %207 = tpu.concatenate %205, %206 in 0 : vector<240x8xf32>, vector<16x8xf32> -> vector<256x8xf32>
    %cst_85 = arith.constant 0.000000e+00 : f32
    %208 = vector.shape_cast %22 : vector<256x1xi1> to vector<256x1xi1>
    %209 = vector.broadcast %208 : vector<256x1xi1> to vector<256x8xi1>
    %210 = vector.broadcast %cst_85 : f32 to vector<256x8xf32>
    %211 = arith.select %209, %207, %210 : vector<256x8xi1>, vector<256x8xf32>
    %212 = arith.addf %201, %211 : vector<256x8xf32>
    %c8_86 = arith.constant 8 : index
    %c0_87 = arith.constant 0 : index
    %c0_88 = arith.constant 0 : index
    %213 = vector.load %arg5[%c8_86, %c0_87, %c0_88] : memref<9x8x8xf32, #tpu.memory_space<vmem>>, vector<1x8x8xf32>
    %214 = vector.shape_cast %213 : vector<1x8x8xf32> to vector<8x8xf32>
    %cst_89 = arith.constant dense<0.000000e+00> : vector<256x8xf32>
    %215 = tpu.matmul %129, %214, %cst_89 {dimension_numbers = #tpu.dot_dimension_numbers<[1], [0], [0], [1], [0, 0, 1, 1], [], []>} : vector<256x8xf32>, vector<8x8xf32>, vector<256x8xf32> -> vector<256x8xf32>
    %216 = vector.extract_strided_slice %215 {offsets = [17, 0], sizes = [239, 8], strides = [1, 1]} : vector<256x8xf32> to vector<239x8xf32>
    %217 = vector.extract_strided_slice %215 {offsets = [0, 0], sizes = [17, 8], strides = [1, 1]} : vector<256x8xf32> to vector<17x8xf32>
    %218 = tpu.concatenate %216, %217 in 0 : vector<239x8xf32>, vector<17x8xf32> -> vector<256x8xf32>
    %219 = arith.andi %22, %26 : vector<256x1xi1>
    %cst_90 = arith.constant 0.000000e+00 : f32
    %220 = vector.shape_cast %219 : vector<256x1xi1> to vector<256x1xi1>
    %221 = vector.broadcast %220 : vector<256x1xi1> to vector<256x8xi1>
    %222 = vector.broadcast %cst_90 : f32 to vector<256x8xf32>
    %223 = arith.select %221, %218, %222 : vector<256x8xi1>, vector<256x8xf32>
    %224 = arith.addf %212, %223 : vector<256x8xf32>
    %c0_91 = arith.constant 0 : index
    %c0_92 = arith.constant 0 : index
    %225 = vector.load %arg6[%c0_91, %c0_92] : memref<1x8xf32, #tpu.memory_space<vmem>>, vector<1x8xf32>
    %226 = vector.broadcast %225 : vector<1x8xf32> to vector<256x8xf32>
    %227 = arith.mulf %224, %226 : vector<256x8xf32>
    %c0_93 = arith.constant 0 : index
    %c0_94 = arith.constant 0 : index
    %228 = vector.load %arg7[%c0_93, %c0_94] : memref<1x8xf32, #tpu.memory_space<vmem>>, vector<1x8xf32>
    %229 = vector.broadcast %228 : vector<1x8xf32> to vector<256x8xf32>
    %230 = arith.addf %227, %229 : vector<256x8xf32>
    %231 = arith.addf %230, %1 : vector<256x8xf32>
    %cst_95 = arith.constant 0.000000e+00 : f32
    %232 = vector.broadcast %cst_95 : f32 to vector<256x8xf32>
    %233 = arith.maximumf %231, %232 : vector<256x8xf32>
    %c0_96 = arith.constant 0 : index
    %c0_97 = arith.constant 0 : index
    %c0_98 = arith.constant 0 : index
    %234 = vector.load %arg8[%c0_96, %c0_97, %c0_98] : memref<1x256x8xf32, #tpu.memory_space<vmem>>, vector<1x256x8xf32>
    %235 = vector.shape_cast %234 : vector<1x256x8xf32> to vector<256x8xf32>
    %236 = vector.shape_cast %233 : vector<256x8xf32> to vector<1x256x8xf32>
    tpu.vector_store %arg8[%c0_96, %c0_97, %c0_98], %236 {strides = array<i32>} : memref<1x256x8xf32, #tpu.memory_space<vmem>>, vector<1x256x8xf32>,
    return
  }
  func.func @transform_0(%arg0: i32) -> (i32, i32, i32) {
    %c0_i32 = arith.constant 0 : i32
    %c0_i32_0 = arith.constant 0 : i32
    %c0_i32_1 = arith.constant 0 : i32
    return %arg0, %c0_i32, %c0_i32_0 : i32, i32, i32
  }
  func.func @transform_1(%arg0: i32) -> (i32, i32, i32) {
    %c0_i32 = arith.constant 0 : i32
    %c0_i32_0 = arith.constant 0 : i32
    %c0_i32_1 = arith.constant 0 : i32
    %c0_i32_2 = arith.constant 0 : i32
    return %c0_i32, %c0_i32_0, %c0_i32_1 : i32, i32, i32
  }
  func.func @transform_2(%arg0: i32) -> (i32, i32) {
    %c0_i32 = arith.constant 0 : i32
    %c0_i32_0 = arith.constant 0 : i32
    %c0_i32_1 = arith.constant 0 : i32
    return %c0_i32, %c0_i32_0 : i32, i32
  }
  func.func @transform_3(%arg0: i32) -> (i32, i32) {
    %c0_i32 = arith.constant 0 : i32
    %c0_i32_0 = arith.constant 0 : i32
    %c0_i32_1 = arith.constant 0 : i32
    return %c0_i32, %c0_i32_0 : i32, i32
  }
  func.func @transform_4(%arg0: i32) -> (i32, i32, i32) {
    %c0_i32 = arith.constant 0 : i32
    %c0_i32_0 = arith.constant 0 : i32
    %c0_i32_1 = arith.constant 0 : i32
    %c0_i32_2 = arith.constant 0 : i32
    return %c0_i32, %c0_i32_0, %c0_i32_1 : i32, i32, i32
  }
  func.func @transform_5(%arg0: i32) -> (i32, i32) {
    %c0_i32 = arith.constant 0 : i32
    %c0_i32_0 = arith.constant 0 : i32
    %c0_i32_1 = arith.constant 0 : i32
    return %c0_i32, %c0_i32_0 : i32, i32
  }
  func.func @transform_6(%arg0: i32) -> (i32, i32) {
    %c0_i32 = arith.constant 0 : i32
    %c0_i32_0 = arith.constant 0 : i32
    %c0_i32_1 = arith.constant 0 : i32
    return %c0_i32, %c0_i32_0 : i32, i32
  }
  func.func @transform_7(%arg0: i32) -> (i32, i32, i32) {
    %c0_i32 = arith.constant 0 : i32
    %c0_i32_0 = arith.constant 0 : i32
    %c0_i32_1 = arith.constant 0 : i32
    return %arg0, %c0_i32, %c0_i32_0 : i32, i32, i32
  }
}

</mosaic_0001>

<llo_original>
// kernel: tpu_custom_call.1
$region0: #{tpu_custom_call.1}
  #allocation0 [shape = 'u32[]', space=smem, size = 0x4, offset = 0x4, fixed_abs, tag = 'smem constant byte address 0x4 - core index']
  #allocation1 [shape = 'u32[144,128]{1,0:T(1,128)}', space=vmem, size = 0x12000, scoped, tag = 'internal scratch']
  %s0 = inlined_call_operand.vmem [shape: f32[2,256,8], index: 0, kind: input, shape index: {}]
  %s1 = inlined_call_operand.vmem [shape: f32[9,8,8], index: 1, kind: input, shape index: {}]
  %s2 = inlined_call_operand.vmem [shape: f32[1,8], index: 2, kind: input, shape index: {}]
  %s3 = inlined_call_operand.vmem [shape: f32[1,8], index: 3, kind: input, shape index: {}]
  %s4 = inlined_call_operand.vmem [shape: f32[9,8,8], index: 4, kind: input, shape index: {}]
  %s5 = inlined_call_operand.vmem [shape: f32[1,8], index: 5, kind: input, shape index: {}]
  %s6 = inlined_call_operand.vmem [shape: f32[1,8], index: 6, kind: input, shape index: {}]
  %s7 = inlined_call_operand.vmem [shape: f32[2,256,8], index: 7, kind: output, shape index: {}]
  %s8 = sld [smem:[#allocation0]]
  $region61: #{tpu_custom_call.1} parent=0
    _
  %s10 = ssub.s32 1, %s8
  %s11 = scalar_select 0, %s10, %s8
  loop: start=0, step=1, limit=4
  $region2: #{tpu_custom_call.1} parent=0 // loop_pre_header
    _
  $region3: #{tpu_custom_call.1} parent=0 // loop_header
    %s13 = sphi 0, %s17
    %p14 = scmp.ge.s32.totalorder %s13, 4
    %s23 = sphi 0, %s25
    %s26 = sphi 0, %s23
    %s27 = sphi 0, %s26
    %s43 = sphi 0, %s27
    %s47 = sphi 0, %s47
    %s49 = sphi 0, %s47
    %s50 = sphi 0, %s49
    %s64 = sphi 0, %s50
    %s68 = sphi 0, %s68
    %s70 = sphi 0, %s68
    %s71 = sphi 0, %s70
    %s85 = sphi 0, %s71
    %s89 = sphi 0, %s89
    %s91 = sphi 0, %s89
    %s92 = sphi 0, %s91
    %s106 = sphi 0, %s92
    %s110 = sphi 0, %s110
    %s112 = sphi 0, %s110
    %s113 = sphi 0, %s112
    %s127 = sphi 0, %s113
    %s131 = sphi 0, %s131
    %s133 = sphi 0, %s131
    %s134 = sphi 0, %s133
    %s148 = sphi 0, %s134
    %s152 = sphi 0, %s152
    %s154 = sphi 0, %s152
    %s155 = sphi 0, %s154
    %s169 = sphi 0, %s155
    %s175 = sphi 0, %s177
    %s178 = sphi 0, %s175
    %s179 = sphi 0, %s178
    %s195 = sphi 0, %s179
  $region4: #{tpu_custom_call.1} parent=0 // loop_header_branch
    %16 = sbr.rel (%p14) target = $region8
  $region5: #{tpu_custom_call.1} parent=0 // loop_body
    %s18 = ssub.s32 %s13, 1
    %s19 = ssub.s32 %s13, 2
    %s20 = sadd.s32 %s13, 1
    %s21 = ssub.s32 %s13, %s20
    %p22 = scmp.eq.s32.totalorder %s21, 0
    %s24 = sadd.s32 %s23, 1
    %s25 = scalar_select %p22, %s23, %s24
    %p28 = pneg %p22
    %p29 = scmp.eq.s32.totalorder %s13, 1
    %p30 = por %p28, %p29
    %p31 = scmp.ne.s32.totalorder %s23, %s26
    %p32 = scmp.eq.s32.totalorder %s13, 0
    %p33 = por %p31, %p32
    %p34 = scmp.ne.s32.totalorder %s23, %s26
    %p35 = scmp.eq.s32.totalorder %s18, 1
    %p36 = por %p34, %p35
    %p37 = scmp.ne.s32.totalorder %s26, %s27
    %p38 = scmp.eq.s32.totalorder %s18, 0
    %p39 = por %p37, %p38
    %p40 = scmp.ne.s32.totalorder %s26, %s27
    %p41 = scmp.eq.s32.totalorder %s19, 1
    %p42 = por %p40, %p41
    %p44 = scmp.ne.s32.totalorder %s27, %s43
    %p45 = scmp.eq.s32.totalorder %s19, 0
    %p46 = por %p44, %p45
    %s48 = sadd.s32 %s47, 1
    %p51 = scmp.eq.s32.totalorder %s13, 1
    %p52 = scmp.ne.s32.totalorder %s47, %s49
    %p53 = scmp.eq.s32.totalorder %s13, 0
    %p54 = por %p52, %p53
    %p55 = scmp.ne.s32.totalorder %s47, %s49
    %p56 = scmp.eq.s32.totalorder %s18, 1
    %p57 = por %p55, %p56
    %p58 = scmp.ne.s32.totalorder %s49, %s50
    %p59 = scmp.eq.s32.totalorder %s18, 0
    %p60 = por %p58, %p59
    %p61 = scmp.ne.s32.totalorder %s49, %s50
    %p62 = scmp.eq.s32.totalorder %s19, 1
    %p63 = por %p61, %p62
    %p65 = scmp.ne.s32.totalorder %s50, %s64
    %p66 = scmp.eq.s32.totalorder %s19, 0
    %p67 = por %p65, %p66
    %s69 = sadd.s32 %s68, 1
    %p72 = scmp.eq.s32.totalorder %s13, 1
    %p73 = scmp.ne.s32.totalorder %s68, %s70
    %p74 = scmp.eq.s32.totalorder %s13, 0
    %p75 = por %p73, %p74
    %p76 = scmp.ne.s32.totalorder %s68, %s70
    %p77 = scmp.eq.s32.totalorder %s18, 1
    %p78 = por %p76, %p77
    %p79 = scmp.ne.s32.totalorder %s70, %s71
    %p80 = scmp.eq.s32.totalorder %s18, 0
    %p81 = por %p79, %p80
    %p82 = scmp.ne.s32.totalorder %s70, %s71
    %p83 = scmp.eq.s32.totalorder %s19, 1
    %p84 = por %p82, %p83
    %p86 = scmp.ne.s32.totalorder %s71, %s85
    %p87 = scmp.eq.s32.totalorder %s19, 0
    %p88 = por %p86, %p87
    %s90 = sadd.s32 %s89, 1
    %p93 = scmp.eq.s32.totalorder %s13, 1
    %p94 = scmp.ne.s32.totalorder %s89, %s91
    %p95 = scmp.eq.s32.totalorder %s13, 0
    %p96 = por %p94, %p95
    %p97 = scmp.ne.s32.totalorder %s89, %s91
    %p98 = scmp.eq.s32.totalorder %s18, 1
    %p99 = por %p97, %p98
    %p100 = scmp.ne.s32.totalorder %s91, %s92
    %p101 = scmp.eq.s32.totalorder %s18, 0
    %p102 = por %p100, %p101
    %p103 = scmp.ne.s32.totalorder %s91, %s92
    %p104 = scmp.eq.s32.totalorder %s19, 1
    %p105 = por %p103, %p104
    %p107 = scmp.ne.s32.totalorder %s92, %s106
    %p108 = scmp.eq.s32.totalorder %s19, 0
    %p109 = por %p107, %p108
    %s111 = sadd.s32 %s110, 1
    %p114 = scmp.eq.s32.totalorder %s13, 1
    %p115 = scmp.ne.s32.totalorder %s110, %s112
    %p116 = scmp.eq.s32.totalorder %s13, 0
    %p117 = por %p115, %p116
    %p118 = scmp.ne.s32.totalorder %s110, %s112
    %p119 = scmp.eq.s32.totalorder %s18, 1
    %p120 = por %p118, %p119
    %p121 = scmp.ne.s32.totalorder %s112, %s113
    %p122 = scmp.eq.s32.totalorder %s18, 0
    %p123 = por %p121, %p122
    %p124 = scmp.ne.s32.totalorder %s112, %s113
    %p125 = scmp.eq.s32.totalorder %s19, 1
    %p126 = por %p124, %p125
    %p128 = scmp.ne.s32.totalorder %s113, %s127
    %p129 = scmp.eq.s32.totalorder %s19, 0
    %p130 = por %p128, %p129
    %s132 = sadd.s32 %s131, 1
    %p135 = scmp.eq.s32.totalorder %s13, 1
    %p136 = scmp.ne.s32.totalorder %s131, %s133
    %p137 = scmp.eq.s32.totalorder %s13, 0
    %p138 = por %p136, %p137
    %p139 = scmp.ne.s32.totalorder %s131, %s133
    %p140 = scmp.eq.s32.totalorder %s18, 1
    %p141 = por %p139, %p140
    %p142 = scmp.ne.s32.totalorder %s133, %s134
    %p143 = scmp.eq.s32.totalorder %s18, 0
    %p144 = por %p142, %p143
    %p145 = scmp.ne.s32.totalorder %s133, %s134
    %p146 = scmp.eq.s32.totalorder %s19, 1
    %p147 = por %p145, %p146
    %p149 = scmp.ne.s32.totalorder %s134, %s148
    %p150 = scmp.eq.s32.totalorder %s19, 0
    %p151 = por %p149, %p150
    %s153 = sadd.s32 %s152, 1
    %p156 = scmp.eq.s32.totalorder %s13, 1
    %p157 = scmp.ne.s32.totalorder %s152, %s154
    %p158 = scmp.eq.s32.totalorder %s13, 0
    %p159 = por %p157, %p158
    %p160 = scmp.ne.s32.totalorder %s152, %s154
    %p161 = scmp.eq.s32.totalorder %s18, 1
    %p162 = por %p160, %p161
    %p163 = scmp.ne.s32.totalorder %s154, %s155
    %p164 = scmp.eq.s32.totalorder %s18, 0
    %p165 = por %p163, %p164
    %p166 = scmp.ne.s32.totalorder %s154, %s155
    %p167 = scmp.eq.s32.totalorder %s19, 1
    %p168 = por %p166, %p167
    %p170 = scmp.ne.s32.totalorder %s155, %s169
    %p171 = scmp.eq.s32.totalorder %s19, 0
    %p172 = por %p170, %p171
    %s173 = ssub.s32 %s13, %s20
    %p174 = scmp.eq.s32.totalorder %s173, 0
    %s176 = sadd.s32 %s175, 1
    %s177 = scalar_select %p174, %s175, %s176
    %p180 = pneg %p174
    %p181 = scmp.eq.s32.totalorder %s13, 1
    %p182 = por %p180, %p181
    %p183 = scmp.ne.s32.totalorder %s175, %s178
    %p184 = scmp.eq.s32.totalorder %s13, 0
    %p185 = por %p183, %p184
    %p186 = scmp.ne.s32.totalorder %s175, %s178
    %p187 = scmp.eq.s32.totalorder %s18, 1
    %p188 = por %p186, %p187
    %p189 = scmp.ne.s32.totalorder %s178, %s179
    %p190 = scmp.eq.s32.totalorder %s18, 0
    %p191 = por %p189, %p190
    %p192 = scmp.ne.s32.totalorder %s178, %s179
    %p193 = scmp.eq.s32.totalorder %s19, 1
    %p194 = por %p192, %p193
    %p196 = scmp.ne.s32.totalorder %s179, %s195
    %p197 = scmp.eq.s32.totalorder %s19, 0
    %p198 = por %p196, %p197
    %p199 = scmp.le.s32.totalorder 1, %s13
    %p200 = scmp.lt.s32.totalorder %s13, 3
    %p201 = pnand %p199, %p200
    %p202 = pneg %p201
    // Predicated region
    $region9: #{tpu_custom_call.1} parent=5 // pred_check
      _
    $region10: #{tpu_custom_call.1} parent=5 // pred_check_branch
      %204 = sbr.rel (%p201) target = $region12
    $region11: #{tpu_custom_call.1} parent=5 // pred_region
      %s205 = ssub.s32 %s13, 1
      // Predicated region
      $region13: #{tpu_custom_call.1} parent=11 // pred_check
        %p206 = pneg %p60
      $region14: #{tpu_custom_call.1} parent=11 // pred_check_branch
        %208 = sbr.rel (%p206) target = $region16
      $region15: #{tpu_custom_call.1} parent=11 // pred_region
        _
      $region16: #{tpu_custom_call.1} parent=11 // pred_fallthru
        _
      // Predicated region
      $region17: #{tpu_custom_call.1} parent=11 // pred_check
        %p209 = pneg %p81
      $region18: #{tpu_custom_call.1} parent=11 // pred_check_branch
        %211 = sbr.rel (%p209) target = $region20
      $region19: #{tpu_custom_call.1} parent=11 // pred_region
        _
      $region20: #{tpu_custom_call.1} parent=11 // pred_fallthru
        _
      // Predicated region
      $region21: #{tpu_custom_call.1} parent=11 // pred_check
        %p212 = pneg %p102
      $region22: #{tpu_custom_call.1} parent=11 // pred_check_branch
        %214 = sbr.rel (%p212) target = $region24
      $region23: #{tpu_custom_call.1} parent=11 // pred_region
        _
      $region24: #{tpu_custom_call.1} parent=11 // pred_fallthru
        _
      // Predicated region
      $region25: #{tpu_custom_call.1} parent=11 // pred_check
        %p215 = pneg %p123
      $region26: #{tpu_custom_call.1} parent=11 // pred_check_branch
        %217 = sbr.rel (%p215) target = $region28
      $region27: #{tpu_custom_call.1} parent=11 // pred_region
        _
      $region28: #{tpu_custom_call.1} parent=11 // pred_fallthru
        _
      // Predicated region
      $region29: #{tpu_custom_call.1} parent=11 // pred_check
        %p218 = pneg %p144
      $region30: #{tpu_custom_call.1} parent=11 // pred_check_branch
        %220 = sbr.rel (%p218) target = $region32
      $region31: #{tpu_custom_call.1} parent=11 // pred_region
        _
      $region32: #{tpu_custom_call.1} parent=11 // pred_fallthru
        _
      // Predicated region
      $region33: #{tpu_custom_call.1} parent=11 // pred_check
        %p221 = pneg %p165
      $region34: #{tpu_custom_call.1} parent=11 // pred_check_branch
        %223 = sbr.rel (%p221) target = $region36
      $region35: #{tpu_custom_call.1} parent=11 // pred_region
        _
      $region36: #{tpu_custom_call.1} parent=11 // pred_fallthru
        _
    $region12: #{tpu_custom_call.1} parent=5 // pred_fallthru
      _
    %p224 = scmp.lt.s32.totalorder %s13, 2
    // Predicated region
    $region37: #{tpu_custom_call.1} parent=5 // pred_check
      %p225 = pneg %p224
    $region38: #{tpu_custom_call.1} parent=5 // pred_check_branch
      %227 = sbr.rel (%p225) target = $region40
    $region39: #{tpu_custom_call.1} parent=5 // pred_region
      // Predicated region
      $region41: #{tpu_custom_call.1} parent=39 // pred_check
        %p228 = pneg %p33
      $region42: #{tpu_custom_call.1} parent=39 // pred_check_branch
        %230 = sbr.rel (%p228) target = $region44
      $region43: #{tpu_custom_call.1} parent=39 // pred_region
        %p231 = scmp.lt.s32.totalorder %s13, 1
        %s232 = scalar_select %p231, %s13, 1
        %s233 = smul.addr %s232, 32
        %s234 = smul.addr %s233, 8
        %s235 = scalar_lea.vmem %s0, %s234
      $region44: #{tpu_custom_call.1} parent=39 // pred_fallthru
        _
    $region40: #{tpu_custom_call.1} parent=5 // pred_fallthru
      _
    %p236 = scmp.le.s32.totalorder 1, %s13
    %p237 = scmp.lt.s32.totalorder %s13, 3
    %p238 = pnand %p236, %p237
    %p239 = pneg %p238
    // Predicated region
    $region45: #{tpu_custom_call.1} parent=5 // pred_check
      _
    $region46: #{tpu_custom_call.1} parent=5 // pred_check_branch
      %241 = sbr.rel (%p238) target = $region48
    $region47: #{tpu_custom_call.1} parent=5 // pred_region
      %s242 = ssub.s32 %s13, 1
      %p243 = scmp.lt.s32.totalorder %s18, 1
      %s244 = scalar_select %p243, %s18, 1
      %s245 = smul.addr %s244, 32
      %s246 = smul.addr %s245, 8
      %s247 = scalar_lea.vmem %s0, %s246
      %p248 = pneg %p39
      %p249 = pneg %p36
      %p250 = pneg %p60
      %p251 = pneg %p57
      %p252 = pneg %p81
      %p253 = pneg %p78
      %p254 = pneg %p102
      %p255 = pneg %p99
      %p256 = pneg %p123
      %p257 = pneg %p120
      %p258 = pneg %p144
      %p259 = pneg %p141
      %p260 = pneg %p165
      %p261 = pneg %p162
      %p262 = pneg %p191
      %p263 = pneg %p188
      %p264 = scmp.lt.s32.totalorder %s18, 1
      %s265 = scalar_select %p264, %s18, 1
      %s266 = smul.addr %s265, 32
      %s267 = smul.addr %s266, 8
      %s268 = scalar_lea.vmem %s7, %s267
      %p269 = scmp.lt.s32.totalorder %s18, 1
      %s270 = scalar_select %p269, %s18, 1
      %s271 = smul.addr %s270, 32
      %s272 = smul.addr %s271, 8
      %s273 = scalar_lea.vmem %s0, %s272
      %p274 = scmp.lt.s32.totalorder %s18, 1
      %s275 = scalar_select %p274, %s18, 1
      %s276 = smul.addr %s275, 32
      %s277 = smul.addr %s276, 8
      %s278 = scalar_lea.vmem %s7, %s277
      %v279 = vld [vmem:[%s273] sm:$0xff]
      %v280 = vld [vmem:[%s273 + $0x8] sm:$0xff]
      %v281 = vld [vmem:[%s273 + $0x10] sm:$0xff]
      %v282 = vld [vmem:[%s273 + $0x18] sm:$0xff]
      %v283 = vld [vmem:[%s273 + $0x20] sm:$0xff]
      %v284 = vld [vmem:[%s273 + $0x28] sm:$0xff]
      %v285 = vld [vmem:[%s273 + $0x30] sm:$0xff]
      %v286 = vld [vmem:[%s273 + $0x38] sm:$0xff]
      %v287 = vld [vmem:[%s273 + $0x40] sm:$0xff]
      %v288 = vld [vmem:[%s273 + $0x48] sm:$0xff]
      %v289 = vld [vmem:[%s273 + $0x50] sm:$0xff]
      %v290 = vld [vmem:[%s273 + $0x58] sm:$0xff]
      %v291 = vld [vmem:[%s273 + $0x60] sm:$0xff]
      %v292 = vld [vmem:[%s273 + $0x68] sm:$0xff]
      %v293 = vld [vmem:[%s273 + $0x70] sm:$0xff]
      %v294 = vld [vmem:[%s273 + $0x78] sm:$0xff]
      %v295 = vld [vmem:[%s273 + $0x80] sm:$0xff]
      %v296 = vld [vmem:[%s273 + $0x88] sm:$0xff]
      %v297 = vld [vmem:[%s273 + $0x90] sm:$0xff]
      %v298 = vld [vmem:[%s273 + $0x98] sm:$0xff]
      %v299 = vld [vmem:[%s273 + $0xa0] sm:$0xff]
      %v300 = vld [vmem:[%s273 + $0xa8] sm:$0xff]
      %v301 = vld [vmem:[%s273 + $0xb0] sm:$0xff]
      %v302 = vld [vmem:[%s273 + $0xb8] sm:$0xff]
      %v303 = vld [vmem:[%s273 + $0xc0] sm:$0xff]
      %v304 = vld [vmem:[%s273 + $0xc8] sm:$0xff]
      %v305 = vld [vmem:[%s273 + $0xd0] sm:$0xff]
      %v306 = vld [vmem:[%s273 + $0xd8] sm:$0xff]
      %v307 = vld [vmem:[%s273 + $0xe0] sm:$0xff]
      %v308 = vld [vmem:[%s273 + $0xe8] sm:$0xff]
      %v309 = vld [vmem:[%s273 + $0xf0] sm:$0xff]
      %v310 = vld [vmem:[%s273 + $0xf8] sm:$0xff]
      %v311 = vlaneseq
      %v312 = vshrl.u32 %v311, 7
      %v313 = vadd.s32 %v312, 8
      %v314 = vadd.s32 %v312, 16
      %v315 = vadd.s32 %v312, 24
      %v316 = vadd.s32 %v312, 32
      %v317 = vadd.s32 %v312, 40
      %v318 = vadd.s32 %v312, 48
      %v319 = vadd.s32 %v312, 56
      %v320 = vadd.s32 %v312, 64
      %v321 = vadd.s32 %v312, 72
      %v322 = vadd.s32 %v312, 80
      %v323 = vadd.s32 %v312, 88
      %v324 = vadd.s32 %v312, 96
      %v325 = vadd.s32 %v312, 104
      %v326 = vadd.s32 %v312, 112
      %v327 = vadd.s32 %v312, 120
      %v328 = vadd.s32 %v312, 128
      %v329 = vadd.s32 %v312, 136
      %v330 = vadd.s32 %v312, 144
      %v331 = vadd.s32 %v312, 152
      %v332 = vadd.s32 %v312, 160
      %v333 = vadd.s32 %v312, 168
      %v334 = vadd.s32 %v312, 176
      %v335 = vadd.s32 %v312, 184
      %v336 = vadd.s32 %v312, 192
      %v337 = vadd.s32 %v312, 200
      %v338 = vadd.s32 %v312, 208
      %v339 = vadd.s32 %v312, 216
      %v340 = vadd.s32 %v312, 224
      %v341 = vadd.s32 %v312, 232
      %v342 = vadd.s32 %v312, 240
      %v343 = vadd.s32 %v312, 248
      %vm344 = vcmp.lt.s32.totalorder %v312, 0
      %v345 = vsub.s32 0, %v312
      %v346 = vsel %vm344, %v345, %v312
      %v347 = vshrl.u32 %v346, 4
      %v348 = vand.u32 %v346, 15
      %v349 = vsub.s32 0, %v348
      %v350 = vsel %vm344, %v349, %v348
      %vm351 = vcmp.lt.s32.totalorder %v313, 0
      %v352 = vsub.s32 0, %v313
      %v353 = vsel %vm351, %v352, %v313
      %v354 = vshrl.u32 %v353, 4
      %v355 = vand.u32 %v353, 15
      %v356 = vsub.s32 0, %v355
      %v357 = vsel %vm351, %v356, %v355
      %vm358 = vcmp.lt.s32.totalorder %v314, 0
      %v359 = vsub.s32 0, %v314
      %v360 = vsel %vm358, %v359, %v314
      %v361 = vshrl.u32 %v360, 4
      %v362 = vand.u32 %v360, 15
      %v363 = vsub.s32 0, %v362
      %v364 = vsel %vm358, %v363, %v362
      %vm365 = vcmp.lt.s32.totalorder %v315, 0
      %v366 = vsub.s32 0, %v315
      %v367 = vsel %vm365, %v366, %v315
      %v368 = vshrl.u32 %v367, 4
      %v369 = vand.u32 %v367, 15
      %v370 = vsub.s32 0, %v369
      %v371 = vsel %vm365, %v370, %v369
      %vm372 = vcmp.lt.s32.totalorder %v316, 0
      %v373 = vsub.s32 0, %v316
      %v374 = vsel %vm372, %v373, %v316
      %v375 = vshrl.u32 %v374, 4
      %v376 = vand.u32 %v374, 15
      %v377 = vsub.s32 0, %v376
      %v378 = vsel %vm372, %v377, %v376
      %vm379 = vcmp.lt.s32.totalorder %v317, 0
      %v380 = vsub.s32 0, %v317
      %v381 = vsel %vm379, %v380, %v317
      %v382 = vshrl.u32 %v381, 4
      %v383 = vand.u32 %v381, 15
      %v384 = vsub.s32 0, %v383
      %v385 = vsel %vm379, %v384, %v383
      %vm386 = vcmp.lt.s32.totalorder %v318, 0
      %v387 = vsub.s32 0, %v318
      %v388 = vsel %vm386, %v387, %v318
      %v389 = vshrl.u32 %v388, 4
      %v390 = vand.u32 %v388, 15
      %v391 = vsub.s32 0, %v390
      %v392 = vsel %vm386, %v391, %v390
      %vm393 = vcmp.lt.s32.totalorder %v319, 0
      %v394 = vsub.s32 0, %v319
      %v395 = vsel %vm393, %v394, %v319
      %v396 = vshrl.u32 %v395, 4
      %v397 = vand.u32 %v395, 15
      %v398 = vsub.s32 0, %v397
      %v399 = vsel %vm393, %v398, %v397
      %vm400 = vcmp.lt.s32.totalorder %v320, 0
      %v401 = vsub.s32 0, %v320
      %v402 = vsel %vm400, %v401, %v320
      %v403 = vshrl.u32 %v402, 4
      %v404 = vand.u32 %v402, 15
      %v405 = vsub.s32 0, %v404
      %v406 = vsel %vm400, %v405, %v404
      %vm407 = vcmp.lt.s32.totalorder %v321, 0
      %v408 = vsub.s32 0, %v321
      %v409 = vsel %vm407, %v408, %v321
      %v410 = vshrl.u32 %v409, 4
      %v411 = vand.u32 %v409, 15
      %v412 = vsub.s32 0, %v411
      %v413 = vsel %vm407, %v412, %v411
      %vm414 = vcmp.lt.s32.totalorder %v322, 0
      %v415 = vsub.s32 0, %v322
      %v416 = vsel %vm414, %v415, %v322
      %v417 = vshrl.u32 %v416, 4
      %v418 = vand.u32 %v416, 15
      %v419 = vsub.s32 0, %v418
      %v420 = vsel %vm414, %v419, %v418
      %vm421 = vcmp.lt.s32.totalorder %v323, 0
      %v422 = vsub.s32 0, %v323
      %v423 = vsel %vm421, %v422, %v323
      %v424 = vshrl.u32 %v423, 4
      %v425 = vand.u32 %v423, 15
      %v426 = vsub.s32 0, %v425
      %v427 = vsel %vm421, %v426, %v425
      %vm428 = vcmp.lt.s32.totalorder %v324, 0
      %v429 = vsub.s32 0, %v324
      %v430 = vsel %vm428, %v429, %v324
      %v431 = vshrl.u32 %v430, 4
      %v432 = vand.u32 %v430, 15
      %v433 = vsub.s32 0, %v432
      %v434 = vsel %vm428, %v433, %v432
      %vm435 = vcmp.lt.s32.totalorder %v325, 0
      %v436 = vsub.s32 0, %v325
      %v437 = vsel %vm435, %v436, %v325
      %v438 = vshrl.u32 %v437, 4
      %v439 = vand.u32 %v437, 15
      %v440 = vsub.s32 0, %v439
      %v441 = vsel %vm435, %v440, %v439
      %vm442 = vcmp.lt.s32.totalorder %v326, 0
      %v443 = vsub.s32 0, %v326
      %v444 = vsel %vm442, %v443, %v326
      %v445 = vshrl.u32 %v444, 4
      %v446 = vand.u32 %v444, 15
      %v447 = vsub.s32 0, %v446
      %v448 = vsel %vm442, %v447, %v446
      %vm449 = vcmp.lt.s32.totalorder %v327, 0
      %v450 = vsub.s32 0, %v327
      %v451 = vsel %vm449, %v450, %v327
      %v452 = vshrl.u32 %v451, 4
      %v453 = vand.u32 %v451, 15
      %v454 = vsub.s32 0, %v453
      %v455 = vsel %vm449, %v454, %v453
      %vm456 = vcmp.lt.s32.totalorder %v328, 0
      %v457 = vsub.s32 0, %v328
      %v458 = vsel %vm456, %v457, %v328
      %v459 = vshrl.u32 %v458, 4
      %v460 = vand.u32 %v458, 15
      %v461 = vsub.s32 0, %v460
      %v462 = vsel %vm456, %v461, %v460
      %vm463 = vcmp.lt.s32.totalorder %v329, 0
      %v464 = vsub.s32 0, %v329
      %v465 = vsel %vm463, %v464, %v329
      %v466 = vshrl.u32 %v465, 4
      %v467 = vand.u32 %v465, 15
      %v468 = vsub.s32 0, %v467
      %v469 = vsel %vm463, %v468, %v467
      %vm470 = vcmp.lt.s32.totalorder %v330, 0
      %v471 = vsub.s32 0, %v330
      %v472 = vsel %vm470, %v471, %v330
      %v473 = vshrl.u32 %v472, 4
      %v474 = vand.u32 %v472, 15
      %v475 = vsub.s32 0, %v474
      %v476 = vsel %vm470, %v475, %v474
      %vm477 = vcmp.lt.s32.totalorder %v331, 0
      %v478 = vsub.s32 0, %v331
      %v479 = vsel %vm477, %v478, %v331
      %v480 = vshrl.u32 %v479, 4
      %v481 = vand.u32 %v479, 15
      %v482 = vsub.s32 0, %v481
      %v483 = vsel %vm477, %v482, %v481
      %vm484 = vcmp.lt.s32.totalorder %v332, 0
      %v485 = vsub.s32 0, %v332
      %v486 = vsel %vm484, %v485, %v332
      %v487 = vshrl.u32 %v486, 4
      %v488 = vand.u32 %v486, 15
      %v489 = vsub.s32 0, %v488
      %v490 = vsel %vm484, %v489, %v488
      %vm491 = vcmp.lt.s32.totalorder %v333, 0
      %v492 = vsub.s32 0, %v333
      %v493 = vsel %vm491, %v492, %v333
      %v494 = vshrl.u32 %v493, 4
      %v495 = vand.u32 %v493, 15
      %v496 = vsub.s32 0, %v495
      %v497 = vsel %vm491, %v496, %v495
      %vm498 = vcmp.lt.s32.totalorder %v334, 0
      %v499 = vsub.s32 0, %v334
      %v500 = vsel %vm498, %v499, %v334
      %v501 = vshrl.u32 %v500, 4
      %v502 = vand.u32 %v500, 15
      %v503 = vsub.s32 0, %v502
      %v504 = vsel %vm498, %v503, %v502
      %vm505 = vcmp.lt.s32.totalorder %v335, 0
      %v506 = vsub.s32 0, %v335
      %v507 = vsel %vm505, %v506, %v335
      %v508 = vshrl.u32 %v507, 4
      %v509 = vand.u32 %v507, 15
      %v510 = vsub.s32 0, %v509
      %v511 = vsel %vm505, %v510, %v509
      %vm512 = vcmp.lt.s32.totalorder %v336, 0
      %v513 = vsub.s32 0, %v336
      %v514 = vsel %vm512, %v513, %v336
      %v515 = vshrl.u32 %v514, 4
      %v516 = vand.u32 %v514, 15
      %v517 = vsub.s32 0, %v516
      %v518 = vsel %vm512, %v517, %v516
      %vm519 = vcmp.lt.s32.totalorder %v337, 0
      %v520 = vsub.s32 0, %v337
      %v521 = vsel %vm519, %v520, %v337
      %v522 = vshrl.u32 %v521, 4
      %v523 = vand.u32 %v521, 15
      %v524 = vsub.s32 0, %v523
      %v525 = vsel %vm519, %v524, %v523
      %vm526 = vcmp.lt.s32.totalorder %v338, 0
      %v527 = vsub.s32 0, %v338
      %v528 = vsel %vm526, %v527, %v338
      %v529 = vshrl.u32 %v528, 4
      %v530 = vand.u32 %v528, 15
      %v531 = vsub.s32 0, %v530
      %v532 = vsel %vm526, %v531, %v530
      %vm533 = vcmp.lt.s32.totalorder %v339, 0
      %v534 = vsub.s32 0, %v339
      %v535 = vsel %vm533, %v534, %v339
      %v536 = vshrl.u32 %v535, 4
      %v537 = vand.u32 %v535, 15
      %v538 = vsub.s32 0, %v537
      %v539 = vsel %vm533, %v538, %v537
      %vm540 = vcmp.lt.s32.totalorder %v340, 0
      %v541 = vsub.s32 0, %v340
      %v542 = vsel %vm540, %v541, %v340
      %v543 = vshrl.u32 %v542, 4
      %v544 = vand.u32 %v542, 15
      %v545 = vsub.s32 0, %v544
      %v546 = vsel %vm540, %v545, %v544
      %vm547 = vcmp.lt.s32.totalorder %v341, 0
      %v548 = vsub.s32 0, %v341
      %v549 = vsel %vm547, %v548, %v341
      %v550 = vshrl.u32 %v549, 4
      %v551 = vand.u32 %v549, 15
      %v552 = vsub.s32 0, %v551
      %v553 = vsel %vm547, %v552, %v551
      %vm554 = vcmp.lt.s32.totalorder %v342, 0
      %v555 = vsub.s32 0, %v342
      %v556 = vsel %vm554, %v555, %v342
      %v557 = vshrl.u32 %v556, 4
      %v558 = vand.u32 %v556, 15
      %v559 = vsub.s32 0, %v558
      %v560 = vsel %vm554, %v559, %v558
      %vm561 = vcmp.lt.s32.totalorder %v343, 0
      %v562 = vsub.s32 0, %v343
      %v563 = vsel %vm561, %v562, %v343
      %v564 = vshrl.u32 %v563, 4
      %v565 = vand.u32 %v563, 15
      %v566 = vsub.s32 0, %v565
      %v567 = vsel %vm561, %v566, %v565
      %vm568 = vcmp.ne.s32.totalorder %v350, 0
      %vm569 = vcmp.ne.s32.totalorder %v357, 0
      %vm570 = vcmp.ne.s32.totalorder %v364, 0
      %vm571 = vcmp.ne.s32.totalorder %v371, 0
      %vm572 = vcmp.ne.s32.totalorder %v378, 0
      %vm573 = vcmp.ne.s32.totalorder %v385, 0
      %vm574 = vcmp.ne.s32.totalorder %v392, 0
      %vm575 = vcmp.ne.s32.totalorder %v399, 0
      %vm576 = vcmp.ne.s32.totalorder %v406, 0
      %vm577 = vcmp.ne.s32.totalorder %v413, 0
      %vm578 = vcmp.ne.s32.totalorder %v420, 0
      %vm579 = vcmp.ne.s32.totalorder %v427, 0
      %vm580 = vcmp.ne.s32.totalorder %v434, 0
      %vm581 = vcmp.ne.s32.totalorder %v441, 0
      %vm582 = vcmp.ne.s32.totalorder %v448, 0
      %vm583 = vcmp.ne.s32.totalorder %v455, 0
      %vm584 = vcmp.ne.s32.totalorder %v462, 0
      %vm585 = vcmp.ne.s32.totalorder %v469, 0
      %vm586 = vcmp.ne.s32.totalorder %v476, 0
      %vm587 = vcmp.ne.s32.totalorder %v483, 0
      %vm588 = vcmp.ne.s32.totalorder %v490, 0
      %vm589 = vcmp.ne.s32.totalorder %v497, 0
      %vm590 = vcmp.ne.s32.totalorder %v504, 0
      %vm591 = vcmp.ne.s32.totalorder %v511, 0
      %vm592 = vcmp.ne.s32.totalorder %v518, 0
      %vm593 = vcmp.ne.s32.totalorder %v525, 0
      %vm594 = vcmp.ne.s32.totalorder %v532, 0
      %vm595 = vcmp.ne.s32.totalorder %v539, 0
      %vm596 = vcmp.ne.s32.totalorder %v546, 0
      %vm597 = vcmp.ne.s32.totalorder %v553, 0
      %vm598 = vcmp.ne.s32.totalorder %v560, 0
      %vm599 = vcmp.ne.s32.totalorder %v567, 0
      %vm600 = vcmp.lt.s32.totalorder %v350, 0
      %vm601 = vcmp.lt.s32.totalorder %v357, 0
      %vm602 = vcmp.lt.s32.totalorder %v364, 0
      %vm603 = vcmp.lt.s32.totalorder %v371, 0
      %vm604 = vcmp.lt.s32.totalorder %v378, 0
      %vm605 = vcmp.lt.s32.totalorder %v385, 0
      %vm606 = vcmp.lt.s32.totalorder %v392, 0
      %vm607 = vcmp.lt.s32.totalorder %v399, 0
      %vm608 = vcmp.lt.s32.totalorder %v406, 0
      %vm609 = vcmp.lt.s32.totalorder %v413, 0
      %vm610 = vcmp.lt.s32.totalorder %v420, 0
      %vm611 = vcmp.lt.s32.totalorder %v427, 0
      %vm612 = vcmp.lt.s32.totalorder %v434, 0
      %vm613 = vcmp.lt.s32.totalorder %v441, 0
      %vm614 = vcmp.lt.s32.totalorder %v448, 0
      %vm615 = vcmp.lt.s32.totalorder %v455, 0
      %vm616 = vcmp.lt.s32.totalorder %v462, 0
      %vm617 = vcmp.lt.s32.totalorder %v469, 0
      %vm618 = vcmp.lt.s32.totalorder %v476, 0
      %vm619 = vcmp.lt.s32.totalorder %v483, 0
      %vm620 = vcmp.lt.s32.totalorder %v490, 0
      %vm621 = vcmp.lt.s32.totalorder %v497, 0
      %vm622 = vcmp.lt.s32.totalorder %v504, 0
      %vm623 = vcmp.lt.s32.totalorder %v511, 0
      %vm624 = vcmp.lt.s32.totalorder %v518, 0
      %vm625 = vcmp.lt.s32.totalorder %v525, 0
      %vm626 = vcmp.lt.s32.totalorder %v532, 0
      %vm627 = vcmp.lt.s32.totalorder %v539, 0
      %vm628 = vcmp.lt.s32.totalorder %v546, 0
      %vm629 = vcmp.lt.s32.totalorder %v553, 0
      %vm630 = vcmp.lt.s32.totalorder %v560, 0
      %vm631 = vcmp.lt.s32.totalorder %v567, 0
      %vm632 = vmand %vm600, %vm568
      %vm633 = vmand %vm601, %vm569
      %vm634 = vmand %vm602, %vm570
      %vm635 = vmand %vm603, %vm571
      %vm636 = vmand %vm604, %vm572
      %vm637 = vmand %vm605, %vm573
      %vm638 = vmand %vm606, %vm574
      %vm639 = vmand %vm607, %vm575
      %vm640 = vmand %vm608, %vm576
      %vm641 = vmand %vm609, %vm577
      %vm642 = vmand %vm610, %vm578
      %vm643 = vmand %vm611, %vm579
      %vm644 = vmand %vm612, %vm580
      %vm645 = vmand %vm613, %vm581
      %vm646 = vmand %vm614, %vm582
      %vm647 = vmand %vm615, %vm583
      %vm648 = vmand %vm616, %vm584
      %vm649 = vmand %vm617, %vm585
      %vm650 = vmand %vm618, %vm586
      %vm651 = vmand %vm619, %vm587
      %vm652 = vmand %vm620, %vm588
      %vm653 = vmand %vm621, %vm589
      %vm654 = vmand %vm622, %vm590
      %vm655 = vmand %vm623, %vm591
      %vm656 = vmand %vm624, %vm592
      %vm657 = vmand %vm625, %vm593
      %vm658 = vmand %vm626, %vm594
      %vm659 = vmand %vm627, %vm595
      %vm660 = vmand %vm628, %vm596
      %vm661 = vmand %vm629, %vm597
      %vm662 = vmand %vm630, %vm598
      %vm663 = vmand %vm631, %vm599
      %v664 = vadd.s32 %v350, 16
      %v665 = vadd.s32 %v357, 16
      %v666 = vadd.s32 %v364, 16
      %v667 = vadd.s32 %v371, 16
      %v668 = vadd.s32 %v378, 16
      %v669 = vadd.s32 %v385, 16
      %v670 = vadd.s32 %v392, 16
      %v671 = vadd.s32 %v399, 16
      %v672 = vadd.s32 %v406, 16
      %v673 = vadd.s32 %v413, 16
      %v674 = vadd.s32 %v420, 16
      %v675 = vadd.s32 %v427, 16
      %v676 = vadd.s32 %v434, 16
      %v677 = vadd.s32 %v441, 16
      %v678 = vadd.s32 %v448, 16
      %v679 = vadd.s32 %v455, 16
      %v680 = vadd.s32 %v462, 16
      %v681 = vadd.s32 %v469, 16
      %v682 = vadd.s32 %v476, 16
      %v683 = vadd.s32 %v483, 16
      %v684 = vadd.s32 %v490, 16
      %v685 = vadd.s32 %v497, 16
      %v686 = vadd.s32 %v504, 16
      %v687 = vadd.s32 %v511, 16
      %v688 = vadd.s32 %v518, 16
      %v689 = vadd.s32 %v525, 16
      %v690 = vadd.s32 %v532, 16
      %v691 = vadd.s32 %v539, 16
      %v692 = vadd.s32 %v546, 16
      %v693 = vadd.s32 %v553, 16
      %v694 = vadd.s32 %v560, 16
      %v695 = vadd.s32 %v567, 16
      %v696 = vsel %vm632, %v664, %v350
      %v697 = vsel %vm633, %v665, %v357
      %v698 = vsel %vm634, %v666, %v364
      %v699 = vsel %vm635, %v667, %v371
      %v700 = vsel %vm636, %v668, %v378
      %v701 = vsel %vm637, %v669, %v385
      %v702 = vsel %vm638, %v670, %v392
      %v703 = vsel %vm639, %v671, %v399
      %v704 = vsel %vm640, %v672, %v406
      %v705 = vsel %vm641, %v673, %v413
      %v706 = vsel %vm642, %v674, %v420
      %v707 = vsel %vm643, %v675, %v427
      %v708 = vsel %vm644, %v676, %v434
      %v709 = vsel %vm645, %v677, %v441
      %v710 = vsel %vm646, %v678, %v448
      %v711 = vsel %vm647, %v679, %v455
      %v712 = vsel %vm648, %v680, %v462
      %v713 = vsel %vm649, %v681, %v469
      %v714 = vsel %vm650, %v682, %v476
      %v715 = vsel %vm651, %v683, %v483
      %v716 = vsel %vm652, %v684, %v490
      %v717 = vsel %vm653, %v685, %v497
      %v718 = vsel %vm654, %v686, %v504
      %v719 = vsel %vm655, %v687, %v511
      %v720 = vsel %vm656, %v688, %v518
      %v721 = vsel %vm657, %v689, %v525
      %v722 = vsel %vm658, %v690, %v532
      %v723 = vsel %vm659, %v691, %v539
      %v724 = vsel %vm660, %v692, %v546
      %v725 = vsel %vm661, %v693, %v553
      %v726 = vsel %vm662, %v694, %v560
      %v727 = vsel %vm663, %v695, %v567
      %vm728 = vcmp.ge.s32.totalorder %v312, 16
      %vm729 = vcmp.ge.s32.totalorder %v313, 16
      %vm730 = vcmp.ge.s32.totalorder %v314, 16
      %vm731 = vcmp.ge.s32.totalorder %v315, 16
      %vm732 = vcmp.ge.s32.totalorder %v316, 16
      %vm733 = vcmp.ge.s32.totalorder %v317, 16
      %vm734 = vcmp.ge.s32.totalorder %v318, 16
      %vm735 = vcmp.ge.s32.totalorder %v319, 16
      %vm736 = vcmp.ge.s32.totalorder %v320, 16
      %vm737 = vcmp.ge.s32.totalorder %v321, 16
      %vm738 = vcmp.ge.s32.totalorder %v322, 16
      %vm739 = vcmp.ge.s32.totalorder %v323, 16
      %vm740 = vcmp.ge.s32.totalorder %v324, 16
      %vm741 = vcmp.ge.s32.totalorder %v325, 16
      %vm742 = vcmp.ge.s32.totalorder %v326, 16
      %vm743 = vcmp.ge.s32.totalorder %v327, 16
      %vm744 = vcmp.ge.s32.totalorder %v328, 16
      %vm745 = vcmp.ge.s32.totalorder %v329, 16
      %vm746 = vcmp.ge.s32.totalorder %v330, 16
      %vm747 = vcmp.ge.s32.totalorder %v331, 16
      %vm748 = vcmp.ge.s32.totalorder %v332, 16
      %vm749 = vcmp.ge.s32.totalorder %v333, 16
      %vm750 = vcmp.ge.s32.totalorder %v334, 16
      %vm751 = vcmp.ge.s32.totalorder %v335, 16
      %vm752 = vcmp.ge.s32.totalorder %v336, 16
      %vm753 = vcmp.ge.s32.totalorder %v337, 16
      %vm754 = vcmp.ge.s32.totalorder %v338, 16
      %vm755 = vcmp.ge.s32.totalorder %v339, 16
      %vm756 = vcmp.ge.s32.totalorder %v340, 16
      %vm757 = vcmp.ge.s32.totalorder %v341, 16
      %vm758 = vcmp.ge.s32.totalorder %v342, 16
      %vm759 = vcmp.ge.s32.totalorder %v343, 16
      %vm760 = vcmp.lt.s32.totalorder %v312, 240
      %vm761 = vcmp.lt.s32.totalorder %v313, 240
      %vm762 = vcmp.lt.s32.totalorder %v314, 240
      %vm763 = vcmp.lt.s32.totalorder %v315, 240
      %vm764 = vcmp.lt.s32.totalorder %v316, 240
      %vm765 = vcmp.lt.s32.totalorder %v317, 240
      %vm766 = vcmp.lt.s32.totalorder %v318, 240
      %vm767 = vcmp.lt.s32.totalorder %v319, 240
      %vm768 = vcmp.lt.s32.totalorder %v320, 240
      %vm769 = vcmp.lt.s32.totalorder %v321, 240
      %vm770 = vcmp.lt.s32.totalorder %v322, 240
      %vm771 = vcmp.lt.s32.totalorder %v323, 240
      %vm772 = vcmp.lt.s32.totalorder %v324, 240
      %vm773 = vcmp.lt.s32.totalorder %v325, 240
      %vm774 = vcmp.lt.s32.totalorder %v326, 240
      %vm775 = vcmp.lt.s32.totalorder %v327, 240
      %vm776 = vcmp.lt.s32.totalorder %v328, 240
      %vm777 = vcmp.lt.s32.totalorder %v329, 240
      %vm778 = vcmp.lt.s32.totalorder %v330, 240
      %vm779 = vcmp.lt.s32.totalorder %v331, 240
      %vm780 = vcmp.lt.s32.totalorder %v332, 240
      %vm781 = vcmp.lt.s32.totalorder %v333, 240
      %vm782 = vcmp.lt.s32.totalorder %v334, 240
      %vm783 = vcmp.lt.s32.totalorder %v335, 240
      %vm784 = vcmp.lt.s32.totalorder %v336, 240
      %vm785 = vcmp.lt.s32.totalorder %v337, 240
      %vm786 = vcmp.lt.s32.totalorder %v338, 240
      %vm787 = vcmp.lt.s32.totalorder %v339, 240
      %vm788 = vcmp.lt.s32.totalorder %v340, 240
      %vm789 = vcmp.lt.s32.totalorder %v341, 240
      %vm790 = vcmp.lt.s32.totalorder %v342, 240
      %vm791 = vcmp.lt.s32.totalorder %v343, 240
      %vm792 = vcmp.ge.s32.totalorder %v696, 1
      %vm793 = vcmp.ge.s32.totalorder %v697, 1
      %vm794 = vcmp.ge.s32.totalorder %v698, 1
      %vm795 = vcmp.ge.s32.totalorder %v699, 1
      %vm796 = vcmp.ge.s32.totalorder %v700, 1
      %vm797 = vcmp.ge.s32.totalorder %v701, 1
      %vm798 = vcmp.ge.s32.totalorder %v702, 1
      %vm799 = vcmp.ge.s32.totalorder %v703, 1
      %vm800 = vcmp.ge.s32.totalorder %v704, 1
      %vm801 = vcmp.ge.s32.totalorder %v705, 1
      %vm802 = vcmp.ge.s32.totalorder %v706, 1
      %vm803 = vcmp.ge.s32.totalorder %v707, 1
      %vm804 = vcmp.ge.s32.totalorder %v708, 1
      %vm805 = vcmp.ge.s32.totalorder %v709, 1
      %vm806 = vcmp.ge.s32.totalorder %v710, 1
      %vm807 = vcmp.ge.s32.totalorder %v711, 1
      %vm808 = vcmp.ge.s32.totalorder %v712, 1
      %vm809 = vcmp.ge.s32.totalorder %v713, 1
      %vm810 = vcmp.ge.s32.totalorder %v714, 1
      %vm811 = vcmp.ge.s32.totalorder %v715, 1
      %vm812 = vcmp.ge.s32.totalorder %v716, 1
      %vm813 = vcmp.ge.s32.totalorder %v717, 1
      %vm814 = vcmp.ge.s32.totalorder %v718, 1
      %vm815 = vcmp.ge.s32.totalorder %v719, 1
      %vm816 = vcmp.ge.s32.totalorder %v720, 1
      %vm817 = vcmp.ge.s32.totalorder %v721, 1
      %vm818 = vcmp.ge.s32.totalorder %v722, 1
      %vm819 = vcmp.ge.s32.totalorder %v723, 1
      %vm820 = vcmp.ge.s32.totalorder %v724, 1
      %vm821 = vcmp.ge.s32.totalorder %v725, 1
      %vm822 = vcmp.ge.s32.totalorder %v726, 1
      %vm823 = vcmp.ge.s32.totalorder %v727, 1
      %vm824 = vcmp.lt.s32.totalorder %v696, 15
      %vm825 = vcmp.lt.s32.totalorder %v697, 15
      %vm826 = vcmp.lt.s32.totalorder %v698, 15
      %vm827 = vcmp.lt.s32.totalorder %v699, 15
      %vm828 = vcmp.lt.s32.totalorder %v700, 15
      %vm829 = vcmp.lt.s32.totalorder %v701, 15
      %vm830 = vcmp.lt.s32.totalorder %v702, 15
      %vm831 = vcmp.lt.s32.totalorder %v703, 15
      %vm832 = vcmp.lt.s32.totalorder %v704, 15
      %vm833 = vcmp.lt.s32.totalorder %v705, 15
      %vm834 = vcmp.lt.s32.totalorder %v706, 15
      %vm835 = vcmp.lt.s32.totalorder %v707, 15
      %vm836 = vcmp.lt.s32.totalorder %v708, 15
      %vm837 = vcmp.lt.s32.totalorder %v709, 15
      %vm838 = vcmp.lt.s32.totalorder %v710, 15
      %vm839 = vcmp.lt.s32.totalorder %v711, 15
      %vm840 = vcmp.lt.s32.totalorder %v712, 15
      %vm841 = vcmp.lt.s32.totalorder %v713, 15
      %vm842 = vcmp.lt.s32.totalorder %v714, 15
      %vm843 = vcmp.lt.s32.totalorder %v715, 15
      %vm844 = vcmp.lt.s32.totalorder %v716, 15
      %vm845 = vcmp.lt.s32.totalorder %v717, 15
      %vm846 = vcmp.lt.s32.totalorder %v718, 15
      %vm847 = vcmp.lt.s32.totalorder %v719, 15
      %vm848 = vcmp.lt.s32.totalorder %v720, 15
      %vm849 = vcmp.lt.s32.totalorder %v721, 15
      %vm850 = vcmp.lt.s32.totalorder %v722, 15
      %vm851 = vcmp.lt.s32.totalorder %v723, 15
      %vm852 = vcmp.lt.s32.totalorder %v724, 15
      %vm853 = vcmp.lt.s32.totalorder %v725, 15
      %vm854 = vcmp.lt.s32.totalorder %v726, 15
      %vm855 = vcmp.lt.s32.totalorder %v727, 15
      %s856 = scalar_lea.vmem %s1, 32
      %v857 = vld [vmem:[%s856] sm:$0xff]
      %v858 = vld [vmem:[%s1] sm:$0xff]
      %vm859 = vcmask 64512
      %v861 = vsel %vm859, %v279, 0
      %v864 = vsel %vm859, %v280, 0
      %v867 = vsel %vm859, %v281, 0
      %v870 = vsel %vm859, %v282, 0
      %v873 = vsel %vm859, %v283, 0
      %v876 = vsel %vm859, %v284, 0
      %v879 = vsel %vm859, %v285, 0
      %v882 = vsel %vm859, %v286, 0
      %v885 = vsel %vm859, %v287, 0
      %v888 = vsel %vm859, %v288, 0
      %v891 = vsel %vm859, %v289, 0
      %v894 = vsel %vm859, %v290, 0
      %v897 = vsel %vm859, %v291, 0
      %v900 = vsel %vm859, %v292, 0
      %v903 = vsel %vm859, %v293, 0
      %v906 = vsel %vm859, %v294, 0
      %v909 = vsel %vm859, %v295, 0
      %v912 = vsel %vm859, %v296, 0
      %v915 = vsel %vm859, %v297, 0
      %v918 = vsel %vm859, %v298, 0
      %v921 = vsel %vm859, %v299, 0
      %v924 = vsel %vm859, %v300, 0
      %v927 = vsel %vm859, %v301, 0
      %v930 = vsel %vm859, %v302, 0
      %v933 = vsel %vm859, %v303, 0
      %v936 = vsel %vm859, %v304, 0
      %v939 = vsel %vm859, %v305, 0
      %v942 = vsel %vm859, %v306, 0
      %v945 = vsel %vm859, %v307, 0
      %v948 = vsel %vm859, %v308, 0
      %v951 = vsel %vm859, %v309, 0
      %v954 = vsel %vm859, %v310, 0
      %956 = vmatprep.subr.mxu0 0.0
      %957 = vmatpush1.msra.mxu0 0.0
      %958 = vmatprep.subr.mxu0 0.0
      %959 = vmatpush1.msra.mxu0 0.0
      %960 = vmatprep.subr.mxu0 0.0
      %961 = vmatpush1.msra.mxu0 0.0
      %962 = vmatprep.subr.mxu0 0.0
      %963 = vmatpush1.msra.mxu0 0.0
      %964 = vmatprep.subr.mxu0 0.0
      %965 = vmatpush1.msra.mxu0 0.0
      %966 = vmatprep.subr.mxu0 0.0
      %967 = vmatpush1.msra.mxu0 0.0
      %968 = vmatprep.subr.mxu0 0.0
      %969 = vmatpush1.msra.mxu0 0.0
      %970 = vmatprep.subr.mxu0 0.0
      %971 = vmatpush1.msra.mxu0 0.0
      %972 = vmatprep.subr.mxu0 0.0
      %973 = vmatpush1.msra.mxu0 0.0
      %974 = vmatprep.subr.mxu0 0.0
      %975 = vmatpush1.msra.mxu0 0.0
      %976 = vmatprep.subr.mxu0 0.0
      %977 = vmatpush1.msra.mxu0 0.0
      %978 = vmatprep.subr.mxu0 0.0
      %979 = vmatpush1.msra.mxu0 0.0
      %980 = vmatprep.subr.mxu0 0.0
      %981 = vmatpush1.msra.mxu0 0.0
      %982 = vmatprep.subr.mxu0 0.0
      %983 = vmatpush1.msra.mxu0 0.0
      %984 = vmatprep.subr.mxu0 0.0
      %985 = vmatpush1.msra.mxu0 0.0
      %986 = vmatprep.subr.mxu0 0.0
      %987 = vmatpush1.msra.mxu0 %v858
      %988 = vmatprep.subr.mxu0 0.0
      %989 = vmatpush2.msra.mxu0 0.0
      %990 = vmatprep.subr.mxu0 0.0
      %991 = vmatpush2.msra.mxu0 0.0
      %992 = vmatprep.subr.mxu0 0.0
      %993 = vmatpush2.msra.mxu0 0.0
      %994 = vmatprep.subr.mxu0 0.0
      %995 = vmatpush2.msra.mxu0 0.0
      %996 = vmatprep.subr.mxu0 0.0
      %997 = vmatpush2.msra.mxu0 0.0
      %998 = vmatprep.subr.mxu0 0.0
      %999 = vmatpush2.msra.mxu0 0.0
      %1000 = vmatprep.subr.mxu0 0.0
      %1001 = vmatpush2.msra.mxu0 0.0
      %1002 = vmatprep.subr.mxu0 0.0
      %1003 = vmatpush2.msra.mxu0 0.0
      %1004 = vmatprep.subr.mxu0 0.0
      %1005 = vmatpush2.msra.mxu0 0.0
      %1006 = vmatprep.subr.mxu0 0.0
      %1007 = vmatpush2.msra.mxu0 0.0
      %1008 = vmatprep.subr.mxu0 0.0
      %1009 = vmatpush2.msra.mxu0 0.0
      %1010 = vmatprep.subr.mxu0 0.0
      %1011 = vmatpush2.msra.mxu0 0.0
      %1012 = vmatprep.subr.mxu0 0.0
      %1013 = vmatpush2.msra.mxu0 0.0
      %1014 = vmatprep.subr.mxu0 0.0
      %1015 = vmatpush2.msra.mxu0 0.0
      %1016 = vmatprep.subr.mxu0 0.0
      %1017 = vmatpush2.msra.mxu0 0.0
      %1018 = vmatprep.subr.mxu0 0.0
      %1019 = vmatpush2.msra.mxu0 0.0
      %1020 = vmatprep.mubr.f32.mxu0 0.0
      %1021 = vmatmul.mubr.f32.gmra.mxu0 %v861
      %v1022 = vpop.f32.mrf.mxu0
      %v1023 = vadd.f32 0.0, %v1022
      %v1024 = vpop.f32.mrf.mxu0
      %1025 = vmatprep.mubr.f32.mxu0 0.0
      %1026 = vmatmul.mubr.f32.gmra.mxu0 %v864
      %v1027 = vpop.f32.mrf.mxu0
      %v1028 = vadd.f32 0.0, %v1027
      %v1029 = vpop.f32.mrf.mxu0
      %1030 = vmatprep.mubr.f32.mxu0 0.0
      %1031 = vmatmul.mubr.f32.gmra.mxu0 %v867
      %v1032 = vpop.f32.mrf.mxu0
      %v1033 = vadd.f32 0.0, %v1032
      %v1034 = vpop.f32.mrf.mxu0
      %1035 = vmatprep.mubr.f32.mxu0 0.0
      %1036 = vmatmul.mubr.f32.gmra.mxu0 %v870
      %v1037 = vpop.f32.mrf.mxu0
      %v1038 = vadd.f32 0.0, %v1037
      %v1039 = vpop.f32.mrf.mxu0
      %1040 = vmatprep.mubr.f32.mxu0 0.0
      %1041 = vmatmul.mubr.f32.gmra.mxu0 %v873
      %v1042 = vpop.f32.mrf.mxu0
      %v1043 = vadd.f32 0.0, %v1042
      %v1044 = vpop.f32.mrf.mxu0
      %1045 = vmatprep.mubr.f32.mxu0 0.0
      %1046 = vmatmul.mubr.f32.gmra.mxu0 %v876
      %v1047 = vpop.f32.mrf.mxu0
      %v1048 = vadd.f32 0.0, %v1047
      %v1049 = vpop.f32.mrf.mxu0
      %1050 = vmatprep.mubr.f32.mxu0 0.0
      %1051 = vmatmul.mubr.f32.gmra.mxu0 %v879
      %v1052 = vpop.f32.mrf.mxu0
      %v1053 = vadd.f32 0.0, %v1052
      %v1054 = vpop.f32.mrf.mxu0
      %1055 = vmatprep.mubr.f32.mxu0 0.0
      %1056 = vmatmul.mubr.f32.gmra.mxu0 %v882
      %v1057 = vpop.f32.mrf.mxu0
      %v1058 = vadd.f32 0.0, %v1057
      %v1059 = vpop.f32.mrf.mxu0
      %1060 = vmatprep.mubr.f32.mxu0 0.0
      %1061 = vmatmul.mubr.f32.gmra.mxu0 %v885
      %v1062 = vpop.f32.mrf.mxu0
      %v1063 = vadd.f32 0.0, %v1062
      %v1064 = vpop.f32.mrf.mxu0
      %1065 = vmatprep.mubr.f32.mxu0 0.0
      %1066 = vmatmul.mubr.f32.gmra.mxu0 %v888
      %v1067 = vpop.f32.mrf.mxu0
      %v1068 = vadd.f32 0.0, %v1067
      %v1069 = vpop.f32.mrf.mxu0
      %1070 = vmatprep.mubr.f32.mxu0 0.0
      %1071 = vmatmul.mubr.f32.gmra.mxu0 %v891
      %v1072 = vpop.f32.mrf.mxu0
      %v1073 = vadd.f32 0.0, %v1072
      %v1074 = vpop.f32.mrf.mxu0
      %1075 = vmatprep.mubr.f32.mxu0 0.0
      %1076 = vmatmul.mubr.f32.gmra.mxu0 %v894
      %v1077 = vpop.f32.mrf.mxu0
      %v1078 = vadd.f32 0.0, %v1077
      %v1079 = vpop.f32.mrf.mxu0
      %1080 = vmatprep.mubr.f32.mxu0 0.0
      %1081 = vmatmul.mubr.f32.gmra.mxu0 %v897
      %v1082 = vpop.f32.mrf.mxu0
      %v1083 = vadd.f32 0.0, %v1082
      %v1084 = vpop.f32.mrf.mxu0
      %1085 = vmatprep.mubr.f32.mxu0 0.0
      %1086 = vmatmul.mubr.f32.gmra.mxu0 %v900
      %v1087 = vpop.f32.mrf.mxu0
      %v1088 = vadd.f32 0.0, %v1087
      %v1089 = vpop.f32.mrf.mxu0
      %1090 = vmatprep.mubr.f32.mxu0 0.0
      %1091 = vmatmul.mubr.f32.gmra.mxu0 %v903
      %v1092 = vpop.f32.mrf.mxu0
      %v1093 = vadd.f32 0.0, %v1092
      %v1094 = vpop.f32.mrf.mxu0
      %1095 = vmatprep.mubr.f32.mxu0 0.0
      %1096 = vmatmul.mubr.f32.gmra.mxu0 %v906
      %v1097 = vpop.f32.mrf.mxu0
      %v1098 = vadd.f32 0.0, %v1097
      %v1099 = vpop.f32.mrf.mxu0
      %1100 = vmatprep.mubr.f32.mxu0 0.0
      %1101 = vmatmul.mubr.f32.gmra.mxu0 %v909
      %v1102 = vpop.f32.mrf.mxu0
      %v1103 = vadd.f32 0.0, %v1102
      %v1104 = vpop.f32.mrf.mxu0
      %1105 = vmatprep.mubr.f32.mxu0 0.0
      %1106 = vmatmul.mubr.f32.gmra.mxu0 %v912
      %v1107 = vpop.f32.mrf.mxu0
      %v1108 = vadd.f32 0.0, %v1107
      %v1109 = vpop.f32.mrf.mxu0
      %1110 = vmatprep.mubr.f32.mxu0 0.0
      %1111 = vmatmul.mubr.f32.gmra.mxu0 %v915
      %v1112 = vpop.f32.mrf.mxu0
      %v1113 = vadd.f32 0.0, %v1112
      %v1114 = vpop.f32.mrf.mxu0
      %1115 = vmatprep.mubr.f32.mxu0 0.0
      %1116 = vmatmul.mubr.f32.gmra.mxu0 %v918
      %v1117 = vpop.f32.mrf.mxu0
      %v1118 = vadd.f32 0.0, %v1117
      %v1119 = vpop.f32.mrf.mxu0
      %1120 = vmatprep.mubr.f32.mxu0 0.0
      %1121 = vmatmul.mubr.f32.gmra.mxu0 %v921
      %v1122 = vpop.f32.mrf.mxu0
      %v1123 = vadd.f32 0.0, %v1122
      %v1124 = vpop.f32.mrf.mxu0
      %1125 = vmatprep.mubr.f32.mxu0 0.0
      %1126 = vmatmul.mubr.f32.gmra.mxu0 %v924
      %v1127 = vpop.f32.mrf.mxu0
      %v1128 = vadd.f32 0.0, %v1127
      %v1129 = vpop.f32.mrf.mxu0
      %1130 = vmatprep.mubr.f32.mxu0 0.0
      %1131 = vmatmul.mubr.f32.gmra.mxu0 %v927
      %v1132 = vpop.f32.mrf.mxu0
      %v1133 = vadd.f32 0.0, %v1132
      %v1134 = vpop.f32.mrf.mxu0
      %1135 = vmatprep.mubr.f32.mxu0 0.0
      %1136 = vmatmul.mubr.f32.gmra.mxu0 %v930
      %v1137 = vpop.f32.mrf.mxu0
      %v1138 = vadd.f32 0.0, %v1137
      %v1139 = vpop.f32.mrf.mxu0
      %1140 = vmatprep.mubr.f32.mxu0 0.0
      %1141 = vmatmul.mubr.f32.gmra.mxu0 %v933
      %v1142 = vpop.f32.mrf.mxu0
      %v1143 = vadd.f32 0.0, %v1142
      %v1144 = vpop.f32.mrf.mxu0
      %1145 = vmatprep.mubr.f32.mxu0 0.0
      %1146 = vmatmul.mubr.f32.gmra.mxu0 %v936
      %v1147 = vpop.f32.mrf.mxu0
      %v1148 = vadd.f32 0.0, %v1147
      %v1149 = vpop.f32.mrf.mxu0
      %1150 = vmatprep.mubr.f32.mxu0 0.0
      %1151 = vmatmul.mubr.f32.gmra.mxu0 %v939
      %v1152 = vpop.f32.mrf.mxu0
      %v1153 = vadd.f32 0.0, %v1152
      %v1154 = vpop.f32.mrf.mxu0
      %1155 = vmatprep.mubr.f32.mxu0 0.0
      %1156 = vmatmul.mubr.f32.gmra.mxu0 %v942
      %v1157 = vpop.f32.mrf.mxu0
      %v1158 = vadd.f32 0.0, %v1157
      %v1159 = vpop.f32.mrf.mxu0
      %1160 = vmatprep.mubr.f32.mxu0 0.0
      %1161 = vmatmul.mubr.f32.gmra.mxu0 %v945
      %v1162 = vpop.f32.mrf.mxu0
      %v1163 = vadd.f32 0.0, %v1162
      %v1164 = vpop.f32.mrf.mxu0
      %1165 = vmatprep.mubr.f32.mxu0 0.0
      %1166 = vmatmul.mubr.f32.gmra.mxu0 %v948
      %v1167 = vpop.f32.mrf.mxu0
      %v1168 = vadd.f32 0.0, %v1167
      %v1169 = vpop.f32.mrf.mxu0
      %1170 = vmatprep.mubr.f32.mxu0 0.0
      %1171 = vmatmul.mubr.f32.gmra.mxu0 %v951
      %v1172 = vpop.f32.mrf.mxu0
      %v1173 = vadd.f32 0.0, %v1172
      %v1174 = vpop.f32.mrf.mxu0
      %1175 = vmatprep.mubr.f32.mxu0 0.0
      %1176 = vmatmul.mubr.f32.gmra.mxu0 %v954
      %v1177 = vpop.f32.mrf.mxu0
      %v1178 = vadd.f32 0.0, %v1177
      %v1179 = vpop.f32.mrf.mxu0
      %1180 = vdwg.mxu0
      %vm1184 = vcmask 1040384
      %v1185 = vrot.slane %v1168, 7
      %v1186 = vrot.slane %v1173, 7
      %v1187 = vsel %vm1184, %v1185, %v1186
      %v1188 = vrot.slane %v1178, 7
      %v1189 = vsel %vm1184, %v1186, %v1188
      %v1222 = vrot.slane %v1023, 7
      %v1223 = vrot.slane %v1028, 7
      %v1224 = vsel %vm1184, %v1222, %v1223
      %v1225 = vrot.slane %v1033, 7
      %v1226 = vsel %vm1184, %v1223, %v1225
      %v1227 = vrot.slane %v1038, 7
      %v1228 = vsel %vm1184, %v1225, %v1227
      %v1229 = vrot.slane %v1043, 7
      %v1230 = vsel %vm1184, %v1227, %v1229
      %v1231 = vrot.slane %v1048, 7
      %v1232 = vsel %vm1184, %v1229, %v1231
      %v1233 = vrot.slane %v1053, 7
      %v1234 = vsel %vm1184, %v1231, %v1233
      %v1235 = vrot.slane %v1058, 7
      %v1236 = vsel %vm1184, %v1233, %v1235
      %v1237 = vrot.slane %v1063, 7
      %v1238 = vsel %vm1184, %v1235, %v1237
      %v1239 = vrot.slane %v1068, 7
      %v1240 = vsel %vm1184, %v1237, %v1239
      %v1241 = vrot.slane %v1073, 7
      %v1242 = vsel %vm1184, %v1239, %v1241
      %v1243 = vrot.slane %v1078, 7
      %v1244 = vsel %vm1184, %v1241, %v1243
      %v1245 = vrot.slane %v1083, 7
      %v1246 = vsel %vm1184, %v1243, %v1245
      %v1247 = vrot.slane %v1088, 7
      %v1248 = vsel %vm1184, %v1245, %v1247
      %v1249 = vrot.slane %v1093, 7
      %v1250 = vsel %vm1184, %v1247, %v1249
      %v1251 = vrot.slane %v1098, 7
      %v1252 = vsel %vm1184, %v1249, %v1251
      %v1253 = vrot.slane %v1103, 7
      %v1254 = vsel %vm1184, %v1251, %v1253
      %v1255 = vrot.slane %v1108, 7
      %v1256 = vsel %vm1184, %v1253, %v1255
      %v1257 = vrot.slane %v1113, 7
      %v1258 = vsel %vm1184, %v1255, %v1257
      %v1259 = vrot.slane %v1118, 7
      %v1260 = vsel %vm1184, %v1257, %v1259
      %v1261 = vrot.slane %v1123, 7
      %v1262 = vsel %vm1184, %v1259, %v1261
      %v1263 = vrot.slane %v1128, 7
      %v1264 = vsel %vm1184, %v1261, %v1263
      %v1265 = vrot.slane %v1133, 7
      %v1266 = vsel %vm1184, %v1263, %v1265
      %v1267 = vrot.slane %v1138, 7
      %v1268 = vsel %vm1184, %v1265, %v1267
      %v1269 = vrot.slane %v1143, 7
      %v1270 = vsel %vm1184, %v1267, %v1269
      %v1271 = vrot.slane %v1148, 7
      %v1272 = vsel %vm1184, %v1269, %v1271
      %v1273 = vrot.slane %v1153, 7
      %v1274 = vsel %vm1184, %v1271, %v1273
      %v1275 = vrot.slane %v1158, 7
      %v1276 = vsel %vm1184, %v1273, %v1275
      %v1277 = vrot.slane %v1163, 7
      %v1278 = vsel %vm1184, %v1275, %v1277
      %v1279 = vsel %vm1184, %v1277, %v1185
      %v1310 = vsel %vm1184, %v1188, %v1222
      %vm1311 = vmand %vm728, %vm792
      %vm1312 = vmand %vm729, %vm793
      %vm1313 = vmand %vm730, %vm794
      %vm1314 = vmand %vm731, %vm795
      %vm1315 = vmand %vm732, %vm796
      %vm1316 = vmand %vm733, %vm797
      %vm1317 = vmand %vm734, %vm798
      %vm1318 = vmand %vm735, %vm799
      %vm1319 = vmand %vm736, %vm800
      %vm1320 = vmand %vm737, %vm801
      %vm1321 = vmand %vm738, %vm802
      %vm1322 = vmand %vm739, %vm803
      %vm1323 = vmand %vm740, %vm804
      %vm1324 = vmand %vm741, %vm805
      %vm1325 = vmand %vm742, %vm806
      %vm1326 = vmand %vm743, %vm807
      %vm1327 = vmand %vm744, %vm808
      %vm1328 = vmand %vm745, %vm809
      %vm1329 = vmand %vm746, %vm810
      %vm1330 = vmand %vm747, %vm811
      %vm1331 = vmand %vm748, %vm812
      %vm1332 = vmand %vm749, %vm813
      %vm1333 = vmand %vm750, %vm814
      %vm1334 = vmand %vm751, %vm815
      %vm1335 = vmand %vm752, %vm816
      %vm1336 = vmand %vm753, %vm817
      %vm1337 = vmand %vm754, %vm818
      %vm1338 = vmand %vm755, %vm819
      %vm1339 = vmand %vm756, %vm820
      %vm1340 = vmand %vm757, %vm821
      %vm1341 = vmand %vm758, %vm822
      %vm1342 = vmand %vm759, %vm823
      %v1343 = vsel %vm1311, 1, 0
      %v1344 = vsel %vm1312, 1, 0
      %v1345 = vsel %vm1313, 1, 0
      %v1346 = vsel %vm1314, 1, 0
      %v1347 = vsel %vm1315, 1, 0
      %v1348 = vsel %vm1316, 1, 0
      %v1349 = vsel %vm1317, 1, 0
      %v1350 = vsel %vm1318, 1, 0
      %v1351 = vsel %vm1319, 1, 0
      %v1352 = vsel %vm1320, 1, 0
      %v1353 = vsel %vm1321, 1, 0
      %v1354 = vsel %vm1322, 1, 0
      %v1355 = vsel %vm1323, 1, 0
      %v1356 = vsel %vm1324, 1, 0
      %v1357 = vsel %vm1325, 1, 0
      %v1358 = vsel %vm1326, 1, 0
      %v1359 = vsel %vm1327, 1, 0
      %v1360 = vsel %vm1328, 1, 0
      %v1361 = vsel %vm1329, 1, 0
      %v1362 = vsel %vm1330, 1, 0
      %v1363 = vsel %vm1331, 1, 0
      %v1364 = vsel %vm1332, 1, 0
      %v1365 = vsel %vm1333, 1, 0
      %v1366 = vsel %vm1334, 1, 0
      %v1367 = vsel %vm1335, 1, 0
      %v1368 = vsel %vm1336, 1, 0
      %v1369 = vsel %vm1337, 1, 0
      %v1370 = vsel %vm1338, 1, 0
      %v1371 = vsel %vm1339, 1, 0
      %v1372 = vsel %vm1340, 1, 0
      %v1373 = vsel %vm1341, 1, 0
      %v1374 = vsel %vm1342, 1, 0
      %vm1375 = vcmp.eq.s32.totalorder %v1343, 1
      %vm1376 = vcmp.eq.s32.totalorder %v1344, 1
      %vm1377 = vcmp.eq.s32.totalorder %v1345, 1
      %vm1378 = vcmp.eq.s32.totalorder %v1346, 1
      %vm1379 = vcmp.eq.s32.totalorder %v1347, 1
      %vm1380 = vcmp.eq.s32.totalorder %v1348, 1
      %vm1381 = vcmp.eq.s32.totalorder %v1349, 1
      %vm1382 = vcmp.eq.s32.totalorder %v1350, 1
      %vm1383 = vcmp.eq.s32.totalorder %v1351, 1
      %vm1384 = vcmp.eq.s32.totalorder %v1352, 1
      %vm1385 = vcmp.eq.s32.totalorder %v1353, 1
      %vm1386 = vcmp.eq.s32.totalorder %v1354, 1
      %vm1387 = vcmp.eq.s32.totalorder %v1355, 1
      %vm1388 = vcmp.eq.s32.totalorder %v1356, 1
      %vm1389 = vcmp.eq.s32.totalorder %v1357, 1
      %vm1390 = vcmp.eq.s32.totalorder %v1358, 1
      %vm1391 = vcmp.eq.s32.totalorder %v1359, 1
      %vm1392 = vcmp.eq.s32.totalorder %v1360, 1
      %vm1393 = vcmp.eq.s32.totalorder %v1361, 1
      %vm1394 = vcmp.eq.s32.totalorder %v1362, 1
      %vm1395 = vcmp.eq.s32.totalorder %v1363, 1
      %vm1396 = vcmp.eq.s32.totalorder %v1364, 1
      %vm1397 = vcmp.eq.s32.totalorder %v1365, 1
      %vm1398 = vcmp.eq.s32.totalorder %v1366, 1
      %vm1399 = vcmp.eq.s32.totalorder %v1367, 1
      %vm1400 = vcmp.eq.s32.totalorder %v1368, 1
      %vm1401 = vcmp.eq.s32.totalorder %v1369, 1
      %vm1402 = vcmp.eq.s32.totalorder %v1370, 1
      %vm1403 = vcmp.eq.s32.totalorder %v1371, 1
      %vm1404 = vcmp.eq.s32.totalorder %v1372, 1
      %vm1405 = vcmp.eq.s32.totalorder %v1373, 1
      %vm1406 = vcmp.eq.s32.totalorder %v1374, 1
      %v1407 = vsel %vm1375, %v1187, 0.0
      %v1408 = vsel %vm1376, %v1189, 0.0
      %v1409 = vsel %vm1377, %v1310, 0.0
      %v1410 = vsel %vm1378, %v1224, 0.0
      %v1411 = vsel %vm1379, %v1226, 0.0
      %v1412 = vsel %vm1380, %v1228, 0.0
      %v1413 = vsel %vm1381, %v1230, 0.0
      %v1414 = vsel %vm1382, %v1232, 0.0
      %v1415 = vsel %vm1383, %v1234, 0.0
      %v1416 = vsel %vm1384, %v1236, 0.0
      %v1417 = vsel %vm1385, %v1238, 0.0
      %v1418 = vsel %vm1386, %v1240, 0.0
      %v1419 = vsel %vm1387, %v1242, 0.0
      %v1420 = vsel %vm1388, %v1244, 0.0
      %v1421 = vsel %vm1389, %v1246, 0.0
      %v1422 = vsel %vm1390, %v1248, 0.0
      %v1423 = vsel %vm1391, %v1250, 0.0
      %v1424 = vsel %vm1392, %v1252, 0.0
      %v1425 = vsel %vm1393, %v1254, 0.0
      %v1426 = vsel %vm1394, %v1256, 0.0
      %v1427 = vsel %vm1395, %v1258, 0.0
      %v1428 = vsel %vm1396, %v1260, 0.0
      %v1429 = vsel %vm1397, %v1262, 0.0
      %v1430 = vsel %vm1398, %v1264, 0.0
      %v1431 = vsel %vm1399, %v1266, 0.0
      %v1432 = vsel %vm1400, %v1268, 0.0
      %v1433 = vsel %vm1401, %v1270, 0.0
      %v1434 = vsel %vm1402, %v1272, 0.0
      %v1435 = vsel %vm1403, %v1274, 0.0
      %v1436 = vsel %vm1404, %v1276, 0.0
      %v1437 = vsel %vm1405, %v1278, 0.0
      %v1438 = vsel %vm1406, %v1279, 0.0
      %1439 = vmatprep.subr.mxu0 0.0
      %1440 = vmatpush1.msra.mxu0 0.0
      %1441 = vmatprep.subr.mxu0 0.0
      %1442 = vmatpush1.msra.mxu0 0.0
      %1443 = vmatprep.subr.mxu0 0.0
      %1444 = vmatpush1.msra.mxu0 0.0
      %1445 = vmatprep.subr.mxu0 0.0
      %1446 = vmatpush1.msra.mxu0 0.0
      %1447 = vmatprep.subr.mxu0 0.0
      %1448 = vmatpush1.msra.mxu0 0.0
      %1449 = vmatprep.subr.mxu0 0.0
      %1450 = vmatpush1.msra.mxu0 0.0
      %1451 = vmatprep.subr.mxu0 0.0
      %1452 = vmatpush1.msra.mxu0 0.0
      %1453 = vmatprep.subr.mxu0 0.0
      %1454 = vmatpush1.msra.mxu0 0.0
      %1455 = vmatprep.subr.mxu0 0.0
      %1456 = vmatpush1.msra.mxu0 0.0
      %1457 = vmatprep.subr.mxu0 0.0
      %1458 = vmatpush1.msra.mxu0 0.0
      %1459 = vmatprep.subr.mxu0 0.0
      %1460 = vmatpush1.msra.mxu0 0.0
      %1461 = vmatprep.subr.mxu0 0.0
      %1462 = vmatpush1.msra.mxu0 0.0
      %1463 = vmatprep.subr.mxu0 0.0
      %1464 = vmatpush1.msra.mxu0 0.0
      %1465 = vmatprep.subr.mxu0 0.0
      %1466 = vmatpush1.msra.mxu0 0.0
      %1467 = vmatprep.subr.mxu0 0.0
      %1468 = vmatpush1.msra.mxu0 0.0
      %1469 = vmatprep.subr.mxu0 0.0
      %1470 = vmatpush1.msra.mxu0 %v857
      %1471 = vmatprep.subr.mxu0 0.0
      %1472 = vmatpush2.msra.mxu0 0.0
      %1473 = vmatprep.subr.mxu0 0.0
      %1474 = vmatpush2.msra.mxu0 0.0
      %1475 = vmatprep.subr.mxu0 0.0
      %1476 = vmatpush2.msra.mxu0 0.0
      %1477 = vmatprep.subr.mxu0 0.0
      %1478 = vmatpush2.msra.mxu0 0.0
      %1479 = vmatprep.subr.mxu0 0.0
      %1480 = vmatpush2.msra.mxu0 0.0
      %1481 = vmatprep.subr.mxu0 0.0
      %1482 = vmatpush2.msra.mxu0 0.0
      %1483 = vmatprep.subr.mxu0 0.0
      %1484 = vmatpush2.msra.mxu0 0.0
      %1485 = vmatprep.subr.mxu0 0.0
      %1486 = vmatpush2.msra.mxu0 0.0
      %1487 = vmatprep.subr.mxu0 0.0
      %1488 = vmatpush2.msra.mxu0 0.0
      %1489 = vmatprep.subr.mxu0 0.0
      %1490 = vmatpush2.msra.mxu0 0.0
      %1491 = vmatprep.subr.mxu0 0.0
      %1492 = vmatpush2.msra.mxu0 0.0
      %1493 = vmatprep.subr.mxu0 0.0
      %1494 = vmatpush2.msra.mxu0 0.0
      %1495 = vmatprep.subr.mxu0 0.0
      %1496 = vmatpush2.msra.mxu0 0.0
      %1497 = vmatprep.subr.mxu0 0.0
      %1498 = vmatpush2.msra.mxu0 0.0
      %1499 = vmatprep.subr.mxu0 0.0
      %1500 = vmatpush2.msra.mxu0 0.0
      %1501 = vmatprep.subr.mxu0 0.0
      %1502 = vmatpush2.msra.mxu0 0.0
      %1503 = vmatprep.mubr.f32.mxu0 0.0
      %1504 = vmatmul.mubr.f32.gmra.mxu0 %v861
      %v1505 = vpop.f32.mrf.mxu0
      %v1506 = vadd.f32 %v1407, %v1505
      %v1507 = vpop.f32.mrf.mxu0
      %1508 = vmatprep.mubr.f32.mxu0 0.0
      %1509 = vmatmul.mubr.f32.gmra.mxu0 %v864
      %v1510 = vpop.f32.mrf.mxu0
      %v1511 = vadd.f32 %v1408, %v1510
      %v1512 = vpop.f32.mrf.mxu0
      %1513 = vmatprep.mubr.f32.mxu0 0.0
      %1514 = vmatmul.mubr.f32.gmra.mxu0 %v867
      %v1515 = vpop.f32.mrf.mxu0
      %v1516 = vadd.f32 %v1409, %v1515
      %v1517 = vpop.f32.mrf.mxu0
      %1518 = vmatprep.mubr.f32.mxu0 0.0
      %1519 = vmatmul.mubr.f32.gmra.mxu0 %v870
      %v1520 = vpop.f32.mrf.mxu0
      %v1521 = vadd.f32 %v1410, %v1520
      %v1522 = vpop.f32.mrf.mxu0
      %1523 = vmatprep.mubr.f32.mxu0 0.0
      %1524 = vmatmul.mubr.f32.gmra.mxu0 %v873
      %v1525 = vpop.f32.mrf.mxu0
      %v1526 = vadd.f32 %v1411, %v1525
      %v1527 = vpop.f32.mrf.mxu0
      %1528 = vmatprep.mubr.f32.mxu0 0.0
      %1529 = vmatmul.mubr.f32.gmra.mxu0 %v876
      %v1530 = vpop.f32.mrf.mxu0
      %v1531 = vadd.f32 %v1412, %v1530
      %v1532 = vpop.f32.mrf.mxu0
      %1533 = vmatprep.mubr.f32.mxu0 0.0
      %1534 = vmatmul.mubr.f32.gmra.mxu0 %v879
      %v1535 = vpop.f32.mrf.mxu0
      %v1536 = vadd.f32 %v1413, %v1535
      %v1537 = vpop.f32.mrf.mxu0
      %1538 = vmatprep.mubr.f32.mxu0 0.0
      %1539 = vmatmul.mubr.f32.gmra.mxu0 %v882
      %v1540 = vpop.f32.mrf.mxu0
      %v1541 = vadd.f32 %v1414, %v1540
      %v1542 = vpop.f32.mrf.mxu0
      %1543 = vmatprep.mubr.f32.mxu0 0.0
      %1544 = vmatmul.mubr.f32.gmra.mxu0 %v885
      %v1545 = vpop.f32.mrf.mxu0
      %v1546 = vadd.f32 %v1415, %v1545
      %v1547 = vpop.f32.mrf.mxu0
      %1548 = vmatprep.mubr.f32.mxu0 0.0
      %1549 = vmatmul.mubr.f32.gmra.mxu0 %v888
      %v1550 = vpop.f32.mrf.mxu0
      %v1551 = vadd.f32 %v1416, %v1550
      %v1552 = vpop.f32.mrf.mxu0
      %1553 = vmatprep.mubr.f32.mxu0 0.0
      %1554 = vmatmul.mubr.f32.gmra.mxu0 %v891
      %v1555 = vpop.f32.mrf.mxu0
      %v1556 = vadd.f32 %v1417, %v1555
      %v1557 = vpop.f32.mrf.mxu0
      %1558 = vmatprep.mubr.f32.mxu0 0.0
      %1559 = vmatmul.mubr.f32.gmra.mxu0 %v894
      %v1560 = vpop.f32.mrf.mxu0
      %v1561 = vadd.f32 %v1418, %v1560
      %v1562 = vpop.f32.mrf.mxu0
      %1563 = vmatprep.mubr.f32.mxu0 0.0
      %1564 = vmatmul.mubr.f32.gmra.mxu0 %v897
      %v1565 = vpop.f32.mrf.mxu0
      %v1566 = vadd.f32 %v1419, %v1565
      %v1567 = vpop.f32.mrf.mxu0
      %1568 = vmatprep.mubr.f32.mxu0 0.0
      %1569 = vmatmul.mubr.f32.gmra.mxu0 %v900
      %v1570 = vpop.f32.mrf.mxu0
      %v1571 = vadd.f32 %v1420, %v1570
      %v1572 = vpop.f32.mrf.mxu0
      %1573 = vmatprep.mubr.f32.mxu0 0.0
      %1574 = vmatmul.mubr.f32.gmra.mxu0 %v903
      %v1575 = vpop.f32.mrf.mxu0
      %v1576 = vadd.f32 %v1421, %v1575
      %v1577 = vpop.f32.mrf.mxu0
      %1578 = vmatprep.mubr.f32.mxu0 0.0
      %1579 = vmatmul.mubr.f32.gmra.mxu0 %v906
      %v1580 = vpop.f32.mrf.mxu0
      %v1581 = vadd.f32 %v1422, %v1580
      %v1582 = vpop.f32.mrf.mxu0
      %1583 = vmatprep.mubr.f32.mxu0 0.0
      %1584 = vmatmul.mubr.f32.gmra.mxu0 %v909
      %v1585 = vpop.f32.mrf.mxu0
      %v1586 = vadd.f32 %v1423, %v1585
      %v1587 = vpop.f32.mrf.mxu0
      %1588 = vmatprep.mubr.f32.mxu0 0.0
      %1589 = vmatmul.mubr.f32.gmra.mxu0 %v912
      %v1590 = vpop.f32.mrf.mxu0
      %v1591 = vadd.f32 %v1424, %v1590
      %v1592 = vpop.f32.mrf.mxu0
      %1593 = vmatprep.mubr.f32.mxu0 0.0
      %1594 = vmatmul.mubr.f32.gmra.mxu0 %v915
      %v1595 = vpop.f32.mrf.mxu0
      %v1596 = vadd.f32 %v1425, %v1595
      %v1597 = vpop.f32.mrf.mxu0
      %1598 = vmatprep.mubr.f32.mxu0 0.0
      %1599 = vmatmul.mubr.f32.gmra.mxu0 %v918
      %v1600 = vpop.f32.mrf.mxu0
      %v1601 = vadd.f32 %v1426, %v1600
      %v1602 = vpop.f32.mrf.mxu0
      %1603 = vmatprep.mubr.f32.mxu0 0.0
      %1604 = vmatmul.mubr.f32.gmra.mxu0 %v921
      %v1605 = vpop.f32.mrf.mxu0
      %v1606 = vadd.f32 %v1427, %v1605
      %v1607 = vpop.f32.mrf.mxu0
      %1608 = vmatprep.mubr.f32.mxu0 0.0
      %1609 = vmatmul.mubr.f32.gmra.mxu0 %v924
      %v1610 = vpop.f32.mrf.mxu0
      %v1611 = vadd.f32 %v1428, %v1610
      %v1612 = vpop.f32.mrf.mxu0
      %1613 = vmatprep.mubr.f32.mxu0 0.0
      %1614 = vmatmul.mubr.f32.gmra.mxu0 %v927
      %v1615 = vpop.f32.mrf.mxu0
      %v1616 = vadd.f32 %v1429, %v1615
      %v1617 = vpop.f32.mrf.mxu0
      %1618 = vmatprep.mubr.f32.mxu0 0.0
      %1619 = vmatmul.mubr.f32.gmra.mxu0 %v930
      %v1620 = vpop.f32.mrf.mxu0
      %v1621 = vadd.f32 %v1430, %v1620
      %v1622 = vpop.f32.mrf.mxu0
      %1623 = vmatprep.mubr.f32.mxu0 0.0
      %1624 = vmatmul.mubr.f32.gmra.mxu0 %v933
      %v1625 = vpop.f32.mrf.mxu0
      %v1626 = vadd.f32 %v1431, %v1625
      %v1627 = vpop.f32.mrf.mxu0
      %1628 = vmatprep.mubr.f32.mxu0 0.0
      %1629 = vmatmul.mubr.f32.gmra.mxu0 %v936
      %v1630 = vpop.f32.mrf.mxu0
      %v1631 = vadd.f32 %v1432, %v1630
      %v1632 = vpop.f32.mrf.mxu0
      %1633 = vmatprep.mubr.f32.mxu0 0.0
      %1634 = vmatmul.mubr.f32.gmra.mxu0 %v939
      %v1635 = vpop.f32.mrf.mxu0
      %v1636 = vadd.f32 %v1433, %v1635
      %v1637 = vpop.f32.mrf.mxu0
      %1638 = vmatprep.mubr.f32.mxu0 0.0
      %1639 = vmatmul.mubr.f32.gmra.mxu0 %v942
      %v1640 = vpop.f32.mrf.mxu0
      %v1641 = vadd.f32 %v1434, %v1640
      %v1642 = vpop.f32.mrf.mxu0
      %1643 = vmatprep.mubr.f32.mxu0 0.0
      %1644 = vmatmul.mubr.f32.gmra.mxu0 %v945
      %v1645 = vpop.f32.mrf.mxu0
      %v1646 = vadd.f32 %v1435, %v1645
      %v1647 = vpop.f32.mrf.mxu0
      %1648 = vmatprep.mubr.f32.mxu0 0.0
      %1649 = vmatmul.mubr.f32.gmra.mxu0 %v948
      %v1650 = vpop.f32.mrf.mxu0
      %v1651 = vadd.f32 %v1436, %v1650
      %v1652 = vpop.f32.mrf.mxu0
      %1653 = vmatprep.mubr.f32.mxu0 0.0
      %1654 = vmatmul.mubr.f32.gmra.mxu0 %v951
      %v1655 = vpop.f32.mrf.mxu0
      %v1656 = vadd.f32 %v1437, %v1655
      %v1657 = vpop.f32.mrf.mxu0
      %1658 = vmatprep.mubr.f32.mxu0 0.0
      %1659 = vmatmul.mubr.f32.gmra.mxu0 %v954
      %v1660 = vpop.f32.mrf.mxu0
      %v1661 = vadd.f32 %v1438, %v1660
      %v1662 = vpop.f32.mrf.mxu0
      %1663 = vdwg.mxu0
      %s1664 = scalar_lea.vmem %s1, 8
      %v1665 = vld [vmem:[%s1664] sm:$0xff]
      %1666 = vmatprep.subr.mxu0 0.0
      %1667 = vmatpush1.msra.mxu0 0.0
      %1668 = vmatprep.subr.mxu0 0.0
      %1669 = vmatpush1.msra.mxu0 0.0
      %1670 = vmatprep.subr.mxu0 0.0
      %1671 = vmatpush1.msra.mxu0 0.0
      %1672 = vmatprep.subr.mxu0 0.0
      %1673 = vmatpush1.msra.mxu0 0.0
      %1674 = vmatprep.subr.mxu0 0.0
      %1675 = vmatpush1.msra.mxu0 0.0
      %1676 = vmatprep.subr.mxu0 0.0
      %1677 = vmatpush1.msra.mxu0 0.0
      %1678 = vmatprep.subr.mxu0 0.0
      %1679 = vmatpush1.msra.mxu0 0.0
      %1680 = vmatprep.subr.mxu0 0.0
      %1681 = vmatpush1.msra.mxu0 0.0
      %1682 = vmatprep.subr.mxu0 0.0
      %1683 = vmatpush1.msra.mxu0 0.0
      %1684 = vmatprep.subr.mxu0 0.0
      %1685 = vmatpush1.msra.mxu0 0.0
      %1686 = vmatprep.subr.mxu0 0.0
      %1687 = vmatpush1.msra.mxu0 0.0
      %1688 = vmatprep.subr.mxu0 0.0
      %1689 = vmatpush1.msra.mxu0 0.0
      %1690 = vmatprep.subr.mxu0 0.0
      %1691 = vmatpush1.msra.mxu0 0.0
      %1692 = vmatprep.subr.mxu0 0.0
      %1693 = vmatpush1.msra.mxu0 0.0
      %1694 = vmatprep.subr.mxu0 0.0
      %1695 = vmatpush1.msra.mxu0 0.0
      %1696 = vmatprep.subr.mxu0 0.0
      %1697 = vmatpush1.msra.mxu0 %v1665
      %1698 = vmatprep.subr.mxu0 0.0
      %1699 = vmatpush2.msra.mxu0 0.0
      %1700 = vmatprep.subr.mxu0 0.0
      %1701 = vmatpush2.msra.mxu0 0.0
      %1702 = vmatprep.subr.mxu0 0.0
      %1703 = vmatpush2.msra.mxu0 0.0
      %1704 = vmatprep.subr.mxu0 0.0
      %1705 = vmatpush2.msra.mxu0 0.0
      %1706 = vmatprep.subr.mxu0 0.0
      %1707 = vmatpush2.msra.mxu0 0.0
      %1708 = vmatprep.subr.mxu0 0.0
      %1709 = vmatpush2.msra.mxu0 0.0
      %1710 = vmatprep.subr.mxu0 0.0
      %1711 = vmatpush2.msra.mxu0 0.0
      %1712 = vmatprep.subr.mxu0 0.0
      %1713 = vmatpush2.msra.mxu0 0.0
      %1714 = vmatprep.subr.mxu0 0.0
      %1715 = vmatpush2.msra.mxu0 0.0
      %1716 = vmatprep.subr.mxu0 0.0
      %1717 = vmatpush2.msra.mxu0 0.0
      %1718 = vmatprep.subr.mxu0 0.0
      %1719 = vmatpush2.msra.mxu0 0.0
      %1720 = vmatprep.subr.mxu0 0.0
      %1721 = vmatpush2.msra.mxu0 0.0
      %1722 = vmatprep.subr.mxu0 0.0
      %1723 = vmatpush2.msra.mxu0 0.0
      %1724 = vmatprep.subr.mxu0 0.0
      %1725 = vmatpush2.msra.mxu0 0.0
      %1726 = vmatprep.subr.mxu0 0.0
      %1727 = vmatpush2.msra.mxu0 0.0
      %1728 = vmatprep.subr.mxu0 0.0
      %1729 = vmatpush2.msra.mxu0 0.0
      %1730 = vmatprep.mubr.f32.mxu0 0.0
      %1731 = vmatmul.mubr.f32.gmra.mxu0 %v861
      %v1732 = vpop.f32.mrf.mxu0
      %v1733 = vadd.f32 0.0, %v1732
      %v1734 = vpop.f32.mrf.mxu0
      %1735 = vmatprep.mubr.f32.mxu0 0.0
      %1736 = vmatmul.mubr.f32.gmra.mxu0 %v864
      %v1737 = vpop.f32.mrf.mxu0
      %v1738 = vadd.f32 0.0, %v1737
      %v1739 = vpop.f32.mrf.mxu0
      %1740 = vmatprep.mubr.f32.mxu0 0.0
      %1741 = vmatmul.mubr.f32.gmra.mxu0 %v867
      %v1742 = vpop.f32.mrf.mxu0
      %v1743 = vadd.f32 0.0, %v1742
      %v1744 = vpop.f32.mrf.mxu0
      %1745 = vmatprep.mubr.f32.mxu0 0.0
      %1746 = vmatmul.mubr.f32.gmra.mxu0 %v870
      %v1747 = vpop.f32.mrf.mxu0
      %v1748 = vadd.f32 0.0, %v1747
      %v1749 = vpop.f32.mrf.mxu0
      %1750 = vmatprep.mubr.f32.mxu0 0.0
      %1751 = vmatmul.mubr.f32.gmra.mxu0 %v873
      %v1752 = vpop.f32.mrf.mxu0
      %v1753 = vadd.f32 0.0, %v1752
      %v1754 = vpop.f32.mrf.mxu0
      %1755 = vmatprep.mubr.f32.mxu0 0.0
      %1756 = vmatmul.mubr.f32.gmra.mxu0 %v876
      %v1757 = vpop.f32.mrf.mxu0
      %v1758 = vadd.f32 0.0, %v1757
      %v1759 = vpop.f32.mrf.mxu0
      %1760 = vmatprep.mubr.f32.mxu0 0.0
      %1761 = vmatmul.mubr.f32.gmra.mxu0 %v879
      %v1762 = vpop.f32.mrf.mxu0
      %v1763 = vadd.f32 0.0, %v1762
      %v1764 = vpop.f32.mrf.mxu0
      %1765 = vmatprep.mubr.f32.mxu0 0.0
      %1766 = vmatmul.mubr.f32.gmra.mxu0 %v882
      %v1767 = vpop.f32.mrf.mxu0
      %v1768 = vadd.f32 0.0, %v1767
      %v1769 = vpop.f32.mrf.mxu0
      %1770 = vmatprep.mubr.f32.mxu0 0.0
      %1771 = vmatmul.mubr.f32.gmra.mxu0 %v885
      %v1772 = vpop.f32.mrf.mxu0
      %v1773 = vadd.f32 0.0, %v1772
      %v1774 = vpop.f32.mrf.mxu0
      %1775 = vmatprep.mubr.f32.mxu0 0.0
      %1776 = vmatmul.mubr.f32.gmra.mxu0 %v888
      %v1777 = vpop.f32.mrf.mxu0
      %v1778 = vadd.f32 0.0, %v1777
      %v1779 = vpop.f32.mrf.mxu0
      %1780 = vmatprep.mubr.f32.mxu0 0.0
      %1781 = vmatmul.mubr.f32.gmra.mxu0 %v891
      %v1782 = vpop.f32.mrf.mxu0
      %v1783 = vadd.f32 0.0, %v1782
      %v1784 = vpop.f32.mrf.mxu0
      %1785 = vmatprep.mubr.f32.mxu0 0.0
      %1786 = vmatmul.mubr.f32.gmra.mxu0 %v894
      %v1787 = vpop.f32.mrf.mxu0
      %v1788 = vadd.f32 0.0, %v1787
      %v1789 = vpop.f32.mrf.mxu0
      %1790 = vmatprep.mubr.f32.mxu0 0.0
      %1791 = vmatmul.mubr.f32.gmra.mxu0 %v897
      %v1792 = vpop.f32.mrf.mxu0
      %v1793 = vadd.f32 0.0, %v1792
      %v1794 = vpop.f32.mrf.mxu0
      %1795 = vmatprep.mubr.f32.mxu0 0.0
      %1796 = vmatmul.mubr.f32.gmra.mxu0 %v900
      %v1797 = vpop.f32.mrf.mxu0
      %v1798 = vadd.f32 0.0, %v1797
      %v1799 = vpop.f32.mrf.mxu0
      %1800 = vmatprep.mubr.f32.mxu0 0.0
      %1801 = vmatmul.mubr.f32.gmra.mxu0 %v903
      %v1802 = vpop.f32.mrf.mxu0
      %v1803 = vadd.f32 0.0, %v1802
      %v1804 = vpop.f32.mrf.mxu0
      %1805 = vmatprep.mubr.f32.mxu0 0.0
      %1806 = vmatmul.mubr.f32.gmra.mxu0 %v906
      %v1807 = vpop.f32.mrf.mxu0
      %v1808 = vadd.f32 0.0, %v1807
      %v1809 = vpop.f32.mrf.mxu0
      %1810 = vmatprep.mubr.f32.mxu0 0.0
      %1811 = vmatmul.mubr.f32.gmra.mxu0 %v909
      %v1812 = vpop.f32.mrf.mxu0
      %v1813 = vadd.f32 0.0, %v1812
      %v1814 = vpop.f32.mrf.mxu0
      %1815 = vmatprep.mubr.f32.mxu0 0.0
      %1816 = vmatmul.mubr.f32.gmra.mxu0 %v912
      %v1817 = vpop.f32.mrf.mxu0
      %v1818 = vadd.f32 0.0, %v1817
      %v1819 = vpop.f32.mrf.mxu0
      %1820 = vmatprep.mubr.f32.mxu0 0.0
      %1821 = vmatmul.mubr.f32.gmra.mxu0 %v915
      %v1822 = vpop.f32.mrf.mxu0
      %v1823 = vadd.f32 0.0, %v1822
      %v1824 = vpop.f32.mrf.mxu0
      %1825 = vmatprep.mubr.f32.mxu0 0.0
      %1826 = vmatmul.mubr.f32.gmra.mxu0 %v918
      %v1827 = vpop.f32.mrf.mxu0
      %v1828 = vadd.f32 0.0, %v1827
      %v1829 = vpop.f32.mrf.mxu0
      %1830 = vmatprep.mubr.f32.mxu0 0.0
      %1831 = vmatmul.mubr.f32.gmra.mxu0 %v921
      %v1832 = vpop.f32.mrf.mxu0
      %v1833 = vadd.f32 0.0, %v1832
      %v1834 = vpop.f32.mrf.mxu0
      %1835 = vmatprep.mubr.f32.mxu0 0.0
      %1836 = vmatmul.mubr.f32.gmra.mxu0 %v924
      %v1837 = vpop.f32.mrf.mxu0
      %v1838 = vadd.f32 0.0, %v1837
      %v1839 = vpop.f32.mrf.mxu0
      %1840 = vmatprep.mubr.f32.mxu0 0.0
      %1841 = vmatmul.mubr.f32.gmra.mxu0 %v927
      %v1842 = vpop.f32.mrf.mxu0
      %v1843 = vadd.f32 0.0, %v1842
      %v1844 = vpop.f32.mrf.mxu0
      %1845 = vmatprep.mubr.f32.mxu0 0.0
      %1846 = vmatmul.mubr.f32.gmra.mxu0 %v930
      %v1847 = vpop.f32.mrf.mxu0
      %v1848 = vadd.f32 0.0, %v1847
      %v1849 = vpop.f32.mrf.mxu0
      %1850 = vmatprep.mubr.f32.mxu0 0.0
      %1851 = vmatmul.mubr.f32.gmra.mxu0 %v933
      %v1852 = vpop.f32.mrf.mxu0
      %v1853 = vadd.f32 0.0, %v1852
      %v1854 = vpop.f32.mrf.mxu0
      %1855 = vmatprep.mubr.f32.mxu0 0.0
      %1856 = vmatmul.mubr.f32.gmra.mxu0 %v936
      %v1857 = vpop.f32.mrf.mxu0
      %v1858 = vadd.f32 0.0, %v1857
      %v1859 = vpop.f32.mrf.mxu0
      %1860 = vmatprep.mubr.f32.mxu0 0.0
      %1861 = vmatmul.mubr.f32.gmra.mxu0 %v939
      %v1862 = vpop.f32.mrf.mxu0
      %v1863 = vadd.f32 0.0, %v1862
      %v1864 = vpop.f32.mrf.mxu0
      %1865 = vmatprep.mubr.f32.mxu0 0.0
      %1866 = vmatmul.mubr.f32.gmra.mxu0 %v942
      %v1867 = vpop.f32.mrf.mxu0
      %v1868 = vadd.f32 0.0, %v1867
      %v1869 = vpop.f32.mrf.mxu0
      %1870 = vmatprep.mubr.f32.mxu0 0.0
      %1871 = vmatmul.mubr.f32.gmra.mxu0 %v945
      %v1872 = vpop.f32.mrf.mxu0
      %v1873 = vadd.f32 0.0, %v1872
      %v1874 = vpop.f32.mrf.mxu0
      %1875 = vmatprep.mubr.f32.mxu0 0.0
      %1876 = vmatmul.mubr.f32.gmra.mxu0 %v948
      %v1877 = vpop.f32.mrf.mxu0
      %v1878 = vadd.f32 0.0, %v1877
      %v1879 = vpop.f32.mrf.mxu0
      %1880 = vmatprep.mubr.f32.mxu0 0.0
      %1881 = vmatmul.mubr.f32.gmra.mxu0 %v951
      %v1882 = vpop.f32.mrf.mxu0
      %v1883 = vadd.f32 0.0, %v1882
      %v1884 = vpop.f32.mrf.mxu0
      %1885 = vmatprep.mubr.f32.mxu0 0.0
      %1886 = vmatmul.mubr.f32.gmra.mxu0 %v954
      %v1887 = vpop.f32.mrf.mxu0
      %v1888 = vadd.f32 0.0, %v1887
      %v1889 = vpop.f32.mrf.mxu0
      %1890 = vdwg.mxu0
      %v1891 = vsel %vm728, 1, 0
      %v1892 = vsel %vm729, 1, 0
      %v1893 = vsel %vm730, 1, 0
      %v1894 = vsel %vm731, 1, 0
      %v1895 = vsel %vm732, 1, 0
      %v1896 = vsel %vm733, 1, 0
      %v1897 = vsel %vm734, 1, 0
      %v1898 = vsel %vm735, 1, 0
      %v1899 = vsel %vm736, 1, 0
      %v1900 = vsel %vm737, 1, 0
      %v1901 = vsel %vm738, 1, 0
      %v1902 = vsel %vm739, 1, 0
      %v1903 = vsel %vm740, 1, 0
      %v1904 = vsel %vm741, 1, 0
      %v1905 = vsel %vm742, 1, 0
      %v1906 = vsel %vm743, 1, 0
      %v1907 = vsel %vm744, 1, 0
      %v1908 = vsel %vm745, 1, 0
      %v1909 = vsel %vm746, 1, 0
      %v1910 = vsel %vm747, 1, 0
      %v1911 = vsel %vm748, 1, 0
      %v1912 = vsel %vm749, 1, 0
      %v1913 = vsel %vm750, 1, 0
      %v1914 = vsel %vm751, 1, 0
      %v1915 = vsel %vm752, 1, 0
      %v1916 = vsel %vm753, 1, 0
      %v1917 = vsel %vm754, 1, 0
      %v1918 = vsel %vm755, 1, 0
      %v1919 = vsel %vm756, 1, 0
      %v1920 = vsel %vm757, 1, 0
      %v1921 = vsel %vm758, 1, 0
      %v1922 = vsel %vm759, 1, 0
      %vm1923 = vcmp.eq.s32.totalorder %v1891, 1
      %vm1924 = vcmp.eq.s32.totalorder %v1892, 1
      %vm1925 = vcmp.eq.s32.totalorder %v1893, 1
      %vm1926 = vcmp.eq.s32.totalorder %v1894, 1
      %vm1927 = vcmp.eq.s32.totalorder %v1895, 1
      %vm1928 = vcmp.eq.s32.totalorder %v1896, 1
      %vm1929 = vcmp.eq.s32.totalorder %v1897, 1
      %vm1930 = vcmp.eq.s32.totalorder %v1898, 1
      %vm1931 = vcmp.eq.s32.totalorder %v1899, 1
      %vm1932 = vcmp.eq.s32.totalorder %v1900, 1
      %vm1933 = vcmp.eq.s32.totalorder %v1901, 1
      %vm1934 = vcmp.eq.s32.totalorder %v1902, 1
      %vm1935 = vcmp.eq.s32.totalorder %v1903, 1
      %vm1936 = vcmp.eq.s32.totalorder %v1904, 1
      %vm1937 = vcmp.eq.s32.totalorder %v1905, 1
      %vm1938 = vcmp.eq.s32.totalorder %v1906, 1
      %vm1939 = vcmp.eq.s32.totalorder %v1907, 1
      %vm1940 = vcmp.eq.s32.totalorder %v1908, 1
      %vm1941 = vcmp.eq.s32.totalorder %v1909, 1
      %vm1942 = vcmp.eq.s32.totalorder %v1910, 1
      %vm1943 = vcmp.eq.s32.totalorder %v1911, 1
      %vm1944 = vcmp.eq.s32.totalorder %v1912, 1
      %vm1945 = vcmp.eq.s32.totalorder %v1913, 1
      %vm1946 = vcmp.eq.s32.totalorder %v1914, 1
      %vm1947 = vcmp.eq.s32.totalorder %v1915, 1
      %vm1948 = vcmp.eq.s32.totalorder %v1916, 1
      %vm1949 = vcmp.eq.s32.totalorder %v1917, 1
      %vm1950 = vcmp.eq.s32.totalorder %v1918, 1
      %vm1951 = vcmp.eq.s32.totalorder %v1919, 1
      %vm1952 = vcmp.eq.s32.totalorder %v1920, 1
      %vm1953 = vcmp.eq.s32.totalorder %v1921, 1
      %vm1954 = vcmp.eq.s32.totalorder %v1922, 1
      %v1955 = vsel %vm1923, %v1883, 0.0
      %v1956 = vsel %vm1924, %v1888, 0.0
      %v1957 = vsel %vm1925, %v1733, 0.0
      %v1958 = vsel %vm1926, %v1738, 0.0
      %v1959 = vsel %vm1927, %v1743, 0.0
      %v1960 = vsel %vm1928, %v1748, 0.0
      %v1961 = vsel %vm1929, %v1753, 0.0
      %v1962 = vsel %vm1930, %v1758, 0.0
      %v1963 = vsel %vm1931, %v1763, 0.0
      %v1964 = vsel %vm1932, %v1768, 0.0
      %v1965 = vsel %vm1933, %v1773, 0.0
      %v1966 = vsel %vm1934, %v1778, 0.0
      %v1967 = vsel %vm1935, %v1783, 0.0
      %v1968 = vsel %vm1936, %v1788, 0.0
      %v1969 = vsel %vm1937, %v1793, 0.0
      %v1970 = vsel %vm1938, %v1798, 0.0
      %v1971 = vsel %vm1939, %v1803, 0.0
      %v1972 = vsel %vm1940, %v1808, 0.0
      %v1973 = vsel %vm1941, %v1813, 0.0
      %v1974 = vsel %vm1942, %v1818, 0.0
      %v1975 = vsel %vm1943, %v1823, 0.0
      %v1976 = vsel %vm1944, %v1828, 0.0
      %v1977 = vsel %vm1945, %v1833, 0.0
      %v1978 = vsel %vm1946, %v1838, 0.0
      %v1979 = vsel %vm1947, %v1843, 0.0
      %v1980 = vsel %vm1948, %v1848, 0.0
      %v1981 = vsel %vm1949, %v1853, 0.0
      %v1982 = vsel %vm1950, %v1858, 0.0
      %v1983 = vsel %vm1951, %v1863, 0.0
      %v1984 = vsel %vm1952, %v1868, 0.0
      %v1985 = vsel %vm1953, %v1873, 0.0
      %v1986 = vsel %vm1954, %v1878, 0.0
      %v1987 = vadd.f32 %v1506, %v1955
      %v1988 = vadd.f32 %v1511, %v1956
      %v1989 = vadd.f32 %v1516, %v1957
      %v1990 = vadd.f32 %v1521, %v1958
      %v1991 = vadd.f32 %v1526, %v1959
      %v1992 = vadd.f32 %v1531, %v1960
      %v1993 = vadd.f32 %v1536, %v1961
      %v1994 = vadd.f32 %v1541, %v1962
      %v1995 = vadd.f32 %v1546, %v1963
      %v1996 = vadd.f32 %v1551, %v1964
      %v1997 = vadd.f32 %v1556, %v1965
      %v1998 = vadd.f32 %v1561, %v1966
      %v1999 = vadd.f32 %v1566, %v1967
      %v2000 = vadd.f32 %v1571, %v1968
      %v2001 = vadd.f32 %v1576, %v1969
      %v2002 = vadd.f32 %v1581, %v1970
      %v2003 = vadd.f32 %v1586, %v1971
      %v2004 = vadd.f32 %v1591, %v1972
      %v2005 = vadd.f32 %v1596, %v1973
      %v2006 = vadd.f32 %v1601, %v1974
      %v2007 = vadd.f32 %v1606, %v1975
      %v2008 = vadd.f32 %v1611, %v1976
      %v2009 = vadd.f32 %v1616, %v1977
      %v2010 = vadd.f32 %v1621, %v1978
      %v2011 = vadd.f32 %v1626, %v1979
      %v2012 = vadd.f32 %v1631, %v1980
      %v2013 = vadd.f32 %v1636, %v1981
      %v2014 = vadd.f32 %v1641, %v1982
      %v2015 = vadd.f32 %v1646, %v1983
      %v2016 = vadd.f32 %v1651, %v1984
      %v2017 = vadd.f32 %v1656, %v1985
      %v2018 = vadd.f32 %v1661, %v1986
      %s2019 = scalar_lea.vmem %s1, 16
      %v2020 = vld [vmem:[%s2019] sm:$0xff]
      %2021 = vmatprep.subr.mxu0 0.0
      %2022 = vmatpush1.msra.mxu0 0.0
      %2023 = vmatprep.subr.mxu0 0.0
      %2024 = vmatpush1.msra.mxu0 0.0
      %2025 = vmatprep.subr.mxu0 0.0
      %2026 = vmatpush1.msra.mxu0 0.0
      %2027 = vmatprep.subr.mxu0 0.0
      %2028 = vmatpush1.msra.mxu0 0.0
      %2029 = vmatprep.subr.mxu0 0.0
      %2030 = vmatpush1.msra.mxu0 0.0
      %2031 = vmatprep.subr.mxu0 0.0
      %2032 = vmatpush1.msra.mxu0 0.0
      %2033 = vmatprep.subr.mxu0 0.0
      %2034 = vmatpush1.msra.mxu0 0.0
      %2035 = vmatprep.subr.mxu0 0.0
      %2036 = vmatpush1.msra.mxu0 0.0
      %2037 = vmatprep.subr.mxu0 0.0
      %2038 = vmatpush1.msra.mxu0 0.0
      %2039 = vmatprep.subr.mxu0 0.0
      %2040 = vmatpush1.msra.mxu0 0.0
      %2041 = vmatprep.subr.mxu0 0.0
      %2042 = vmatpush1.msra.mxu0 0.0
      %2043 = vmatprep.subr.mxu0 0.0
      %2044 = vmatpush1.msra.mxu0 0.0
      %2045 = vmatprep.subr.mxu0 0.0
      %2046 = vmatpush1.msra.mxu0 0.0
      %2047 = vmatprep.subr.mxu0 0.0
      %2048 = vmatpush1.msra.mxu0 0.0
      %2049 = vmatprep.subr.mxu0 0.0
      %2050 = vmatpush1.msra.mxu0 0.0
      %2051 = vmatprep.subr.mxu0 0.0
      %2052 = vmatpush1.msra.mxu0 %v2020
      %2053 = vmatprep.subr.mxu0 0.0
      %2054 = vmatpush2.msra.mxu0 0.0
      %2055 = vmatprep.subr.mxu0 0.0
      %2056 = vmatpush2.msra.mxu0 0.0
      %2057 = vmatprep.subr.mxu0 0.0
      %2058 = vmatpush2.msra.mxu0 0.0
      %2059 = vmatprep.subr.mxu0 0.0
      %2060 = vmatpush2.msra.mxu0 0.0
      %2061 = vmatprep.subr.mxu0 0.0
      %2062 = vmatpush2.msra.mxu0 0.0
      %2063 = vmatprep.subr.mxu0 0.0
      %2064 = vmatpush2.msra.mxu0 0.0
      %2065 = vmatprep.subr.mxu0 0.0
      %2066 = vmatpush2.msra.mxu0 0.0
      %2067 = vmatprep.subr.mxu0 0.0
      %2068 = vmatpush2.msra.mxu0 0.0
      %2069 = vmatprep.subr.mxu0 0.0
      %2070 = vmatpush2.msra.mxu0 0.0
      %2071 = vmatprep.subr.mxu0 0.0
      %2072 = vmatpush2.msra.mxu0 0.0
      %2073 = vmatprep.subr.mxu0 0.0
      %2074 = vmatpush2.msra.mxu0 0.0
      %2075 = vmatprep.subr.mxu0 0.0
      %2076 = vmatpush2.msra.mxu0 0.0
      %2077 = vmatprep.subr.mxu0 0.0
      %2078 = vmatpush2.msra.mxu0 0.0
      %2079 = vmatprep.subr.mxu0 0.0
      %2080 = vmatpush2.msra.mxu0 0.0
      %2081 = vmatprep.subr.mxu0 0.0
      %2082 = vmatpush2.msra.mxu0 0.0
      %2083 = vmatprep.subr.mxu0 0.0
      %2084 = vmatpush2.msra.mxu0 0.0
      %2085 = vmatprep.mubr.f32.mxu0 0.0
      %2086 = vmatmul.mubr.f32.gmra.mxu0 %v861
      %v2087 = vpop.f32.mrf.mxu0
      %v2088 = vadd.f32 0.0, %v2087
      %v2089 = vpop.f32.mrf.mxu0
      %2090 = vmatprep.mubr.f32.mxu0 0.0
      %2091 = vmatmul.mubr.f32.gmra.mxu0 %v864
      %v2092 = vpop.f32.mrf.mxu0
      %v2093 = vadd.f32 0.0, %v2092
      %v2094 = vpop.f32.mrf.mxu0
      %2095 = vmatprep.mubr.f32.mxu0 0.0
      %2096 = vmatmul.mubr.f32.gmra.mxu0 %v867
      %v2097 = vpop.f32.mrf.mxu0
      %v2098 = vadd.f32 0.0, %v2097
      %v2099 = vpop.f32.mrf.mxu0
      %2100 = vmatprep.mubr.f32.mxu0 0.0
      %2101 = vmatmul.mubr.f32.gmra.mxu0 %v870
      %v2102 = vpop.f32.mrf.mxu0
      %v2103 = vadd.f32 0.0, %v2102
      %v2104 = vpop.f32.mrf.mxu0
      %2105 = vmatprep.mubr.f32.mxu0 0.0
      %2106 = vmatmul.mubr.f32.gmra.mxu0 %v873
      %v2107 = vpop.f32.mrf.mxu0
      %v2108 = vadd.f32 0.0, %v2107
      %v2109 = vpop.f32.mrf.mxu0
      %2110 = vmatprep.mubr.f32.mxu0 0.0
      %2111 = vmatmul.mubr.f32.gmra.mxu0 %v876
      %v2112 = vpop.f32.mrf.mxu0
      %v2113 = vadd.f32 0.0, %v2112
      %v2114 = vpop.f32.mrf.mxu0
      %2115 = vmatprep.mubr.f32.mxu0 0.0
      %2116 = vmatmul.mubr.f32.gmra.mxu0 %v879
      %v2117 = vpop.f32.mrf.mxu0
      %v2118 = vadd.f32 0.0, %v2117
      %v2119 = vpop.f32.mrf.mxu0
      %2120 = vmatprep.mubr.f32.mxu0 0.0
      %2121 = vmatmul.mubr.f32.gmra.mxu0 %v882
      %v2122 = vpop.f32.mrf.mxu0
      %v2123 = vadd.f32 0.0, %v2122
      %v2124 = vpop.f32.mrf.mxu0
      %2125 = vmatprep.mubr.f32.mxu0 0.0
      %2126 = vmatmul.mubr.f32.gmra.mxu0 %v885
      %v2127 = vpop.f32.mrf.mxu0
      %v2128 = vadd.f32 0.0, %v2127
      %v2129 = vpop.f32.mrf.mxu0
      %2130 = vmatprep.mubr.f32.mxu0 0.0
      %2131 = vmatmul.mubr.f32.gmra.mxu0 %v888
      %v2132 = vpop.f32.mrf.mxu0
      %v2133 = vadd.f32 0.0, %v2132
      %v2134 = vpop.f32.mrf.mxu0
      %2135 = vmatprep.mubr.f32.mxu0 0.0
      %2136 = vmatmul.mubr.f32.gmra.mxu0 %v891
      %v2137 = vpop.f32.mrf.mxu0
      %v2138 = vadd.f32 0.0, %v2137
      %v2139 = vpop.f32.mrf.mxu0
      %2140 = vmatprep.mubr.f32.mxu0 0.0
      %2141 = vmatmul.mubr.f32.gmra.mxu0 %v894
      %v2142 = vpop.f32.mrf.mxu0
      %v2143 = vadd.f32 0.0, %v2142
      %v2144 = vpop.f32.mrf.mxu0
      %2145 = vmatprep.mubr.f32.mxu0 0.0
      %2146 = vmatmul.mubr.f32.gmra.mxu0 %v897
      %v2147 = vpop.f32.mrf.mxu0
      %v2148 = vadd.f32 0.0, %v2147
      %v2149 = vpop.f32.mrf.mxu0
      %2150 = vmatprep.mubr.f32.mxu0 0.0
      %2151 = vmatmul.mubr.f32.gmra.mxu0 %v900
      %v2152 = vpop.f32.mrf.mxu0
      %v2153 = vadd.f32 0.0, %v2152
      %v2154 = vpop.f32.mrf.mxu0
      %2155 = vmatprep.mubr.f32.mxu0 0.0
      %2156 = vmatmul.mubr.f32.gmra.mxu0 %v903
      %v2157 = vpop.f32.mrf.mxu0
      %v2158 = vadd.f32 0.0, %v2157
      %v2159 = vpop.f32.mrf.mxu0
      %2160 = vmatprep.mubr.f32.mxu0 0.0
      %2161 = vmatmul.mubr.f32.gmra.mxu0 %v906
      %v2162 = vpop.f32.mrf.mxu0
      %v2163 = vadd.f32 0.0, %v2162
      %v2164 = vpop.f32.mrf.mxu0
      %2165 = vmatprep.mubr.f32.mxu0 0.0
      %2166 = vmatmul.mubr.f32.gmra.mxu0 %v909
      %v2167 = vpop.f32.mrf.mxu0
      %v2168 = vadd.f32 0.0, %v2167
      %v2169 = vpop.f32.mrf.mxu0
      %2170 = vmatprep.mubr.f32.mxu0 0.0
      %2171 = vmatmul.mubr.f32.gmra.mxu0 %v912
      %v2172 = vpop.f32.mrf.mxu0
      %v2173 = vadd.f32 0.0, %v2172
      %v2174 = vpop.f32.mrf.mxu0
      %2175 = vmatprep.mubr.f32.mxu0 0.0
      %2176 = vmatmul.mubr.f32.gmra.mxu0 %v915
      %v2177 = vpop.f32.mrf.mxu0
      %v2178 = vadd.f32 0.0, %v2177
      %v2179 = vpop.f32.mrf.mxu0
      %2180 = vmatprep.mubr.f32.mxu0 0.0
      %2181 = vmatmul.mubr.f32.gmra.mxu0 %v918
      %v2182 = vpop.f32.mrf.mxu0
      %v2183 = vadd.f32 0.0, %v2182
      %v2184 = vpop.f32.mrf.mxu0
      %2185 = vmatprep.mubr.f32.mxu0 0.0
      %2186 = vmatmul.mubr.f32.gmra.mxu0 %v921
      %v2187 = vpop.f32.mrf.mxu0
      %v2188 = vadd.f32 0.0, %v2187
      %v2189 = vpop.f32.mrf.mxu0
      %2190 = vmatprep.mubr.f32.mxu0 0.0
      %2191 = vmatmul.mubr.f32.gmra.mxu0 %v924
      %v2192 = vpop.f32.mrf.mxu0
      %v2193 = vadd.f32 0.0, %v2192
      %v2194 = vpop.f32.mrf.mxu0
      %2195 = vmatprep.mubr.f32.mxu0 0.0
      %2196 = vmatmul.mubr.f32.gmra.mxu0 %v927
      %v2197 = vpop.f32.mrf.mxu0
      %v2198 = vadd.f32 0.0, %v2197
      %v2199 = vpop.f32.mrf.mxu0
      %2200 = vmatprep.mubr.f32.mxu0 0.0
      %2201 = vmatmul.mubr.f32.gmra.mxu0 %v930
      %v2202 = vpop.f32.mrf.mxu0
      %v2203 = vadd.f32 0.0, %v2202
      %v2204 = vpop.f32.mrf.mxu0
      %2205 = vmatprep.mubr.f32.mxu0 0.0
      %2206 = vmatmul.mubr.f32.gmra.mxu0 %v933
      %v2207 = vpop.f32.mrf.mxu0
      %v2208 = vadd.f32 0.0, %v2207
      %v2209 = vpop.f32.mrf.mxu0
      %2210 = vmatprep.mubr.f32.mxu0 0.0
      %2211 = vmatmul.mubr.f32.gmra.mxu0 %v936
      %v2212 = vpop.f32.mrf.mxu0
      %v2213 = vadd.f32 0.0, %v2212
      %v2214 = vpop.f32.mrf.mxu0
      %2215 = vmatprep.mubr.f32.mxu0 0.0
      %2216 = vmatmul.mubr.f32.gmra.mxu0 %v939
      %v2217 = vpop.f32.mrf.mxu0
      %v2218 = vadd.f32 0.0, %v2217
      %v2219 = vpop.f32.mrf.mxu0
      %2220 = vmatprep.mubr.f32.mxu0 0.0
      %2221 = vmatmul.mubr.f32.gmra.mxu0 %v942
      %v2222 = vpop.f32.mrf.mxu0
      %v2223 = vadd.f32 0.0, %v2222
      %v2224 = vpop.f32.mrf.mxu0
      %2225 = vmatprep.mubr.f32.mxu0 0.0
      %2226 = vmatmul.mubr.f32.gmra.mxu0 %v945
      %v2227 = vpop.f32.mrf.mxu0
      %v2228 = vadd.f32 0.0, %v2227
      %v2229 = vpop.f32.mrf.mxu0
      %2230 = vmatprep.mubr.f32.mxu0 0.0
      %2231 = vmatmul.mubr.f32.gmra.mxu0 %v948
      %v2232 = vpop.f32.mrf.mxu0
      %v2233 = vadd.f32 0.0, %v2232
      %v2234 = vpop.f32.mrf.mxu0
      %2235 = vmatprep.mubr.f32.mxu0 0.0
      %2236 = vmatmul.mubr.f32.gmra.mxu0 %v951
      %v2237 = vpop.f32.mrf.mxu0
      %v2238 = vadd.f32 0.0, %v2237
      %v2239 = vpop.f32.mrf.mxu0
      %2240 = vmatprep.mubr.f32.mxu0 0.0
      %2241 = vmatmul.mubr.f32.gmra.mxu0 %v954
      %v2242 = vpop.f32.mrf.mxu0
      %v2243 = vadd.f32 0.0, %v2242
      %v2244 = vpop.f32.mrf.mxu0
      %2245 = vdwg.mxu0
      %vm2248 = vcmask 1046528
      %v2249 = vrot.slane %v2238, 1
      %v2250 = vrot.slane %v2243, 1
      %v2251 = vsel %vm2248, %v2249, %v2250
      %v2284 = vrot.slane %v2088, 1
      %v2285 = vrot.slane %v2093, 1
      %v2286 = vsel %vm2248, %v2284, %v2285
      %v2287 = vrot.slane %v2098, 1
      %v2288 = vsel %vm2248, %v2285, %v2287
      %v2289 = vrot.slane %v2103, 1
      %v2290 = vsel %vm2248, %v2287, %v2289
      %v2291 = vrot.slane %v2108, 1
      %v2292 = vsel %vm2248, %v2289, %v2291
      %v2293 = vrot.slane %v2113, 1
      %v2294 = vsel %vm2248, %v2291, %v2293
      %v2295 = vrot.slane %v2118, 1
      %v2296 = vsel %vm2248, %v2293, %v2295
      %v2297 = vrot.slane %v2123, 1
      %v2298 = vsel %vm2248, %v2295, %v2297
      %v2299 = vrot.slane %v2128, 1
      %v2300 = vsel %vm2248, %v2297, %v2299
      %v2301 = vrot.slane %v2133, 1
      %v2302 = vsel %vm2248, %v2299, %v2301
      %v2303 = vrot.slane %v2138, 1
      %v2304 = vsel %vm2248, %v2301, %v2303
      %v2305 = vrot.slane %v2143, 1
      %v2306 = vsel %vm2248, %v2303, %v2305
      %v2307 = vrot.slane %v2148, 1
      %v2308 = vsel %vm2248, %v2305, %v2307
      %v2309 = vrot.slane %v2153, 1
      %v2310 = vsel %vm2248, %v2307, %v2309
      %v2311 = vrot.slane %v2158, 1
      %v2312 = vsel %vm2248, %v2309, %v2311
      %v2313 = vrot.slane %v2163, 1
      %v2314 = vsel %vm2248, %v2311, %v2313
      %v2315 = vrot.slane %v2168, 1
      %v2316 = vsel %vm2248, %v2313, %v2315
      %v2317 = vrot.slane %v2173, 1
      %v2318 = vsel %vm2248, %v2315, %v2317
      %v2319 = vrot.slane %v2178, 1
      %v2320 = vsel %vm2248, %v2317, %v2319
      %v2321 = vrot.slane %v2183, 1
      %v2322 = vsel %vm2248, %v2319, %v2321
      %v2323 = vrot.slane %v2188, 1
      %v2324 = vsel %vm2248, %v2321, %v2323
      %v2325 = vrot.slane %v2193, 1
      %v2326 = vsel %vm2248, %v2323, %v2325
      %v2327 = vrot.slane %v2198, 1
      %v2328 = vsel %vm2248, %v2325, %v2327
      %v2329 = vrot.slane %v2203, 1
      %v2330 = vsel %vm2248, %v2327, %v2329
      %v2331 = vrot.slane %v2208, 1
      %v2332 = vsel %vm2248, %v2329, %v2331
      %v2333 = vrot.slane %v2213, 1
      %v2334 = vsel %vm2248, %v2331, %v2333
      %v2335 = vrot.slane %v2218, 1
      %v2336 = vsel %vm2248, %v2333, %v2335
      %v2337 = vrot.slane %v2223, 1
      %v2338 = vsel %vm2248, %v2335, %v2337
      %v2339 = vrot.slane %v2228, 1
      %v2340 = vsel %vm2248, %v2337, %v2339
      %v2341 = vrot.slane %v2233, 1
      %v2342 = vsel %vm2248, %v2339, %v2341
      %v2343 = vsel %vm2248, %v2341, %v2249
      %v2375 = vsel %vm2248, %v2250, %v2284
      %vm2376 = vmand %vm728, %vm824
      %vm2377 = vmand %vm729, %vm825
      %vm2378 = vmand %vm730, %vm826
      %vm2379 = vmand %vm731, %vm827
      %vm2380 = vmand %vm732, %vm828
      %vm2381 = vmand %vm733, %vm829
      %vm2382 = vmand %vm734, %vm830
      %vm2383 = vmand %vm735, %vm831
      %vm2384 = vmand %vm736, %vm832
      %vm2385 = vmand %vm737, %vm833
      %vm2386 = vmand %vm738, %vm834
      %vm2387 = vmand %vm739, %vm835
      %vm2388 = vmand %vm740, %vm836
      %vm2389 = vmand %vm741, %vm837
      %vm2390 = vmand %vm742, %vm838
      %vm2391 = vmand %vm743, %vm839
      %vm2392 = vmand %vm744, %vm840
      %vm2393 = vmand %vm745, %vm841
      %vm2394 = vmand %vm746, %vm842
      %vm2395 = vmand %vm747, %vm843
      %vm2396 = vmand %vm748, %vm844
      %vm2397 = vmand %vm749, %vm845
      %vm2398 = vmand %vm750, %vm846
      %vm2399 = vmand %vm751, %vm847
      %vm2400 = vmand %vm752, %vm848
      %vm2401 = vmand %vm753, %vm849
      %vm2402 = vmand %vm754, %vm850
      %vm2403 = vmand %vm755, %vm851
      %vm2404 = vmand %vm756, %vm852
      %vm2405 = vmand %vm757, %vm853
      %vm2406 = vmand %vm758, %vm854
      %vm2407 = vmand %vm759, %vm855
      %v2408 = vsel %vm2376, 1, 0
      %v2409 = vsel %vm2377, 1, 0
      %v2410 = vsel %vm2378, 1, 0
      %v2411 = vsel %vm2379, 1, 0
      %v2412 = vsel %vm2380, 1, 0
      %v2413 = vsel %vm2381, 1, 0
      %v2414 = vsel %vm2382, 1, 0
      %v2415 = vsel %vm2383, 1, 0
      %v2416 = vsel %vm2384, 1, 0
      %v2417 = vsel %vm2385, 1, 0
      %v2418 = vsel %vm2386, 1, 0
      %v2419 = vsel %vm2387, 1, 0
      %v2420 = vsel %vm2388, 1, 0
      %v2421 = vsel %vm2389, 1, 0
      %v2422 = vsel %vm2390, 1, 0
      %v2423 = vsel %vm2391, 1, 0
      %v2424 = vsel %vm2392, 1, 0
      %v2425 = vsel %vm2393, 1, 0
      %v2426 = vsel %vm2394, 1, 0
      %v2427 = vsel %vm2395, 1, 0
      %v2428 = vsel %vm2396, 1, 0
      %v2429 = vsel %vm2397, 1, 0
      %v2430 = vsel %vm2398, 1, 0
      %v2431 = vsel %vm2399, 1, 0
      %v2432 = vsel %vm2400, 1, 0
      %v2433 = vsel %vm2401, 1, 0
      %v2434 = vsel %vm2402, 1, 0
      %v2435 = vsel %vm2403, 1, 0
      %v2436 = vsel %vm2404, 1, 0
      %v2437 = vsel %vm2405, 1, 0
      %v2438 = vsel %vm2406, 1, 0
      %v2439 = vsel %vm2407, 1, 0
      %vm2440 = vcmp.eq.s32.totalorder %v2408, 1
      %vm2441 = vcmp.eq.s32.totalorder %v2409, 1
      %vm2442 = vcmp.eq.s32.totalorder %v2410, 1
      %vm2443 = vcmp.eq.s32.totalorder %v2411, 1
      %vm2444 = vcmp.eq.s32.totalorder %v2412, 1
      %vm2445 = vcmp.eq.s32.totalorder %v2413, 1
      %vm2446 = vcmp.eq.s32.totalorder %v2414, 1
      %vm2447 = vcmp.eq.s32.totalorder %v2415, 1
      %vm2448 = vcmp.eq.s32.totalorder %v2416, 1
      %vm2449 = vcmp.eq.s32.totalorder %v2417, 1
      %vm2450 = vcmp.eq.s32.totalorder %v2418, 1
      %vm2451 = vcmp.eq.s32.totalorder %v2419, 1
      %vm2452 = vcmp.eq.s32.totalorder %v2420, 1
      %vm2453 = vcmp.eq.s32.totalorder %v2421, 1
      %vm2454 = vcmp.eq.s32.totalorder %v2422, 1
      %vm2455 = vcmp.eq.s32.totalorder %v2423, 1
      %vm2456 = vcmp.eq.s32.totalorder %v2424, 1
      %vm2457 = vcmp.eq.s32.totalorder %v2425, 1
      %vm2458 = vcmp.eq.s32.totalorder %v2426, 1
      %vm2459 = vcmp.eq.s32.totalorder %v2427, 1
      %vm2460 = vcmp.eq.s32.totalorder %v2428, 1
      %vm2461 = vcmp.eq.s32.totalorder %v2429, 1
      %vm2462 = vcmp.eq.s32.totalorder %v2430, 1
      %vm2463 = vcmp.eq.s32.totalorder %v2431, 1
      %vm2464 = vcmp.eq.s32.totalorder %v2432, 1
      %vm2465 = vcmp.eq.s32.totalorder %v2433, 1
      %vm2466 = vcmp.eq.s32.totalorder %v2434, 1
      %vm2467 = vcmp.eq.s32.totalorder %v2435, 1
      %vm2468 = vcmp.eq.s32.totalorder %v2436, 1
      %vm2469 = vcmp.eq.s32.totalorder %v2437, 1
      %vm2470 = vcmp.eq.s32.totalorder %v2438, 1
      %vm2471 = vcmp.eq.s32.totalorder %v2439, 1
      %v2472 = vsel %vm2440, %v2251, 0.0
      %v2473 = vsel %vm2441, %v2375, 0.0
      %v2474 = vsel %vm2442, %v2286, 0.0
      %v2475 = vsel %vm2443, %v2288, 0.0
      %v2476 = vsel %vm2444, %v2290, 0.0
      %v2477 = vsel %vm2445, %v2292, 0.0
      %v2478 = vsel %vm2446, %v2294, 0.0
      %v2479 = vsel %vm2447, %v2296, 0.0
      %v2480 = vsel %vm2448, %v2298, 0.0
      %v2481 = vsel %vm2449, %v2300, 0.0
      %v2482 = vsel %vm2450, %v2302, 0.0
      %v2483 = vsel %vm2451, %v2304, 0.0
      %v2484 = vsel %vm2452, %v2306, 0.0
      %v2485 = vsel %vm2453, %v2308, 0.0
      %v2486 = vsel %vm2454, %v2310, 0.0
      %v2487 = vsel %vm2455, %v2312, 0.0
      %v2488 = vsel %vm2456, %v2314, 0.0
      %v2489 = vsel %vm2457, %v2316, 0.0
      %v2490 = vsel %vm2458, %v2318, 0.0
      %v2491 = vsel %vm2459, %v2320, 0.0
      %v2492 = vsel %vm2460, %v2322, 0.0
      %v2493 = vsel %vm2461, %v2324, 0.0
      %v2494 = vsel %vm2462, %v2326, 0.0
      %v2495 = vsel %vm2463, %v2328, 0.0
      %v2496 = vsel %vm2464, %v2330, 0.0
      %v2497 = vsel %vm2465, %v2332, 0.0
      %v2498 = vsel %vm2466, %v2334, 0.0
      %v2499 = vsel %vm2467, %v2336, 0.0
      %v2500 = vsel %vm2468, %v2338, 0.0
      %v2501 = vsel %vm2469, %v2340, 0.0
      %v2502 = vsel %vm2470, %v2342, 0.0
      %v2503 = vsel %vm2471, %v2343, 0.0
      %v2504 = vadd.f32 %v1987, %v2472
      %v2505 = vadd.f32 %v1988, %v2473
      %v2506 = vadd.f32 %v1989, %v2474
      %v2507 = vadd.f32 %v1990, %v2475
      %v2508 = vadd.f32 %v1991, %v2476
      %v2509 = vadd.f32 %v1992, %v2477
      %v2510 = vadd.f32 %v1993, %v2478
      %v2511 = vadd.f32 %v1994, %v2479
      %v2512 = vadd.f32 %v1995, %v2480
      %v2513 = vadd.f32 %v1996, %v2481
      %v2514 = vadd.f32 %v1997, %v2482
      %v2515 = vadd.f32 %v1998, %v2483
      %v2516 = vadd.f32 %v1999, %v2484
      %v2517 = vadd.f32 %v2000, %v2485
      %v2518 = vadd.f32 %v2001, %v2486
      %v2519 = vadd.f32 %v2002, %v2487
      %v2520 = vadd.f32 %v2003, %v2488
      %v2521 = vadd.f32 %v2004, %v2489
      %v2522 = vadd.f32 %v2005, %v2490
      %v2523 = vadd.f32 %v2006, %v2491
      %v2524 = vadd.f32 %v2007, %v2492
      %v2525 = vadd.f32 %v2008, %v2493
      %v2526 = vadd.f32 %v2009, %v2494
      %v2527 = vadd.f32 %v2010, %v2495
      %v2528 = vadd.f32 %v2011, %v2496
      %v2529 = vadd.f32 %v2012, %v2497
      %v2530 = vadd.f32 %v2013, %v2498
      %v2531 = vadd.f32 %v2014, %v2499
      %v2532 = vadd.f32 %v2015, %v2500
      %v2533 = vadd.f32 %v2016, %v2501
      %v2534 = vadd.f32 %v2017, %v2502
      %v2535 = vadd.f32 %v2018, %v2503
      %s2536 = scalar_lea.vmem %s1, 24
      %v2537 = vld [vmem:[%s2536] sm:$0xff]
      %2538 = vmatprep.subr.mxu0 0.0
      %2539 = vmatpush1.msra.mxu0 0.0
      %2540 = vmatprep.subr.mxu0 0.0
      %2541 = vmatpush1.msra.mxu0 0.0
      %2542 = vmatprep.subr.mxu0 0.0
      %2543 = vmatpush1.msra.mxu0 0.0
      %2544 = vmatprep.subr.mxu0 0.0
      %2545 = vmatpush1.msra.mxu0 0.0
      %2546 = vmatprep.subr.mxu0 0.0
      %2547 = vmatpush1.msra.mxu0 0.0
      %2548 = vmatprep.subr.mxu0 0.0
      %2549 = vmatpush1.msra.mxu0 0.0
      %2550 = vmatprep.subr.mxu0 0.0
      %2551 = vmatpush1.msra.mxu0 0.0
      %2552 = vmatprep.subr.mxu0 0.0
      %2553 = vmatpush1.msra.mxu0 0.0
      %2554 = vmatprep.subr.mxu0 0.0
      %2555 = vmatpush1.msra.mxu0 0.0
      %2556 = vmatprep.subr.mxu0 0.0
      %2557 = vmatpush1.msra.mxu0 0.0
      %2558 = vmatprep.subr.mxu0 0.0
      %2559 = vmatpush1.msra.mxu0 0.0
      %2560 = vmatprep.subr.mxu0 0.0
      %2561 = vmatpush1.msra.mxu0 0.0
      %2562 = vmatprep.subr.mxu0 0.0
      %2563 = vmatpush1.msra.mxu0 0.0
      %2564 = vmatprep.subr.mxu0 0.0
      %2565 = vmatpush1.msra.mxu0 0.0
      %2566 = vmatprep.subr.mxu0 0.0
      %2567 = vmatpush1.msra.mxu0 0.0
      %2568 = vmatprep.subr.mxu0 0.0
      %2569 = vmatpush1.msra.mxu0 %v2537
      %2570 = vmatprep.subr.mxu0 0.0
      %2571 = vmatpush2.msra.mxu0 0.0
      %2572 = vmatprep.subr.mxu0 0.0
      %2573 = vmatpush2.msra.mxu0 0.0
      %2574 = vmatprep.subr.mxu0 0.0
      %2575 = vmatpush2.msra.mxu0 0.0
      %2576 = vmatprep.subr.mxu0 0.0
      %2577 = vmatpush2.msra.mxu0 0.0
      %2578 = vmatprep.subr.mxu0 0.0
      %2579 = vmatpush2.msra.mxu0 0.0
      %2580 = vmatprep.subr.mxu0 0.0
      %2581 = vmatpush2.msra.mxu0 0.0
      %2582 = vmatprep.subr.mxu0 0.0
      %2583 = vmatpush2.msra.mxu0 0.0
      %2584 = vmatprep.subr.mxu0 0.0
      %2585 = vmatpush2.msra.mxu0 0.0
      %2586 = vmatprep.subr.mxu0 0.0
      %2587 = vmatpush2.msra.mxu0 0.0
      %2588 = vmatprep.subr.mxu0 0.0
      %2589 = vmatpush2.msra.mxu0 0.0
      %2590 = vmatprep.subr.mxu0 0.0
      %2591 = vmatpush2.msra.mxu0 0.0
      %2592 = vmatprep.subr.mxu0 0.0
      %2593 = vmatpush2.msra.mxu0 0.0
      %2594 = vmatprep.subr.mxu0 0.0
      %2595 = vmatpush2.msra.mxu0 0.0
      %2596 = vmatprep.subr.mxu0 0.0
      %2597 = vmatpush2.msra.mxu0 0.0
      %2598 = vmatprep.subr.mxu0 0.0
      %2599 = vmatpush2.msra.mxu0 0.0
      %2600 = vmatprep.subr.mxu0 0.0
      %2601 = vmatpush2.msra.mxu0 0.0
      %2602 = vmatprep.mubr.f32.mxu0 0.0
      %2603 = vmatmul.mubr.f32.gmra.mxu0 %v861
      %v2604 = vpop.f32.mrf.mxu0
      %v2605 = vadd.f32 0.0, %v2604
      %v2606 = vpop.f32.mrf.mxu0
      %2607 = vmatprep.mubr.f32.mxu0 0.0
      %2608 = vmatmul.mubr.f32.gmra.mxu0 %v864
      %v2609 = vpop.f32.mrf.mxu0
      %v2610 = vadd.f32 0.0, %v2609
      %v2611 = vpop.f32.mrf.mxu0
      %2612 = vmatprep.mubr.f32.mxu0 0.0
      %2613 = vmatmul.mubr.f32.gmra.mxu0 %v867
      %v2614 = vpop.f32.mrf.mxu0
      %v2615 = vadd.f32 0.0, %v2614
      %v2616 = vpop.f32.mrf.mxu0
      %2617 = vmatprep.mubr.f32.mxu0 0.0
      %2618 = vmatmul.mubr.f32.gmra.mxu0 %v870
      %v2619 = vpop.f32.mrf.mxu0
      %v2620 = vadd.f32 0.0, %v2619
      %v2621 = vpop.f32.mrf.mxu0
      %2622 = vmatprep.mubr.f32.mxu0 0.0
      %2623 = vmatmul.mubr.f32.gmra.mxu0 %v873
      %v2624 = vpop.f32.mrf.mxu0
      %v2625 = vadd.f32 0.0, %v2624
      %v2626 = vpop.f32.mrf.mxu0
      %2627 = vmatprep.mubr.f32.mxu0 0.0
      %2628 = vmatmul.mubr.f32.gmra.mxu0 %v876
      %v2629 = vpop.f32.mrf.mxu0
      %v2630 = vadd.f32 0.0, %v2629
      %v2631 = vpop.f32.mrf.mxu0
      %2632 = vmatprep.mubr.f32.mxu0 0.0
      %2633 = vmatmul.mubr.f32.gmra.mxu0 %v879
      %v2634 = vpop.f32.mrf.mxu0
      %v2635 = vadd.f32 0.0, %v2634
      %v2636 = vpop.f32.mrf.mxu0
      %2637 = vmatprep.mubr.f32.mxu0 0.0
      %2638 = vmatmul.mubr.f32.gmra.mxu0 %v882
      %v2639 = vpop.f32.mrf.mxu0
      %v2640 = vadd.f32 0.0, %v2639
      %v2641 = vpop.f32.mrf.mxu0
      %2642 = vmatprep.mubr.f32.mxu0 0.0
      %2643 = vmatmul.mubr.f32.gmra.mxu0 %v885
      %v2644 = vpop.f32.mrf.mxu0
      %v2645 = vadd.f32 0.0, %v2644
      %v2646 = vpop.f32.mrf.mxu0
      %2647 = vmatprep.mubr.f32.mxu0 0.0
      %2648 = vmatmul.mubr.f32.gmra.mxu0 %v888
      %v2649 = vpop.f32.mrf.mxu0
      %v2650 = vadd.f32 0.0, %v2649
      %v2651 = vpop.f32.mrf.mxu0
      %2652 = vmatprep.mubr.f32.mxu0 0.0
      %2653 = vmatmul.mubr.f32.gmra.mxu0 %v891
      %v2654 = vpop.f32.mrf.mxu0
      %v2655 = vadd.f32 0.0, %v2654
      %v2656 = vpop.f32.mrf.mxu0
      %2657 = vmatprep.mubr.f32.mxu0 0.0
      %2658 = vmatmul.mubr.f32.gmra.mxu0 %v894
      %v2659 = vpop.f32.mrf.mxu0
      %v2660 = vadd.f32 0.0, %v2659
      %v2661 = vpop.f32.mrf.mxu0
      %2662 = vmatprep.mubr.f32.mxu0 0.0
      %2663 = vmatmul.mubr.f32.gmra.mxu0 %v897
      %v2664 = vpop.f32.mrf.mxu0
      %v2665 = vadd.f32 0.0, %v2664
      %v2666 = vpop.f32.mrf.mxu0
      %2667 = vmatprep.mubr.f32.mxu0 0.0
      %2668 = vmatmul.mubr.f32.gmra.mxu0 %v900
      %v2669 = vpop.f32.mrf.mxu0
      %v2670 = vadd.f32 0.0, %v2669
      %v2671 = vpop.f32.mrf.mxu0
      %2672 = vmatprep.mubr.f32.mxu0 0.0
      %2673 = vmatmul.mubr.f32.gmra.mxu0 %v903
      %v2674 = vpop.f32.mrf.mxu0
      %v2675 = vadd.f32 0.0, %v2674
      %v2676 = vpop.f32.mrf.mxu0
      %2677 = vmatprep.mubr.f32.mxu0 0.0
      %2678 = vmatmul.mubr.f32.gmra.mxu0 %v906
      %v2679 = vpop.f32.mrf.mxu0
      %v2680 = vadd.f32 0.0, %v2679
      %v2681 = vpop.f32.mrf.mxu0
      %2682 = vmatprep.mubr.f32.mxu0 0.0
      %2683 = vmatmul.mubr.f32.gmra.mxu0 %v909
      %v2684 = vpop.f32.mrf.mxu0
      %v2685 = vadd.f32 0.0, %v2684
      %v2686 = vpop.f32.mrf.mxu0
      %2687 = vmatprep.mubr.f32.mxu0 0.0
      %2688 = vmatmul.mubr.f32.gmra.mxu0 %v912
      %v2689 = vpop.f32.mrf.mxu0
      %v2690 = vadd.f32 0.0, %v2689
      %v2691 = vpop.f32.mrf.mxu0
      %2692 = vmatprep.mubr.f32.mxu0 0.0
      %2693 = vmatmul.mubr.f32.gmra.mxu0 %v915
      %v2694 = vpop.f32.mrf.mxu0
      %v2695 = vadd.f32 0.0, %v2694
      %v2696 = vpop.f32.mrf.mxu0
      %2697 = vmatprep.mubr.f32.mxu0 0.0
      %2698 = vmatmul.mubr.f32.gmra.mxu0 %v918
      %v2699 = vpop.f32.mrf.mxu0
      %v2700 = vadd.f32 0.0, %v2699
      %v2701 = vpop.f32.mrf.mxu0
      %2702 = vmatprep.mubr.f32.mxu0 0.0
      %2703 = vmatmul.mubr.f32.gmra.mxu0 %v921
      %v2704 = vpop.f32.mrf.mxu0
      %v2705 = vadd.f32 0.0, %v2704
      %v2706 = vpop.f32.mrf.mxu0
      %2707 = vmatprep.mubr.f32.mxu0 0.0
      %2708 = vmatmul.mubr.f32.gmra.mxu0 %v924
      %v2709 = vpop.f32.mrf.mxu0
      %v2710 = vadd.f32 0.0, %v2709
      %v2711 = vpop.f32.mrf.mxu0
      %2712 = vmatprep.mubr.f32.mxu0 0.0
      %2713 = vmatmul.mubr.f32.gmra.mxu0 %v927
      %v2714 = vpop.f32.mrf.mxu0
      %v2715 = vadd.f32 0.0, %v2714
      %v2716 = vpop.f32.mrf.mxu0
      %2717 = vmatprep.mubr.f32.mxu0 0.0
      %2718 = vmatmul.mubr.f32.gmra.mxu0 %v930
      %v2719 = vpop.f32.mrf.mxu0
      %v2720 = vadd.f32 0.0, %v2719
      %v2721 = vpop.f32.mrf.mxu0
      %2722 = vmatprep.mubr.f32.mxu0 0.0
      %2723 = vmatmul.mubr.f32.gmra.mxu0 %v933
      %v2724 = vpop.f32.mrf.mxu0
      %v2725 = vadd.f32 0.0, %v2724
      %v2726 = vpop.f32.mrf.mxu0
      %2727 = vmatprep.mubr.f32.mxu0 0.0
      %2728 = vmatmul.mubr.f32.gmra.mxu0 %v936
      %v2729 = vpop.f32.mrf.mxu0
      %v2730 = vadd.f32 0.0, %v2729
      %v2731 = vpop.f32.mrf.mxu0
      %2732 = vmatprep.mubr.f32.mxu0 0.0
      %2733 = vmatmul.mubr.f32.gmra.mxu0 %v939
      %v2734 = vpop.f32.mrf.mxu0
      %v2735 = vadd.f32 0.0, %v2734
      %v2736 = vpop.f32.mrf.mxu0
      %2737 = vmatprep.mubr.f32.mxu0 0.0
      %2738 = vmatmul.mubr.f32.gmra.mxu0 %v942
      %v2739 = vpop.f32.mrf.mxu0
      %v2740 = vadd.f32 0.0, %v2739
      %v2741 = vpop.f32.mrf.mxu0
      %2742 = vmatprep.mubr.f32.mxu0 0.0
      %2743 = vmatmul.mubr.f32.gmra.mxu0 %v945
      %v2744 = vpop.f32.mrf.mxu0
      %v2745 = vadd.f32 0.0, %v2744
      %v2746 = vpop.f32.mrf.mxu0
      %2747 = vmatprep.mubr.f32.mxu0 0.0
      %2748 = vmatmul.mubr.f32.gmra.mxu0 %v948
      %v2749 = vpop.f32.mrf.mxu0
      %v2750 = vadd.f32 0.0, %v2749
      %v2751 = vpop.f32.mrf.mxu0
      %2752 = vmatprep.mubr.f32.mxu0 0.0
      %2753 = vmatmul.mubr.f32.gmra.mxu0 %v951
      %v2754 = vpop.f32.mrf.mxu0
      %v2755 = vadd.f32 0.0, %v2754
      %v2756 = vpop.f32.mrf.mxu0
      %2757 = vmatprep.mubr.f32.mxu0 0.0
      %2758 = vmatmul.mubr.f32.gmra.mxu0 %v954
      %v2759 = vpop.f32.mrf.mxu0
      %v2760 = vadd.f32 0.0, %v2759
      %v2761 = vpop.f32.mrf.mxu0
      %2762 = vdwg.mxu0
      %v2764 = vrot.slane %v2760, 7
      %v2797 = vrot.slane %v2605, 7
      %v2798 = vrot.slane %v2610, 7
      %v2799 = vsel %vm1184, %v2797, %v2798
      %v2800 = vrot.slane %v2615, 7
      %v2801 = vsel %vm1184, %v2798, %v2800
      %v2802 = vrot.slane %v2620, 7
      %v2803 = vsel %vm1184, %v2800, %v2802
      %v2804 = vrot.slane %v2625, 7
      %v2805 = vsel %vm1184, %v2802, %v2804
      %v2806 = vrot.slane %v2630, 7
      %v2807 = vsel %vm1184, %v2804, %v2806
      %v2808 = vrot.slane %v2635, 7
      %v2809 = vsel %vm1184, %v2806, %v2808
      %v2810 = vrot.slane %v2640, 7
      %v2811 = vsel %vm1184, %v2808, %v2810
      %v2812 = vrot.slane %v2645, 7
      %v2813 = vsel %vm1184, %v2810, %v2812
      %v2814 = vrot.slane %v2650, 7
      %v2815 = vsel %vm1184, %v2812, %v2814
      %v2816 = vrot.slane %v2655, 7
      %v2817 = vsel %vm1184, %v2814, %v2816
      %v2818 = vrot.slane %v2660, 7
      %v2819 = vsel %vm1184, %v2816, %v2818
      %v2820 = vrot.slane %v2665, 7
      %v2821 = vsel %vm1184, %v2818, %v2820
      %v2822 = vrot.slane %v2670, 7
      %v2823 = vsel %vm1184, %v2820, %v2822
      %v2824 = vrot.slane %v2675, 7
      %v2825 = vsel %vm1184, %v2822, %v2824
      %v2826 = vrot.slane %v2680, 7
      %v2827 = vsel %vm1184, %v2824, %v2826
      %v2828 = vrot.slane %v2685, 7
      %v2829 = vsel %vm1184, %v2826, %v2828
      %v2830 = vrot.slane %v2690, 7
      %v2831 = vsel %vm1184, %v2828, %v2830
      %v2832 = vrot.slane %v2695, 7
      %v2833 = vsel %vm1184, %v2830, %v2832
      %v2834 = vrot.slane %v2700, 7
      %v2835 = vsel %vm1184, %v2832, %v2834
      %v2836 = vrot.slane %v2705, 7
      %v2837 = vsel %vm1184, %v2834, %v2836
      %v2838 = vrot.slane %v2710, 7
      %v2839 = vsel %vm1184, %v2836, %v2838
      %v2840 = vrot.slane %v2715, 7
      %v2841 = vsel %vm1184, %v2838, %v2840
      %v2842 = vrot.slane %v2720, 7
      %v2843 = vsel %vm1184, %v2840, %v2842
      %v2844 = vrot.slane %v2725, 7
      %v2845 = vsel %vm1184, %v2842, %v2844
      %v2846 = vrot.slane %v2730, 7
      %v2847 = vsel %vm1184, %v2844, %v2846
      %v2848 = vrot.slane %v2735, 7
      %v2849 = vsel %vm1184, %v2846, %v2848
      %v2850 = vrot.slane %v2740, 7
      %v2851 = vsel %vm1184, %v2848, %v2850
      %v2852 = vrot.slane %v2745, 7
      %v2853 = vsel %vm1184, %v2850, %v2852
      %v2854 = vrot.slane %v2750, 7
      %v2855 = vsel %vm1184, %v2852, %v2854
      %v2856 = vrot.slane %v2755, 7
      %v2857 = vsel %vm1184, %v2854, %v2856
      %v2858 = vsel %vm1184, %v2856, %v2764
      %v2891 = vsel %vm1184, %v2764, %v2797
      %v2892 = vsel %vm792, 1, 0
      %v2893 = vsel %vm793, 1, 0
      %v2894 = vsel %vm794, 1, 0
      %v2895 = vsel %vm795, 1, 0
      %v2896 = vsel %vm796, 1, 0
      %v2897 = vsel %vm797, 1, 0
      %v2898 = vsel %vm798, 1, 0
      %v2899 = vsel %vm799, 1, 0
      %v2900 = vsel %vm800, 1, 0
      %v2901 = vsel %vm801, 1, 0
      %v2902 = vsel %vm802, 1, 0
      %v2903 = vsel %vm803, 1, 0
      %v2904 = vsel %vm804, 1, 0
      %v2905 = vsel %vm805, 1, 0
      %v2906 = vsel %vm806, 1, 0
      %v2907 = vsel %vm807, 1, 0
      %v2908 = vsel %vm808, 1, 0
      %v2909 = vsel %vm809, 1, 0
      %v2910 = vsel %vm810, 1, 0
      %v2911 = vsel %vm811, 1, 0
      %v2912 = vsel %vm812, 1, 0
      %v2913 = vsel %vm813, 1, 0
      %v2914 = vsel %vm814, 1, 0
      %v2915 = vsel %vm815, 1, 0
      %v2916 = vsel %vm816, 1, 0
      %v2917 = vsel %vm817, 1, 0
      %v2918 = vsel %vm818, 1, 0
      %v2919 = vsel %vm819, 1, 0
      %v2920 = vsel %vm820, 1, 0
      %v2921 = vsel %vm821, 1, 0
      %v2922 = vsel %vm822, 1, 0
      %v2923 = vsel %vm823, 1, 0
      %vm2924 = vcmp.eq.s32.totalorder %v2892, 1
      %vm2925 = vcmp.eq.s32.totalorder %v2893, 1
      %vm2926 = vcmp.eq.s32.totalorder %v2894, 1
      %vm2927 = vcmp.eq.s32.totalorder %v2895, 1
      %vm2928 = vcmp.eq.s32.totalorder %v2896, 1
      %vm2929 = vcmp.eq.s32.totalorder %v2897, 1
      %vm2930 = vcmp.eq.s32.totalorder %v2898, 1
      %vm2931 = vcmp.eq.s32.totalorder %v2899, 1
      %vm2932 = vcmp.eq.s32.totalorder %v2900, 1
      %vm2933 = vcmp.eq.s32.totalorder %v2901, 1
      %vm2934 = vcmp.eq.s32.totalorder %v2902, 1
      %vm2935 = vcmp.eq.s32.totalorder %v2903, 1
      %vm2936 = vcmp.eq.s32.totalorder %v2904, 1
      %vm2937 = vcmp.eq.s32.totalorder %v2905, 1
      %vm2938 = vcmp.eq.s32.totalorder %v2906, 1
      %vm2939 = vcmp.eq.s32.totalorder %v2907, 1
      %vm2940 = vcmp.eq.s32.totalorder %v2908, 1
      %vm2941 = vcmp.eq.s32.totalorder %v2909, 1
      %vm2942 = vcmp.eq.s32.totalorder %v2910, 1
      %vm2943 = vcmp.eq.s32.totalorder %v2911, 1
      %vm2944 = vcmp.eq.s32.totalorder %v2912, 1
      %vm2945 = vcmp.eq.s32.totalorder %v2913, 1
      %vm2946 = vcmp.eq.s32.totalorder %v2914, 1
      %vm2947 = vcmp.eq.s32.totalorder %v2915, 1
      %vm2948 = vcmp.eq.s32.totalorder %v2916, 1
      %vm2949 = vcmp.eq.s32.totalorder %v2917, 1
      %vm2950 = vcmp.eq.s32.totalorder %v2918, 1
      %vm2951 = vcmp.eq.s32.totalorder %v2919, 1
      %vm2952 = vcmp.eq.s32.totalorder %v2920, 1
      %vm2953 = vcmp.eq.s32.totalorder %v2921, 1
      %vm2954 = vcmp.eq.s32.totalorder %v2922, 1
      %vm2955 = vcmp.eq.s32.totalorder %v2923, 1
      %v2956 = vsel %vm2924, %v2891, 0.0
      %v2957 = vsel %vm2925, %v2799, 0.0
      %v2958 = vsel %vm2926, %v2801, 0.0
      %v2959 = vsel %vm2927, %v2803, 0.0
      %v2960 = vsel %vm2928, %v2805, 0.0
      %v2961 = vsel %vm2929, %v2807, 0.0
      %v2962 = vsel %vm2930, %v2809, 0.0
      %v2963 = vsel %vm2931, %v2811, 0.0
      %v2964 = vsel %vm2932, %v2813, 0.0
      %v2965 = vsel %vm2933, %v2815, 0.0
      %v2966 = vsel %vm2934, %v2817, 0.0
      %v2967 = vsel %vm2935, %v2819, 0.0
      %v2968 = vsel %vm2936, %v2821, 0.0
      %v2969 = vsel %vm2937, %v2823, 0.0
      %v2970 = vsel %vm2938, %v2825, 0.0
      %v2971 = vsel %vm2939, %v2827, 0.0
      %v2972 = vsel %vm2940, %v2829, 0.0
      %v2973 = vsel %vm2941, %v2831, 0.0
      %v2974 = vsel %vm2942, %v2833, 0.0
      %v2975 = vsel %vm2943, %v2835, 0.0
      %v2976 = vsel %vm2944, %v2837, 0.0
      %v2977 = vsel %vm2945, %v2839, 0.0
      %v2978 = vsel %vm2946, %v2841, 0.0
      %v2979 = vsel %vm2947, %v2843, 0.0
      %v2980 = vsel %vm2948, %v2845, 0.0
      %v2981 = vsel %vm2949, %v2847, 0.0
      %v2982 = vsel %vm2950, %v2849, 0.0
      %v2983 = vsel %vm2951, %v2851, 0.0
      %v2984 = vsel %vm2952, %v2853, 0.0
      %v2985 = vsel %vm2953, %v2855, 0.0
      %v2986 = vsel %vm2954, %v2857, 0.0
      %v2987 = vsel %vm2955, %v2858, 0.0
      %v2988 = vadd.f32 %v2504, %v2956
      %v2989 = vadd.f32 %v2505, %v2957
      %v2990 = vadd.f32 %v2506, %v2958
      %v2991 = vadd.f32 %v2507, %v2959
      %v2992 = vadd.f32 %v2508, %v2960
      %v2993 = vadd.f32 %v2509, %v2961
      %v2994 = vadd.f32 %v2510, %v2962
      %v2995 = vadd.f32 %v2511, %v2963
      %v2996 = vadd.f32 %v2512, %v2964
      %v2997 = vadd.f32 %v2513, %v2965
      %v2998 = vadd.f32 %v2514, %v2966
      %v2999 = vadd.f32 %v2515, %v2967
      %v3000 = vadd.f32 %v2516, %v2968
      %v3001 = vadd.f32 %v2517, %v2969
      %v3002 = vadd.f32 %v2518, %v2970
      %v3003 = vadd.f32 %v2519, %v2971
      %v3004 = vadd.f32 %v2520, %v2972
      %v3005 = vadd.f32 %v2521, %v2973
      %v3006 = vadd.f32 %v2522, %v2974
      %v3007 = vadd.f32 %v2523, %v2975
      %v3008 = vadd.f32 %v2524, %v2976
      %v3009 = vadd.f32 %v2525, %v2977
      %v3010 = vadd.f32 %v2526, %v2978
      %v3011 = vadd.f32 %v2527, %v2979
      %v3012 = vadd.f32 %v2528, %v2980
      %v3013 = vadd.f32 %v2529, %v2981
      %v3014 = vadd.f32 %v2530, %v2982
      %v3015 = vadd.f32 %v2531, %v2983
      %v3016 = vadd.f32 %v2532, %v2984
      %v3017 = vadd.f32 %v2533, %v2985
      %v3018 = vadd.f32 %v2534, %v2986
      %v3019 = vadd.f32 %v2535, %v2987
      %s3020 = scalar_lea.vmem %s1, 40
      %v3021 = vld [vmem:[%s3020] sm:$0xff]
      %3022 = vmatprep.subr.mxu0 0.0
      %3023 = vmatpush1.msra.mxu0 0.0
      %3024 = vmatprep.subr.mxu0 0.0
      %3025 = vmatpush1.msra.mxu0 0.0
      %3026 = vmatprep.subr.mxu0 0.0
      %3027 = vmatpush1.msra.mxu0 0.0
      %3028 = vmatprep.subr.mxu0 0.0
      %3029 = vmatpush1.msra.mxu0 0.0
      %3030 = vmatprep.subr.mxu0 0.0
      %3031 = vmatpush1.msra.mxu0 0.0
      %3032 = vmatprep.subr.mxu0 0.0
      %3033 = vmatpush1.msra.mxu0 0.0
      %3034 = vmatprep.subr.mxu0 0.0
      %3035 = vmatpush1.msra.mxu0 0.0
      %3036 = vmatprep.subr.mxu0 0.0
      %3037 = vmatpush1.msra.mxu0 0.0
      %3038 = vmatprep.subr.mxu0 0.0
      %3039 = vmatpush1.msra.mxu0 0.0
      %3040 = vmatprep.subr.mxu0 0.0
      %3041 = vmatpush1.msra.mxu0 0.0
      %3042 = vmatprep.subr.mxu0 0.0
      %3043 = vmatpush1.msra.mxu0 0.0
      %3044 = vmatprep.subr.mxu0 0.0
      %3045 = vmatpush1.msra.mxu0 0.0
      %3046 = vmatprep.subr.mxu0 0.0
      %3047 = vmatpush1.msra.mxu0 0.0
      %3048 = vmatprep.subr.mxu0 0.0
      %3049 = vmatpush1.msra.mxu0 0.0
      %3050 = vmatprep.subr.mxu0 0.0
      %3051 = vmatpush1.msra.mxu0 0.0
      %3052 = vmatprep.subr.mxu0 0.0
      %3053 = vmatpush1.msra.mxu0 %v3021
      %3054 = vmatprep.subr.mxu0 0.0
      %3055 = vmatpush2.msra.mxu0 0.0
      %3056 = vmatprep.subr.mxu0 0.0
      %3057 = vmatpush2.msra.mxu0 0.0
      %3058 = vmatprep.subr.mxu0 0.0
      %3059 = vmatpush2.msra.mxu0 0.0
      %3060 = vmatprep.subr.mxu0 0.0
      %3061 = vmatpush2.msra.mxu0 0.0
      %3062 = vmatprep.subr.mxu0 0.0
      %3063 = vmatpush2.msra.mxu0 0.0
      %3064 = vmatprep.subr.mxu0 0.0
      %3065 = vmatpush2.msra.mxu0 0.0
      %3066 = vmatprep.subr.mxu0 0.0
      %3067 = vmatpush2.msra.mxu0 0.0
      %3068 = vmatprep.subr.mxu0 0.0
      %3069 = vmatpush2.msra.mxu0 0.0
      %3070 = vmatprep.subr.mxu0 0.0
      %3071 = vmatpush2.msra.mxu0 0.0
      %3072 = vmatprep.subr.mxu0 0.0
      %3073 = vmatpush2.msra.mxu0 0.0
      %3074 = vmatprep.subr.mxu0 0.0
      %3075 = vmatpush2.msra.mxu0 0.0
      %3076 = vmatprep.subr.mxu0 0.0
      %3077 = vmatpush2.msra.mxu0 0.0
      %3078 = vmatprep.subr.mxu0 0.0
      %3079 = vmatpush2.msra.mxu0 0.0
      %3080 = vmatprep.subr.mxu0 0.0
      %3081 = vmatpush2.msra.mxu0 0.0
      %3082 = vmatprep.subr.mxu0 0.0
      %3083 = vmatpush2.msra.mxu0 0.0
      %3084 = vmatprep.subr.mxu0 0.0
      %3085 = vmatpush2.msra.mxu0 0.0
      %3086 = vmatprep.mubr.f32.mxu0 0.0
      %3087 = vmatmul.mubr.f32.gmra.mxu0 %v861
      %v3088 = vpop.f32.mrf.mxu0
      %v3089 = vadd.f32 0.0, %v3088
      %v3090 = vpop.f32.mrf.mxu0
      %3091 = vmatprep.mubr.f32.mxu0 0.0
      %3092 = vmatmul.mubr.f32.gmra.mxu0 %v864
      %v3093 = vpop.f32.mrf.mxu0
      %v3094 = vadd.f32 0.0, %v3093
      %v3095 = vpop.f32.mrf.mxu0
      %3096 = vmatprep.mubr.f32.mxu0 0.0
      %3097 = vmatmul.mubr.f32.gmra.mxu0 %v867
      %v3098 = vpop.f32.mrf.mxu0
      %v3099 = vadd.f32 0.0, %v3098
      %v3100 = vpop.f32.mrf.mxu0
      %3101 = vmatprep.mubr.f32.mxu0 0.0
      %3102 = vmatmul.mubr.f32.gmra.mxu0 %v870
      %v3103 = vpop.f32.mrf.mxu0
      %v3104 = vadd.f32 0.0, %v3103
      %v3105 = vpop.f32.mrf.mxu0
      %3106 = vmatprep.mubr.f32.mxu0 0.0
      %3107 = vmatmul.mubr.f32.gmra.mxu0 %v873
      %v3108 = vpop.f32.mrf.mxu0
      %v3109 = vadd.f32 0.0, %v3108
      %v3110 = vpop.f32.mrf.mxu0
      %3111 = vmatprep.mubr.f32.mxu0 0.0
      %3112 = vmatmul.mubr.f32.gmra.mxu0 %v876
      %v3113 = vpop.f32.mrf.mxu0
      %v3114 = vadd.f32 0.0, %v3113
      %v3115 = vpop.f32.mrf.mxu0
      %3116 = vmatprep.mubr.f32.mxu0 0.0
      %3117 = vmatmul.mubr.f32.gmra.mxu0 %v879
      %v3118 = vpop.f32.mrf.mxu0
      %v3119 = vadd.f32 0.0, %v3118
      %v3120 = vpop.f32.mrf.mxu0
      %3121 = vmatprep.mubr.f32.mxu0 0.0
      %3122 = vmatmul.mubr.f32.gmra.mxu0 %v882
      %v3123 = vpop.f32.mrf.mxu0
      %v3124 = vadd.f32 0.0, %v3123
      %v3125 = vpop.f32.mrf.mxu0
      %3126 = vmatprep.mubr.f32.mxu0 0.0
      %3127 = vmatmul.mubr.f32.gmra.mxu0 %v885
      %v3128 = vpop.f32.mrf.mxu0
      %v3129 = vadd.f32 0.0, %v3128
      %v3130 = vpop.f32.mrf.mxu0
      %3131 = vmatprep.mubr.f32.mxu0 0.0
      %3132 = vmatmul.mubr.f32.gmra.mxu0 %v888
      %v3133 = vpop.f32.mrf.mxu0
      %v3134 = vadd.f32 0.0, %v3133
      %v3135 = vpop.f32.mrf.mxu0
      %3136 = vmatprep.mubr.f32.mxu0 0.0
      %3137 = vmatmul.mubr.f32.gmra.mxu0 %v891
      %v3138 = vpop.f32.mrf.mxu0
      %v3139 = vadd.f32 0.0, %v3138
      %v3140 = vpop.f32.mrf.mxu0
      %3141 = vmatprep.mubr.f32.mxu0 0.0
      %3142 = vmatmul.mubr.f32.gmra.mxu0 %v894
      %v3143 = vpop.f32.mrf.mxu0
      %v3144 = vadd.f32 0.0, %v3143
      %v3145 = vpop.f32.mrf.mxu0
      %3146 = vmatprep.mubr.f32.mxu0 0.0
      %3147 = vmatmul.mubr.f32.gmra.mxu0 %v897
      %v3148 = vpop.f32.mrf.mxu0
      %v3149 = vadd.f32 0.0, %v3148
      %v3150 = vpop.f32.mrf.mxu0
      %3151 = vmatprep.mubr.f32.mxu0 0.0
      %3152 = vmatmul.mubr.f32.gmra.mxu0 %v900
      %v3153 = vpop.f32.mrf.mxu0
      %v3154 = vadd.f32 0.0, %v3153
      %v3155 = vpop.f32.mrf.mxu0
      %3156 = vmatprep.mubr.f32.mxu0 0.0
      %3157 = vmatmul.mubr.f32.gmra.mxu0 %v903
      %v3158 = vpop.f32.mrf.mxu0
      %v3159 = vadd.f32 0.0, %v3158
      %v3160 = vpop.f32.mrf.mxu0
      %3161 = vmatprep.mubr.f32.mxu0 0.0
      %3162 = vmatmul.mubr.f32.gmra.mxu0 %v906
      %v3163 = vpop.f32.mrf.mxu0
      %v3164 = vadd.f32 0.0, %v3163
      %v3165 = vpop.f32.mrf.mxu0
      %3166 = vmatprep.mubr.f32.mxu0 0.0
      %3167 = vmatmul.mubr.f32.gmra.mxu0 %v909
      %v3168 = vpop.f32.mrf.mxu0
      %v3169 = vadd.f32 0.0, %v3168
      %v3170 = vpop.f32.mrf.mxu0
      %3171 = vmatprep.mubr.f32.mxu0 0.0
      %3172 = vmatmul.mubr.f32.gmra.mxu0 %v912
      %v3173 = vpop.f32.mrf.mxu0
      %v3174 = vadd.f32 0.0, %v3173
      %v3175 = vpop.f32.mrf.mxu0
      %3176 = vmatprep.mubr.f32.mxu0 0.0
      %3177 = vmatmul.mubr.f32.gmra.mxu0 %v915
      %v3178 = vpop.f32.mrf.mxu0
      %v3179 = vadd.f32 0.0, %v3178
      %v3180 = vpop.f32.mrf.mxu0
      %3181 = vmatprep.mubr.f32.mxu0 0.0
      %3182 = vmatmul.mubr.f32.gmra.mxu0 %v918
      %v3183 = vpop.f32.mrf.mxu0
      %v3184 = vadd.f32 0.0, %v3183
      %v3185 = vpop.f32.mrf.mxu0
      %3186 = vmatprep.mubr.f32.mxu0 0.0
      %3187 = vmatmul.mubr.f32.gmra.mxu0 %v921
      %v3188 = vpop.f32.mrf.mxu0
      %v3189 = vadd.f32 0.0, %v3188
      %v3190 = vpop.f32.mrf.mxu0
      %3191 = vmatprep.mubr.f32.mxu0 0.0
      %3192 = vmatmul.mubr.f32.gmra.mxu0 %v924
      %v3193 = vpop.f32.mrf.mxu0
      %v3194 = vadd.f32 0.0, %v3193
      %v3195 = vpop.f32.mrf.mxu0
      %3196 = vmatprep.mubr.f32.mxu0 0.0
      %3197 = vmatmul.mubr.f32.gmra.mxu0 %v927
      %v3198 = vpop.f32.mrf.mxu0
      %v3199 = vadd.f32 0.0, %v3198
      %v3200 = vpop.f32.mrf.mxu0
      %3201 = vmatprep.mubr.f32.mxu0 0.0
      %3202 = vmatmul.mubr.f32.gmra.mxu0 %v930
      %v3203 = vpop.f32.mrf.mxu0
      %v3204 = vadd.f32 0.0, %v3203
      %v3205 = vpop.f32.mrf.mxu0
      %3206 = vmatprep.mubr.f32.mxu0 0.0
      %3207 = vmatmul.mubr.f32.gmra.mxu0 %v933
      %v3208 = vpop.f32.mrf.mxu0
      %v3209 = vadd.f32 0.0, %v3208
      %v3210 = vpop.f32.mrf.mxu0
      %3211 = vmatprep.mubr.f32.mxu0 0.0
      %3212 = vmatmul.mubr.f32.gmra.mxu0 %v936
      %v3213 = vpop.f32.mrf.mxu0
      %v3214 = vadd.f32 0.0, %v3213
      %v3215 = vpop.f32.mrf.mxu0
      %3216 = vmatprep.mubr.f32.mxu0 0.0
      %3217 = vmatmul.mubr.f32.gmra.mxu0 %v939
      %v3218 = vpop.f32.mrf.mxu0
      %v3219 = vadd.f32 0.0, %v3218
      %v3220 = vpop.f32.mrf.mxu0
      %3221 = vmatprep.mubr.f32.mxu0 0.0
      %3222 = vmatmul.mubr.f32.gmra.mxu0 %v942
      %v3223 = vpop.f32.mrf.mxu0
      %v3224 = vadd.f32 0.0, %v3223
      %v3225 = vpop.f32.mrf.mxu0
      %3226 = vmatprep.mubr.f32.mxu0 0.0
      %3227 = vmatmul.mubr.f32.gmra.mxu0 %v945
      %v3228 = vpop.f32.mrf.mxu0
      %v3229 = vadd.f32 0.0, %v3228
      %v3230 = vpop.f32.mrf.mxu0
      %3231 = vmatprep.mubr.f32.mxu0 0.0
      %3232 = vmatmul.mubr.f32.gmra.mxu0 %v948
      %v3233 = vpop.f32.mrf.mxu0
      %v3234 = vadd.f32 0.0, %v3233
      %v3235 = vpop.f32.mrf.mxu0
      %3236 = vmatprep.mubr.f32.mxu0 0.0
      %3237 = vmatmul.mubr.f32.gmra.mxu0 %v951
      %v3238 = vpop.f32.mrf.mxu0
      %v3239 = vadd.f32 0.0, %v3238
      %v3240 = vpop.f32.mrf.mxu0
      %3241 = vmatprep.mubr.f32.mxu0 0.0
      %3242 = vmatmul.mubr.f32.gmra.mxu0 %v954
      %v3243 = vpop.f32.mrf.mxu0
      %v3244 = vadd.f32 0.0, %v3243
      %v3245 = vpop.f32.mrf.mxu0
      %3246 = vdwg.mxu0
      %v3279 = vrot.slane %v3089, 1
      %v3280 = vrot.slane %v3094, 1
      %v3281 = vsel %vm2248, %v3279, %v3280
      %v3282 = vrot.slane %v3099, 1
      %v3283 = vsel %vm2248, %v3280, %v3282
      %v3284 = vrot.slane %v3104, 1
      %v3285 = vsel %vm2248, %v3282, %v3284
      %v3286 = vrot.slane %v3109, 1
      %v3287 = vsel %vm2248, %v3284, %v3286
      %v3288 = vrot.slane %v3114, 1
      %v3289 = vsel %vm2248, %v3286, %v3288
      %v3290 = vrot.slane %v3119, 1
      %v3291 = vsel %vm2248, %v3288, %v3290
      %v3292 = vrot.slane %v3124, 1
      %v3293 = vsel %vm2248, %v3290, %v3292
      %v3294 = vrot.slane %v3129, 1
      %v3295 = vsel %vm2248, %v3292, %v3294
      %v3296 = vrot.slane %v3134, 1
      %v3297 = vsel %vm2248, %v3294, %v3296
      %v3298 = vrot.slane %v3139, 1
      %v3299 = vsel %vm2248, %v3296, %v3298
      %v3300 = vrot.slane %v3144, 1
      %v3301 = vsel %vm2248, %v3298, %v3300
      %v3302 = vrot.slane %v3149, 1
      %v3303 = vsel %vm2248, %v3300, %v3302
      %v3304 = vrot.slane %v3154, 1
      %v3305 = vsel %vm2248, %v3302, %v3304
      %v3306 = vrot.slane %v3159, 1
      %v3307 = vsel %vm2248, %v3304, %v3306
      %v3308 = vrot.slane %v3164, 1
      %v3309 = vsel %vm2248, %v3306, %v3308
      %v3310 = vrot.slane %v3169, 1
      %v3311 = vsel %vm2248, %v3308, %v3310
      %v3312 = vrot.slane %v3174, 1
      %v3313 = vsel %vm2248, %v3310, %v3312
      %v3314 = vrot.slane %v3179, 1
      %v3315 = vsel %vm2248, %v3312, %v3314
      %v3316 = vrot.slane %v3184, 1
      %v3317 = vsel %vm2248, %v3314, %v3316
      %v3318 = vrot.slane %v3189, 1
      %v3319 = vsel %vm2248, %v3316, %v3318
      %v3320 = vrot.slane %v3194, 1
      %v3321 = vsel %vm2248, %v3318, %v3320
      %v3322 = vrot.slane %v3199, 1
      %v3323 = vsel %vm2248, %v3320, %v3322
      %v3324 = vrot.slane %v3204, 1
      %v3325 = vsel %vm2248, %v3322, %v3324
      %v3326 = vrot.slane %v3209, 1
      %v3327 = vsel %vm2248, %v3324, %v3326
      %v3328 = vrot.slane %v3214, 1
      %v3329 = vsel %vm2248, %v3326, %v3328
      %v3330 = vrot.slane %v3219, 1
      %v3331 = vsel %vm2248, %v3328, %v3330
      %v3332 = vrot.slane %v3224, 1
      %v3333 = vsel %vm2248, %v3330, %v3332
      %v3334 = vrot.slane %v3229, 1
      %v3335 = vsel %vm2248, %v3332, %v3334
      %v3336 = vrot.slane %v3234, 1
      %v3337 = vsel %vm2248, %v3334, %v3336
      %v3338 = vrot.slane %v3239, 1
      %v3339 = vsel %vm2248, %v3336, %v3338
      %v3340 = vrot.slane %v3244, 1
      %v3341 = vsel %vm2248, %v3338, %v3340
      %v3375 = vsel %vm2248, %v3340, %v3279
      %v3376 = vsel %vm824, 1, 0
      %v3377 = vsel %vm825, 1, 0
      %v3378 = vsel %vm826, 1, 0
      %v3379 = vsel %vm827, 1, 0
      %v3380 = vsel %vm828, 1, 0
      %v3381 = vsel %vm829, 1, 0
      %v3382 = vsel %vm830, 1, 0
      %v3383 = vsel %vm831, 1, 0
      %v3384 = vsel %vm832, 1, 0
      %v3385 = vsel %vm833, 1, 0
      %v3386 = vsel %vm834, 1, 0
      %v3387 = vsel %vm835, 1, 0
      %v3388 = vsel %vm836, 1, 0
      %v3389 = vsel %vm837, 1, 0
      %v3390 = vsel %vm838, 1, 0
      %v3391 = vsel %vm839, 1, 0
      %v3392 = vsel %vm840, 1, 0
      %v3393 = vsel %vm841, 1, 0
      %v3394 = vsel %vm842, 1, 0
      %v3395 = vsel %vm843, 1, 0
      %v3396 = vsel %vm844, 1, 0
      %v3397 = vsel %vm845, 1, 0
      %v3398 = vsel %vm846, 1, 0
      %v3399 = vsel %vm847, 1, 0
      %v3400 = vsel %vm848, 1, 0
      %v3401 = vsel %vm849, 1, 0
      %v3402 = vsel %vm850, 1, 0
      %v3403 = vsel %vm851, 1, 0
      %v3404 = vsel %vm852, 1, 0
      %v3405 = vsel %vm853, 1, 0
      %v3406 = vsel %vm854, 1, 0
      %v3407 = vsel %vm855, 1, 0
      %vm3408 = vcmp.eq.s32.totalorder %v3376, 1
      %vm3409 = vcmp.eq.s32.totalorder %v3377, 1
      %vm3410 = vcmp.eq.s32.totalorder %v3378, 1
      %vm3411 = vcmp.eq.s32.totalorder %v3379, 1
      %vm3412 = vcmp.eq.s32.totalorder %v3380, 1
      %vm3413 = vcmp.eq.s32.totalorder %v3381, 1
      %vm3414 = vcmp.eq.s32.totalorder %v3382, 1
      %vm3415 = vcmp.eq.s32.totalorder %v3383, 1
      %vm3416 = vcmp.eq.s32.totalorder %v3384, 1
      %vm3417 = vcmp.eq.s32.totalorder %v3385, 1
      %vm3418 = vcmp.eq.s32.totalorder %v3386, 1
      %vm3419 = vcmp.eq.s32.totalorder %v3387, 1
      %vm3420 = vcmp.eq.s32.totalorder %v3388, 1
      %vm3421 = vcmp.eq.s32.totalorder %v3389, 1
      %vm3422 = vcmp.eq.s32.totalorder %v3390, 1
      %vm3423 = vcmp.eq.s32.totalorder %v3391, 1
      %vm3424 = vcmp.eq.s32.totalorder %v3392, 1
      %vm3425 = vcmp.eq.s32.totalorder %v3393, 1
      %vm3426 = vcmp.eq.s32.totalorder %v3394, 1
      %vm3427 = vcmp.eq.s32.totalorder %v3395, 1
      %vm3428 = vcmp.eq.s32.totalorder %v3396, 1
      %vm3429 = vcmp.eq.s32.totalorder %v3397, 1
      %vm3430 = vcmp.eq.s32.totalorder %v3398, 1
      %vm3431 = vcmp.eq.s32.totalorder %v3399, 1
      %vm3432 = vcmp.eq.s32.totalorder %v3400, 1
      %vm3433 = vcmp.eq.s32.totalorder %v3401, 1
      %vm3434 = vcmp.eq.s32.totalorder %v3402, 1
      %vm3435 = vcmp.eq.s32.totalorder %v3403, 1
      %vm3436 = vcmp.eq.s32.totalorder %v3404, 1
      %vm3437 = vcmp.eq.s32.totalorder %v3405, 1
      %vm3438 = vcmp.eq.s32.totalorder %v3406, 1
      %vm3439 = vcmp.eq.s32.totalorder %v3407, 1
      %v3440 = vsel %vm3408, %v3281, 0.0
      %v3441 = vsel %vm3409, %v3283, 0.0
      %v3442 = vsel %vm3410, %v3285, 0.0
      %v3443 = vsel %vm3411, %v3287, 0.0
      %v3444 = vsel %vm3412, %v3289, 0.0
      %v3445 = vsel %vm3413, %v3291, 0.0
      %v3446 = vsel %vm3414, %v3293, 0.0
      %v3447 = vsel %vm3415, %v3295, 0.0
      %v3448 = vsel %vm3416, %v3297, 0.0
      %v3449 = vsel %vm3417, %v3299, 0.0
      %v3450 = vsel %vm3418, %v3301, 0.0
      %v3451 = vsel %vm3419, %v3303, 0.0
      %v3452 = vsel %vm3420, %v3305, 0.0
      %v3453 = vsel %vm3421, %v3307, 0.0
      %v3454 = vsel %vm3422, %v3309, 0.0
      %v3455 = vsel %vm3423, %v3311, 0.0
      %v3456 = vsel %vm3424, %v3313, 0.0
      %v3457 = vsel %vm3425, %v3315, 0.0
      %v3458 = vsel %vm3426, %v3317, 0.0
      %v3459 = vsel %vm3427, %v3319, 0.0
      %v3460 = vsel %vm3428, %v3321, 0.0
      %v3461 = vsel %vm3429, %v3323, 0.0
      %v3462 = vsel %vm3430, %v3325, 0.0
      %v3463 = vsel %vm3431, %v3327, 0.0
      %v3464 = vsel %vm3432, %v3329, 0.0
      %v3465 = vsel %vm3433, %v3331, 0.0
      %v3466 = vsel %vm3434, %v3333, 0.0
      %v3467 = vsel %vm3435, %v3335, 0.0
      %v3468 = vsel %vm3436, %v3337, 0.0
      %v3469 = vsel %vm3437, %v3339, 0.0
      %v3470 = vsel %vm3438, %v3341, 0.0
      %v3471 = vsel %vm3439, %v3375, 0.0
      %v3472 = vadd.f32 %v2988, %v3440
      %v3473 = vadd.f32 %v2989, %v3441
      %v3474 = vadd.f32 %v2990, %v3442
      %v3475 = vadd.f32 %v2991, %v3443
      %v3476 = vadd.f32 %v2992, %v3444
      %v3477 = vadd.f32 %v2993, %v3445
      %v3478 = vadd.f32 %v2994, %v3446
      %v3479 = vadd.f32 %v2995, %v3447
      %v3480 = vadd.f32 %v2996, %v3448
      %v3481 = vadd.f32 %v2997, %v3449
      %v3482 = vadd.f32 %v2998, %v3450
      %v3483 = vadd.f32 %v2999, %v3451
      %v3484 = vadd.f32 %v3000, %v3452
      %v3485 = vadd.f32 %v3001, %v3453
      %v3486 = vadd.f32 %v3002, %v3454
      %v3487 = vadd.f32 %v3003, %v3455
      %v3488 = vadd.f32 %v3004, %v3456
      %v3489 = vadd.f32 %v3005, %v3457
      %v3490 = vadd.f32 %v3006, %v3458
      %v3491 = vadd.f32 %v3007, %v3459
      %v3492 = vadd.f32 %v3008, %v3460
      %v3493 = vadd.f32 %v3009, %v3461
      %v3494 = vadd.f32 %v3010, %v3462
      %v3495 = vadd.f32 %v3011, %v3463
      %v3496 = vadd.f32 %v3012, %v3464
      %v3497 = vadd.f32 %v3013, %v3465
      %v3498 = vadd.f32 %v3014, %v3466
      %v3499 = vadd.f32 %v3015, %v3467
      %v3500 = vadd.f32 %v3016, %v3468
      %v3501 = vadd.f32 %v3017, %v3469
      %v3502 = vadd.f32 %v3018, %v3470
      %v3503 = vadd.f32 %v3019, %v3471
      %s3504 = scalar_lea.vmem %s1, 48
      %v3505 = vld [vmem:[%s3504] sm:$0xff]
      %3506 = vmatprep.subr.mxu0 0.0
      %3507 = vmatpush1.msra.mxu0 0.0
      %3508 = vmatprep.subr.mxu0 0.0
      %3509 = vmatpush1.msra.mxu0 0.0
      %3510 = vmatprep.subr.mxu0 0.0
      %3511 = vmatpush1.msra.mxu0 0.0
      %3512 = vmatprep.subr.mxu0 0.0
      %3513 = vmatpush1.msra.mxu0 0.0
      %3514 = vmatprep.subr.mxu0 0.0
      %3515 = vmatpush1.msra.mxu0 0.0
      %3516 = vmatprep.subr.mxu0 0.0
      %3517 = vmatpush1.msra.mxu0 0.0
      %3518 = vmatprep.subr.mxu0 0.0
      %3519 = vmatpush1.msra.mxu0 0.0
      %3520 = vmatprep.subr.mxu0 0.0
      %3521 = vmatpush1.msra.mxu0 0.0
      %3522 = vmatprep.subr.mxu0 0.0
      %3523 = vmatpush1.msra.mxu0 0.0
      %3524 = vmatprep.subr.mxu0 0.0
      %3525 = vmatpush1.msra.mxu0 0.0
      %3526 = vmatprep.subr.mxu0 0.0
      %3527 = vmatpush1.msra.mxu0 0.0
      %3528 = vmatprep.subr.mxu0 0.0
      %3529 = vmatpush1.msra.mxu0 0.0
      %3530 = vmatprep.subr.mxu0 0.0
      %3531 = vmatpush1.msra.mxu0 0.0
      %3532 = vmatprep.subr.mxu0 0.0
      %3533 = vmatpush1.msra.mxu0 0.0
      %3534 = vmatprep.subr.mxu0 0.0
      %3535 = vmatpush1.msra.mxu0 0.0
      %3536 = vmatprep.subr.mxu0 0.0
      %3537 = vmatpush1.msra.mxu0 %v3505
      %3538 = vmatprep.subr.mxu0 0.0
      %3539 = vmatpush2.msra.mxu0 0.0
      %3540 = vmatprep.subr.mxu0 0.0
      %3541 = vmatpush2.msra.mxu0 0.0
      %3542 = vmatprep.subr.mxu0 0.0
      %3543 = vmatpush2.msra.mxu0 0.0
      %3544 = vmatprep.subr.mxu0 0.0
      %3545 = vmatpush2.msra.mxu0 0.0
      %3546 = vmatprep.subr.mxu0 0.0
      %3547 = vmatpush2.msra.mxu0 0.0
      %3548 = vmatprep.subr.mxu0 0.0
      %3549 = vmatpush2.msra.mxu0 0.0
      %3550 = vmatprep.subr.mxu0 0.0
      %3551 = vmatpush2.msra.mxu0 0.0
      %3552 = vmatprep.subr.mxu0 0.0
      %3553 = vmatpush2.msra.mxu0 0.0
      %3554 = vmatprep.subr.mxu0 0.0
      %3555 = vmatpush2.msra.mxu0 0.0
      %3556 = vmatprep.subr.mxu0 0.0
      %3557 = vmatpush2.msra.mxu0 0.0
      %3558 = vmatprep.subr.mxu0 0.0
      %3559 = vmatpush2.msra.mxu0 0.0
      %3560 = vmatprep.subr.mxu0 0.0
      %3561 = vmatpush2.msra.mxu0 0.0
      %3562 = vmatprep.subr.mxu0 0.0
      %3563 = vmatpush2.msra.mxu0 0.0
      %3564 = vmatprep.subr.mxu0 0.0
      %3565 = vmatpush2.msra.mxu0 0.0
      %3566 = vmatprep.subr.mxu0 0.0
      %3567 = vmatpush2.msra.mxu0 0.0
      %3568 = vmatprep.subr.mxu0 0.0
      %3569 = vmatpush2.msra.mxu0 0.0
      %3570 = vmatprep.mubr.f32.mxu0 0.0
      %3571 = vmatmul.mubr.f32.gmra.mxu0 %v861
      %v3572 = vpop.f32.mrf.mxu0
      %v3573 = vadd.f32 0.0, %v3572
      %v3574 = vpop.f32.mrf.mxu0
      %3575 = vmatprep.mubr.f32.mxu0 0.0
      %3576 = vmatmul.mubr.f32.gmra.mxu0 %v864
      %v3577 = vpop.f32.mrf.mxu0
      %v3578 = vadd.f32 0.0, %v3577
      %v3579 = vpop.f32.mrf.mxu0
      %3580 = vmatprep.mubr.f32.mxu0 0.0
      %3581 = vmatmul.mubr.f32.gmra.mxu0 %v867
      %v3582 = vpop.f32.mrf.mxu0
      %v3583 = vadd.f32 0.0, %v3582
      %v3584 = vpop.f32.mrf.mxu0
      %3585 = vmatprep.mubr.f32.mxu0 0.0
      %3586 = vmatmul.mubr.f32.gmra.mxu0 %v870
      %v3587 = vpop.f32.mrf.mxu0
      %v3588 = vadd.f32 0.0, %v3587
      %v3589 = vpop.f32.mrf.mxu0
      %3590 = vmatprep.mubr.f32.mxu0 0.0
      %3591 = vmatmul.mubr.f32.gmra.mxu0 %v873
      %v3592 = vpop.f32.mrf.mxu0
      %v3593 = vadd.f32 0.0, %v3592
      %v3594 = vpop.f32.mrf.mxu0
      %3595 = vmatprep.mubr.f32.mxu0 0.0
      %3596 = vmatmul.mubr.f32.gmra.mxu0 %v876
      %v3597 = vpop.f32.mrf.mxu0
      %v3598 = vadd.f32 0.0, %v3597
      %v3599 = vpop.f32.mrf.mxu0
      %3600 = vmatprep.mubr.f32.mxu0 0.0
      %3601 = vmatmul.mubr.f32.gmra.mxu0 %v879
      %v3602 = vpop.f32.mrf.mxu0
      %v3603 = vadd.f32 0.0, %v3602
      %v3604 = vpop.f32.mrf.mxu0
      %3605 = vmatprep.mubr.f32.mxu0 0.0
      %3606 = vmatmul.mubr.f32.gmra.mxu0 %v882
      %v3607 = vpop.f32.mrf.mxu0
      %v3608 = vadd.f32 0.0, %v3607
      %v3609 = vpop.f32.mrf.mxu0
      %3610 = vmatprep.mubr.f32.mxu0 0.0
      %3611 = vmatmul.mubr.f32.gmra.mxu0 %v885
      %v3612 = vpop.f32.mrf.mxu0
      %v3613 = vadd.f32 0.0, %v3612
      %v3614 = vpop.f32.mrf.mxu0
      %3615 = vmatprep.mubr.f32.mxu0 0.0
      %3616 = vmatmul.mubr.f32.gmra.mxu0 %v888
      %v3617 = vpop.f32.mrf.mxu0
      %v3618 = vadd.f32 0.0, %v3617
      %v3619 = vpop.f32.mrf.mxu0
      %3620 = vmatprep.mubr.f32.mxu0 0.0
      %3621 = vmatmul.mubr.f32.gmra.mxu0 %v891
      %v3622 = vpop.f32.mrf.mxu0
      %v3623 = vadd.f32 0.0, %v3622
      %v3624 = vpop.f32.mrf.mxu0
      %3625 = vmatprep.mubr.f32.mxu0 0.0
      %3626 = vmatmul.mubr.f32.gmra.mxu0 %v894
      %v3627 = vpop.f32.mrf.mxu0
      %v3628 = vadd.f32 0.0, %v3627
      %v3629 = vpop.f32.mrf.mxu0
      %3630 = vmatprep.mubr.f32.mxu0 0.0
      %3631 = vmatmul.mubr.f32.gmra.mxu0 %v897
      %v3632 = vpop.f32.mrf.mxu0
      %v3633 = vadd.f32 0.0, %v3632
      %v3634 = vpop.f32.mrf.mxu0
      %3635 = vmatprep.mubr.f32.mxu0 0.0
      %3636 = vmatmul.mubr.f32.gmra.mxu0 %v900
      %v3637 = vpop.f32.mrf.mxu0
      %v3638 = vadd.f32 0.0, %v3637
      %v3639 = vpop.f32.mrf.mxu0
      %3640 = vmatprep.mubr.f32.mxu0 0.0
      %3641 = vmatmul.mubr.f32.gmra.mxu0 %v903
      %v3642 = vpop.f32.mrf.mxu0
      %v3643 = vadd.f32 0.0, %v3642
      %v3644 = vpop.f32.mrf.mxu0
      %3645 = vmatprep.mubr.f32.mxu0 0.0
      %3646 = vmatmul.mubr.f32.gmra.mxu0 %v906
      %v3647 = vpop.f32.mrf.mxu0
      %v3648 = vadd.f32 0.0, %v3647
      %v3649 = vpop.f32.mrf.mxu0
      %3650 = vmatprep.mubr.f32.mxu0 0.0
      %3651 = vmatmul.mubr.f32.gmra.mxu0 %v909
      %v3652 = vpop.f32.mrf.mxu0
      %v3653 = vadd.f32 0.0, %v3652
      %v3654 = vpop.f32.mrf.mxu0
      %3655 = vmatprep.mubr.f32.mxu0 0.0
      %3656 = vmatmul.mubr.f32.gmra.mxu0 %v912
      %v3657 = vpop.f32.mrf.mxu0
      %v3658 = vadd.f32 0.0, %v3657
      %v3659 = vpop.f32.mrf.mxu0
      %3660 = vmatprep.mubr.f32.mxu0 0.0
      %3661 = vmatmul.mubr.f32.gmra.mxu0 %v915
      %v3662 = vpop.f32.mrf.mxu0
      %v3663 = vadd.f32 0.0, %v3662
      %v3664 = vpop.f32.mrf.mxu0
      %3665 = vmatprep.mubr.f32.mxu0 0.0
      %3666 = vmatmul.mubr.f32.gmra.mxu0 %v918
      %v3667 = vpop.f32.mrf.mxu0
      %v3668 = vadd.f32 0.0, %v3667
      %v3669 = vpop.f32.mrf.mxu0
      %3670 = vmatprep.mubr.f32.mxu0 0.0
      %3671 = vmatmul.mubr.f32.gmra.mxu0 %v921
      %v3672 = vpop.f32.mrf.mxu0
      %v3673 = vadd.f32 0.0, %v3672
      %v3674 = vpop.f32.mrf.mxu0
      %3675 = vmatprep.mubr.f32.mxu0 0.0
      %3676 = vmatmul.mubr.f32.gmra.mxu0 %v924
      %v3677 = vpop.f32.mrf.mxu0
      %v3678 = vadd.f32 0.0, %v3677
      %v3679 = vpop.f32.mrf.mxu0
      %3680 = vmatprep.mubr.f32.mxu0 0.0
      %3681 = vmatmul.mubr.f32.gmra.mxu0 %v927
      %v3682 = vpop.f32.mrf.mxu0
      %v3683 = vadd.f32 0.0, %v3682
      %v3684 = vpop.f32.mrf.mxu0
      %3685 = vmatprep.mubr.f32.mxu0 0.0
      %3686 = vmatmul.mubr.f32.gmra.mxu0 %v930
      %v3687 = vpop.f32.mrf.mxu0
      %v3688 = vadd.f32 0.0, %v3687
      %v3689 = vpop.f32.mrf.mxu0
      %3690 = vmatprep.mubr.f32.mxu0 0.0
      %3691 = vmatmul.mubr.f32.gmra.mxu0 %v933
      %v3692 = vpop.f32.mrf.mxu0
      %v3693 = vadd.f32 0.0, %v3692
      %v3694 = vpop.f32.mrf.mxu0
      %3695 = vmatprep.mubr.f32.mxu0 0.0
      %3696 = vmatmul.mubr.f32.gmra.mxu0 %v936
      %v3697 = vpop.f32.mrf.mxu0
      %v3698 = vadd.f32 0.0, %v3697
      %v3699 = vpop.f32.mrf.mxu0
      %3700 = vmatprep.mubr.f32.mxu0 0.0
      %3701 = vmatmul.mubr.f32.gmra.mxu0 %v939
      %v3702 = vpop.f32.mrf.mxu0
      %v3703 = vadd.f32 0.0, %v3702
      %v3704 = vpop.f32.mrf.mxu0
      %3705 = vmatprep.mubr.f32.mxu0 0.0
      %3706 = vmatmul.mubr.f32.gmra.mxu0 %v942
      %v3707 = vpop.f32.mrf.mxu0
      %v3708 = vadd.f32 0.0, %v3707
      %v3709 = vpop.f32.mrf.mxu0
      %3710 = vmatprep.mubr.f32.mxu0 0.0
      %3711 = vmatmul.mubr.f32.gmra.mxu0 %v945
      %v3712 = vpop.f32.mrf.mxu0
      %v3713 = vadd.f32 0.0, %v3712
      %v3714 = vpop.f32.mrf.mxu0
      %3715 = vmatprep.mubr.f32.mxu0 0.0
      %3716 = vmatmul.mubr.f32.gmra.mxu0 %v948
      %v3717 = vpop.f32.mrf.mxu0
      %v3718 = vadd.f32 0.0, %v3717
      %v3719 = vpop.f32.mrf.mxu0
      %3720 = vmatprep.mubr.f32.mxu0 0.0
      %3721 = vmatmul.mubr.f32.gmra.mxu0 %v951
      %v3722 = vpop.f32.mrf.mxu0
      %v3723 = vadd.f32 0.0, %v3722
      %v3724 = vpop.f32.mrf.mxu0
      %3725 = vmatprep.mubr.f32.mxu0 0.0
      %3726 = vmatmul.mubr.f32.gmra.mxu0 %v954
      %v3727 = vpop.f32.mrf.mxu0
      %v3728 = vadd.f32 0.0, %v3727
      %v3729 = vpop.f32.mrf.mxu0
      %3730 = vdwg.mxu0
      %v3762 = vrot.slane %v3578, 7
      %v3763 = vrot.slane %v3583, 7
      %v3764 = vsel %vm1184, %v3762, %v3763
      %v3765 = vrot.slane %v3588, 7
      %v3766 = vsel %vm1184, %v3763, %v3765
      %v3767 = vrot.slane %v3593, 7
      %v3768 = vsel %vm1184, %v3765, %v3767
      %v3769 = vrot.slane %v3598, 7
      %v3770 = vsel %vm1184, %v3767, %v3769
      %v3771 = vrot.slane %v3603, 7
      %v3772 = vsel %vm1184, %v3769, %v3771
      %v3773 = vrot.slane %v3608, 7
      %v3774 = vsel %vm1184, %v3771, %v3773
      %v3775 = vrot.slane %v3613, 7
      %v3776 = vsel %vm1184, %v3773, %v3775
      %v3777 = vrot.slane %v3618, 7
      %v3778 = vsel %vm1184, %v3775, %v3777
      %v3779 = vrot.slane %v3623, 7
      %v3780 = vsel %vm1184, %v3777, %v3779
      %v3781 = vrot.slane %v3628, 7
      %v3782 = vsel %vm1184, %v3779, %v3781
      %v3783 = vrot.slane %v3633, 7
      %v3784 = vsel %vm1184, %v3781, %v3783
      %v3785 = vrot.slane %v3638, 7
      %v3786 = vsel %vm1184, %v3783, %v3785
      %v3787 = vrot.slane %v3643, 7
      %v3788 = vsel %vm1184, %v3785, %v3787
      %v3789 = vrot.slane %v3648, 7
      %v3790 = vsel %vm1184, %v3787, %v3789
      %v3791 = vrot.slane %v3653, 7
      %v3792 = vsel %vm1184, %v3789, %v3791
      %v3793 = vrot.slane %v3658, 7
      %v3794 = vsel %vm1184, %v3791, %v3793
      %v3795 = vrot.slane %v3663, 7
      %v3796 = vsel %vm1184, %v3793, %v3795
      %v3797 = vrot.slane %v3668, 7
      %v3798 = vsel %vm1184, %v3795, %v3797
      %v3799 = vrot.slane %v3673, 7
      %v3800 = vsel %vm1184, %v3797, %v3799
      %v3801 = vrot.slane %v3678, 7
      %v3802 = vsel %vm1184, %v3799, %v3801
      %v3803 = vrot.slane %v3683, 7
      %v3804 = vsel %vm1184, %v3801, %v3803
      %v3805 = vrot.slane %v3688, 7
      %v3806 = vsel %vm1184, %v3803, %v3805
      %v3807 = vrot.slane %v3693, 7
      %v3808 = vsel %vm1184, %v3805, %v3807
      %v3809 = vrot.slane %v3698, 7
      %v3810 = vsel %vm1184, %v3807, %v3809
      %v3811 = vrot.slane %v3703, 7
      %v3812 = vsel %vm1184, %v3809, %v3811
      %v3813 = vrot.slane %v3708, 7
      %v3814 = vsel %vm1184, %v3811, %v3813
      %v3815 = vrot.slane %v3713, 7
      %v3816 = vsel %vm1184, %v3813, %v3815
      %v3817 = vrot.slane %v3718, 7
      %v3818 = vsel %vm1184, %v3815, %v3817
      %v3819 = vrot.slane %v3723, 7
      %v3820 = vsel %vm1184, %v3817, %v3819
      %v3821 = vrot.slane %v3728, 7
      %v3822 = vsel %vm1184, %v3819, %v3821
      %v3855 = vrot.slane %v3573, 7
      %v3856 = vsel %vm1184, %v3855, %v3762
      %v3859 = vsel %vm1184, %v3821, %v3855
      %vm3860 = vmand %vm760, %vm792
      %vm3861 = vmand %vm761, %vm793
      %vm3862 = vmand %vm762, %vm794
      %vm3863 = vmand %vm763, %vm795
      %vm3864 = vmand %vm764, %vm796
      %vm3865 = vmand %vm765, %vm797
      %vm3866 = vmand %vm766, %vm798
      %vm3867 = vmand %vm767, %vm799
      %vm3868 = vmand %vm768, %vm800
      %vm3869 = vmand %vm769, %vm801
      %vm3870 = vmand %vm770, %vm802
      %vm3871 = vmand %vm771, %vm803
      %vm3872 = vmand %vm772, %vm804
      %vm3873 = vmand %vm773, %vm805
      %vm3874 = vmand %vm774, %vm806
      %vm3875 = vmand %vm775, %vm807
      %vm3876 = vmand %vm776, %vm808
      %vm3877 = vmand %vm777, %vm809
      %vm3878 = vmand %vm778, %vm810
      %vm3879 = vmand %vm779, %vm811
      %vm3880 = vmand %vm780, %vm812
      %vm3881 = vmand %vm781, %vm813
      %vm3882 = vmand %vm782, %vm814
      %vm3883 = vmand %vm783, %vm815
      %vm3884 = vmand %vm784, %vm816
      %vm3885 = vmand %vm785, %vm817
      %vm3886 = vmand %vm786, %vm818
      %vm3887 = vmand %vm787, %vm819
      %vm3888 = vmand %vm788, %vm820
      %vm3889 = vmand %vm789, %vm821
      %vm3890 = vmand %vm790, %vm822
      %vm3891 = vmand %vm791, %vm823
      %v3892 = vsel %vm3860, 1, 0
      %v3893 = vsel %vm3861, 1, 0
      %v3894 = vsel %vm3862, 1, 0
      %v3895 = vsel %vm3863, 1, 0
      %v3896 = vsel %vm3864, 1, 0
      %v3897 = vsel %vm3865, 1, 0
      %v3898 = vsel %vm3866, 1, 0
      %v3899 = vsel %vm3867, 1, 0
      %v3900 = vsel %vm3868, 1, 0
      %v3901 = vsel %vm3869, 1, 0
      %v3902 = vsel %vm3870, 1, 0
      %v3903 = vsel %vm3871, 1, 0
      %v3904 = vsel %vm3872, 1, 0
      %v3905 = vsel %vm3873, 1, 0
      %v3906 = vsel %vm3874, 1, 0
      %v3907 = vsel %vm3875, 1, 0
      %v3908 = vsel %vm3876, 1, 0
      %v3909 = vsel %vm3877, 1, 0
      %v3910 = vsel %vm3878, 1, 0
      %v3911 = vsel %vm3879, 1, 0
      %v3912 = vsel %vm3880, 1, 0
      %v3913 = vsel %vm3881, 1, 0
      %v3914 = vsel %vm3882, 1, 0
      %v3915 = vsel %vm3883, 1, 0
      %v3916 = vsel %vm3884, 1, 0
      %v3917 = vsel %vm3885, 1, 0
      %v3918 = vsel %vm3886, 1, 0
      %v3919 = vsel %vm3887, 1, 0
      %v3920 = vsel %vm3888, 1, 0
      %v3921 = vsel %vm3889, 1, 0
      %v3922 = vsel %vm3890, 1, 0
      %v3923 = vsel %vm3891, 1, 0
      %vm3924 = vcmp.eq.s32.totalorder %v3892, 1
      %vm3925 = vcmp.eq.s32.totalorder %v3893, 1
      %vm3926 = vcmp.eq.s32.totalorder %v3894, 1
      %vm3927 = vcmp.eq.s32.totalorder %v3895, 1
      %vm3928 = vcmp.eq.s32.totalorder %v3896, 1
      %vm3929 = vcmp.eq.s32.totalorder %v3897, 1
      %vm3930 = vcmp.eq.s32.totalorder %v3898, 1
      %vm3931 = vcmp.eq.s32.totalorder %v3899, 1
      %vm3932 = vcmp.eq.s32.totalorder %v3900, 1
      %vm3933 = vcmp.eq.s32.totalorder %v3901, 1
      %vm3934 = vcmp.eq.s32.totalorder %v3902, 1
      %vm3935 = vcmp.eq.s32.totalorder %v3903, 1
      %vm3936 = vcmp.eq.s32.totalorder %v3904, 1
      %vm3937 = vcmp.eq.s32.totalorder %v3905, 1
      %vm3938 = vcmp.eq.s32.totalorder %v3906, 1
      %vm3939 = vcmp.eq.s32.totalorder %v3907, 1
      %vm3940 = vcmp.eq.s32.totalorder %v3908, 1
      %vm3941 = vcmp.eq.s32.totalorder %v3909, 1
      %vm3942 = vcmp.eq.s32.totalorder %v3910, 1
      %vm3943 = vcmp.eq.s32.totalorder %v3911, 1
      %vm3944 = vcmp.eq.s32.totalorder %v3912, 1
      %vm3945 = vcmp.eq.s32.totalorder %v3913, 1
      %vm3946 = vcmp.eq.s32.totalorder %v3914, 1
      %vm3947 = vcmp.eq.s32.totalorder %v3915, 1
      %vm3948 = vcmp.eq.s32.totalorder %v3916, 1
      %vm3949 = vcmp.eq.s32.totalorder %v3917, 1
      %vm3950 = vcmp.eq.s32.totalorder %v3918, 1
      %vm3951 = vcmp.eq.s32.totalorder %v3919, 1
      %vm3952 = vcmp.eq.s32.totalorder %v3920, 1
      %vm3953 = vcmp.eq.s32.totalorder %v3921, 1
      %vm3954 = vcmp.eq.s32.totalorder %v3922, 1
      %vm3955 = vcmp.eq.s32.totalorder %v3923, 1
      %v3956 = vsel %vm3924, %v3764, 0.0
      %v3957 = vsel %vm3925, %v3766, 0.0
      %v3958 = vsel %vm3926, %v3768, 0.0
      %v3959 = vsel %vm3927, %v3770, 0.0
      %v3960 = vsel %vm3928, %v3772, 0.0
      %v3961 = vsel %vm3929, %v3774, 0.0
      %v3962 = vsel %vm3930, %v3776, 0.0
      %v3963 = vsel %vm3931, %v3778, 0.0
      %v3964 = vsel %vm3932, %v3780, 0.0
      %v3965 = vsel %vm3933, %v3782, 0.0
      %v3966 = vsel %vm3934, %v3784, 0.0
      %v3967 = vsel %vm3935, %v3786, 0.0
      %v3968 = vsel %vm3936, %v3788, 0.0
      %v3969 = vsel %vm3937, %v3790, 0.0
      %v3970 = vsel %vm3938, %v3792, 0.0
      %v3971 = vsel %vm3939, %v3794, 0.0
      %v3972 = vsel %vm3940, %v3796, 0.0
      %v3973 = vsel %vm3941, %v3798, 0.0
      %v3974 = vsel %vm3942, %v3800, 0.0
      %v3975 = vsel %vm3943, %v3802, 0.0
      %v3976 = vsel %vm3944, %v3804, 0.0
      %v3977 = vsel %vm3945, %v3806, 0.0
      %v3978 = vsel %vm3946, %v3808, 0.0
      %v3979 = vsel %vm3947, %v3810, 0.0
      %v3980 = vsel %vm3948, %v3812, 0.0
      %v3981 = vsel %vm3949, %v3814, 0.0
      %v3982 = vsel %vm3950, %v3816, 0.0
      %v3983 = vsel %vm3951, %v3818, 0.0
      %v3984 = vsel %vm3952, %v3820, 0.0
      %v3985 = vsel %vm3953, %v3822, 0.0
      %v3986 = vsel %vm3954, %v3859, 0.0
      %v3987 = vsel %vm3955, %v3856, 0.0
      %v3988 = vadd.f32 %v3472, %v3956
      %v3989 = vadd.f32 %v3473, %v3957
      %v3990 = vadd.f32 %v3474, %v3958
      %v3991 = vadd.f32 %v3475, %v3959
      %v3992 = vadd.f32 %v3476, %v3960
      %v3993 = vadd.f32 %v3477, %v3961
      %v3994 = vadd.f32 %v3478, %v3962
      %v3995 = vadd.f32 %v3479, %v3963
      %v3996 = vadd.f32 %v3480, %v3964
      %v3997 = vadd.f32 %v3481, %v3965
      %v3998 = vadd.f32 %v3482, %v3966
      %v3999 = vadd.f32 %v3483, %v3967
      %v4000 = vadd.f32 %v3484, %v3968
      %v4001 = vadd.f32 %v3485, %v3969
      %v4002 = vadd.f32 %v3486, %v3970
      %v4003 = vadd.f32 %v3487, %v3971
      %v4004 = vadd.f32 %v3488, %v3972
      %v4005 = vadd.f32 %v3489, %v3973
      %v4006 = vadd.f32 %v3490, %v3974
      %v4007 = vadd.f32 %v3491, %v3975
      %v4008 = vadd.f32 %v3492, %v3976
      %v4009 = vadd.f32 %v3493, %v3977
      %v4010 = vadd.f32 %v3494, %v3978
      %v4011 = vadd.f32 %v3495, %v3979
      %v4012 = vadd.f32 %v3496, %v3980
      %v4013 = vadd.f32 %v3497, %v3981
      %v4014 = vadd.f32 %v3498, %v3982
      %v4015 = vadd.f32 %v3499, %v3983
      %v4016 = vadd.f32 %v3500, %v3984
      %v4017 = vadd.f32 %v3501, %v3985
      %v4018 = vadd.f32 %v3502, %v3986
      %v4019 = vadd.f32 %v3503, %v3987
      %s4020 = scalar_lea.vmem %s1, 56
      %v4021 = vld [vmem:[%s4020] sm:$0xff]
      %4022 = vmatprep.subr.mxu0 0.0
      %4023 = vmatpush1.msra.mxu0 0.0
      %4024 = vmatprep.subr.mxu0 0.0
      %4025 = vmatpush1.msra.mxu0 0.0
      %4026 = vmatprep.subr.mxu0 0.0
      %4027 = vmatpush1.msra.mxu0 0.0
      %4028 = vmatprep.subr.mxu0 0.0
      %4029 = vmatpush1.msra.mxu0 0.0
      %4030 = vmatprep.subr.mxu0 0.0
      %4031 = vmatpush1.msra.mxu0 0.0
      %4032 = vmatprep.subr.mxu0 0.0
      %4033 = vmatpush1.msra.mxu0 0.0
      %4034 = vmatprep.subr.mxu0 0.0
      %4035 = vmatpush1.msra.mxu0 0.0
      %4036 = vmatprep.subr.mxu0 0.0
      %4037 = vmatpush1.msra.mxu0 0.0
      %4038 = vmatprep.subr.mxu0 0.0
      %4039 = vmatpush1.msra.mxu0 0.0
      %4040 = vmatprep.subr.mxu0 0.0
      %4041 = vmatpush1.msra.mxu0 0.0
      %4042 = vmatprep.subr.mxu0 0.0
      %4043 = vmatpush1.msra.mxu0 0.0
      %4044 = vmatprep.subr.mxu0 0.0
      %4045 = vmatpush1.msra.mxu0 0.0
      %4046 = vmatprep.subr.mxu0 0.0
      %4047 = vmatpush1.msra.mxu0 0.0
      %4048 = vmatprep.subr.mxu0 0.0
      %4049 = vmatpush1.msra.mxu0 0.0
      %4050 = vmatprep.subr.mxu0 0.0
      %4051 = vmatpush1.msra.mxu0 0.0
      %4052 = vmatprep.subr.mxu0 0.0
      %4053 = vmatpush1.msra.mxu0 %v4021
      %4054 = vmatprep.subr.mxu0 0.0
      %4055 = vmatpush2.msra.mxu0 0.0
      %4056 = vmatprep.subr.mxu0 0.0
      %4057 = vmatpush2.msra.mxu0 0.0
      %4058 = vmatprep.subr.mxu0 0.0
      %4059 = vmatpush2.msra.mxu0 0.0
      %4060 = vmatprep.subr.mxu0 0.0
      %4061 = vmatpush2.msra.mxu0 0.0
      %4062 = vmatprep.subr.mxu0 0.0
      %4063 = vmatpush2.msra.mxu0 0.0
      %4064 = vmatprep.subr.mxu0 0.0
      %4065 = vmatpush2.msra.mxu0 0.0
      %4066 = vmatprep.subr.mxu0 0.0
      %4067 = vmatpush2.msra.mxu0 0.0
      %4068 = vmatprep.subr.mxu0 0.0
      %4069 = vmatpush2.msra.mxu0 0.0
      %4070 = vmatprep.subr.mxu0 0.0
      %4071 = vmatpush2.msra.mxu0 0.0
      %4072 = vmatprep.subr.mxu0 0.0
      %4073 = vmatpush2.msra.mxu0 0.0
      %4074 = vmatprep.subr.mxu0 0.0
      %4075 = vmatpush2.msra.mxu0 0.0
      %4076 = vmatprep.subr.mxu0 0.0
      %4077 = vmatpush2.msra.mxu0 0.0
      %4078 = vmatprep.subr.mxu0 0.0
      %4079 = vmatpush2.msra.mxu0 0.0
      %4080 = vmatprep.subr.mxu0 0.0
      %4081 = vmatpush2.msra.mxu0 0.0
      %4082 = vmatprep.subr.mxu0 0.0
      %4083 = vmatpush2.msra.mxu0 0.0
      %4084 = vmatprep.subr.mxu0 0.0
      %4085 = vmatpush2.msra.mxu0 0.0
      %4086 = vmatprep.mubr.f32.mxu0 0.0
      %4087 = vmatmul.mubr.f32.gmra.mxu0 %v861
      %v4088 = vpop.f32.mrf.mxu0
      %v4089 = vadd.f32 0.0, %v4088
      %v4090 = vpop.f32.mrf.mxu0
      %4091 = vmatprep.mubr.f32.mxu0 0.0
      %4092 = vmatmul.mubr.f32.gmra.mxu0 %v864
      %v4093 = vpop.f32.mrf.mxu0
      %v4094 = vadd.f32 0.0, %v4093
      %v4095 = vpop.f32.mrf.mxu0
      %4096 = vmatprep.mubr.f32.mxu0 0.0
      %4097 = vmatmul.mubr.f32.gmra.mxu0 %v867
      %v4098 = vpop.f32.mrf.mxu0
      %v4099 = vadd.f32 0.0, %v4098
      %v4100 = vpop.f32.mrf.mxu0
      %4101 = vmatprep.mubr.f32.mxu0 0.0
      %4102 = vmatmul.mubr.f32.gmra.mxu0 %v870
      %v4103 = vpop.f32.mrf.mxu0
      %v4104 = vadd.f32 0.0, %v4103
      %v4105 = vpop.f32.mrf.mxu0
      %4106 = vmatprep.mubr.f32.mxu0 0.0
      %4107 = vmatmul.mubr.f32.gmra.mxu0 %v873
      %v4108 = vpop.f32.mrf.mxu0
      %v4109 = vadd.f32 0.0, %v4108
      %v4110 = vpop.f32.mrf.mxu0
      %4111 = vmatprep.mubr.f32.mxu0 0.0
      %4112 = vmatmul.mubr.f32.gmra.mxu0 %v876
      %v4113 = vpop.f32.mrf.mxu0
      %v4114 = vadd.f32 0.0, %v4113
      %v4115 = vpop.f32.mrf.mxu0
      %4116 = vmatprep.mubr.f32.mxu0 0.0
      %4117 = vmatmul.mubr.f32.gmra.mxu0 %v879
      %v4118 = vpop.f32.mrf.mxu0
      %v4119 = vadd.f32 0.0, %v4118
      %v4120 = vpop.f32.mrf.mxu0
      %4121 = vmatprep.mubr.f32.mxu0 0.0
      %4122 = vmatmul.mubr.f32.gmra.mxu0 %v882
      %v4123 = vpop.f32.mrf.mxu0
      %v4124 = vadd.f32 0.0, %v4123
      %v4125 = vpop.f32.mrf.mxu0
      %4126 = vmatprep.mubr.f32.mxu0 0.0
      %4127 = vmatmul.mubr.f32.gmra.mxu0 %v885
      %v4128 = vpop.f32.mrf.mxu0
      %v4129 = vadd.f32 0.0, %v4128
      %v4130 = vpop.f32.mrf.mxu0
      %4131 = vmatprep.mubr.f32.mxu0 0.0
      %4132 = vmatmul.mubr.f32.gmra.mxu0 %v888
      %v4133 = vpop.f32.mrf.mxu0
      %v4134 = vadd.f32 0.0, %v4133
      %v4135 = vpop.f32.mrf.mxu0
      %4136 = vmatprep.mubr.f32.mxu0 0.0
      %4137 = vmatmul.mubr.f32.gmra.mxu0 %v891
      %v4138 = vpop.f32.mrf.mxu0
      %v4139 = vadd.f32 0.0, %v4138
      %v4140 = vpop.f32.mrf.mxu0
      %4141 = vmatprep.mubr.f32.mxu0 0.0
      %4142 = vmatmul.mubr.f32.gmra.mxu0 %v894
      %v4143 = vpop.f32.mrf.mxu0
      %v4144 = vadd.f32 0.0, %v4143
      %v4145 = vpop.f32.mrf.mxu0
      %4146 = vmatprep.mubr.f32.mxu0 0.0
      %4147 = vmatmul.mubr.f32.gmra.mxu0 %v897
      %v4148 = vpop.f32.mrf.mxu0
      %v4149 = vadd.f32 0.0, %v4148
      %v4150 = vpop.f32.mrf.mxu0
      %4151 = vmatprep.mubr.f32.mxu0 0.0
      %4152 = vmatmul.mubr.f32.gmra.mxu0 %v900
      %v4153 = vpop.f32.mrf.mxu0
      %v4154 = vadd.f32 0.0, %v4153
      %v4155 = vpop.f32.mrf.mxu0
      %4156 = vmatprep.mubr.f32.mxu0 0.0
      %4157 = vmatmul.mubr.f32.gmra.mxu0 %v903
      %v4158 = vpop.f32.mrf.mxu0
      %v4159 = vadd.f32 0.0, %v4158
      %v4160 = vpop.f32.mrf.mxu0
      %4161 = vmatprep.mubr.f32.mxu0 0.0
      %4162 = vmatmul.mubr.f32.gmra.mxu0 %v906
      %v4163 = vpop.f32.mrf.mxu0
      %v4164 = vadd.f32 0.0, %v4163
      %v4165 = vpop.f32.mrf.mxu0
      %4166 = vmatprep.mubr.f32.mxu0 0.0
      %4167 = vmatmul.mubr.f32.gmra.mxu0 %v909
      %v4168 = vpop.f32.mrf.mxu0
      %v4169 = vadd.f32 0.0, %v4168
      %v4170 = vpop.f32.mrf.mxu0
      %4171 = vmatprep.mubr.f32.mxu0 0.0
      %4172 = vmatmul.mubr.f32.gmra.mxu0 %v912
      %v4173 = vpop.f32.mrf.mxu0
      %v4174 = vadd.f32 0.0, %v4173
      %v4175 = vpop.f32.mrf.mxu0
      %4176 = vmatprep.mubr.f32.mxu0 0.0
      %4177 = vmatmul.mubr.f32.gmra.mxu0 %v915
      %v4178 = vpop.f32.mrf.mxu0
      %v4179 = vadd.f32 0.0, %v4178
      %v4180 = vpop.f32.mrf.mxu0
      %4181 = vmatprep.mubr.f32.mxu0 0.0
      %4182 = vmatmul.mubr.f32.gmra.mxu0 %v918
      %v4183 = vpop.f32.mrf.mxu0
      %v4184 = vadd.f32 0.0, %v4183
      %v4185 = vpop.f32.mrf.mxu0
      %4186 = vmatprep.mubr.f32.mxu0 0.0
      %4187 = vmatmul.mubr.f32.gmra.mxu0 %v921
      %v4188 = vpop.f32.mrf.mxu0
      %v4189 = vadd.f32 0.0, %v4188
      %v4190 = vpop.f32.mrf.mxu0
      %4191 = vmatprep.mubr.f32.mxu0 0.0
      %4192 = vmatmul.mubr.f32.gmra.mxu0 %v924
      %v4193 = vpop.f32.mrf.mxu0
      %v4194 = vadd.f32 0.0, %v4193
      %v4195 = vpop.f32.mrf.mxu0
      %4196 = vmatprep.mubr.f32.mxu0 0.0
      %4197 = vmatmul.mubr.f32.gmra.mxu0 %v927
      %v4198 = vpop.f32.mrf.mxu0
      %v4199 = vadd.f32 0.0, %v4198
      %v4200 = vpop.f32.mrf.mxu0
      %4201 = vmatprep.mubr.f32.mxu0 0.0
      %4202 = vmatmul.mubr.f32.gmra.mxu0 %v930
      %v4203 = vpop.f32.mrf.mxu0
      %v4204 = vadd.f32 0.0, %v4203
      %v4205 = vpop.f32.mrf.mxu0
      %4206 = vmatprep.mubr.f32.mxu0 0.0
      %4207 = vmatmul.mubr.f32.gmra.mxu0 %v933
      %v4208 = vpop.f32.mrf.mxu0
      %v4209 = vadd.f32 0.0, %v4208
      %v4210 = vpop.f32.mrf.mxu0
      %4211 = vmatprep.mubr.f32.mxu0 0.0
      %4212 = vmatmul.mubr.f32.gmra.mxu0 %v936
      %v4213 = vpop.f32.mrf.mxu0
      %v4214 = vadd.f32 0.0, %v4213
      %v4215 = vpop.f32.mrf.mxu0
      %4216 = vmatprep.mubr.f32.mxu0 0.0
      %4217 = vmatmul.mubr.f32.gmra.mxu0 %v939
      %v4218 = vpop.f32.mrf.mxu0
      %v4219 = vadd.f32 0.0, %v4218
      %v4220 = vpop.f32.mrf.mxu0
      %4221 = vmatprep.mubr.f32.mxu0 0.0
      %4222 = vmatmul.mubr.f32.gmra.mxu0 %v942
      %v4223 = vpop.f32.mrf.mxu0
      %v4224 = vadd.f32 0.0, %v4223
      %v4225 = vpop.f32.mrf.mxu0
      %4226 = vmatprep.mubr.f32.mxu0 0.0
      %4227 = vmatmul.mubr.f32.gmra.mxu0 %v945
      %v4228 = vpop.f32.mrf.mxu0
      %v4229 = vadd.f32 0.0, %v4228
      %v4230 = vpop.f32.mrf.mxu0
      %4231 = vmatprep.mubr.f32.mxu0 0.0
      %4232 = vmatmul.mubr.f32.gmra.mxu0 %v948
      %v4233 = vpop.f32.mrf.mxu0
      %v4234 = vadd.f32 0.0, %v4233
      %v4235 = vpop.f32.mrf.mxu0
      %4236 = vmatprep.mubr.f32.mxu0 0.0
      %4237 = vmatmul.mubr.f32.gmra.mxu0 %v951
      %v4238 = vpop.f32.mrf.mxu0
      %v4239 = vadd.f32 0.0, %v4238
      %v4240 = vpop.f32.mrf.mxu0
      %4241 = vmatprep.mubr.f32.mxu0 0.0
      %4242 = vmatmul.mubr.f32.gmra.mxu0 %v954
      %v4243 = vpop.f32.mrf.mxu0
      %v4244 = vadd.f32 0.0, %v4243
      %v4245 = vpop.f32.mrf.mxu0
      %4246 = vdwg.mxu0
      %v4247 = vsel %vm760, 1, 0
      %v4248 = vsel %vm761, 1, 0
      %v4249 = vsel %vm762, 1, 0
      %v4250 = vsel %vm763, 1, 0
      %v4251 = vsel %vm764, 1, 0
      %v4252 = vsel %vm765, 1, 0
      %v4253 = vsel %vm766, 1, 0
      %v4254 = vsel %vm767, 1, 0
      %v4255 = vsel %vm768, 1, 0
      %v4256 = vsel %vm769, 1, 0
      %v4257 = vsel %vm770, 1, 0
      %v4258 = vsel %vm771, 1, 0
      %v4259 = vsel %vm772, 1, 0
      %v4260 = vsel %vm773, 1, 0
      %v4261 = vsel %vm774, 1, 0
      %v4262 = vsel %vm775, 1, 0
      %v4263 = vsel %vm776, 1, 0
      %v4264 = vsel %vm777, 1, 0
      %v4265 = vsel %vm778, 1, 0
      %v4266 = vsel %vm779, 1, 0
      %v4267 = vsel %vm780, 1, 0
      %v4268 = vsel %vm781, 1, 0
      %v4269 = vsel %vm782, 1, 0
      %v4270 = vsel %vm783, 1, 0
      %v4271 = vsel %vm784, 1, 0
      %v4272 = vsel %vm785, 1, 0
      %v4273 = vsel %vm786, 1, 0
      %v4274 = vsel %vm787, 1, 0
      %v4275 = vsel %vm788, 1, 0
      %v4276 = vsel %vm789, 1, 0
      %v4277 = vsel %vm790, 1, 0
      %v4278 = vsel %vm791, 1, 0
      %vm4279 = vcmp.eq.s32.totalorder %v4247, 1
      %vm4280 = vcmp.eq.s32.totalorder %v4248, 1
      %vm4281 = vcmp.eq.s32.totalorder %v4249, 1
      %vm4282 = vcmp.eq.s32.totalorder %v4250, 1
      %vm4283 = vcmp.eq.s32.totalorder %v4251, 1
      %vm4284 = vcmp.eq.s32.totalorder %v4252, 1
      %vm4285 = vcmp.eq.s32.totalorder %v4253, 1
      %vm4286 = vcmp.eq.s32.totalorder %v4254, 1
      %vm4287 = vcmp.eq.s32.totalorder %v4255, 1
      %vm4288 = vcmp.eq.s32.totalorder %v4256, 1
      %vm4289 = vcmp.eq.s32.totalorder %v4257, 1
      %vm4290 = vcmp.eq.s32.totalorder %v4258, 1
      %vm4291 = vcmp.eq.s32.totalorder %v4259, 1
      %vm4292 = vcmp.eq.s32.totalorder %v4260, 1
      %vm4293 = vcmp.eq.s32.totalorder %v4261, 1
      %vm4294 = vcmp.eq.s32.totalorder %v4262, 1
      %vm4295 = vcmp.eq.s32.totalorder %v4263, 1
      %vm4296 = vcmp.eq.s32.totalorder %v4264, 1
      %vm4297 = vcmp.eq.s32.totalorder %v4265, 1
      %vm4298 = vcmp.eq.s32.totalorder %v4266, 1
      %vm4299 = vcmp.eq.s32.totalorder %v4267, 1
      %vm4300 = vcmp.eq.s32.totalorder %v4268, 1
      %vm4301 = vcmp.eq.s32.totalorder %v4269, 1
      %vm4302 = vcmp.eq.s32.totalorder %v4270, 1
      %vm4303 = vcmp.eq.s32.totalorder %v4271, 1
      %vm4304 = vcmp.eq.s32.totalorder %v4272, 1
      %vm4305 = vcmp.eq.s32.totalorder %v4273, 1
      %vm4306 = vcmp.eq.s32.totalorder %v4274, 1
      %vm4307 = vcmp.eq.s32.totalorder %v4275, 1
      %vm4308 = vcmp.eq.s32.totalorder %v4276, 1
      %vm4309 = vcmp.eq.s32.totalorder %v4277, 1
      %vm4310 = vcmp.eq.s32.totalorder %v4278, 1
      %v4311 = vsel %vm4279, %v4099, 0.0
      %v4312 = vsel %vm4280, %v4104, 0.0
      %v4313 = vsel %vm4281, %v4109, 0.0
      %v4314 = vsel %vm4282, %v4114, 0.0
      %v4315 = vsel %vm4283, %v4119, 0.0
      %v4316 = vsel %vm4284, %v4124, 0.0
      %v4317 = vsel %vm4285, %v4129, 0.0
      %v4318 = vsel %vm4286, %v4134, 0.0
      %v4319 = vsel %vm4287, %v4139, 0.0
      %v4320 = vsel %vm4288, %v4144, 0.0
      %v4321 = vsel %vm4289, %v4149, 0.0
      %v4322 = vsel %vm4290, %v4154, 0.0
      %v4323 = vsel %vm4291, %v4159, 0.0
      %v4324 = vsel %vm4292, %v4164, 0.0
      %v4325 = vsel %vm4293, %v4169, 0.0
      %v4326 = vsel %vm4294, %v4174, 0.0
      %v4327 = vsel %vm4295, %v4179, 0.0
      %v4328 = vsel %vm4296, %v4184, 0.0
      %v4329 = vsel %vm4297, %v4189, 0.0
      %v4330 = vsel %vm4298, %v4194, 0.0
      %v4331 = vsel %vm4299, %v4199, 0.0
      %v4332 = vsel %vm4300, %v4204, 0.0
      %v4333 = vsel %vm4301, %v4209, 0.0
      %v4334 = vsel %vm4302, %v4214, 0.0
      %v4335 = vsel %vm4303, %v4219, 0.0
      %v4336 = vsel %vm4304, %v4224, 0.0
      %v4337 = vsel %vm4305, %v4229, 0.0
      %v4338 = vsel %vm4306, %v4234, 0.0
      %v4339 = vsel %vm4307, %v4239, 0.0
      %v4340 = vsel %vm4308, %v4244, 0.0
      %v4341 = vsel %vm4309, %v4089, 0.0
      %v4342 = vsel %vm4310, %v4094, 0.0
      %v4343 = vadd.f32 %v3988, %v4311
      %v4344 = vadd.f32 %v3989, %v4312
      %v4345 = vadd.f32 %v3990, %v4313
      %v4346 = vadd.f32 %v3991, %v4314
      %v4347 = vadd.f32 %v3992, %v4315
      %v4348 = vadd.f32 %v3993, %v4316
      %v4349 = vadd.f32 %v3994, %v4317
      %v4350 = vadd.f32 %v3995, %v4318
      %v4351 = vadd.f32 %v3996, %v4319
      %v4352 = vadd.f32 %v3997, %v4320
      %v4353 = vadd.f32 %v3998, %v4321
      %v4354 = vadd.f32 %v3999, %v4322
      %v4355 = vadd.f32 %v4000, %v4323
      %v4356 = vadd.f32 %v4001, %v4324
      %v4357 = vadd.f32 %v4002, %v4325
      %v4358 = vadd.f32 %v4003, %v4326
      %v4359 = vadd.f32 %v4004, %v4327
      %v4360 = vadd.f32 %v4005, %v4328
      %v4361 = vadd.f32 %v4006, %v4329
      %v4362 = vadd.f32 %v4007, %v4330
      %v4363 = vadd.f32 %v4008, %v4331
      %v4364 = vadd.f32 %v4009, %v4332
      %v4365 = vadd.f32 %v4010, %v4333
      %v4366 = vadd.f32 %v4011, %v4334
      %v4367 = vadd.f32 %v4012, %v4335
      %v4368 = vadd.f32 %v4013, %v4336
      %v4369 = vadd.f32 %v4014, %v4337
      %v4370 = vadd.f32 %v4015, %v4338
      %v4371 = vadd.f32 %v4016, %v4339
      %v4372 = vadd.f32 %v4017, %v4340
      %v4373 = vadd.f32 %v4018, %v4341
      %v4374 = vadd.f32 %v4019, %v4342
      %s4375 = scalar_lea.vmem %s1, 64
      %v4376 = vld [vmem:[%s4375] sm:$0xff]
      %4377 = vmatprep.subr.mxu0 0.0
      %4378 = vmatpush1.msra.mxu0 0.0
      %4379 = vmatprep.subr.mxu0 0.0
      %4380 = vmatpush1.msra.mxu0 0.0
      %4381 = vmatprep.subr.mxu0 0.0
      %4382 = vmatpush1.msra.mxu0 0.0
      %4383 = vmatprep.subr.mxu0 0.0
      %4384 = vmatpush1.msra.mxu0 0.0
      %4385 = vmatprep.subr.mxu0 0.0
      %4386 = vmatpush1.msra.mxu0 0.0
      %4387 = vmatprep.subr.mxu0 0.0
      %4388 = vmatpush1.msra.mxu0 0.0
      %4389 = vmatprep.subr.mxu0 0.0
      %4390 = vmatpush1.msra.mxu0 0.0
      %4391 = vmatprep.subr.mxu0 0.0
      %4392 = vmatpush1.msra.mxu0 0.0
      %4393 = vmatprep.subr.mxu0 0.0
      %4394 = vmatpush1.msra.mxu0 0.0
      %4395 = vmatprep.subr.mxu0 0.0
      %4396 = vmatpush1.msra.mxu0 0.0
      %4397 = vmatprep.subr.mxu0 0.0
      %4398 = vmatpush1.msra.mxu0 0.0
      %4399 = vmatprep.subr.mxu0 0.0
      %4400 = vmatpush1.msra.mxu0 0.0
      %4401 = vmatprep.subr.mxu0 0.0
      %4402 = vmatpush1.msra.mxu0 0.0
      %4403 = vmatprep.subr.mxu0 0.0
      %4404 = vmatpush1.msra.mxu0 0.0
      %4405 = vmatprep.subr.mxu0 0.0
      %4406 = vmatpush1.msra.mxu0 0.0
      %4407 = vmatprep.subr.mxu0 0.0
      %4408 = vmatpush1.msra.mxu0 %v4376
      %4409 = vmatprep.subr.mxu0 0.0
      %4410 = vmatpush2.msra.mxu0 0.0
      %4411 = vmatprep.subr.mxu0 0.0
      %4412 = vmatpush2.msra.mxu0 0.0
      %4413 = vmatprep.subr.mxu0 0.0
      %4414 = vmatpush2.msra.mxu0 0.0
      %4415 = vmatprep.subr.mxu0 0.0
      %4416 = vmatpush2.msra.mxu0 0.0
      %4417 = vmatprep.subr.mxu0 0.0
      %4418 = vmatpush2.msra.mxu0 0.0
      %4419 = vmatprep.subr.mxu0 0.0
      %4420 = vmatpush2.msra.mxu0 0.0
      %4421 = vmatprep.subr.mxu0 0.0
      %4422 = vmatpush2.msra.mxu0 0.0
      %4423 = vmatprep.subr.mxu0 0.0
      %4424 = vmatpush2.msra.mxu0 0.0
      %4425 = vmatprep.subr.mxu0 0.0
      %4426 = vmatpush2.msra.mxu0 0.0
      %4427 = vmatprep.subr.mxu0 0.0
      %4428 = vmatpush2.msra.mxu0 0.0
      %4429 = vmatprep.subr.mxu0 0.0
      %4430 = vmatpush2.msra.mxu0 0.0
      %4431 = vmatprep.subr.mxu0 0.0
      %4432 = vmatpush2.msra.mxu0 0.0
      %4433 = vmatprep.subr.mxu0 0.0
      %4434 = vmatpush2.msra.mxu0 0.0
      %4435 = vmatprep.subr.mxu0 0.0
      %4436 = vmatpush2.msra.mxu0 0.0
      %4437 = vmatprep.subr.mxu0 0.0
      %4438 = vmatpush2.msra.mxu0 0.0
      %4439 = vmatprep.subr.mxu0 0.0
      %4440 = vmatpush2.msra.mxu0 0.0
      %4441 = vmatprep.mubr.f32.mxu0 0.0
      %4442 = vmatmul.mubr.f32.gmra.mxu0 %v861
      %v4443 = vpop.f32.mrf.mxu0
      %v4444 = vadd.f32 0.0, %v4443
      %v4445 = vpop.f32.mrf.mxu0
      %4446 = vmatprep.mubr.f32.mxu0 0.0
      %4447 = vmatmul.mubr.f32.gmra.mxu0 %v864
      %v4448 = vpop.f32.mrf.mxu0
      %v4449 = vadd.f32 0.0, %v4448
      %v4450 = vpop.f32.mrf.mxu0
      %4451 = vmatprep.mubr.f32.mxu0 0.0
      %4452 = vmatmul.mubr.f32.gmra.mxu0 %v867
      %v4453 = vpop.f32.mrf.mxu0
      %v4454 = vadd.f32 0.0, %v4453
      %v4455 = vpop.f32.mrf.mxu0
      %4456 = vmatprep.mubr.f32.mxu0 0.0
      %4457 = vmatmul.mubr.f32.gmra.mxu0 %v870
      %v4458 = vpop.f32.mrf.mxu0
      %v4459 = vadd.f32 0.0, %v4458
      %v4460 = vpop.f32.mrf.mxu0
      %4461 = vmatprep.mubr.f32.mxu0 0.0
      %4462 = vmatmul.mubr.f32.gmra.mxu0 %v873
      %v4463 = vpop.f32.mrf.mxu0
      %v4464 = vadd.f32 0.0, %v4463
      %v4465 = vpop.f32.mrf.mxu0
      %4466 = vmatprep.mubr.f32.mxu0 0.0
      %4467 = vmatmul.mubr.f32.gmra.mxu0 %v876
      %v4468 = vpop.f32.mrf.mxu0
      %v4469 = vadd.f32 0.0, %v4468
      %v4470 = vpop.f32.mrf.mxu0
      %4471 = vmatprep.mubr.f32.mxu0 0.0
      %4472 = vmatmul.mubr.f32.gmra.mxu0 %v879
      %v4473 = vpop.f32.mrf.mxu0
      %v4474 = vadd.f32 0.0, %v4473
      %v4475 = vpop.f32.mrf.mxu0
      %4476 = vmatprep.mubr.f32.mxu0 0.0
      %4477 = vmatmul.mubr.f32.gmra.mxu0 %v882
      %v4478 = vpop.f32.mrf.mxu0
      %v4479 = vadd.f32 0.0, %v4478
      %v4480 = vpop.f32.mrf.mxu0
      %4481 = vmatprep.mubr.f32.mxu0 0.0
      %4482 = vmatmul.mubr.f32.gmra.mxu0 %v885
      %v4483 = vpop.f32.mrf.mxu0
      %v4484 = vadd.f32 0.0, %v4483
      %v4485 = vpop.f32.mrf.mxu0
      %4486 = vmatprep.mubr.f32.mxu0 0.0
      %4487 = vmatmul.mubr.f32.gmra.mxu0 %v888
      %v4488 = vpop.f32.mrf.mxu0
      %v4489 = vadd.f32 0.0, %v4488
      %v4490 = vpop.f32.mrf.mxu0
      %4491 = vmatprep.mubr.f32.mxu0 0.0
      %4492 = vmatmul.mubr.f32.gmra.mxu0 %v891
      %v4493 = vpop.f32.mrf.mxu0
      %v4494 = vadd.f32 0.0, %v4493
      %v4495 = vpop.f32.mrf.mxu0
      %4496 = vmatprep.mubr.f32.mxu0 0.0
      %4497 = vmatmul.mubr.f32.gmra.mxu0 %v894
      %v4498 = vpop.f32.mrf.mxu0
      %v4499 = vadd.f32 0.0, %v4498
      %v4500 = vpop.f32.mrf.mxu0
      %4501 = vmatprep.mubr.f32.mxu0 0.0
      %4502 = vmatmul.mubr.f32.gmra.mxu0 %v897
      %v4503 = vpop.f32.mrf.mxu0
      %v4504 = vadd.f32 0.0, %v4503
      %v4505 = vpop.f32.mrf.mxu0
      %4506 = vmatprep.mubr.f32.mxu0 0.0
      %4507 = vmatmul.mubr.f32.gmra.mxu0 %v900
      %v4508 = vpop.f32.mrf.mxu0
      %v4509 = vadd.f32 0.0, %v4508
      %v4510 = vpop.f32.mrf.mxu0
      %4511 = vmatprep.mubr.f32.mxu0 0.0
      %4512 = vmatmul.mubr.f32.gmra.mxu0 %v903
      %v4513 = vpop.f32.mrf.mxu0
      %v4514 = vadd.f32 0.0, %v4513
      %v4515 = vpop.f32.mrf.mxu0
      %4516 = vmatprep.mubr.f32.mxu0 0.0
      %4517 = vmatmul.mubr.f32.gmra.mxu0 %v906
      %v4518 = vpop.f32.mrf.mxu0
      %v4519 = vadd.f32 0.0, %v4518
      %v4520 = vpop.f32.mrf.mxu0
      %4521 = vmatprep.mubr.f32.mxu0 0.0
      %4522 = vmatmul.mubr.f32.gmra.mxu0 %v909
      %v4523 = vpop.f32.mrf.mxu0
      %v4524 = vadd.f32 0.0, %v4523
      %v4525 = vpop.f32.mrf.mxu0
      %4526 = vmatprep.mubr.f32.mxu0 0.0
      %4527 = vmatmul.mubr.f32.gmra.mxu0 %v912
      %v4528 = vpop.f32.mrf.mxu0
      %v4529 = vadd.f32 0.0, %v4528
      %v4530 = vpop.f32.mrf.mxu0
      %4531 = vmatprep.mubr.f32.mxu0 0.0
      %4532 = vmatmul.mubr.f32.gmra.mxu0 %v915
      %v4533 = vpop.f32.mrf.mxu0
      %v4534 = vadd.f32 0.0, %v4533
      %v4535 = vpop.f32.mrf.mxu0
      %4536 = vmatprep.mubr.f32.mxu0 0.0
      %4537 = vmatmul.mubr.f32.gmra.mxu0 %v918
      %v4538 = vpop.f32.mrf.mxu0
      %v4539 = vadd.f32 0.0, %v4538
      %v4540 = vpop.f32.mrf.mxu0
      %4541 = vmatprep.mubr.f32.mxu0 0.0
      %4542 = vmatmul.mubr.f32.gmra.mxu0 %v921
      %v4543 = vpop.f32.mrf.mxu0
      %v4544 = vadd.f32 0.0, %v4543
      %v4545 = vpop.f32.mrf.mxu0
      %4546 = vmatprep.mubr.f32.mxu0 0.0
      %4547 = vmatmul.mubr.f32.gmra.mxu0 %v924
      %v4548 = vpop.f32.mrf.mxu0
      %v4549 = vadd.f32 0.0, %v4548
      %v4550 = vpop.f32.mrf.mxu0
      %4551 = vmatprep.mubr.f32.mxu0 0.0
      %4552 = vmatmul.mubr.f32.gmra.mxu0 %v927
      %v4553 = vpop.f32.mrf.mxu0
      %v4554 = vadd.f32 0.0, %v4553
      %v4555 = vpop.f32.mrf.mxu0
      %4556 = vmatprep.mubr.f32.mxu0 0.0
      %4557 = vmatmul.mubr.f32.gmra.mxu0 %v930
      %v4558 = vpop.f32.mrf.mxu0
      %v4559 = vadd.f32 0.0, %v4558
      %v4560 = vpop.f32.mrf.mxu0
      %4561 = vmatprep.mubr.f32.mxu0 0.0
      %4562 = vmatmul.mubr.f32.gmra.mxu0 %v933
      %v4563 = vpop.f32.mrf.mxu0
      %v4564 = vadd.f32 0.0, %v4563
      %v4565 = vpop.f32.mrf.mxu0
      %4566 = vmatprep.mubr.f32.mxu0 0.0
      %4567 = vmatmul.mubr.f32.gmra.mxu0 %v936
      %v4568 = vpop.f32.mrf.mxu0
      %v4569 = vadd.f32 0.0, %v4568
      %v4570 = vpop.f32.mrf.mxu0
      %4571 = vmatprep.mubr.f32.mxu0 0.0
      %4572 = vmatmul.mubr.f32.gmra.mxu0 %v939
      %v4573 = vpop.f32.mrf.mxu0
      %v4574 = vadd.f32 0.0, %v4573
      %v4575 = vpop.f32.mrf.mxu0
      %4576 = vmatprep.mubr.f32.mxu0 0.0
      %4577 = vmatmul.mubr.f32.gmra.mxu0 %v942
      %v4578 = vpop.f32.mrf.mxu0
      %v4579 = vadd.f32 0.0, %v4578
      %v4580 = vpop.f32.mrf.mxu0
      %4581 = vmatprep.mubr.f32.mxu0 0.0
      %4582 = vmatmul.mubr.f32.gmra.mxu0 %v945
      %v4583 = vpop.f32.mrf.mxu0
      %v4584 = vadd.f32 0.0, %v4583
      %v4585 = vpop.f32.mrf.mxu0
      %4586 = vmatprep.mubr.f32.mxu0 0.0
      %4587 = vmatmul.mubr.f32.gmra.mxu0 %v948
      %v4588 = vpop.f32.mrf.mxu0
      %v4589 = vadd.f32 0.0, %v4588
      %v4590 = vpop.f32.mrf.mxu0
      %4591 = vmatprep.mubr.f32.mxu0 0.0
      %4592 = vmatmul.mubr.f32.gmra.mxu0 %v951
      %v4593 = vpop.f32.mrf.mxu0
      %v4594 = vadd.f32 0.0, %v4593
      %v4595 = vpop.f32.mrf.mxu0
      %4596 = vmatprep.mubr.f32.mxu0 0.0
      %4597 = vmatmul.mubr.f32.gmra.mxu0 %v954
      %v4598 = vpop.f32.mrf.mxu0
      %v4599 = vadd.f32 0.0, %v4598
      %v4600 = vpop.f32.mrf.mxu0
      %4601 = vdwg.mxu0
      %v4632 = vrot.slane %v4454, 1
      %v4633 = vrot.slane %v4459, 1
      %v4634 = vsel %vm2248, %v4632, %v4633
      %v4635 = vrot.slane %v4464, 1
      %v4636 = vsel %vm2248, %v4633, %v4635
      %v4637 = vrot.slane %v4469, 1
      %v4638 = vsel %vm2248, %v4635, %v4637
      %v4639 = vrot.slane %v4474, 1
      %v4640 = vsel %vm2248, %v4637, %v4639
      %v4641 = vrot.slane %v4479, 1
      %v4642 = vsel %vm2248, %v4639, %v4641
      %v4643 = vrot.slane %v4484, 1
      %v4644 = vsel %vm2248, %v4641, %v4643
      %v4645 = vrot.slane %v4489, 1
      %v4646 = vsel %vm2248, %v4643, %v4645
      %v4647 = vrot.slane %v4494, 1
      %v4648 = vsel %vm2248, %v4645, %v4647
      %v4649 = vrot.slane %v4499, 1
      %v4650 = vsel %vm2248, %v4647, %v4649
      %v4651 = vrot.slane %v4504, 1
      %v4652 = vsel %vm2248, %v4649, %v4651
      %v4653 = vrot.slane %v4509, 1
      %v4654 = vsel %vm2248, %v4651, %v4653
      %v4655 = vrot.slane %v4514, 1
      %v4656 = vsel %vm2248, %v4653, %v4655
      %v4657 = vrot.slane %v4519, 1
      %v4658 = vsel %vm2248, %v4655, %v4657
      %v4659 = vrot.slane %v4524, 1
      %v4660 = vsel %vm2248, %v4657, %v4659
      %v4661 = vrot.slane %v4529, 1
      %v4662 = vsel %vm2248, %v4659, %v4661
      %v4663 = vrot.slane %v4534, 1
      %v4664 = vsel %vm2248, %v4661, %v4663
      %v4665 = vrot.slane %v4539, 1
      %v4666 = vsel %vm2248, %v4663, %v4665
      %v4667 = vrot.slane %v4544, 1
      %v4668 = vsel %vm2248, %v4665, %v4667
      %v4669 = vrot.slane %v4549, 1
      %v4670 = vsel %vm2248, %v4667, %v4669
      %v4671 = vrot.slane %v4554, 1
      %v4672 = vsel %vm2248, %v4669, %v4671
      %v4673 = vrot.slane %v4559, 1
      %v4674 = vsel %vm2248, %v4671, %v4673
      %v4675 = vrot.slane %v4564, 1
      %v4676 = vsel %vm2248, %v4673, %v4675
      %v4677 = vrot.slane %v4569, 1
      %v4678 = vsel %vm2248, %v4675, %v4677
      %v4679 = vrot.slane %v4574, 1
      %v4680 = vsel %vm2248, %v4677, %v4679
      %v4681 = vrot.slane %v4579, 1
      %v4682 = vsel %vm2248, %v4679, %v4681
      %v4683 = vrot.slane %v4584, 1
      %v4684 = vsel %vm2248, %v4681, %v4683
      %v4685 = vrot.slane %v4589, 1
      %v4686 = vsel %vm2248, %v4683, %v4685
      %v4687 = vrot.slane %v4594, 1
      %v4688 = vsel %vm2248, %v4685, %v4687
      %v4689 = vrot.slane %v4599, 1
      %v4690 = vsel %vm2248, %v4687, %v4689
      %v4723 = vrot.slane %v4444, 1
      %v4724 = vrot.slane %v4449, 1
      %v4725 = vsel %vm2248, %v4723, %v4724
      %v4726 = vsel %vm2248, %v4724, %v4632
      %v4730 = vsel %vm2248, %v4689, %v4723
      %vm4731 = vmand %vm760, %vm824
      %vm4732 = vmand %vm761, %vm825
      %vm4733 = vmand %vm762, %vm826
      %vm4734 = vmand %vm763, %vm827
      %vm4735 = vmand %vm764, %vm828
      %vm4736 = vmand %vm765, %vm829
      %vm4737 = vmand %vm766, %vm830
      %vm4738 = vmand %vm767, %vm831
      %vm4739 = vmand %vm768, %vm832
      %vm4740 = vmand %vm769, %vm833
      %vm4741 = vmand %vm770, %vm834
      %vm4742 = vmand %vm771, %vm835
      %vm4743 = vmand %vm772, %vm836
      %vm4744 = vmand %vm773, %vm837
      %vm4745 = vmand %vm774, %vm838
      %vm4746 = vmand %vm775, %vm839
      %vm4747 = vmand %vm776, %vm840
      %vm4748 = vmand %vm777, %vm841
      %vm4749 = vmand %vm778, %vm842
      %vm4750 = vmand %vm779, %vm843
      %vm4751 = vmand %vm780, %vm844
      %vm4752 = vmand %vm781, %vm845
      %vm4753 = vmand %vm782, %vm846
      %vm4754 = vmand %vm783, %vm847
      %vm4755 = vmand %vm784, %vm848
      %vm4756 = vmand %vm785, %vm849
      %vm4757 = vmand %vm786, %vm850
      %vm4758 = vmand %vm787, %vm851
      %vm4759 = vmand %vm788, %vm852
      %vm4760 = vmand %vm789, %vm853
      %vm4761 = vmand %vm790, %vm854
      %vm4762 = vmand %vm791, %vm855
      %v4763 = vsel %vm4731, 1, 0
      %v4764 = vsel %vm4732, 1, 0
      %v4765 = vsel %vm4733, 1, 0
      %v4766 = vsel %vm4734, 1, 0
      %v4767 = vsel %vm4735, 1, 0
      %v4768 = vsel %vm4736, 1, 0
      %v4769 = vsel %vm4737, 1, 0
      %v4770 = vsel %vm4738, 1, 0
      %v4771 = vsel %vm4739, 1, 0
      %v4772 = vsel %vm4740, 1, 0
      %v4773 = vsel %vm4741, 1, 0
      %v4774 = vsel %vm4742, 1, 0
      %v4775 = vsel %vm4743, 1, 0
      %v4776 = vsel %vm4744, 1, 0
      %v4777 = vsel %vm4745, 1, 0
      %v4778 = vsel %vm4746, 1, 0
      %v4779 = vsel %vm4747, 1, 0
      %v4780 = vsel %vm4748, 1, 0
      %v4781 = vsel %vm4749, 1, 0
      %v4782 = vsel %vm4750, 1, 0
      %v4783 = vsel %vm4751, 1, 0
      %v4784 = vsel %vm4752, 1, 0
      %v4785 = vsel %vm4753, 1, 0
      %v4786 = vsel %vm4754, 1, 0
      %v4787 = vsel %vm4755, 1, 0
      %v4788 = vsel %vm4756, 1, 0
      %v4789 = vsel %vm4757, 1, 0
      %v4790 = vsel %vm4758, 1, 0
      %v4791 = vsel %vm4759, 1, 0
      %v4792 = vsel %vm4760, 1, 0
      %v4793 = vsel %vm4761, 1, 0
      %v4794 = vsel %vm4762, 1, 0
      %vm4795 = vcmp.eq.s32.totalorder %v4763, 1
      %vm4796 = vcmp.eq.s32.totalorder %v4764, 1
      %vm4797 = vcmp.eq.s32.totalorder %v4765, 1
      %vm4798 = vcmp.eq.s32.totalorder %v4766, 1
      %vm4799 = vcmp.eq.s32.totalorder %v4767, 1
      %vm4800 = vcmp.eq.s32.totalorder %v4768, 1
      %vm4801 = vcmp.eq.s32.totalorder %v4769, 1
      %vm4802 = vcmp.eq.s32.totalorder %v4770, 1
      %vm4803 = vcmp.eq.s32.totalorder %v4771, 1
      %vm4804 = vcmp.eq.s32.totalorder %v4772, 1
      %vm4805 = vcmp.eq.s32.totalorder %v4773, 1
      %vm4806 = vcmp.eq.s32.totalorder %v4774, 1
      %vm4807 = vcmp.eq.s32.totalorder %v4775, 1
      %vm4808 = vcmp.eq.s32.totalorder %v4776, 1
      %vm4809 = vcmp.eq.s32.totalorder %v4777, 1
      %vm4810 = vcmp.eq.s32.totalorder %v4778, 1
      %vm4811 = vcmp.eq.s32.totalorder %v4779, 1
      %vm4812 = vcmp.eq.s32.totalorder %v4780, 1
      %vm4813 = vcmp.eq.s32.totalorder %v4781, 1
      %vm4814 = vcmp.eq.s32.totalorder %v4782, 1
      %vm4815 = vcmp.eq.s32.totalorder %v4783, 1
      %vm4816 = vcmp.eq.s32.totalorder %v4784, 1
      %vm4817 = vcmp.eq.s32.totalorder %v4785, 1
      %vm4818 = vcmp.eq.s32.totalorder %v4786, 1
      %vm4819 = vcmp.eq.s32.totalorder %v4787, 1
      %vm4820 = vcmp.eq.s32.totalorder %v4788, 1
      %vm4821 = vcmp.eq.s32.totalorder %v4789, 1
      %vm4822 = vcmp.eq.s32.totalorder %v4790, 1
      %vm4823 = vcmp.eq.s32.totalorder %v4791, 1
      %vm4824 = vcmp.eq.s32.totalorder %v4792, 1
      %vm4825 = vcmp.eq.s32.totalorder %v4793, 1
      %vm4826 = vcmp.eq.s32.totalorder %v4794, 1
      %v4827 = vsel %vm4795, %v4634, 0.0
      %v4828 = vsel %vm4796, %v4636, 0.0
      %v4829 = vsel %vm4797, %v4638, 0.0
      %v4830 = vsel %vm4798, %v4640, 0.0
      %v4831 = vsel %vm4799, %v4642, 0.0
      %v4832 = vsel %vm4800, %v4644, 0.0
      %v4833 = vsel %vm4801, %v4646, 0.0
      %v4834 = vsel %vm4802, %v4648, 0.0
      %v4835 = vsel %vm4803, %v4650, 0.0
      %v4836 = vsel %vm4804, %v4652, 0.0
      %v4837 = vsel %vm4805, %v4654, 0.0
      %v4838 = vsel %vm4806, %v4656, 0.0
      %v4839 = vsel %vm4807, %v4658, 0.0
      %v4840 = vsel %vm4808, %v4660, 0.0
      %v4841 = vsel %vm4809, %v4662, 0.0
      %v4842 = vsel %vm4810, %v4664, 0.0
      %v4843 = vsel %vm4811, %v4666, 0.0
      %v4844 = vsel %vm4812, %v4668, 0.0
      %v4845 = vsel %vm4813, %v4670, 0.0
      %v4846 = vsel %vm4814, %v4672, 0.0
      %v4847 = vsel %vm4815, %v4674, 0.0
      %v4848 = vsel %vm4816, %v4676, 0.0
      %v4849 = vsel %vm4817, %v4678, 0.0
      %v4850 = vsel %vm4818, %v4680, 0.0
      %v4851 = vsel %vm4819, %v4682, 0.0
      %v4852 = vsel %vm4820, %v4684, 0.0
      %v4853 = vsel %vm4821, %v4686, 0.0
      %v4854 = vsel %vm4822, %v4688, 0.0
      %v4855 = vsel %vm4823, %v4690, 0.0
      %v4856 = vsel %vm4824, %v4730, 0.0
      %v4857 = vsel %vm4825, %v4725, 0.0
      %v4858 = vsel %vm4826, %v4726, 0.0
      %v4859 = vadd.f32 %v4343, %v4827
      %v4860 = vadd.f32 %v4344, %v4828
      %v4861 = vadd.f32 %v4345, %v4829
      %v4862 = vadd.f32 %v4346, %v4830
      %v4863 = vadd.f32 %v4347, %v4831
      %v4864 = vadd.f32 %v4348, %v4832
      %v4865 = vadd.f32 %v4349, %v4833
      %v4866 = vadd.f32 %v4350, %v4834
      %v4867 = vadd.f32 %v4351, %v4835
      %v4868 = vadd.f32 %v4352, %v4836
      %v4869 = vadd.f32 %v4353, %v4837
      %v4870 = vadd.f32 %v4354, %v4838
      %v4871 = vadd.f32 %v4355, %v4839
      %v4872 = vadd.f32 %v4356, %v4840
      %v4873 = vadd.f32 %v4357, %v4841
      %v4874 = vadd.f32 %v4358, %v4842
      %v4875 = vadd.f32 %v4359, %v4843
      %v4876 = vadd.f32 %v4360, %v4844
      %v4877 = vadd.f32 %v4361, %v4845
      %v4878 = vadd.f32 %v4362, %v4846
      %v4879 = vadd.f32 %v4363, %v4847
      %v4880 = vadd.f32 %v4364, %v4848
      %v4881 = vadd.f32 %v4365, %v4849
      %v4882 = vadd.f32 %v4366, %v4850
      %v4883 = vadd.f32 %v4367, %v4851
      %v4884 = vadd.f32 %v4368, %v4852
      %v4885 = vadd.f32 %v4369, %v4853
      %v4886 = vadd.f32 %v4370, %v4854
      %v4887 = vadd.f32 %v4371, %v4855
      %v4888 = vadd.f32 %v4372, %v4856
      %v4889 = vadd.f32 %v4373, %v4857
      %v4890 = vadd.f32 %v4374, %v4858
      %v4891 = vld [vmem:[%s2] sm:$0x1]
      %v4893 = vlaneseq
      %v4894 = vshrl.u32 %v4893, 7
      %v4895 = vsub.s32 0, %v4894
      %v4896 = vrot.slane %v4891, %v4895
      %v4898 = vmul.f32 %v4859, %v4896
      %v4899 = vmul.f32 %v4860, %v4896
      %v4900 = vmul.f32 %v4861, %v4896
      %v4901 = vmul.f32 %v4862, %v4896
      %v4902 = vmul.f32 %v4863, %v4896
      %v4903 = vmul.f32 %v4864, %v4896
      %v4904 = vmul.f32 %v4865, %v4896
      %v4905 = vmul.f32 %v4866, %v4896
      %v4906 = vmul.f32 %v4867, %v4896
      %v4907 = vmul.f32 %v4868, %v4896
      %v4908 = vmul.f32 %v4869, %v4896
      %v4909 = vmul.f32 %v4870, %v4896
      %v4910 = vmul.f32 %v4871, %v4896
      %v4911 = vmul.f32 %v4872, %v4896
      %v4912 = vmul.f32 %v4873, %v4896
      %v4913 = vmul.f32 %v4874, %v4896
      %v4914 = vmul.f32 %v4875, %v4896
      %v4915 = vmul.f32 %v4876, %v4896
      %v4916 = vmul.f32 %v4877, %v4896
      %v4917 = vmul.f32 %v4878, %v4896
      %v4918 = vmul.f32 %v4879, %v4896
      %v4919 = vmul.f32 %v4880, %v4896
      %v4920 = vmul.f32 %v4881, %v4896
      %v4921 = vmul.f32 %v4882, %v4896
      %v4922 = vmul.f32 %v4883, %v4896
      %v4923 = vmul.f32 %v4884, %v4896
      %v4924 = vmul.f32 %v4885, %v4896
      %v4925 = vmul.f32 %v4886, %v4896
      %v4926 = vmul.f32 %v4887, %v4896
      %v4927 = vmul.f32 %v4888, %v4896
      %v4928 = vmul.f32 %v4889, %v4896
      %v4929 = vmul.f32 %v4890, %v4896
      %v4930 = vld [vmem:[%s3] sm:$0x1]
      %v4932 = vlaneseq
      %v4933 = vshrl.u32 %v4932, 7
      %v4934 = vsub.s32 0, %v4933
      %v4935 = vrot.slane %v4930, %v4934
      %v4937 = vadd.f32 %v4898, %v4935
      %v4938 = vadd.f32 %v4899, %v4935
      %v4939 = vadd.f32 %v4900, %v4935
      %v4940 = vadd.f32 %v4901, %v4935
      %v4941 = vadd.f32 %v4902, %v4935
      %v4942 = vadd.f32 %v4903, %v4935
      %v4943 = vadd.f32 %v4904, %v4935
      %v4944 = vadd.f32 %v4905, %v4935
      %v4945 = vadd.f32 %v4906, %v4935
      %v4946 = vadd.f32 %v4907, %v4935
      %v4947 = vadd.f32 %v4908, %v4935
      %v4948 = vadd.f32 %v4909, %v4935
      %v4949 = vadd.f32 %v4910, %v4935
      %v4950 = vadd.f32 %v4911, %v4935
      %v4951 = vadd.f32 %v4912, %v4935
      %v4952 = vadd.f32 %v4913, %v4935
      %v4953 = vadd.f32 %v4914, %v4935
      %v4954 = vadd.f32 %v4915, %v4935
      %v4955 = vadd.f32 %v4916, %v4935
      %v4956 = vadd.f32 %v4917, %v4935
      %v4957 = vadd.f32 %v4918, %v4935
      %v4958 = vadd.f32 %v4919, %v4935
      %v4959 = vadd.f32 %v4920, %v4935
      %v4960 = vadd.f32 %v4921, %v4935
      %v4961 = vadd.f32 %v4922, %v4935
      %v4962 = vadd.f32 %v4923, %v4935
      %v4963 = vadd.f32 %v4924, %v4935
      %v4964 = vadd.f32 %v4925, %v4935
      %v4965 = vadd.f32 %v4926, %v4935
      %v4966 = vadd.f32 %v4927, %v4935
      %v4967 = vadd.f32 %v4928, %v4935
      %v4968 = vadd.f32 %v4929, %v4935
      %v4969 = vmax.f32 %v4937, 0.0
      %v4970 = vmax.f32 %v4938, 0.0
      %v4971 = vmax.f32 %v4939, 0.0
      %v4972 = vmax.f32 %v4940, 0.0
      %v4973 = vmax.f32 %v4941, 0.0
      %v4974 = vmax.f32 %v4942, 0.0
      %v4975 = vmax.f32 %v4943, 0.0
      %v4976 = vmax.f32 %v4944, 0.0
      %v4977 = vmax.f32 %v4945, 0.0
      %v4978 = vmax.f32 %v4946, 0.0
      %v4979 = vmax.f32 %v4947, 0.0
      %v4980 = vmax.f32 %v4948, 0.0
      %v4981 = vmax.f32 %v4949, 0.0
      %v4982 = vmax.f32 %v4950, 0.0
      %v4983 = vmax.f32 %v4951, 0.0
      %v4984 = vmax.f32 %v4952, 0.0
      %v4985 = vmax.f32 %v4953, 0.0
      %v4986 = vmax.f32 %v4954, 0.0
      %v4987 = vmax.f32 %v4955, 0.0
      %v4988 = vmax.f32 %v4956, 0.0
      %v4989 = vmax.f32 %v4957, 0.0
      %v4990 = vmax.f32 %v4958, 0.0
      %v4991 = vmax.f32 %v4959, 0.0
      %v4992 = vmax.f32 %v4960, 0.0
      %v4993 = vmax.f32 %v4961, 0.0
      %v4994 = vmax.f32 %v4962, 0.0
      %v4995 = vmax.f32 %v4963, 0.0
      %v4996 = vmax.f32 %v4964, 0.0
      %v4997 = vmax.f32 %v4965, 0.0
      %v4998 = vmax.f32 %v4966, 0.0
      %v4999 = vmax.f32 %v4967, 0.0
      %v5000 = vmax.f32 %v4968, 0.0
      %s5001 = scalar_lea.vmem %s4, 32
      %v5002 = vld [vmem:[%s5001] sm:$0xff]
      %v5003 = vld [vmem:[%s4] sm:$0xff]
      %v5005 = vsel %vm859, %v4969, 0
      %v5008 = vsel %vm859, %v4970, 0
      %v5011 = vsel %vm859, %v4971, 0
      %v5014 = vsel %vm859, %v4972, 0
      %v5017 = vsel %vm859, %v4973, 0
      %v5020 = vsel %vm859, %v4974, 0
      %v5023 = vsel %vm859, %v4975, 0
      %v5026 = vsel %vm859, %v4976, 0
      %v5029 = vsel %vm859, %v4977, 0
      %v5032 = vsel %vm859, %v4978, 0
      %v5035 = vsel %vm859, %v4979, 0
      %v5038 = vsel %vm859, %v4980, 0
      %v5041 = vsel %vm859, %v4981, 0
      %v5044 = vsel %vm859, %v4982, 0
      %v5047 = vsel %vm859, %v4983, 0
      %v5050 = vsel %vm859, %v4984, 0
      %v5053 = vsel %vm859, %v4985, 0
      %v5056 = vsel %vm859, %v4986, 0
      %v5059 = vsel %vm859, %v4987, 0
      %v5062 = vsel %vm859, %v4988, 0
      %v5065 = vsel %vm859, %v4989, 0
      %v5068 = vsel %vm859, %v4990, 0
      %v5071 = vsel %vm859, %v4991, 0
      %v5074 = vsel %vm859, %v4992, 0
      %v5077 = vsel %vm859, %v4993, 0
      %v5080 = vsel %vm859, %v4994, 0
      %v5083 = vsel %vm859, %v4995, 0
      %v5086 = vsel %vm859, %v4996, 0
      %v5089 = vsel %vm859, %v4997, 0
      %v5092 = vsel %vm859, %v4998, 0
      %v5095 = vsel %vm859, %v4999, 0
      %v5098 = vsel %vm859, %v5000, 0
      %5100 = vmatprep.subr.mxu0 0.0
      %5101 = vmatpush1.msra.mxu0 0.0
      %5102 = vmatprep.subr.mxu0 0.0
      %5103 = vmatpush1.msra.mxu0 0.0
      %5104 = vmatprep.subr.mxu0 0.0
      %5105 = vmatpush1.msra.mxu0 0.0
      %5106 = vmatprep.subr.mxu0 0.0
      %5107 = vmatpush1.msra.mxu0 0.0
      %5108 = vmatprep.subr.mxu0 0.0
      %5109 = vmatpush1.msra.mxu0 0.0
      %5110 = vmatprep.subr.mxu0 0.0
      %5111 = vmatpush1.msra.mxu0 0.0
      %5112 = vmatprep.subr.mxu0 0.0
      %5113 = vmatpush1.msra.mxu0 0.0
      %5114 = vmatprep.subr.mxu0 0.0
      %5115 = vmatpush1.msra.mxu0 0.0
      %5116 = vmatprep.subr.mxu0 0.0
      %5117 = vmatpush1.msra.mxu0 0.0
      %5118 = vmatprep.subr.mxu0 0.0
      %5119 = vmatpush1.msra.mxu0 0.0
      %5120 = vmatprep.subr.mxu0 0.0
      %5121 = vmatpush1.msra.mxu0 0.0
      %5122 = vmatprep.subr.mxu0 0.0
      %5123 = vmatpush1.msra.mxu0 0.0
      %5124 = vmatprep.subr.mxu0 0.0
      %5125 = vmatpush1.msra.mxu0 0.0
      %5126 = vmatprep.subr.mxu0 0.0
      %5127 = vmatpush1.msra.mxu0 0.0
      %5128 = vmatprep.subr.mxu0 0.0
      %5129 = vmatpush1.msra.mxu0 0.0
      %5130 = vmatprep.subr.mxu0 0.0
      %5131 = vmatpush1.msra.mxu0 %v5003
      %5132 = vmatprep.subr.mxu0 0.0
      %5133 = vmatpush2.msra.mxu0 0.0
      %5134 = vmatprep.subr.mxu0 0.0
      %5135 = vmatpush2.msra.mxu0 0.0
      %5136 = vmatprep.subr.mxu0 0.0
      %5137 = vmatpush2.msra.mxu0 0.0
      %5138 = vmatprep.subr.mxu0 0.0
      %5139 = vmatpush2.msra.mxu0 0.0
      %5140 = vmatprep.subr.mxu0 0.0
      %5141 = vmatpush2.msra.mxu0 0.0
      %5142 = vmatprep.subr.mxu0 0.0
      %5143 = vmatpush2.msra.mxu0 0.0
      %5144 = vmatprep.subr.mxu0 0.0
      %5145 = vmatpush2.msra.mxu0 0.0
      %5146 = vmatprep.subr.mxu0 0.0
      %5147 = vmatpush2.msra.mxu0 0.0
      %5148 = vmatprep.subr.mxu0 0.0
      %5149 = vmatpush2.msra.mxu0 0.0
      %5150 = vmatprep.subr.mxu0 0.0
      %5151 = vmatpush2.msra.mxu0 0.0
      %5152 = vmatprep.subr.mxu0 0.0
      %5153 = vmatpush2.msra.mxu0 0.0
      %5154 = vmatprep.subr.mxu0 0.0
      %5155 = vmatpush2.msra.mxu0 0.0
      %5156 = vmatprep.subr.mxu0 0.0
      %5157 = vmatpush2.msra.mxu0 0.0
      %5158 = vmatprep.subr.mxu0 0.0
      %5159 = vmatpush2.msra.mxu0 0.0
      %5160 = vmatprep.subr.mxu0 0.0
      %5161 = vmatpush2.msra.mxu0 0.0
      %5162 = vmatprep.subr.mxu0 0.0
      %5163 = vmatpush2.msra.mxu0 0.0
      %5164 = vmatprep.mubr.f32.mxu0 0.0
      %5165 = vmatmul.mubr.f32.gmra.mxu0 %v5005
      %v5166 = vpop.f32.mrf.mxu0
      %v5167 = vadd.f32 0.0, %v5166
      %v5168 = vpop.f32.mrf.mxu0
      %5169 = vmatprep.mubr.f32.mxu0 0.0
      %5170 = vmatmul.mubr.f32.gmra.mxu0 %v5008
      %v5171 = vpop.f32.mrf.mxu0
      %v5172 = vadd.f32 0.0, %v5171
      %v5173 = vpop.f32.mrf.mxu0
      %5174 = vmatprep.mubr.f32.mxu0 0.0
      %5175 = vmatmul.mubr.f32.gmra.mxu0 %v5011
      %v5176 = vpop.f32.mrf.mxu0
      %v5177 = vadd.f32 0.0, %v5176
      %v5178 = vpop.f32.mrf.mxu0
      %5179 = vmatprep.mubr.f32.mxu0 0.0
      %5180 = vmatmul.mubr.f32.gmra.mxu0 %v5014
      %v5181 = vpop.f32.mrf.mxu0
      %v5182 = vadd.f32 0.0, %v5181
      %v5183 = vpop.f32.mrf.mxu0
      %5184 = vmatprep.mubr.f32.mxu0 0.0
      %5185 = vmatmul.mubr.f32.gmra.mxu0 %v5017
      %v5186 = vpop.f32.mrf.mxu0
      %v5187 = vadd.f32 0.0, %v5186
      %v5188 = vpop.f32.mrf.mxu0
      %5189 = vmatprep.mubr.f32.mxu0 0.0
      %5190 = vmatmul.mubr.f32.gmra.mxu0 %v5020
      %v5191 = vpop.f32.mrf.mxu0
      %v5192 = vadd.f32 0.0, %v5191
      %v5193 = vpop.f32.mrf.mxu0
      %5194 = vmatprep.mubr.f32.mxu0 0.0
      %5195 = vmatmul.mubr.f32.gmra.mxu0 %v5023
      %v5196 = vpop.f32.mrf.mxu0
      %v5197 = vadd.f32 0.0, %v5196
      %v5198 = vpop.f32.mrf.mxu0
      %5199 = vmatprep.mubr.f32.mxu0 0.0
      %5200 = vmatmul.mubr.f32.gmra.mxu0 %v5026
      %v5201 = vpop.f32.mrf.mxu0
      %v5202 = vadd.f32 0.0, %v5201
      %v5203 = vpop.f32.mrf.mxu0
      %5204 = vmatprep.mubr.f32.mxu0 0.0
      %5205 = vmatmul.mubr.f32.gmra.mxu0 %v5029
      %v5206 = vpop.f32.mrf.mxu0
      %v5207 = vadd.f32 0.0, %v5206
      %v5208 = vpop.f32.mrf.mxu0
      %5209 = vmatprep.mubr.f32.mxu0 0.0
      %5210 = vmatmul.mubr.f32.gmra.mxu0 %v5032
      %v5211 = vpop.f32.mrf.mxu0
      %v5212 = vadd.f32 0.0, %v5211
      %v5213 = vpop.f32.mrf.mxu0
      %5214 = vmatprep.mubr.f32.mxu0 0.0
      %5215 = vmatmul.mubr.f32.gmra.mxu0 %v5035
      %v5216 = vpop.f32.mrf.mxu0
      %v5217 = vadd.f32 0.0, %v5216
      %v5218 = vpop.f32.mrf.mxu0
      %5219 = vmatprep.mubr.f32.mxu0 0.0
      %5220 = vmatmul.mubr.f32.gmra.mxu0 %v5038
      %v5221 = vpop.f32.mrf.mxu0
      %v5222 = vadd.f32 0.0, %v5221
      %v5223 = vpop.f32.mrf.mxu0
      %5224 = vmatprep.mubr.f32.mxu0 0.0
      %5225 = vmatmul.mubr.f32.gmra.mxu0 %v5041
      %v5226 = vpop.f32.mrf.mxu0
      %v5227 = vadd.f32 0.0, %v5226
      %v5228 = vpop.f32.mrf.mxu0
      %5229 = vmatprep.mubr.f32.mxu0 0.0
      %5230 = vmatmul.mubr.f32.gmra.mxu0 %v5044
      %v5231 = vpop.f32.mrf.mxu0
      %v5232 = vadd.f32 0.0, %v5231
      %v5233 = vpop.f32.mrf.mxu0
      %5234 = vmatprep.mubr.f32.mxu0 0.0
      %5235 = vmatmul.mubr.f32.gmra.mxu0 %v5047
      %v5236 = vpop.f32.mrf.mxu0
      %v5237 = vadd.f32 0.0, %v5236
      %v5238 = vpop.f32.mrf.mxu0
      %5239 = vmatprep.mubr.f32.mxu0 0.0
      %5240 = vmatmul.mubr.f32.gmra.mxu0 %v5050
      %v5241 = vpop.f32.mrf.mxu0
      %v5242 = vadd.f32 0.0, %v5241
      %v5243 = vpop.f32.mrf.mxu0
      %5244 = vmatprep.mubr.f32.mxu0 0.0
      %5245 = vmatmul.mubr.f32.gmra.mxu0 %v5053
      %v5246 = vpop.f32.mrf.mxu0
      %v5247 = vadd.f32 0.0, %v5246
      %v5248 = vpop.f32.mrf.mxu0
      %5249 = vmatprep.mubr.f32.mxu0 0.0
      %5250 = vmatmul.mubr.f32.gmra.mxu0 %v5056
      %v5251 = vpop.f32.mrf.mxu0
      %v5252 = vadd.f32 0.0, %v5251
      %v5253 = vpop.f32.mrf.mxu0
      %5254 = vmatprep.mubr.f32.mxu0 0.0
      %5255 = vmatmul.mubr.f32.gmra.mxu0 %v5059
      %v5256 = vpop.f32.mrf.mxu0
      %v5257 = vadd.f32 0.0, %v5256
      %v5258 = vpop.f32.mrf.mxu0
      %5259 = vmatprep.mubr.f32.mxu0 0.0
      %5260 = vmatmul.mubr.f32.gmra.mxu0 %v5062
      %v5261 = vpop.f32.mrf.mxu0
      %v5262 = vadd.f32 0.0, %v5261
      %v5263 = vpop.f32.mrf.mxu0
      %5264 = vmatprep.mubr.f32.mxu0 0.0
      %5265 = vmatmul.mubr.f32.gmra.mxu0 %v5065
      %v5266 = vpop.f32.mrf.mxu0
      %v5267 = vadd.f32 0.0, %v5266
      %v5268 = vpop.f32.mrf.mxu0
      %5269 = vmatprep.mubr.f32.mxu0 0.0
      %5270 = vmatmul.mubr.f32.gmra.mxu0 %v5068
      %v5271 = vpop.f32.mrf.mxu0
      %v5272 = vadd.f32 0.0, %v5271
      %v5273 = vpop.f32.mrf.mxu0
      %5274 = vmatprep.mubr.f32.mxu0 0.0
      %5275 = vmatmul.mubr.f32.gmra.mxu0 %v5071
      %v5276 = vpop.f32.mrf.mxu0
      %v5277 = vadd.f32 0.0, %v5276
      %v5278 = vpop.f32.mrf.mxu0
      %5279 = vmatprep.mubr.f32.mxu0 0.0
      %5280 = vmatmul.mubr.f32.gmra.mxu0 %v5074
      %v5281 = vpop.f32.mrf.mxu0
      %v5282 = vadd.f32 0.0, %v5281
      %v5283 = vpop.f32.mrf.mxu0
      %5284 = vmatprep.mubr.f32.mxu0 0.0
      %5285 = vmatmul.mubr.f32.gmra.mxu0 %v5077
      %v5286 = vpop.f32.mrf.mxu0
      %v5287 = vadd.f32 0.0, %v5286
      %v5288 = vpop.f32.mrf.mxu0
      %5289 = vmatprep.mubr.f32.mxu0 0.0
      %5290 = vmatmul.mubr.f32.gmra.mxu0 %v5080
      %v5291 = vpop.f32.mrf.mxu0
      %v5292 = vadd.f32 0.0, %v5291
      %v5293 = vpop.f32.mrf.mxu0
      %5294 = vmatprep.mubr.f32.mxu0 0.0
      %5295 = vmatmul.mubr.f32.gmra.mxu0 %v5083
      %v5296 = vpop.f32.mrf.mxu0
      %v5297 = vadd.f32 0.0, %v5296
      %v5298 = vpop.f32.mrf.mxu0
      %5299 = vmatprep.mubr.f32.mxu0 0.0
      %5300 = vmatmul.mubr.f32.gmra.mxu0 %v5086
      %v5301 = vpop.f32.mrf.mxu0
      %v5302 = vadd.f32 0.0, %v5301
      %v5303 = vpop.f32.mrf.mxu0
      %5304 = vmatprep.mubr.f32.mxu0 0.0
      %5305 = vmatmul.mubr.f32.gmra.mxu0 %v5089
      %v5306 = vpop.f32.mrf.mxu0
      %v5307 = vadd.f32 0.0, %v5306
      %v5308 = vpop.f32.mrf.mxu0
      %5309 = vmatprep.mubr.f32.mxu0 0.0
      %5310 = vmatmul.mubr.f32.gmra.mxu0 %v5092
      %v5311 = vpop.f32.mrf.mxu0
      %v5312 = vadd.f32 0.0, %v5311
      %v5313 = vpop.f32.mrf.mxu0
      %5314 = vmatprep.mubr.f32.mxu0 0.0
      %5315 = vmatmul.mubr.f32.gmra.mxu0 %v5095
      %v5316 = vpop.f32.mrf.mxu0
      %v5317 = vadd.f32 0.0, %v5316
      %v5318 = vpop.f32.mrf.mxu0
      %5319 = vmatprep.mubr.f32.mxu0 0.0
      %5320 = vmatmul.mubr.f32.gmra.mxu0 %v5098
      %v5321 = vpop.f32.mrf.mxu0
      %v5322 = vadd.f32 0.0, %v5321
      %v5323 = vpop.f32.mrf.mxu0
      %5324 = vdwg.mxu0
      %v5328 = vrot.slane %v5312, 7
      %v5329 = vrot.slane %v5317, 7
      %v5330 = vsel %vm1184, %v5328, %v5329
      %v5331 = vrot.slane %v5322, 7
      %v5332 = vsel %vm1184, %v5329, %v5331
      %v5365 = vrot.slane %v5167, 7
      %v5366 = vrot.slane %v5172, 7
      %v5367 = vsel %vm1184, %v5365, %v5366
      %v5368 = vrot.slane %v5177, 7
      %v5369 = vsel %vm1184, %v5366, %v5368
      %v5370 = vrot.slane %v5182, 7
      %v5371 = vsel %vm1184, %v5368, %v5370
      %v5372 = vrot.slane %v5187, 7
      %v5373 = vsel %vm1184, %v5370, %v5372
      %v5374 = vrot.slane %v5192, 7
      %v5375 = vsel %vm1184, %v5372, %v5374
      %v5376 = vrot.slane %v5197, 7
      %v5377 = vsel %vm1184, %v5374, %v5376
      %v5378 = vrot.slane %v5202, 7
      %v5379 = vsel %vm1184, %v5376, %v5378
      %v5380 = vrot.slane %v5207, 7
      %v5381 = vsel %vm1184, %v5378, %v5380
      %v5382 = vrot.slane %v5212, 7
      %v5383 = vsel %vm1184, %v5380, %v5382
      %v5384 = vrot.slane %v5217, 7
      %v5385 = vsel %vm1184, %v5382, %v5384
      %v5386 = vrot.slane %v5222, 7
      %v5387 = vsel %vm1184, %v5384, %v5386
      %v5388 = vrot.slane %v5227, 7
      %v5389 = vsel %vm1184, %v5386, %v5388
      %v5390 = vrot.slane %v5232, 7
      %v5391 = vsel %vm1184, %v5388, %v5390
      %v5392 = vrot.slane %v5237, 7
      %v5393 = vsel %vm1184, %v5390, %v5392
      %v5394 = vrot.slane %v5242, 7
      %v5395 = vsel %vm1184, %v5392, %v5394
      %v5396 = vrot.slane %v5247, 7
      %v5397 = vsel %vm1184, %v5394, %v5396
      %v5398 = vrot.slane %v5252, 7
      %v5399 = vsel %vm1184, %v5396, %v5398
      %v5400 = vrot.slane %v5257, 7
      %v5401 = vsel %vm1184, %v5398, %v5400
      %v5402 = vrot.slane %v5262, 7
      %v5403 = vsel %vm1184, %v5400, %v5402
      %v5404 = vrot.slane %v5267, 7
      %v5405 = vsel %vm1184, %v5402, %v5404
      %v5406 = vrot.slane %v5272, 7
      %v5407 = vsel %vm1184, %v5404, %v5406
      %v5408 = vrot.slane %v5277, 7
      %v5409 = vsel %vm1184, %v5406, %v5408
      %v5410 = vrot.slane %v5282, 7
      %v5411 = vsel %vm1184, %v5408, %v5410
      %v5412 = vrot.slane %v5287, 7
      %v5413 = vsel %vm1184, %v5410, %v5412
      %v5414 = vrot.slane %v5292, 7
      %v5415 = vsel %vm1184, %v5412, %v5414
      %v5416 = vrot.slane %v5297, 7
      %v5417 = vsel %vm1184, %v5414, %v5416
      %v5418 = vrot.slane %v5302, 7
      %v5419 = vsel %vm1184, %v5416, %v5418
      %v5420 = vrot.slane %v5307, 7
      %v5421 = vsel %vm1184, %v5418, %v5420
      %v5422 = vsel %vm1184, %v5420, %v5328
      %v5453 = vsel %vm1184, %v5331, %v5365
      %v5454 = vsel %vm1375, %v5330, 0.0
      %v5455 = vsel %vm1376, %v5332, 0.0
      %v5456 = vsel %vm1377, %v5453, 0.0
      %v5457 = vsel %vm1378, %v5367, 0.0
      %v5458 = vsel %vm1379, %v5369, 0.0
      %v5459 = vsel %vm1380, %v5371, 0.0
      %v5460 = vsel %vm1381, %v5373, 0.0
      %v5461 = vsel %vm1382, %v5375, 0.0
      %v5462 = vsel %vm1383, %v5377, 0.0
      %v5463 = vsel %vm1384, %v5379, 0.0
      %v5464 = vsel %vm1385, %v5381, 0.0
      %v5465 = vsel %vm1386, %v5383, 0.0
      %v5466 = vsel %vm1387, %v5385, 0.0
      %v5467 = vsel %vm1388, %v5387, 0.0
      %v5468 = vsel %vm1389, %v5389, 0.0
      %v5469 = vsel %vm1390, %v5391, 0.0
      %v5470 = vsel %vm1391, %v5393, 0.0
      %v5471 = vsel %vm1392, %v5395, 0.0
      %v5472 = vsel %vm1393, %v5397, 0.0
      %v5473 = vsel %vm1394, %v5399, 0.0
      %v5474 = vsel %vm1395, %v5401, 0.0
      %v5475 = vsel %vm1396, %v5403, 0.0
      %v5476 = vsel %vm1397, %v5405, 0.0
      %v5477 = vsel %vm1398, %v5407, 0.0
      %v5478 = vsel %vm1399, %v5409, 0.0
      %v5479 = vsel %vm1400, %v5411, 0.0
      %v5480 = vsel %vm1401, %v5413, 0.0
      %v5481 = vsel %vm1402, %v5415, 0.0
      %v5482 = vsel %vm1403, %v5417, 0.0
      %v5483 = vsel %vm1404, %v5419, 0.0
      %v5484 = vsel %vm1405, %v5421, 0.0
      %v5485 = vsel %vm1406, %v5422, 0.0
      %5486 = vmatprep.subr.mxu0 0.0
      %5487 = vmatpush1.msra.mxu0 0.0
      %5488 = vmatprep.subr.mxu0 0.0
      %5489 = vmatpush1.msra.mxu0 0.0
      %5490 = vmatprep.subr.mxu0 0.0
      %5491 = vmatpush1.msra.mxu0 0.0
      %5492 = vmatprep.subr.mxu0 0.0
      %5493 = vmatpush1.msra.mxu0 0.0
      %5494 = vmatprep.subr.mxu0 0.0
      %5495 = vmatpush1.msra.mxu0 0.0
      %5496 = vmatprep.subr.mxu0 0.0
      %5497 = vmatpush1.msra.mxu0 0.0
      %5498 = vmatprep.subr.mxu0 0.0
      %5499 = vmatpush1.msra.mxu0 0.0
      %5500 = vmatprep.subr.mxu0 0.0
      %5501 = vmatpush1.msra.mxu0 0.0
      %5502 = vmatprep.subr.mxu0 0.0
      %5503 = vmatpush1.msra.mxu0 0.0
      %5504 = vmatprep.subr.mxu0 0.0
      %5505 = vmatpush1.msra.mxu0 0.0
      %5506 = vmatprep.subr.mxu0 0.0
      %5507 = vmatpush1.msra.mxu0 0.0
      %5508 = vmatprep.subr.mxu0 0.0
      %5509 = vmatpush1.msra.mxu0 0.0
      %5510 = vmatprep.subr.mxu0 0.0
      %5511 = vmatpush1.msra.mxu0 0.0
      %5512 = vmatprep.subr.mxu0 0.0
      %5513 = vmatpush1.msra.mxu0 0.0
      %5514 = vmatprep.subr.mxu0 0.0
      %5515 = vmatpush1.msra.mxu0 0.0
      %5516 = vmatprep.subr.mxu0 0.0
      %5517 = vmatpush1.msra.mxu0 %v5002
      %5518 = vmatprep.subr.mxu0 0.0
      %5519 = vmatpush2.msra.mxu0 0.0
      %5520 = vmatprep.subr.mxu0 0.0
      %5521 = vmatpush2.msra.mxu0 0.0
      %5522 = vmatprep.subr.mxu0 0.0
      %5523 = vmatpush2.msra.mxu0 0.0
      %5524 = vmatprep.subr.mxu0 0.0
      %5525 = vmatpush2.msra.mxu0 0.0
      %5526 = vmatprep.subr.mxu0 0.0
      %5527 = vmatpush2.msra.mxu0 0.0
      %5528 = vmatprep.subr.mxu0 0.0
      %5529 = vmatpush2.msra.mxu0 0.0
      %5530 = vmatprep.subr.mxu0 0.0
      %5531 = vmatpush2.msra.mxu0 0.0
      %5532 = vmatprep.subr.mxu0 0.0
      %5533 = vmatpush2.msra.mxu0 0.0
      %5534 = vmatprep.subr.mxu0 0.0
      %5535 = vmatpush2.msra.mxu0 0.0
      %5536 = vmatprep.subr.mxu0 0.0
      %5537 = vmatpush2.msra.mxu0 0.0
      %5538 = vmatprep.subr.mxu0 0.0
      %5539 = vmatpush2.msra.mxu0 0.0
      %5540 = vmatprep.subr.mxu0 0.0
      %5541 = vmatpush2.msra.mxu0 0.0
      %5542 = vmatprep.subr.mxu0 0.0
      %5543 = vmatpush2.msra.mxu0 0.0
      %5544 = vmatprep.subr.mxu0 0.0
      %5545 = vmatpush2.msra.mxu0 0.0
      %5546 = vmatprep.subr.mxu0 0.0
      %5547 = vmatpush2.msra.mxu0 0.0
      %5548 = vmatprep.subr.mxu0 0.0
      %5549 = vmatpush2.msra.mxu0 0.0
      %5550 = vmatprep.mubr.f32.mxu0 0.0
      %5551 = vmatmul.mubr.f32.gmra.mxu0 %v5005
      %v5552 = vpop.f32.mrf.mxu0
      %v5553 = vadd.f32 %v5454, %v5552
      %v5554 = vpop.f32.mrf.mxu0
      %5555 = vmatprep.mubr.f32.mxu0 0.0
      %5556 = vmatmul.mubr.f32.gmra.mxu0 %v5008
      %v5557 = vpop.f32.mrf.mxu0
      %v5558 = vadd.f32 %v5455, %v5557
      %v5559 = vpop.f32.mrf.mxu0
      %5560 = vmatprep.mubr.f32.mxu0 0.0
      %5561 = vmatmul.mubr.f32.gmra.mxu0 %v5011
      %v5562 = vpop.f32.mrf.mxu0
      %v5563 = vadd.f32 %v5456, %v5562
      %v5564 = vpop.f32.mrf.mxu0
      %5565 = vmatprep.mubr.f32.mxu0 0.0
      %5566 = vmatmul.mubr.f32.gmra.mxu0 %v5014
      %v5567 = vpop.f32.mrf.mxu0
      %v5568 = vadd.f32 %v5457, %v5567
      %v5569 = vpop.f32.mrf.mxu0
      %5570 = vmatprep.mubr.f32.mxu0 0.0
      %5571 = vmatmul.mubr.f32.gmra.mxu0 %v5017
      %v5572 = vpop.f32.mrf.mxu0
      %v5573 = vadd.f32 %v5458, %v5572
      %v5574 = vpop.f32.mrf.mxu0
      %5575 = vmatprep.mubr.f32.mxu0 0.0
      %5576 = vmatmul.mubr.f32.gmra.mxu0 %v5020
      %v5577 = vpop.f32.mrf.mxu0
      %v5578 = vadd.f32 %v5459, %v5577
      %v5579 = vpop.f32.mrf.mxu0
      %5580 = vmatprep.mubr.f32.mxu0 0.0
      %5581 = vmatmul.mubr.f32.gmra.mxu0 %v5023
      %v5582 = vpop.f32.mrf.mxu0
      %v5583 = vadd.f32 %v5460, %v5582
      %v5584 = vpop.f32.mrf.mxu0
      %5585 = vmatprep.mubr.f32.mxu0 0.0
      %5586 = vmatmul.mubr.f32.gmra.mxu0 %v5026
      %v5587 = vpop.f32.mrf.mxu0
      %v5588 = vadd.f32 %v5461, %v5587
      %v5589 = vpop.f32.mrf.mxu0
      %5590 = vmatprep.mubr.f32.mxu0 0.0
      %5591 = vmatmul.mubr.f32.gmra.mxu0 %v5029
      %v5592 = vpop.f32.mrf.mxu0
      %v5593 = vadd.f32 %v5462, %v5592
      %v5594 = vpop.f32.mrf.mxu0
      %5595 = vmatprep.mubr.f32.mxu0 0.0
      %5596 = vmatmul.mubr.f32.gmra.mxu0 %v5032
      %v5597 = vpop.f32.mrf.mxu0
      %v5598 = vadd.f32 %v5463, %v5597
      %v5599 = vpop.f32.mrf.mxu0
      %5600 = vmatprep.mubr.f32.mxu0 0.0
      %5601 = vmatmul.mubr.f32.gmra.mxu0 %v5035
      %v5602 = vpop.f32.mrf.mxu0
      %v5603 = vadd.f32 %v5464, %v5602
      %v5604 = vpop.f32.mrf.mxu0
      %5605 = vmatprep.mubr.f32.mxu0 0.0
      %5606 = vmatmul.mubr.f32.gmra.mxu0 %v5038
      %v5607 = vpop.f32.mrf.mxu0
      %v5608 = vadd.f32 %v5465, %v5607
      %v5609 = vpop.f32.mrf.mxu0
      %5610 = vmatprep.mubr.f32.mxu0 0.0
      %5611 = vmatmul.mubr.f32.gmra.mxu0 %v5041
      %v5612 = vpop.f32.mrf.mxu0
      %v5613 = vadd.f32 %v5466, %v5612
      %v5614 = vpop.f32.mrf.mxu0
      %5615 = vmatprep.mubr.f32.mxu0 0.0
      %5616 = vmatmul.mubr.f32.gmra.mxu0 %v5044
      %v5617 = vpop.f32.mrf.mxu0
      %v5618 = vadd.f32 %v5467, %v5617
      %v5619 = vpop.f32.mrf.mxu0
      %5620 = vmatprep.mubr.f32.mxu0 0.0
      %5621 = vmatmul.mubr.f32.gmra.mxu0 %v5047
      %v5622 = vpop.f32.mrf.mxu0
      %v5623 = vadd.f32 %v5468, %v5622
      %v5624 = vpop.f32.mrf.mxu0
      %5625 = vmatprep.mubr.f32.mxu0 0.0
      %5626 = vmatmul.mubr.f32.gmra.mxu0 %v5050
      %v5627 = vpop.f32.mrf.mxu0
      %v5628 = vadd.f32 %v5469, %v5627
      %v5629 = vpop.f32.mrf.mxu0
      %5630 = vmatprep.mubr.f32.mxu0 0.0
      %5631 = vmatmul.mubr.f32.gmra.mxu0 %v5053
      %v5632 = vpop.f32.mrf.mxu0
      %v5633 = vadd.f32 %v5470, %v5632
      %v5634 = vpop.f32.mrf.mxu0
      %5635 = vmatprep.mubr.f32.mxu0 0.0
      %5636 = vmatmul.mubr.f32.gmra.mxu0 %v5056
      %v5637 = vpop.f32.mrf.mxu0
      %v5638 = vadd.f32 %v5471, %v5637
      %v5639 = vpop.f32.mrf.mxu0
      %5640 = vmatprep.mubr.f32.mxu0 0.0
      %5641 = vmatmul.mubr.f32.gmra.mxu0 %v5059
      %v5642 = vpop.f32.mrf.mxu0
      %v5643 = vadd.f32 %v5472, %v5642
      %v5644 = vpop.f32.mrf.mxu0
      %5645 = vmatprep.mubr.f32.mxu0 0.0
      %5646 = vmatmul.mubr.f32.gmra.mxu0 %v5062
      %v5647 = vpop.f32.mrf.mxu0
      %v5648 = vadd.f32 %v5473, %v5647
      %v5649 = vpop.f32.mrf.mxu0
      %5650 = vmatprep.mubr.f32.mxu0 0.0
      %5651 = vmatmul.mubr.f32.gmra.mxu0 %v5065
      %v5652 = vpop.f32.mrf.mxu0
      %v5653 = vadd.f32 %v5474, %v5652
      %v5654 = vpop.f32.mrf.mxu0
      %5655 = vmatprep.mubr.f32.mxu0 0.0
      %5656 = vmatmul.mubr.f32.gmra.mxu0 %v5068
      %v5657 = vpop.f32.mrf.mxu0
      %v5658 = vadd.f32 %v5475, %v5657
      %v5659 = vpop.f32.mrf.mxu0
      %5660 = vmatprep.mubr.f32.mxu0 0.0
      %5661 = vmatmul.mubr.f32.gmra.mxu0 %v5071
      %v5662 = vpop.f32.mrf.mxu0
      %v5663 = vadd.f32 %v5476, %v5662
      %v5664 = vpop.f32.mrf.mxu0
      %5665 = vmatprep.mubr.f32.mxu0 0.0
      %5666 = vmatmul.mubr.f32.gmra.mxu0 %v5074
      %v5667 = vpop.f32.mrf.mxu0
      %v5668 = vadd.f32 %v5477, %v5667
      %v5669 = vpop.f32.mrf.mxu0
      %5670 = vmatprep.mubr.f32.mxu0 0.0
      %5671 = vmatmul.mubr.f32.gmra.mxu0 %v5077
      %v5672 = vpop.f32.mrf.mxu0
      %v5673 = vadd.f32 %v5478, %v5672
      %v5674 = vpop.f32.mrf.mxu0
      %5675 = vmatprep.mubr.f32.mxu0 0.0
      %5676 = vmatmul.mubr.f32.gmra.mxu0 %v5080
      %v5677 = vpop.f32.mrf.mxu0
      %v5678 = vadd.f32 %v5479, %v5677
      %v5679 = vpop.f32.mrf.mxu0
      %5680 = vmatprep.mubr.f32.mxu0 0.0
      %5681 = vmatmul.mubr.f32.gmra.mxu0 %v5083
      %v5682 = vpop.f32.mrf.mxu0
      %v5683 = vadd.f32 %v5480, %v5682
      %v5684 = vpop.f32.mrf.mxu0
      %5685 = vmatprep.mubr.f32.mxu0 0.0
      %5686 = vmatmul.mubr.f32.gmra.mxu0 %v5086
      %v5687 = vpop.f32.mrf.mxu0
      %v5688 = vadd.f32 %v5481, %v5687
      %v5689 = vpop.f32.mrf.mxu0
      %5690 = vmatprep.mubr.f32.mxu0 0.0
      %5691 = vmatmul.mubr.f32.gmra.mxu0 %v5089
      %v5692 = vpop.f32.mrf.mxu0
      %v5693 = vadd.f32 %v5482, %v5692
      %v5694 = vpop.f32.mrf.mxu0
      %5695 = vmatprep.mubr.f32.mxu0 0.0
      %5696 = vmatmul.mubr.f32.gmra.mxu0 %v5092
      %v5697 = vpop.f32.mrf.mxu0
      %v5698 = vadd.f32 %v5483, %v5697
      %v5699 = vpop.f32.mrf.mxu0
      %5700 = vmatprep.mubr.f32.mxu0 0.0
      %5701 = vmatmul.mubr.f32.gmra.mxu0 %v5095
      %v5702 = vpop.f32.mrf.mxu0
      %v5703 = vadd.f32 %v5484, %v5702
      %v5704 = vpop.f32.mrf.mxu0
      %5705 = vmatprep.mubr.f32.mxu0 0.0
      %5706 = vmatmul.mubr.f32.gmra.mxu0 %v5098
      %v5707 = vpop.f32.mrf.mxu0
      %v5708 = vadd.f32 %v5485, %v5707
      %v5709 = vpop.f32.mrf.mxu0
      %5710 = vdwg.mxu0
      %s5711 = scalar_lea.vmem %s4, 8
      %v5712 = vld [vmem:[%s5711] sm:$0xff]
      %5713 = vmatprep.subr.mxu0 0.0
      %5714 = vmatpush1.msra.mxu0 0.0
      %5715 = vmatprep.subr.mxu0 0.0
      %5716 = vmatpush1.msra.mxu0 0.0
      %5717 = vmatprep.subr.mxu0 0.0
      %5718 = vmatpush1.msra.mxu0 0.0
      %5719 = vmatprep.subr.mxu0 0.0
      %5720 = vmatpush1.msra.mxu0 0.0
      %5721 = vmatprep.subr.mxu0 0.0
      %5722 = vmatpush1.msra.mxu0 0.0
      %5723 = vmatprep.subr.mxu0 0.0
      %5724 = vmatpush1.msra.mxu0 0.0
      %5725 = vmatprep.subr.mxu0 0.0
      %5726 = vmatpush1.msra.mxu0 0.0
      %5727 = vmatprep.subr.mxu0 0.0
      %5728 = vmatpush1.msra.mxu0 0.0
      %5729 = vmatprep.subr.mxu0 0.0
      %5730 = vmatpush1.msra.mxu0 0.0
      %5731 = vmatprep.subr.mxu0 0.0
      %5732 = vmatpush1.msra.mxu0 0.0
      %5733 = vmatprep.subr.mxu0 0.0
      %5734 = vmatpush1.msra.mxu0 0.0
      %5735 = vmatprep.subr.mxu0 0.0
      %5736 = vmatpush1.msra.mxu0 0.0
      %5737 = vmatprep.subr.mxu0 0.0
      %5738 = vmatpush1.msra.mxu0 0.0
      %5739 = vmatprep.subr.mxu0 0.0
      %5740 = vmatpush1.msra.mxu0 0.0
      %5741 = vmatprep.subr.mxu0 0.0
      %5742 = vmatpush1.msra.mxu0 0.0
      %5743 = vmatprep.subr.mxu0 0.0
      %5744 = vmatpush1.msra.mxu0 %v5712
      %5745 = vmatprep.subr.mxu0 0.0
      %5746 = vmatpush2.msra.mxu0 0.0
      %5747 = vmatprep.subr.mxu0 0.0
      %5748 = vmatpush2.msra.mxu0 0.0
      %5749 = vmatprep.subr.mxu0 0.0
      %5750 = vmatpush2.msra.mxu0 0.0
      %5751 = vmatprep.subr.mxu0 0.0
      %5752 = vmatpush2.msra.mxu0 0.0
      %5753 = vmatprep.subr.mxu0 0.0
      %5754 = vmatpush2.msra.mxu0 0.0
      %5755 = vmatprep.subr.mxu0 0.0
      %5756 = vmatpush2.msra.mxu0 0.0
      %5757 = vmatprep.subr.mxu0 0.0
      %5758 = vmatpush2.msra.mxu0 0.0
      %5759 = vmatprep.subr.mxu0 0.0
      %5760 = vmatpush2.msra.mxu0 0.0
      %5761 = vmatprep.subr.mxu0 0.0
      %5762 = vmatpush2.msra.mxu0 0.0
      %5763 = vmatprep.subr.mxu0 0.0
      %5764 = vmatpush2.msra.mxu0 0.0
      %5765 = vmatprep.subr.mxu0 0.0
      %5766 = vmatpush2.msra.mxu0 0.0
      %5767 = vmatprep.subr.mxu0 0.0
      %5768 = vmatpush2.msra.mxu0 0.0
      %5769 = vmatprep.subr.mxu0 0.0
      %5770 = vmatpush2.msra.mxu0 0.0
      %5771 = vmatprep.subr.mxu0 0.0
      %5772 = vmatpush2.msra.mxu0 0.0
      %5773 = vmatprep.subr.mxu0 0.0
      %5774 = vmatpush2.msra.mxu0 0.0
      %5775 = vmatprep.subr.mxu0 0.0
      %5776 = vmatpush2.msra.mxu0 0.0
      %5777 = vmatprep.mubr.f32.mxu0 0.0
      %5778 = vmatmul.mubr.f32.gmra.mxu0 %v5005
      %v5779 = vpop.f32.mrf.mxu0
      %v5780 = vadd.f32 0.0, %v5779
      %v5781 = vpop.f32.mrf.mxu0
      %5782 = vmatprep.mubr.f32.mxu0 0.0
      %5783 = vmatmul.mubr.f32.gmra.mxu0 %v5008
      %v5784 = vpop.f32.mrf.mxu0
      %v5785 = vadd.f32 0.0, %v5784
      %v5786 = vpop.f32.mrf.mxu0
      %5787 = vmatprep.mubr.f32.mxu0 0.0
      %5788 = vmatmul.mubr.f32.gmra.mxu0 %v5011
      %v5789 = vpop.f32.mrf.mxu0
      %v5790 = vadd.f32 0.0, %v5789
      %v5791 = vpop.f32.mrf.mxu0
      %5792 = vmatprep.mubr.f32.mxu0 0.0
      %5793 = vmatmul.mubr.f32.gmra.mxu0 %v5014
      %v5794 = vpop.f32.mrf.mxu0
      %v5795 = vadd.f32 0.0, %v5794
      %v5796 = vpop.f32.mrf.mxu0
      %5797 = vmatprep.mubr.f32.mxu0 0.0
      %5798 = vmatmul.mubr.f32.gmra.mxu0 %v5017
      %v5799 = vpop.f32.mrf.mxu0
      %v5800 = vadd.f32 0.0, %v5799
      %v5801 = vpop.f32.mrf.mxu0
      %5802 = vmatprep.mubr.f32.mxu0 0.0
      %5803 = vmatmul.mubr.f32.gmra.mxu0 %v5020
      %v5804 = vpop.f32.mrf.mxu0
      %v5805 = vadd.f32 0.0, %v5804
      %v5806 = vpop.f32.mrf.mxu0
      %5807 = vmatprep.mubr.f32.mxu0 0.0
      %5808 = vmatmul.mubr.f32.gmra.mxu0 %v5023
      %v5809 = vpop.f32.mrf.mxu0
      %v5810 = vadd.f32 0.0, %v5809
      %v5811 = vpop.f32.mrf.mxu0
      %5812 = vmatprep.mubr.f32.mxu0 0.0
      %5813 = vmatmul.mubr.f32.gmra.mxu0 %v5026
      %v5814 = vpop.f32.mrf.mxu0
      %v5815 = vadd.f32 0.0, %v5814
      %v5816 = vpop.f32.mrf.mxu0
      %5817 = vmatprep.mubr.f32.mxu0 0.0
      %5818 = vmatmul.mubr.f32.gmra.mxu0 %v5029
      %v5819 = vpop.f32.mrf.mxu0
      %v5820 = vadd.f32 0.0, %v5819
      %v5821 = vpop.f32.mrf.mxu0
      %5822 = vmatprep.mubr.f32.mxu0 0.0
      %5823 = vmatmul.mubr.f32.gmra.mxu0 %v5032
      %v5824 = vpop.f32.mrf.mxu0
      %v5825 = vadd.f32 0.0, %v5824
      %v5826 = vpop.f32.mrf.mxu0
      %5827 = vmatprep.mubr.f32.mxu0 0.0
      %5828 = vmatmul.mubr.f32.gmra.mxu0 %v5035
      %v5829 = vpop.f32.mrf.mxu0
      %v5830 = vadd.f32 0.0, %v5829
      %v5831 = vpop.f32.mrf.mxu0
      %5832 = vmatprep.mubr.f32.mxu0 0.0
      %5833 = vmatmul.mubr.f32.gmra.mxu0 %v5038
      %v5834 = vpop.f32.mrf.mxu0
      %v5835 = vadd.f32 0.0, %v5834
      %v5836 = vpop.f32.mrf.mxu0
      %5837 = vmatprep.mubr.f32.mxu0 0.0
      %5838 = vmatmul.mubr.f32.gmra.mxu0 %v5041
      %v5839 = vpop.f32.mrf.mxu0
      %v5840 = vadd.f32 0.0, %v5839
      %v5841 = vpop.f32.mrf.mxu0
      %5842 = vmatprep.mubr.f32.mxu0 0.0
      %5843 = vmatmul.mubr.f32.gmra.mxu0 %v5044
      %v5844 = vpop.f32.mrf.mxu0
      %v5845 = vadd.f32 0.0, %v5844
      %v5846 = vpop.f32.mrf.mxu0
      %5847 = vmatprep.mubr.f32.mxu0 0.0
      %5848 = vmatmul.mubr.f32.gmra.mxu0 %v5047
      %v5849 = vpop.f32.mrf.mxu0
      %v5850 = vadd.f32 0.0, %v5849
      %v5851 = vpop.f32.mrf.mxu0
      %5852 = vmatprep.mubr.f32.mxu0 0.0
      %5853 = vmatmul.mubr.f32.gmra.mxu0 %v5050
      %v5854 = vpop.f32.mrf.mxu0
      %v5855 = vadd.f32 0.0, %v5854
      %v5856 = vpop.f32.mrf.mxu0
      %5857 = vmatprep.mubr.f32.mxu0 0.0
      %5858 = vmatmul.mubr.f32.gmra.mxu0 %v5053
      %v5859 = vpop.f32.mrf.mxu0
      %v5860 = vadd.f32 0.0, %v5859
      %v5861 = vpop.f32.mrf.mxu0
      %5862 = vmatprep.mubr.f32.mxu0 0.0
      %5863 = vmatmul.mubr.f32.gmra.mxu0 %v5056
      %v5864 = vpop.f32.mrf.mxu0
      %v5865 = vadd.f32 0.0, %v5864
      %v5866 = vpop.f32.mrf.mxu0
      %5867 = vmatprep.mubr.f32.mxu0 0.0
      %5868 = vmatmul.mubr.f32.gmra.mxu0 %v5059
      %v5869 = vpop.f32.mrf.mxu0
      %v5870 = vadd.f32 0.0, %v5869
      %v5871 = vpop.f32.mrf.mxu0
      %5872 = vmatprep.mubr.f32.mxu0 0.0
      %5873 = vmatmul.mubr.f32.gmra.mxu0 %v5062
      %v5874 = vpop.f32.mrf.mxu0
      %v5875 = vadd.f32 0.0, %v5874
      %v5876 = vpop.f32.mrf.mxu0
      %5877 = vmatprep.mubr.f32.mxu0 0.0
      %5878 = vmatmul.mubr.f32.gmra.mxu0 %v5065
      %v5879 = vpop.f32.mrf.mxu0
      %v5880 = vadd.f32 0.0, %v5879
      %v5881 = vpop.f32.mrf.mxu0
      %5882 = vmatprep.mubr.f32.mxu0 0.0
      %5883 = vmatmul.mubr.f32.gmra.mxu0 %v5068
      %v5884 = vpop.f32.mrf.mxu0
      %v5885 = vadd.f32 0.0, %v5884
      %v5886 = vpop.f32.mrf.mxu0
      %5887 = vmatprep.mubr.f32.mxu0 0.0
      %5888 = vmatmul.mubr.f32.gmra.mxu0 %v5071
      %v5889 = vpop.f32.mrf.mxu0
      %v5890 = vadd.f32 0.0, %v5889
      %v5891 = vpop.f32.mrf.mxu0
      %5892 = vmatprep.mubr.f32.mxu0 0.0
      %5893 = vmatmul.mubr.f32.gmra.mxu0 %v5074
      %v5894 = vpop.f32.mrf.mxu0
      %v5895 = vadd.f32 0.0, %v5894
      %v5896 = vpop.f32.mrf.mxu0
      %5897 = vmatprep.mubr.f32.mxu0 0.0
      %5898 = vmatmul.mubr.f32.gmra.mxu0 %v5077
      %v5899 = vpop.f32.mrf.mxu0
      %v5900 = vadd.f32 0.0, %v5899
      %v5901 = vpop.f32.mrf.mxu0
      %5902 = vmatprep.mubr.f32.mxu0 0.0
      %5903 = vmatmul.mubr.f32.gmra.mxu0 %v5080
      %v5904 = vpop.f32.mrf.mxu0
      %v5905 = vadd.f32 0.0, %v5904
      %v5906 = vpop.f32.mrf.mxu0
      %5907 = vmatprep.mubr.f32.mxu0 0.0
      %5908 = vmatmul.mubr.f32.gmra.mxu0 %v5083
      %v5909 = vpop.f32.mrf.mxu0
      %v5910 = vadd.f32 0.0, %v5909
      %v5911 = vpop.f32.mrf.mxu0
      %5912 = vmatprep.mubr.f32.mxu0 0.0
      %5913 = vmatmul.mubr.f32.gmra.mxu0 %v5086
      %v5914 = vpop.f32.mrf.mxu0
      %v5915 = vadd.f32 0.0, %v5914
      %v5916 = vpop.f32.mrf.mxu0
      %5917 = vmatprep.mubr.f32.mxu0 0.0
      %5918 = vmatmul.mubr.f32.gmra.mxu0 %v5089
      %v5919 = vpop.f32.mrf.mxu0
      %v5920 = vadd.f32 0.0, %v5919
      %v5921 = vpop.f32.mrf.mxu0
      %5922 = vmatprep.mubr.f32.mxu0 0.0
      %5923 = vmatmul.mubr.f32.gmra.mxu0 %v5092
      %v5924 = vpop.f32.mrf.mxu0
      %v5925 = vadd.f32 0.0, %v5924
      %v5926 = vpop.f32.mrf.mxu0
      %5927 = vmatprep.mubr.f32.mxu0 0.0
      %5928 = vmatmul.mubr.f32.gmra.mxu0 %v5095
      %v5929 = vpop.f32.mrf.mxu0
      %v5930 = vadd.f32 0.0, %v5929
      %v5931 = vpop.f32.mrf.mxu0
      %5932 = vmatprep.mubr.f32.mxu0 0.0
      %5933 = vmatmul.mubr.f32.gmra.mxu0 %v5098
      %v5934 = vpop.f32.mrf.mxu0
      %v5935 = vadd.f32 0.0, %v5934
      %v5936 = vpop.f32.mrf.mxu0
      %5937 = vdwg.mxu0
      %v5938 = vsel %vm1923, %v5930, 0.0
      %v5939 = vsel %vm1924, %v5935, 0.0
      %v5940 = vsel %vm1925, %v5780, 0.0
      %v5941 = vsel %vm1926, %v5785, 0.0
      %v5942 = vsel %vm1927, %v5790, 0.0
      %v5943 = vsel %vm1928, %v5795, 0.0
      %v5944 = vsel %vm1929, %v5800, 0.0
      %v5945 = vsel %vm1930, %v5805, 0.0
      %v5946 = vsel %vm1931, %v5810, 0.0
      %v5947 = vsel %vm1932, %v5815, 0.0
      %v5948 = vsel %vm1933, %v5820, 0.0
      %v5949 = vsel %vm1934, %v5825, 0.0
      %v5950 = vsel %vm1935, %v5830, 0.0
      %v5951 = vsel %vm1936, %v5835, 0.0
      %v5952 = vsel %vm1937, %v5840, 0.0
      %v5953 = vsel %vm1938, %v5845, 0.0
      %v5954 = vsel %vm1939, %v5850, 0.0
      %v5955 = vsel %vm1940, %v5855, 0.0
      %v5956 = vsel %vm1941, %v5860, 0.0
      %v5957 = vsel %vm1942, %v5865, 0.0
      %v5958 = vsel %vm1943, %v5870, 0.0
      %v5959 = vsel %vm1944, %v5875, 0.0
      %v5960 = vsel %vm1945, %v5880, 0.0
      %v5961 = vsel %vm1946, %v5885, 0.0
      %v5962 = vsel %vm1947, %v5890, 0.0
      %v5963 = vsel %vm1948, %v5895, 0.0
      %v5964 = vsel %vm1949, %v5900, 0.0
      %v5965 = vsel %vm1950, %v5905, 0.0
      %v5966 = vsel %vm1951, %v5910, 0.0
      %v5967 = vsel %vm1952, %v5915, 0.0
      %v5968 = vsel %vm1953, %v5920, 0.0
      %v5969 = vsel %vm1954, %v5925, 0.0
      %v5970 = vadd.f32 %v5553, %v5938
      %v5971 = vadd.f32 %v5558, %v5939
      %v5972 = vadd.f32 %v5563, %v5940
      %v5973 = vadd.f32 %v5568, %v5941
      %v5974 = vadd.f32 %v5573, %v5942
      %v5975 = vadd.f32 %v5578, %v5943
      %v5976 = vadd.f32 %v5583, %v5944
      %v5977 = vadd.f32 %v5588, %v5945
      %v5978 = vadd.f32 %v5593, %v5946
      %v5979 = vadd.f32 %v5598, %v5947
      %v5980 = vadd.f32 %v5603, %v5948
      %v5981 = vadd.f32 %v5608, %v5949
      %v5982 = vadd.f32 %v5613, %v5950
      %v5983 = vadd.f32 %v5618, %v5951
      %v5984 = vadd.f32 %v5623, %v5952
      %v5985 = vadd.f32 %v5628, %v5953
      %v5986 = vadd.f32 %v5633, %v5954
      %v5987 = vadd.f32 %v5638, %v5955
      %v5988 = vadd.f32 %v5643, %v5956
      %v5989 = vadd.f32 %v5648, %v5957
      %v5990 = vadd.f32 %v5653, %v5958
      %v5991 = vadd.f32 %v5658, %v5959
      %v5992 = vadd.f32 %v5663, %v5960
      %v5993 = vadd.f32 %v5668, %v5961
      %v5994 = vadd.f32 %v5673, %v5962
      %v5995 = vadd.f32 %v5678, %v5963
      %v5996 = vadd.f32 %v5683, %v5964
      %v5997 = vadd.f32 %v5688, %v5965
      %v5998 = vadd.f32 %v5693, %v5966
      %v5999 = vadd.f32 %v5698, %v5967
      %v6000 = vadd.f32 %v5703, %v5968
      %v6001 = vadd.f32 %v5708, %v5969
      %s6002 = scalar_lea.vmem %s4, 16
      %v6003 = vld [vmem:[%s6002] sm:$0xff]
      %6004 = vmatprep.subr.mxu0 0.0
      %6005 = vmatpush1.msra.mxu0 0.0
      %6006 = vmatprep.subr.mxu0 0.0
      %6007 = vmatpush1.msra.mxu0 0.0
      %6008 = vmatprep.subr.mxu0 0.0
      %6009 = vmatpush1.msra.mxu0 0.0
      %6010 = vmatprep.subr.mxu0 0.0
      %6011 = vmatpush1.msra.mxu0 0.0
      %6012 = vmatprep.subr.mxu0 0.0
      %6013 = vmatpush1.msra.mxu0 0.0
      %6014 = vmatprep.subr.mxu0 0.0
      %6015 = vmatpush1.msra.mxu0 0.0
      %6016 = vmatprep.subr.mxu0 0.0
      %6017 = vmatpush1.msra.mxu0 0.0
      %6018 = vmatprep.subr.mxu0 0.0
      %6019 = vmatpush1.msra.mxu0 0.0
      %6020 = vmatprep.subr.mxu0 0.0
      %6021 = vmatpush1.msra.mxu0 0.0
      %6022 = vmatprep.subr.mxu0 0.0
      %6023 = vmatpush1.msra.mxu0 0.0
      %6024 = vmatprep.subr.mxu0 0.0
      %6025 = vmatpush1.msra.mxu0 0.0
      %6026 = vmatprep.subr.mxu0 0.0
      %6027 = vmatpush1.msra.mxu0 0.0
      %6028 = vmatprep.subr.mxu0 0.0
      %6029 = vmatpush1.msra.mxu0 0.0
      %6030 = vmatprep.subr.mxu0 0.0
      %6031 = vmatpush1.msra.mxu0 0.0
      %6032 = vmatprep.subr.mxu0 0.0
      %6033 = vmatpush1.msra.mxu0 0.0
      %6034 = vmatprep.subr.mxu0 0.0
      %6035 = vmatpush1.msra.mxu0 %v6003
      %6036 = vmatprep.subr.mxu0 0.0
      %6037 = vmatpush2.msra.mxu0 0.0
      %6038 = vmatprep.subr.mxu0 0.0
      %6039 = vmatpush2.msra.mxu0 0.0
      %6040 = vmatprep.subr.mxu0 0.0
      %6041 = vmatpush2.msra.mxu0 0.0
      %6042 = vmatprep.subr.mxu0 0.0
      %6043 = vmatpush2.msra.mxu0 0.0
      %6044 = vmatprep.subr.mxu0 0.0
      %6045 = vmatpush2.msra.mxu0 0.0
      %6046 = vmatprep.subr.mxu0 0.0
      %6047 = vmatpush2.msra.mxu0 0.0
      %6048 = vmatprep.subr.mxu0 0.0
      %6049 = vmatpush2.msra.mxu0 0.0
      %6050 = vmatprep.subr.mxu0 0.0
      %6051 = vmatpush2.msra.mxu0 0.0
      %6052 = vmatprep.subr.mxu0 0.0
      %6053 = vmatpush2.msra.mxu0 0.0
      %6054 = vmatprep.subr.mxu0 0.0
      %6055 = vmatpush2.msra.mxu0 0.0
      %6056 = vmatprep.subr.mxu0 0.0
      %6057 = vmatpush2.msra.mxu0 0.0
      %6058 = vmatprep.subr.mxu0 0.0
      %6059 = vmatpush2.msra.mxu0 0.0
      %6060 = vmatprep.subr.mxu0 0.0
      %6061 = vmatpush2.msra.mxu0 0.0
      %6062 = vmatprep.subr.mxu0 0.0
      %6063 = vmatpush2.msra.mxu0 0.0
      %6064 = vmatprep.subr.mxu0 0.0
      %6065 = vmatpush2.msra.mxu0 0.0
      %6066 = vmatprep.subr.mxu0 0.0
      %6067 = vmatpush2.msra.mxu0 0.0
      %6068 = vmatprep.mubr.f32.mxu0 0.0
      %6069 = vmatmul.mubr.f32.gmra.mxu0 %v5005
      %v6070 = vpop.f32.mrf.mxu0
      %v6071 = vadd.f32 0.0, %v6070
      %v6072 = vpop.f32.mrf.mxu0
      %6073 = vmatprep.mubr.f32.mxu0 0.0
      %6074 = vmatmul.mubr.f32.gmra.mxu0 %v5008
      %v6075 = vpop.f32.mrf.mxu0
      %v6076 = vadd.f32 0.0, %v6075
      %v6077 = vpop.f32.mrf.mxu0
      %6078 = vmatprep.mubr.f32.mxu0 0.0
      %6079 = vmatmul.mubr.f32.gmra.mxu0 %v5011
      %v6080 = vpop.f32.mrf.mxu0
      %v6081 = vadd.f32 0.0, %v6080
      %v6082 = vpop.f32.mrf.mxu0
      %6083 = vmatprep.mubr.f32.mxu0 0.0
      %6084 = vmatmul.mubr.f32.gmra.mxu0 %v5014
      %v6085 = vpop.f32.mrf.mxu0
      %v6086 = vadd.f32 0.0, %v6085
      %v6087 = vpop.f32.mrf.mxu0
      %6088 = vmatprep.mubr.f32.mxu0 0.0
      %6089 = vmatmul.mubr.f32.gmra.mxu0 %v5017
      %v6090 = vpop.f32.mrf.mxu0
      %v6091 = vadd.f32 0.0, %v6090
      %v6092 = vpop.f32.mrf.mxu0
      %6093 = vmatprep.mubr.f32.mxu0 0.0
      %6094 = vmatmul.mubr.f32.gmra.mxu0 %v5020
      %v6095 = vpop.f32.mrf.mxu0
      %v6096 = vadd.f32 0.0, %v6095
      %v6097 = vpop.f32.mrf.mxu0
      %6098 = vmatprep.mubr.f32.mxu0 0.0
      %6099 = vmatmul.mubr.f32.gmra.mxu0 %v5023
      %v6100 = vpop.f32.mrf.mxu0
      %v6101 = vadd.f32 0.0, %v6100
      %v6102 = vpop.f32.mrf.mxu0
      %6103 = vmatprep.mubr.f32.mxu0 0.0
      %6104 = vmatmul.mubr.f32.gmra.mxu0 %v5026
      %v6105 = vpop.f32.mrf.mxu0
      %v6106 = vadd.f32 0.0, %v6105
      %v6107 = vpop.f32.mrf.mxu0
      %6108 = vmatprep.mubr.f32.mxu0 0.0
      %6109 = vmatmul.mubr.f32.gmra.mxu0 %v5029
      %v6110 = vpop.f32.mrf.mxu0
      %v6111 = vadd.f32 0.0, %v6110
      %v6112 = vpop.f32.mrf.mxu0
      %6113 = vmatprep.mubr.f32.mxu0 0.0
      %6114 = vmatmul.mubr.f32.gmra.mxu0 %v5032
      %v6115 = vpop.f32.mrf.mxu0
      %v6116 = vadd.f32 0.0, %v6115
      %v6117 = vpop.f32.mrf.mxu0
      %6118 = vmatprep.mubr.f32.mxu0 0.0
      %6119 = vmatmul.mubr.f32.gmra.mxu0 %v5035
      %v6120 = vpop.f32.mrf.mxu0
      %v6121 = vadd.f32 0.0, %v6120
      %v6122 = vpop.f32.mrf.mxu0
      %6123 = vmatprep.mubr.f32.mxu0 0.0
      %6124 = vmatmul.mubr.f32.gmra.mxu0 %v5038
      %v6125 = vpop.f32.mrf.mxu0
      %v6126 = vadd.f32 0.0, %v6125
      %v6127 = vpop.f32.mrf.mxu0
      %6128 = vmatprep.mubr.f32.mxu0 0.0
      %6129 = vmatmul.mubr.f32.gmra.mxu0 %v5041
      %v6130 = vpop.f32.mrf.mxu0
      %v6131 = vadd.f32 0.0, %v6130
      %v6132 = vpop.f32.mrf.mxu0
      %6133 = vmatprep.mubr.f32.mxu0 0.0
      %6134 = vmatmul.mubr.f32.gmra.mxu0 %v5044
      %v6135 = vpop.f32.mrf.mxu0
      %v6136 = vadd.f32 0.0, %v6135
      %v6137 = vpop.f32.mrf.mxu0
      %6138 = vmatprep.mubr.f32.mxu0 0.0
      %6139 = vmatmul.mubr.f32.gmra.mxu0 %v5047
      %v6140 = vpop.f32.mrf.mxu0
      %v6141 = vadd.f32 0.0, %v6140
      %v6142 = vpop.f32.mrf.mxu0
      %6143 = vmatprep.mubr.f32.mxu0 0.0
      %6144 = vmatmul.mubr.f32.gmra.mxu0 %v5050
      %v6145 = vpop.f32.mrf.mxu0
      %v6146 = vadd.f32 0.0, %v6145
      %v6147 = vpop.f32.mrf.mxu0
      %6148 = vmatprep.mubr.f32.mxu0 0.0
      %6149 = vmatmul.mubr.f32.gmra.mxu0 %v5053
      %v6150 = vpop.f32.mrf.mxu0
      %v6151 = vadd.f32 0.0, %v6150
      %v6152 = vpop.f32.mrf.mxu0
      %6153 = vmatprep.mubr.f32.mxu0 0.0
      %6154 = vmatmul.mubr.f32.gmra.mxu0 %v5056
      %v6155 = vpop.f32.mrf.mxu0
      %v6156 = vadd.f32 0.0, %v6155
      %v6157 = vpop.f32.mrf.mxu0
      %6158 = vmatprep.mubr.f32.mxu0 0.0
      %6159 = vmatmul.mubr.f32.gmra.mxu0 %v5059
      %v6160 = vpop.f32.mrf.mxu0
      %v6161 = vadd.f32 0.0, %v6160
      %v6162 = vpop.f32.mrf.mxu0
      %6163 = vmatprep.mubr.f32.mxu0 0.0
      %6164 = vmatmul.mubr.f32.gmra.mxu0 %v5062
      %v6165 = vpop.f32.mrf.mxu0
      %v6166 = vadd.f32 0.0, %v6165
      %v6167 = vpop.f32.mrf.mxu0
      %6168 = vmatprep.mubr.f32.mxu0 0.0
      %6169 = vmatmul.mubr.f32.gmra.mxu0 %v5065
      %v6170 = vpop.f32.mrf.mxu0
      %v6171 = vadd.f32 0.0, %v6170
      %v6172 = vpop.f32.mrf.mxu0
      %6173 = vmatprep.mubr.f32.mxu0 0.0
      %6174 = vmatmul.mubr.f32.gmra.mxu0 %v5068
      %v6175 = vpop.f32.mrf.mxu0
      %v6176 = vadd.f32 0.0, %v6175
      %v6177 = vpop.f32.mrf.mxu0
      %6178 = vmatprep.mubr.f32.mxu0 0.0
      %6179 = vmatmul.mubr.f32.gmra.mxu0 %v5071
      %v6180 = vpop.f32.mrf.mxu0
      %v6181 = vadd.f32 0.0, %v6180
      %v6182 = vpop.f32.mrf.mxu0
      %6183 = vmatprep.mubr.f32.mxu0 0.0
      %6184 = vmatmul.mubr.f32.gmra.mxu0 %v5074
      %v6185 = vpop.f32.mrf.mxu0
      %v6186 = vadd.f32 0.0, %v6185
      %v6187 = vpop.f32.mrf.mxu0
      %6188 = vmatprep.mubr.f32.mxu0 0.0
      %6189 = vmatmul.mubr.f32.gmra.mxu0 %v5077
      %v6190 = vpop.f32.mrf.mxu0
      %v6191 = vadd.f32 0.0, %v6190
      %v6192 = vpop.f32.mrf.mxu0
      %6193 = vmatprep.mubr.f32.mxu0 0.0
      %6194 = vmatmul.mubr.f32.gmra.mxu0 %v5080
      %v6195 = vpop.f32.mrf.mxu0
      %v6196 = vadd.f32 0.0, %v6195
      %v6197 = vpop.f32.mrf.mxu0
      %6198 = vmatprep.mubr.f32.mxu0 0.0
      %6199 = vmatmul.mubr.f32.gmra.mxu0 %v5083
      %v6200 = vpop.f32.mrf.mxu0
      %v6201 = vadd.f32 0.0, %v6200
      %v6202 = vpop.f32.mrf.mxu0
      %6203 = vmatprep.mubr.f32.mxu0 0.0
      %6204 = vmatmul.mubr.f32.gmra.mxu0 %v5086
      %v6205 = vpop.f32.mrf.mxu0
      %v6206 = vadd.f32 0.0, %v6205
      %v6207 = vpop.f32.mrf.mxu0
      %6208 = vmatprep.mubr.f32.mxu0 0.0
      %6209 = vmatmul.mubr.f32.gmra.mxu0 %v5089
      %v6210 = vpop.f32.mrf.mxu0
      %v6211 = vadd.f32 0.0, %v6210
      %v6212 = vpop.f32.mrf.mxu0
      %6213 = vmatprep.mubr.f32.mxu0 0.0
      %6214 = vmatmul.mubr.f32.gmra.mxu0 %v5092
      %v6215 = vpop.f32.mrf.mxu0
      %v6216 = vadd.f32 0.0, %v6215
      %v6217 = vpop.f32.mrf.mxu0
      %6218 = vmatprep.mubr.f32.mxu0 0.0
      %6219 = vmatmul.mubr.f32.gmra.mxu0 %v5095
      %v6220 = vpop.f32.mrf.mxu0
      %v6221 = vadd.f32 0.0, %v6220
      %v6222 = vpop.f32.mrf.mxu0
      %6223 = vmatprep.mubr.f32.mxu0 0.0
      %6224 = vmatmul.mubr.f32.gmra.mxu0 %v5098
      %v6225 = vpop.f32.mrf.mxu0
      %v6226 = vadd.f32 0.0, %v6225
      %v6227 = vpop.f32.mrf.mxu0
      %6228 = vdwg.mxu0
      %v6231 = vrot.slane %v6221, 1
      %v6232 = vrot.slane %v6226, 1
      %v6233 = vsel %vm2248, %v6231, %v6232
      %v6266 = vrot.slane %v6071, 1
      %v6267 = vrot.slane %v6076, 1
      %v6268 = vsel %vm2248, %v6266, %v6267
      %v6269 = vrot.slane %v6081, 1
      %v6270 = vsel %vm2248, %v6267, %v6269
      %v6271 = vrot.slane %v6086, 1
      %v6272 = vsel %vm2248, %v6269, %v6271
      %v6273 = vrot.slane %v6091, 1
      %v6274 = vsel %vm2248, %v6271, %v6273
      %v6275 = vrot.slane %v6096, 1
      %v6276 = vsel %vm2248, %v6273, %v6275
      %v6277 = vrot.slane %v6101, 1
      %v6278 = vsel %vm2248, %v6275, %v6277
      %v6279 = vrot.slane %v6106, 1
      %v6280 = vsel %vm2248, %v6277, %v6279
      %v6281 = vrot.slane %v6111, 1
      %v6282 = vsel %vm2248, %v6279, %v6281
      %v6283 = vrot.slane %v6116, 1
      %v6284 = vsel %vm2248, %v6281, %v6283
      %v6285 = vrot.slane %v6121, 1
      %v6286 = vsel %vm2248, %v6283, %v6285
      %v6287 = vrot.slane %v6126, 1
      %v6288 = vsel %vm2248, %v6285, %v6287
      %v6289 = vrot.slane %v6131, 1
      %v6290 = vsel %vm2248, %v6287, %v6289
      %v6291 = vrot.slane %v6136, 1
      %v6292 = vsel %vm2248, %v6289, %v6291
      %v6293 = vrot.slane %v6141, 1
      %v6294 = vsel %vm2248, %v6291, %v6293
      %v6295 = vrot.slane %v6146, 1
      %v6296 = vsel %vm2248, %v6293, %v6295
      %v6297 = vrot.slane %v6151, 1
      %v6298 = vsel %vm2248, %v6295, %v6297
      %v6299 = vrot.slane %v6156, 1
      %v6300 = vsel %vm2248, %v6297, %v6299
      %v6301 = vrot.slane %v6161, 1
      %v6302 = vsel %vm2248, %v6299, %v6301
      %v6303 = vrot.slane %v6166, 1
      %v6304 = vsel %vm2248, %v6301, %v6303
      %v6305 = vrot.slane %v6171, 1
      %v6306 = vsel %vm2248, %v6303, %v6305
      %v6307 = vrot.slane %v6176, 1
      %v6308 = vsel %vm2248, %v6305, %v6307
      %v6309 = vrot.slane %v6181, 1
      %v6310 = vsel %vm2248, %v6307, %v6309
      %v6311 = vrot.slane %v6186, 1
      %v6312 = vsel %vm2248, %v6309, %v6311
      %v6313 = vrot.slane %v6191, 1
      %v6314 = vsel %vm2248, %v6311, %v6313
      %v6315 = vrot.slane %v6196, 1
      %v6316 = vsel %vm2248, %v6313, %v6315
      %v6317 = vrot.slane %v6201, 1
      %v6318 = vsel %vm2248, %v6315, %v6317
      %v6319 = vrot.slane %v6206, 1
      %v6320 = vsel %vm2248, %v6317, %v6319
      %v6321 = vrot.slane %v6211, 1
      %v6322 = vsel %vm2248, %v6319, %v6321
      %v6323 = vrot.slane %v6216, 1
      %v6324 = vsel %vm2248, %v6321, %v6323
      %v6325 = vsel %vm2248, %v6323, %v6231
      %v6357 = vsel %vm2248, %v6232, %v6266
      %v6358 = vsel %vm2440, %v6233, 0.0
      %v6359 = vsel %vm2441, %v6357, 0.0
      %v6360 = vsel %vm2442, %v6268, 0.0
      %v6361 = vsel %vm2443, %v6270, 0.0
      %v6362 = vsel %vm2444, %v6272, 0.0
      %v6363 = vsel %vm2445, %v6274, 0.0
      %v6364 = vsel %vm2446, %v6276, 0.0
      %v6365 = vsel %vm2447, %v6278, 0.0
      %v6366 = vsel %vm2448, %v6280, 0.0
      %v6367 = vsel %vm2449, %v6282, 0.0
      %v6368 = vsel %vm2450, %v6284, 0.0
      %v6369 = vsel %vm2451, %v6286, 0.0
      %v6370 = vsel %vm2452, %v6288, 0.0
      %v6371 = vsel %vm2453, %v6290, 0.0
      %v6372 = vsel %vm2454, %v6292, 0.0
      %v6373 = vsel %vm2455, %v6294, 0.0
      %v6374 = vsel %vm2456, %v6296, 0.0
      %v6375 = vsel %vm2457, %v6298, 0.0
      %v6376 = vsel %vm2458, %v6300, 0.0
      %v6377 = vsel %vm2459, %v6302, 0.0
      %v6378 = vsel %vm2460, %v6304, 0.0
      %v6379 = vsel %vm2461, %v6306, 0.0
      %v6380 = vsel %vm2462, %v6308, 0.0
      %v6381 = vsel %vm2463, %v6310, 0.0
      %v6382 = vsel %vm2464, %v6312, 0.0
      %v6383 = vsel %vm2465, %v6314, 0.0
      %v6384 = vsel %vm2466, %v6316, 0.0
      %v6385 = vsel %vm2467, %v6318, 0.0
      %v6386 = vsel %vm2468, %v6320, 0.0
      %v6387 = vsel %vm2469, %v6322, 0.0
      %v6388 = vsel %vm2470, %v6324, 0.0
      %v6389 = vsel %vm2471, %v6325, 0.0
      %v6390 = vadd.f32 %v5970, %v6358
      %v6391 = vadd.f32 %v5971, %v6359
      %v6392 = vadd.f32 %v5972, %v6360
      %v6393 = vadd.f32 %v5973, %v6361
      %v6394 = vadd.f32 %v5974, %v6362
      %v6395 = vadd.f32 %v5975, %v6363
      %v6396 = vadd.f32 %v5976, %v6364
      %v6397 = vadd.f32 %v5977, %v6365
      %v6398 = vadd.f32 %v5978, %v6366
      %v6399 = vadd.f32 %v5979, %v6367
      %v6400 = vadd.f32 %v5980, %v6368
      %v6401 = vadd.f32 %v5981, %v6369
      %v6402 = vadd.f32 %v5982, %v6370
      %v6403 = vadd.f32 %v5983, %v6371
      %v6404 = vadd.f32 %v5984, %v6372
      %v6405 = vadd.f32 %v5985, %v6373
      %v6406 = vadd.f32 %v5986, %v6374
      %v6407 = vadd.f32 %v5987, %v6375
      %v6408 = vadd.f32 %v5988, %v6376
      %v6409 = vadd.f32 %v5989, %v6377
      %v6410 = vadd.f32 %v5990, %v6378
      %v6411 = vadd.f32 %v5991, %v6379
      %v6412 = vadd.f32 %v5992, %v6380
      %v6413 = vadd.f32 %v5993, %v6381
      %v6414 = vadd.f32 %v5994, %v6382
      %v6415 = vadd.f32 %v5995, %v6383
      %v6416 = vadd.f32 %v5996, %v6384
      %v6417 = vadd.f32 %v5997, %v6385
      %v6418 = vadd.f32 %v5998, %v6386
      %v6419 = vadd.f32 %v5999, %v6387
      %v6420 = vadd.f32 %v6000, %v6388
      %v6421 = vadd.f32 %v6001, %v6389
      %s6422 = scalar_lea.vmem %s4, 24
      %v6423 = vld [vmem:[%s6422] sm:$0xff]
      %6424 = vmatprep.subr.mxu0 0.0
      %6425 = vmatpush1.msra.mxu0 0.0
      %6426 = vmatprep.subr.mxu0 0.0
      %6427 = vmatpush1.msra.mxu0 0.0
      %6428 = vmatprep.subr.mxu0 0.0
      %6429 = vmatpush1.msra.mxu0 0.0
      %6430 = vmatprep.subr.mxu0 0.0
      %6431 = vmatpush1.msra.mxu0 0.0
      %6432 = vmatprep.subr.mxu0 0.0
      %6433 = vmatpush1.msra.mxu0 0.0
      %6434 = vmatprep.subr.mxu0 0.0
      %6435 = vmatpush1.msra.mxu0 0.0
      %6436 = vmatprep.subr.mxu0 0.0
      %6437 = vmatpush1.msra.mxu0 0.0
      %6438 = vmatprep.subr.mxu0 0.0
      %6439 = vmatpush1.msra.mxu0 0.0
      %6440 = vmatprep.subr.mxu0 0.0
      %6441 = vmatpush1.msra.mxu0 0.0
      %6442 = vmatprep.subr.mxu0 0.0
      %6443 = vmatpush1.msra.mxu0 0.0
      %6444 = vmatprep.subr.mxu0 0.0
      %6445 = vmatpush1.msra.mxu0 0.0
      %6446 = vmatprep.subr.mxu0 0.0
      %6447 = vmatpush1.msra.mxu0 0.0
      %6448 = vmatprep.subr.mxu0 0.0
      %6449 = vmatpush1.msra.mxu0 0.0
      %6450 = vmatprep.subr.mxu0 0.0
      %6451 = vmatpush1.msra.mxu0 0.0
      %6452 = vmatprep.subr.mxu0 0.0
      %6453 = vmatpush1.msra.mxu0 0.0
      %6454 = vmatprep.subr.mxu0 0.0
      %6455 = vmatpush1.msra.mxu0 %v6423
      %6456 = vmatprep.subr.mxu0 0.0
      %6457 = vmatpush2.msra.mxu0 0.0
      %6458 = vmatprep.subr.mxu0 0.0
      %6459 = vmatpush2.msra.mxu0 0.0
      %6460 = vmatprep.subr.mxu0 0.0
      %6461 = vmatpush2.msra.mxu0 0.0
      %6462 = vmatprep.subr.mxu0 0.0
      %6463 = vmatpush2.msra.mxu0 0.0
      %6464 = vmatprep.subr.mxu0 0.0
      %6465 = vmatpush2.msra.mxu0 0.0
      %6466 = vmatprep.subr.mxu0 0.0
      %6467 = vmatpush2.msra.mxu0 0.0
      %6468 = vmatprep.subr.mxu0 0.0
      %6469 = vmatpush2.msra.mxu0 0.0
      %6470 = vmatprep.subr.mxu0 0.0
      %6471 = vmatpush2.msra.mxu0 0.0
      %6472 = vmatprep.subr.mxu0 0.0
      %6473 = vmatpush2.msra.mxu0 0.0
      %6474 = vmatprep.subr.mxu0 0.0
      %6475 = vmatpush2.msra.mxu0 0.0
      %6476 = vmatprep.subr.mxu0 0.0
      %6477 = vmatpush2.msra.mxu0 0.0
      %6478 = vmatprep.subr.mxu0 0.0
      %6479 = vmatpush2.msra.mxu0 0.0
      %6480 = vmatprep.subr.mxu0 0.0
      %6481 = vmatpush2.msra.mxu0 0.0
      %6482 = vmatprep.subr.mxu0 0.0
      %6483 = vmatpush2.msra.mxu0 0.0
      %6484 = vmatprep.subr.mxu0 0.0
      %6485 = vmatpush2.msra.mxu0 0.0
      %6486 = vmatprep.subr.mxu0 0.0
      %6487 = vmatpush2.msra.mxu0 0.0
      %6488 = vmatprep.mubr.f32.mxu0 0.0
      %6489 = vmatmul.mubr.f32.gmra.mxu0 %v5005
      %v6490 = vpop.f32.mrf.mxu0
      %v6491 = vadd.f32 0.0, %v6490
      %v6492 = vpop.f32.mrf.mxu0
      %6493 = vmatprep.mubr.f32.mxu0 0.0
      %6494 = vmatmul.mubr.f32.gmra.mxu0 %v5008
      %v6495 = vpop.f32.mrf.mxu0
      %v6496 = vadd.f32 0.0, %v6495
      %v6497 = vpop.f32.mrf.mxu0
      %6498 = vmatprep.mubr.f32.mxu0 0.0
      %6499 = vmatmul.mubr.f32.gmra.mxu0 %v5011
      %v6500 = vpop.f32.mrf.mxu0
      %v6501 = vadd.f32 0.0, %v6500
      %v6502 = vpop.f32.mrf.mxu0
      %6503 = vmatprep.mubr.f32.mxu0 0.0
      %6504 = vmatmul.mubr.f32.gmra.mxu0 %v5014
      %v6505 = vpop.f32.mrf.mxu0
      %v6506 = vadd.f32 0.0, %v6505
      %v6507 = vpop.f32.mrf.mxu0
      %6508 = vmatprep.mubr.f32.mxu0 0.0
      %6509 = vmatmul.mubr.f32.gmra.mxu0 %v5017
      %v6510 = vpop.f32.mrf.mxu0
      %v6511 = vadd.f32 0.0, %v6510
      %v6512 = vpop.f32.mrf.mxu0
      %6513 = vmatprep.mubr.f32.mxu0 0.0
      %6514 = vmatmul.mubr.f32.gmra.mxu0 %v5020
      %v6515 = vpop.f32.mrf.mxu0
      %v6516 = vadd.f32 0.0, %v6515
      %v6517 = vpop.f32.mrf.mxu0
      %6518 = vmatprep.mubr.f32.mxu0 0.0
      %6519 = vmatmul.mubr.f32.gmra.mxu0 %v5023
      %v6520 = vpop.f32.mrf.mxu0
      %v6521 = vadd.f32 0.0, %v6520
      %v6522 = vpop.f32.mrf.mxu0
      %6523 = vmatprep.mubr.f32.mxu0 0.0
      %6524 = vmatmul.mubr.f32.gmra.mxu0 %v5026
      %v6525 = vpop.f32.mrf.mxu0
      %v6526 = vadd.f32 0.0, %v6525
      %v6527 = vpop.f32.mrf.mxu0
      %6528 = vmatprep.mubr.f32.mxu0 0.0
      %6529 = vmatmul.mubr.f32.gmra.mxu0 %v5029
      %v6530 = vpop.f32.mrf.mxu0
      %v6531 = vadd.f32 0.0, %v6530
      %v6532 = vpop.f32.mrf.mxu0
      %6533 = vmatprep.mubr.f32.mxu0 0.0
      %6534 = vmatmul.mubr.f32.gmra.mxu0 %v5032
      %v6535 = vpop.f32.mrf.mxu0
      %v6536 = vadd.f32 0.0, %v6535
      %v6537 = vpop.f32.mrf.mxu0
      %6538 = vmatprep.mubr.f32.mxu0 0.0
      %6539 = vmatmul.mubr.f32.gmra.mxu0 %v5035
      %v6540 = vpop.f32.mrf.mxu0
      %v6541 = vadd.f32 0.0, %v6540
      %v6542 = vpop.f32.mrf.mxu0
      %6543 = vmatprep.mubr.f32.mxu0 0.0
      %6544 = vmatmul.mubr.f32.gmra.mxu0 %v5038
      %v6545 = vpop.f32.mrf.mxu0
      %v6546 = vadd.f32 0.0, %v6545
      %v6547 = vpop.f32.mrf.mxu0
      %6548 = vmatprep.mubr.f32.mxu0 0.0
      %6549 = vmatmul.mubr.f32.gmra.mxu0 %v5041
      %v6550 = vpop.f32.mrf.mxu0
      %v6551 = vadd.f32 0.0, %v6550
      %v6552 = vpop.f32.mrf.mxu0
      %6553 = vmatprep.mubr.f32.mxu0 0.0
      %6554 = vmatmul.mubr.f32.gmra.mxu0 %v5044
      %v6555 = vpop.f32.mrf.mxu0
      %v6556 = vadd.f32 0.0, %v6555
      %v6557 = vpop.f32.mrf.mxu0
      %6558 = vmatprep.mubr.f32.mxu0 0.0
      %6559 = vmatmul.mubr.f32.gmra.mxu0 %v5047
      %v6560 = vpop.f32.mrf.mxu0
      %v6561 = vadd.f32 0.0, %v6560
      %v6562 = vpop.f32.mrf.mxu0
      %6563 = vmatprep.mubr.f32.mxu0 0.0
      %6564 = vmatmul.mubr.f32.gmra.mxu0 %v5050
      %v6565 = vpop.f32.mrf.mxu0
      %v6566 = vadd.f32 0.0, %v6565
      %v6567 = vpop.f32.mrf.mxu0
      %6568 = vmatprep.mubr.f32.mxu0 0.0
      %6569 = vmatmul.mubr.f32.gmra.mxu0 %v5053
      %v6570 = vpop.f32.mrf.mxu0
      %v6571 = vadd.f32 0.0, %v6570
      %v6572 = vpop.f32.mrf.mxu0
      %6573 = vmatprep.mubr.f32.mxu0 0.0
      %6574 = vmatmul.mubr.f32.gmra.mxu0 %v5056
      %v6575 = vpop.f32.mrf.mxu0
      %v6576 = vadd.f32 0.0, %v6575
      %v6577 = vpop.f32.mrf.mxu0
      %6578 = vmatprep.mubr.f32.mxu0 0.0
      %6579 = vmatmul.mubr.f32.gmra.mxu0 %v5059
      %v6580 = vpop.f32.mrf.mxu0
      %v6581 = vadd.f32 0.0, %v6580
      %v6582 = vpop.f32.mrf.mxu0
      %6583 = vmatprep.mubr.f32.mxu0 0.0
      %6584 = vmatmul.mubr.f32.gmra.mxu0 %v5062
      %v6585 = vpop.f32.mrf.mxu0
      %v6586 = vadd.f32 0.0, %v6585
      %v6587 = vpop.f32.mrf.mxu0
      %6588 = vmatprep.mubr.f32.mxu0 0.0
      %6589 = vmatmul.mubr.f32.gmra.mxu0 %v5065
      %v6590 = vpop.f32.mrf.mxu0
      %v6591 = vadd.f32 0.0, %v6590
      %v6592 = vpop.f32.mrf.mxu0
      %6593 = vmatprep.mubr.f32.mxu0 0.0
      %6594 = vmatmul.mubr.f32.gmra.mxu0 %v5068
      %v6595 = vpop.f32.mrf.mxu0
      %v6596 = vadd.f32 0.0, %v6595
      %v6597 = vpop.f32.mrf.mxu0
      %6598 = vmatprep.mubr.f32.mxu0 0.0
      %6599 = vmatmul.mubr.f32.gmra.mxu0 %v5071
      %v6600 = vpop.f32.mrf.mxu0
      %v6601 = vadd.f32 0.0, %v6600
      %v6602 = vpop.f32.mrf.mxu0
      %6603 = vmatprep.mubr.f32.mxu0 0.0
      %6604 = vmatmul.mubr.f32.gmra.mxu0 %v5074
      %v6605 = vpop.f32.mrf.mxu0
      %v6606 = vadd.f32 0.0, %v6605
      %v6607 = vpop.f32.mrf.mxu0
      %6608 = vmatprep.mubr.f32.mxu0 0.0
      %6609 = vmatmul.mubr.f32.gmra.mxu0 %v5077
      %v6610 = vpop.f32.mrf.mxu0
      %v6611 = vadd.f32 0.0, %v6610
      %v6612 = vpop.f32.mrf.mxu0
      %6613 = vmatprep.mubr.f32.mxu0 0.0
      %6614 = vmatmul.mubr.f32.gmra.mxu0 %v5080
      %v6615 = vpop.f32.mrf.mxu0
      %v6616 = vadd.f32 0.0, %v6615
      %v6617 = vpop.f32.mrf.mxu0
      %6618 = vmatprep.mubr.f32.mxu0 0.0
      %6619 = vmatmul.mubr.f32.gmra.mxu0 %v5083
      %v6620 = vpop.f32.mrf.mxu0
      %v6621 = vadd.f32 0.0, %v6620
      %v6622 = vpop.f32.mrf.mxu0
      %6623 = vmatprep.mubr.f32.mxu0 0.0
      %6624 = vmatmul.mubr.f32.gmra.mxu0 %v5086
      %v6625 = vpop.f32.mrf.mxu0
      %v6626 = vadd.f32 0.0, %v6625
      %v6627 = vpop.f32.mrf.mxu0
      %6628 = vmatprep.mubr.f32.mxu0 0.0
      %6629 = vmatmul.mubr.f32.gmra.mxu0 %v5089
      %v6630 = vpop.f32.mrf.mxu0
      %v6631 = vadd.f32 0.0, %v6630
      %v6632 = vpop.f32.mrf.mxu0
      %6633 = vmatprep.mubr.f32.mxu0 0.0
      %6634 = vmatmul.mubr.f32.gmra.mxu0 %v5092
      %v6635 = vpop.f32.mrf.mxu0
      %v6636 = vadd.f32 0.0, %v6635
      %v6637 = vpop.f32.mrf.mxu0
      %6638 = vmatprep.mubr.f32.mxu0 0.0
      %6639 = vmatmul.mubr.f32.gmra.mxu0 %v5095
      %v6640 = vpop.f32.mrf.mxu0
      %v6641 = vadd.f32 0.0, %v6640
      %v6642 = vpop.f32.mrf.mxu0
      %6643 = vmatprep.mubr.f32.mxu0 0.0
      %6644 = vmatmul.mubr.f32.gmra.mxu0 %v5098
      %v6645 = vpop.f32.mrf.mxu0
      %v6646 = vadd.f32 0.0, %v6645
      %v6647 = vpop.f32.mrf.mxu0
      %6648 = vdwg.mxu0
      %v6650 = vrot.slane %v6646, 7
      %v6683 = vrot.slane %v6491, 7
      %v6684 = vrot.slane %v6496, 7
      %v6685 = vsel %vm1184, %v6683, %v6684
      %v6686 = vrot.slane %v6501, 7
      %v6687 = vsel %vm1184, %v6684, %v6686
      %v6688 = vrot.slane %v6506, 7
      %v6689 = vsel %vm1184, %v6686, %v6688
      %v6690 = vrot.slane %v6511, 7
      %v6691 = vsel %vm1184, %v6688, %v6690
      %v6692 = vrot.slane %v6516, 7
      %v6693 = vsel %vm1184, %v6690, %v6692
      %v6694 = vrot.slane %v6521, 7
      %v6695 = vsel %vm1184, %v6692, %v6694
      %v6696 = vrot.slane %v6526, 7
      %v6697 = vsel %vm1184, %v6694, %v6696
      %v6698 = vrot.slane %v6531, 7
      %v6699 = vsel %vm1184, %v6696, %v6698
      %v6700 = vrot.slane %v6536, 7
      %v6701 = vsel %vm1184, %v6698, %v6700
      %v6702 = vrot.slane %v6541, 7
      %v6703 = vsel %vm1184, %v6700, %v6702
      %v6704 = vrot.slane %v6546, 7
      %v6705 = vsel %vm1184, %v6702, %v6704
      %v6706 = vrot.slane %v6551, 7
      %v6707 = vsel %vm1184, %v6704, %v6706
      %v6708 = vrot.slane %v6556, 7
      %v6709 = vsel %vm1184, %v6706, %v6708
      %v6710 = vrot.slane %v6561, 7
      %v6711 = vsel %vm1184, %v6708, %v6710
      %v6712 = vrot.slane %v6566, 7
      %v6713 = vsel %vm1184, %v6710, %v6712
      %v6714 = vrot.slane %v6571, 7
      %v6715 = vsel %vm1184, %v6712, %v6714
      %v6716 = vrot.slane %v6576, 7
      %v6717 = vsel %vm1184, %v6714, %v6716
      %v6718 = vrot.slane %v6581, 7
      %v6719 = vsel %vm1184, %v6716, %v6718
      %v6720 = vrot.slane %v6586, 7
      %v6721 = vsel %vm1184, %v6718, %v6720
      %v6722 = vrot.slane %v6591, 7
      %v6723 = vsel %vm1184, %v6720, %v6722
      %v6724 = vrot.slane %v6596, 7
      %v6725 = vsel %vm1184, %v6722, %v6724
      %v6726 = vrot.slane %v6601, 7
      %v6727 = vsel %vm1184, %v6724, %v6726
      %v6728 = vrot.slane %v6606, 7
      %v6729 = vsel %vm1184, %v6726, %v6728
      %v6730 = vrot.slane %v6611, 7
      %v6731 = vsel %vm1184, %v6728, %v6730
      %v6732 = vrot.slane %v6616, 7
      %v6733 = vsel %vm1184, %v6730, %v6732
      %v6734 = vrot.slane %v6621, 7
      %v6735 = vsel %vm1184, %v6732, %v6734
      %v6736 = vrot.slane %v6626, 7
      %v6737 = vsel %vm1184, %v6734, %v6736
      %v6738 = vrot.slane %v6631, 7
      %v6739 = vsel %vm1184, %v6736, %v6738
      %v6740 = vrot.slane %v6636, 7
      %v6741 = vsel %vm1184, %v6738, %v6740
      %v6742 = vrot.slane %v6641, 7
      %v6743 = vsel %vm1184, %v6740, %v6742
      %v6744 = vsel %vm1184, %v6742, %v6650
      %v6777 = vsel %vm1184, %v6650, %v6683
      %v6778 = vsel %vm2924, %v6777, 0.0
      %v6779 = vsel %vm2925, %v6685, 0.0
      %v6780 = vsel %vm2926, %v6687, 0.0
      %v6781 = vsel %vm2927, %v6689, 0.0
      %v6782 = vsel %vm2928, %v6691, 0.0
      %v6783 = vsel %vm2929, %v6693, 0.0
      %v6784 = vsel %vm2930, %v6695, 0.0
      %v6785 = vsel %vm2931, %v6697, 0.0
      %v6786 = vsel %vm2932, %v6699, 0.0
      %v6787 = vsel %vm2933, %v6701, 0.0
      %v6788 = vsel %vm2934, %v6703, 0.0
      %v6789 = vsel %vm2935, %v6705, 0.0
      %v6790 = vsel %vm2936, %v6707, 0.0
      %v6791 = vsel %vm2937, %v6709, 0.0
      %v6792 = vsel %vm2938, %v6711, 0.0
      %v6793 = vsel %vm2939, %v6713, 0.0
      %v6794 = vsel %vm2940, %v6715, 0.0
      %v6795 = vsel %vm2941, %v6717, 0.0
      %v6796 = vsel %vm2942, %v6719, 0.0
      %v6797 = vsel %vm2943, %v6721, 0.0
      %v6798 = vsel %vm2944, %v6723, 0.0
      %v6799 = vsel %vm2945, %v6725, 0.0
      %v6800 = vsel %vm2946, %v6727, 0.0
      %v6801 = vsel %vm2947, %v6729, 0.0
      %v6802 = vsel %vm2948, %v6731, 0.0
      %v6803 = vsel %vm2949, %v6733, 0.0
      %v6804 = vsel %vm2950, %v6735, 0.0
      %v6805 = vsel %vm2951, %v6737, 0.0
      %v6806 = vsel %vm2952, %v6739, 0.0
      %v6807 = vsel %vm2953, %v6741, 0.0
      %v6808 = vsel %vm2954, %v6743, 0.0
      %v6809 = vsel %vm2955, %v6744, 0.0
      %v6810 = vadd.f32 %v6390, %v6778
      %v6811 = vadd.f32 %v6391, %v6779
      %v6812 = vadd.f32 %v6392, %v6780
      %v6813 = vadd.f32 %v6393, %v6781
      %v6814 = vadd.f32 %v6394, %v6782
      %v6815 = vadd.f32 %v6395, %v6783
      %v6816 = vadd.f32 %v6396, %v6784
      %v6817 = vadd.f32 %v6397, %v6785
      %v6818 = vadd.f32 %v6398, %v6786
      %v6819 = vadd.f32 %v6399, %v6787
      %v6820 = vadd.f32 %v6400, %v6788
      %v6821 = vadd.f32 %v6401, %v6789
      %v6822 = vadd.f32 %v6402, %v6790
      %v6823 = vadd.f32 %v6403, %v6791
      %v6824 = vadd.f32 %v6404, %v6792
      %v6825 = vadd.f32 %v6405, %v6793
      %v6826 = vadd.f32 %v6406, %v6794
      %v6827 = vadd.f32 %v6407, %v6795
      %v6828 = vadd.f32 %v6408, %v6796
      %v6829 = vadd.f32 %v6409, %v6797
      %v6830 = vadd.f32 %v6410, %v6798
      %v6831 = vadd.f32 %v6411, %v6799
      %v6832 = vadd.f32 %v6412, %v6800
      %v6833 = vadd.f32 %v6413, %v6801
      %v6834 = vadd.f32 %v6414, %v6802
      %v6835 = vadd.f32 %v6415, %v6803
      %v6836 = vadd.f32 %v6416, %v6804
      %v6837 = vadd.f32 %v6417, %v6805
      %v6838 = vadd.f32 %v6418, %v6806
      %v6839 = vadd.f32 %v6419, %v6807
      %v6840 = vadd.f32 %v6420, %v6808
      %v6841 = vadd.f32 %v6421, %v6809
      %s6842 = scalar_lea.vmem %s4, 40
      %v6843 = vld [vmem:[%s6842] sm:$0xff]
      %6844 = vmatprep.subr.mxu0 0.0
      %6845 = vmatpush1.msra.mxu0 0.0
      %6846 = vmatprep.subr.mxu0 0.0
      %6847 = vmatpush1.msra.mxu0 0.0
      %6848 = vmatprep.subr.mxu0 0.0
      %6849 = vmatpush1.msra.mxu0 0.0
      %6850 = vmatprep.subr.mxu0 0.0
      %6851 = vmatpush1.msra.mxu0 0.0
      %6852 = vmatprep.subr.mxu0 0.0
      %6853 = vmatpush1.msra.mxu0 0.0
      %6854 = vmatprep.subr.mxu0 0.0
      %6855 = vmatpush1.msra.mxu0 0.0
      %6856 = vmatprep.subr.mxu0 0.0
      %6857 = vmatpush1.msra.mxu0 0.0
      %6858 = vmatprep.subr.mxu0 0.0
      %6859 = vmatpush1.msra.mxu0 0.0
      %6860 = vmatprep.subr.mxu0 0.0
      %6861 = vmatpush1.msra.mxu0 0.0
      %6862 = vmatprep.subr.mxu0 0.0
      %6863 = vmatpush1.msra.mxu0 0.0
      %6864 = vmatprep.subr.mxu0 0.0
      %6865 = vmatpush1.msra.mxu0 0.0
      %6866 = vmatprep.subr.mxu0 0.0
      %6867 = vmatpush1.msra.mxu0 0.0
      %6868 = vmatprep.subr.mxu0 0.0
      %6869 = vmatpush1.msra.mxu0 0.0
      %6870 = vmatprep.subr.mxu0 0.0
      %6871 = vmatpush1.msra.mxu0 0.0
      %6872 = vmatprep.subr.mxu0 0.0
      %6873 = vmatpush1.msra.mxu0 0.0
      %6874 = vmatprep.subr.mxu0 0.0
      %6875 = vmatpush1.msra.mxu0 %v6843
      %6876 = vmatprep.subr.mxu0 0.0
      %6877 = vmatpush2.msra.mxu0 0.0
      %6878 = vmatprep.subr.mxu0 0.0
      %6879 = vmatpush2.msra.mxu0 0.0
      %6880 = vmatprep.subr.mxu0 0.0
      %6881 = vmatpush2.msra.mxu0 0.0
      %6882 = vmatprep.subr.mxu0 0.0
      %6883 = vmatpush2.msra.mxu0 0.0
      %6884 = vmatprep.subr.mxu0 0.0
      %6885 = vmatpush2.msra.mxu0 0.0
      %6886 = vmatprep.subr.mxu0 0.0
      %6887 = vmatpush2.msra.mxu0 0.0
      %6888 = vmatprep.subr.mxu0 0.0
      %6889 = vmatpush2.msra.mxu0 0.0
      %6890 = vmatprep.subr.mxu0 0.0
      %6891 = vmatpush2.msra.mxu0 0.0
      %6892 = vmatprep.subr.mxu0 0.0
      %6893 = vmatpush2.msra.mxu0 0.0
      %6894 = vmatprep.subr.mxu0 0.0
      %6895 = vmatpush2.msra.mxu0 0.0
      %6896 = vmatprep.subr.mxu0 0.0
      %6897 = vmatpush2.msra.mxu0 0.0
      %6898 = vmatprep.subr.mxu0 0.0
      %6899 = vmatpush2.msra.mxu0 0.0
      %6900 = vmatprep.subr.mxu0 0.0
      %6901 = vmatpush2.msra.mxu0 0.0
      %6902 = vmatprep.subr.mxu0 0.0
      %6903 = vmatpush2.msra.mxu0 0.0
      %6904 = vmatprep.subr.mxu0 0.0
      %6905 = vmatpush2.msra.mxu0 0.0
      %6906 = vmatprep.subr.mxu0 0.0
      %6907 = vmatpush2.msra.mxu0 0.0
      %6908 = vmatprep.mubr.f32.mxu0 0.0
      %6909 = vmatmul.mubr.f32.gmra.mxu0 %v5005
      %v6910 = vpop.f32.mrf.mxu0
      %v6911 = vadd.f32 0.0, %v6910
      %v6912 = vpop.f32.mrf.mxu0
      %6913 = vmatprep.mubr.f32.mxu0 0.0
      %6914 = vmatmul.mubr.f32.gmra.mxu0 %v5008
      %v6915 = vpop.f32.mrf.mxu0
      %v6916 = vadd.f32 0.0, %v6915
      %v6917 = vpop.f32.mrf.mxu0
      %6918 = vmatprep.mubr.f32.mxu0 0.0
      %6919 = vmatmul.mubr.f32.gmra.mxu0 %v5011
      %v6920 = vpop.f32.mrf.mxu0
      %v6921 = vadd.f32 0.0, %v6920
      %v6922 = vpop.f32.mrf.mxu0
      %6923 = vmatprep.mubr.f32.mxu0 0.0
      %6924 = vmatmul.mubr.f32.gmra.mxu0 %v5014
      %v6925 = vpop.f32.mrf.mxu0
      %v6926 = vadd.f32 0.0, %v6925
      %v6927 = vpop.f32.mrf.mxu0
      %6928 = vmatprep.mubr.f32.mxu0 0.0
      %6929 = vmatmul.mubr.f32.gmra.mxu0 %v5017
      %v6930 = vpop.f32.mrf.mxu0
      %v6931 = vadd.f32 0.0, %v6930
      %v6932 = vpop.f32.mrf.mxu0
      %6933 = vmatprep.mubr.f32.mxu0 0.0
      %6934 = vmatmul.mubr.f32.gmra.mxu0 %v5020
      %v6935 = vpop.f32.mrf.mxu0
      %v6936 = vadd.f32 0.0, %v6935
      %v6937 = vpop.f32.mrf.mxu0
      %6938 = vmatprep.mubr.f32.mxu0 0.0
      %6939 = vmatmul.mubr.f32.gmra.mxu0 %v5023
      %v6940 = vpop.f32.mrf.mxu0
      %v6941 = vadd.f32 0.0, %v6940
      %v6942 = vpop.f32.mrf.mxu0
      %6943 = vmatprep.mubr.f32.mxu0 0.0
      %6944 = vmatmul.mubr.f32.gmra.mxu0 %v5026
      %v6945 = vpop.f32.mrf.mxu0
      %v6946 = vadd.f32 0.0, %v6945
      %v6947 = vpop.f32.mrf.mxu0
      %6948 = vmatprep.mubr.f32.mxu0 0.0
      %6949 = vmatmul.mubr.f32.gmra.mxu0 %v5029
      %v6950 = vpop.f32.mrf.mxu0
      %v6951 = vadd.f32 0.0, %v6950
      %v6952 = vpop.f32.mrf.mxu0
      %6953 = vmatprep.mubr.f32.mxu0 0.0
      %6954 = vmatmul.mubr.f32.gmra.mxu0 %v5032
      %v6955 = vpop.f32.mrf.mxu0
      %v6956 = vadd.f32 0.0, %v6955
      %v6957 = vpop.f32.mrf.mxu0
      %6958 = vmatprep.mubr.f32.mxu0 0.0
      %6959 = vmatmul.mubr.f32.gmra.mxu0 %v5035
      %v6960 = vpop.f32.mrf.mxu0
      %v6961 = vadd.f32 0.0, %v6960
      %v6962 = vpop.f32.mrf.mxu0
      %6963 = vmatprep.mubr.f32.mxu0 0.0
      %6964 = vmatmul.mubr.f32.gmra.mxu0 %v5038
      %v6965 = vpop.f32.mrf.mxu0
      %v6966 = vadd.f32 0.0, %v6965
      %v6967 = vpop.f32.mrf.mxu0
      %6968 = vmatprep.mubr.f32.mxu0 0.0
      %6969 = vmatmul.mubr.f32.gmra.mxu0 %v5041
      %v6970 = vpop.f32.mrf.mxu0
      %v6971 = vadd.f32 0.0, %v6970
      %v6972 = vpop.f32.mrf.mxu0
      %6973 = vmatprep.mubr.f32.mxu0 0.0
      %6974 = vmatmul.mubr.f32.gmra.mxu0 %v5044
      %v6975 = vpop.f32.mrf.mxu0
      %v6976 = vadd.f32 0.0, %v6975
      %v6977 = vpop.f32.mrf.mxu0
      %6978 = vmatprep.mubr.f32.mxu0 0.0
      %6979 = vmatmul.mubr.f32.gmra.mxu0 %v5047
      %v6980 = vpop.f32.mrf.mxu0
      %v6981 = vadd.f32 0.0, %v6980
      %v6982 = vpop.f32.mrf.mxu0
      %6983 = vmatprep.mubr.f32.mxu0 0.0
      %6984 = vmatmul.mubr.f32.gmra.mxu0 %v5050
      %v6985 = vpop.f32.mrf.mxu0
      %v6986 = vadd.f32 0.0, %v6985
      %v6987 = vpop.f32.mrf.mxu0
      %6988 = vmatprep.mubr.f32.mxu0 0.0
      %6989 = vmatmul.mubr.f32.gmra.mxu0 %v5053
      %v6990 = vpop.f32.mrf.mxu0
      %v6991 = vadd.f32 0.0, %v6990
      %v6992 = vpop.f32.mrf.mxu0
      %6993 = vmatprep.mubr.f32.mxu0 0.0
      %6994 = vmatmul.mubr.f32.gmra.mxu0 %v5056
      %v6995 = vpop.f32.mrf.mxu0
      %v6996 = vadd.f32 0.0, %v6995
      %v6997 = vpop.f32.mrf.mxu0
      %6998 = vmatprep.mubr.f32.mxu0 0.0
      %6999 = vmatmul.mubr.f32.gmra.mxu0 %v5059
      %v7000 = vpop.f32.mrf.mxu0
      %v7001 = vadd.f32 0.0, %v7000
      %v7002 = vpop.f32.mrf.mxu0
      %7003 = vmatprep.mubr.f32.mxu0 0.0
      %7004 = vmatmul.mubr.f32.gmra.mxu0 %v5062
      %v7005 = vpop.f32.mrf.mxu0
      %v7006 = vadd.f32 0.0, %v7005
      %v7007 = vpop.f32.mrf.mxu0
      %7008 = vmatprep.mubr.f32.mxu0 0.0
      %7009 = vmatmul.mubr.f32.gmra.mxu0 %v5065
      %v7010 = vpop.f32.mrf.mxu0
      %v7011 = vadd.f32 0.0, %v7010
      %v7012 = vpop.f32.mrf.mxu0
      %7013 = vmatprep.mubr.f32.mxu0 0.0
      %7014 = vmatmul.mubr.f32.gmra.mxu0 %v5068
      %v7015 = vpop.f32.mrf.mxu0
      %v7016 = vadd.f32 0.0, %v7015
      %v7017 = vpop.f32.mrf.mxu0
      %7018 = vmatprep.mubr.f32.mxu0 0.0
      %7019 = vmatmul.mubr.f32.gmra.mxu0 %v5071
      %v7020 = vpop.f32.mrf.mxu0
      %v7021 = vadd.f32 0.0, %v7020
      %v7022 = vpop.f32.mrf.mxu0
      %7023 = vmatprep.mubr.f32.mxu0 0.0
      %7024 = vmatmul.mubr.f32.gmra.mxu0 %v5074
      %v7025 = vpop.f32.mrf.mxu0
      %v7026 = vadd.f32 0.0, %v7025
      %v7027 = vpop.f32.mrf.mxu0
      %7028 = vmatprep.mubr.f32.mxu0 0.0
      %7029 = vmatmul.mubr.f32.gmra.mxu0 %v5077
      %v7030 = vpop.f32.mrf.mxu0
      %v7031 = vadd.f32 0.0, %v7030
      %v7032 = vpop.f32.mrf.mxu0
      %7033 = vmatprep.mubr.f32.mxu0 0.0
      %7034 = vmatmul.mubr.f32.gmra.mxu0 %v5080
      %v7035 = vpop.f32.mrf.mxu0
      %v7036 = vadd.f32 0.0, %v7035
      %v7037 = vpop.f32.mrf.mxu0
      %7038 = vmatprep.mubr.f32.mxu0 0.0
      %7039 = vmatmul.mubr.f32.gmra.mxu0 %v5083
      %v7040 = vpop.f32.mrf.mxu0
      %v7041 = vadd.f32 0.0, %v7040
      %v7042 = vpop.f32.mrf.mxu0
      %7043 = vmatprep.mubr.f32.mxu0 0.0
      %7044 = vmatmul.mubr.f32.gmra.mxu0 %v5086
      %v7045 = vpop.f32.mrf.mxu0
      %v7046 = vadd.f32 0.0, %v7045
      %v7047 = vpop.f32.mrf.mxu0
      %7048 = vmatprep.mubr.f32.mxu0 0.0
      %7049 = vmatmul.mubr.f32.gmra.mxu0 %v5089
      %v7050 = vpop.f32.mrf.mxu0
      %v7051 = vadd.f32 0.0, %v7050
      %v7052 = vpop.f32.mrf.mxu0
      %7053 = vmatprep.mubr.f32.mxu0 0.0
      %7054 = vmatmul.mubr.f32.gmra.mxu0 %v5092
      %v7055 = vpop.f32.mrf.mxu0
      %v7056 = vadd.f32 0.0, %v7055
      %v7057 = vpop.f32.mrf.mxu0
      %7058 = vmatprep.mubr.f32.mxu0 0.0
      %7059 = vmatmul.mubr.f32.gmra.mxu0 %v5095
      %v7060 = vpop.f32.mrf.mxu0
      %v7061 = vadd.f32 0.0, %v7060
      %v7062 = vpop.f32.mrf.mxu0
      %7063 = vmatprep.mubr.f32.mxu0 0.0
      %7064 = vmatmul.mubr.f32.gmra.mxu0 %v5098
      %v7065 = vpop.f32.mrf.mxu0
      %v7066 = vadd.f32 0.0, %v7065
      %v7067 = vpop.f32.mrf.mxu0
      %7068 = vdwg.mxu0
      %v7101 = vrot.slane %v6911, 1
      %v7102 = vrot.slane %v6916, 1
      %v7103 = vsel %vm2248, %v7101, %v7102
      %v7104 = vrot.slane %v6921, 1
      %v7105 = vsel %vm2248, %v7102, %v7104
      %v7106 = vrot.slane %v6926, 1
      %v7107 = vsel %vm2248, %v7104, %v7106
      %v7108 = vrot.slane %v6931, 1
      %v7109 = vsel %vm2248, %v7106, %v7108
      %v7110 = vrot.slane %v6936, 1
      %v7111 = vsel %vm2248, %v7108, %v7110
      %v7112 = vrot.slane %v6941, 1
      %v7113 = vsel %vm2248, %v7110, %v7112
      %v7114 = vrot.slane %v6946, 1
      %v7115 = vsel %vm2248, %v7112, %v7114
      %v7116 = vrot.slane %v6951, 1
      %v7117 = vsel %vm2248, %v7114, %v7116
      %v7118 = vrot.slane %v6956, 1
      %v7119 = vsel %vm2248, %v7116, %v7118
      %v7120 = vrot.slane %v6961, 1
      %v7121 = vsel %vm2248, %v7118, %v7120
      %v7122 = vrot.slane %v6966, 1
      %v7123 = vsel %vm2248, %v7120, %v7122
      %v7124 = vrot.slane %v6971, 1
      %v7125 = vsel %vm2248, %v7122, %v7124
      %v7126 = vrot.slane %v6976, 1
      %v7127 = vsel %vm2248, %v7124, %v7126
      %v7128 = vrot.slane %v6981, 1
      %v7129 = vsel %vm2248, %v7126, %v7128
      %v7130 = vrot.slane %v6986, 1
      %v7131 = vsel %vm2248, %v7128, %v7130
      %v7132 = vrot.slane %v6991, 1
      %v7133 = vsel %vm2248, %v7130, %v7132
      %v7134 = vrot.slane %v6996, 1
      %v7135 = vsel %vm2248, %v7132, %v7134
      %v7136 = vrot.slane %v7001, 1
      %v7137 = vsel %vm2248, %v7134, %v7136
      %v7138 = vrot.slane %v7006, 1
      %v7139 = vsel %vm2248, %v7136, %v7138
      %v7140 = vrot.slane %v7011, 1
      %v7141 = vsel %vm2248, %v7138, %v7140
      %v7142 = vrot.slane %v7016, 1
      %v7143 = vsel %vm2248, %v7140, %v7142
      %v7144 = vrot.slane %v7021, 1
      %v7145 = vsel %vm2248, %v7142, %v7144
      %v7146 = vrot.slane %v7026, 1
      %v7147 = vsel %vm2248, %v7144, %v7146
      %v7148 = vrot.slane %v7031, 1
      %v7149 = vsel %vm2248, %v7146, %v7148
      %v7150 = vrot.slane %v7036, 1
      %v7151 = vsel %vm2248, %v7148, %v7150
      %v7152 = vrot.slane %v7041, 1
      %v7153 = vsel %vm2248, %v7150, %v7152
      %v7154 = vrot.slane %v7046, 1
      %v7155 = vsel %vm2248, %v7152, %v7154
      %v7156 = vrot.slane %v7051, 1
      %v7157 = vsel %vm2248, %v7154, %v7156
      %v7158 = vrot.slane %v7056, 1
      %v7159 = vsel %vm2248, %v7156, %v7158
      %v7160 = vrot.slane %v7061, 1
      %v7161 = vsel %vm2248, %v7158, %v7160
      %v7162 = vrot.slane %v7066, 1
      %v7163 = vsel %vm2248, %v7160, %v7162
      %v7197 = vsel %vm2248, %v7162, %v7101
      %v7198 = vsel %vm3408, %v7103, 0.0
      %v7199 = vsel %vm3409, %v7105, 0.0
      %v7200 = vsel %vm3410, %v7107, 0.0
      %v7201 = vsel %vm3411, %v7109, 0.0
      %v7202 = vsel %vm3412, %v7111, 0.0
      %v7203 = vsel %vm3413, %v7113, 0.0
      %v7204 = vsel %vm3414, %v7115, 0.0
      %v7205 = vsel %vm3415, %v7117, 0.0
      %v7206 = vsel %vm3416, %v7119, 0.0
      %v7207 = vsel %vm3417, %v7121, 0.0
      %v7208 = vsel %vm3418, %v7123, 0.0
      %v7209 = vsel %vm3419, %v7125, 0.0
      %v7210 = vsel %vm3420, %v7127, 0.0
      %v7211 = vsel %vm3421, %v7129, 0.0
      %v7212 = vsel %vm3422, %v7131, 0.0
      %v7213 = vsel %vm3423, %v7133, 0.0
      %v7214 = vsel %vm3424, %v7135, 0.0
      %v7215 = vsel %vm3425, %v7137, 0.0
      %v7216 = vsel %vm3426, %v7139, 0.0
      %v7217 = vsel %vm3427, %v7141, 0.0
      %v7218 = vsel %vm3428, %v7143, 0.0
      %v7219 = vsel %vm3429, %v7145, 0.0
      %v7220 = vsel %vm3430, %v7147, 0.0
      %v7221 = vsel %vm3431, %v7149, 0.0
      %v7222 = vsel %vm3432, %v7151, 0.0
      %v7223 = vsel %vm3433, %v7153, 0.0
      %v7224 = vsel %vm3434, %v7155, 0.0
      %v7225 = vsel %vm3435, %v7157, 0.0
      %v7226 = vsel %vm3436, %v7159, 0.0
      %v7227 = vsel %vm3437, %v7161, 0.0
      %v7228 = vsel %vm3438, %v7163, 0.0
      %v7229 = vsel %vm3439, %v7197, 0.0
      %v7230 = vadd.f32 %v6810, %v7198
      %v7231 = vadd.f32 %v6811, %v7199
      %v7232 = vadd.f32 %v6812, %v7200
      %v7233 = vadd.f32 %v6813, %v7201
      %v7234 = vadd.f32 %v6814, %v7202
      %v7235 = vadd.f32 %v6815, %v7203
      %v7236 = vadd.f32 %v6816, %v7204
      %v7237 = vadd.f32 %v6817, %v7205
      %v7238 = vadd.f32 %v6818, %v7206
      %v7239 = vadd.f32 %v6819, %v7207
      %v7240 = vadd.f32 %v6820, %v7208
      %v7241 = vadd.f32 %v6821, %v7209
      %v7242 = vadd.f32 %v6822, %v7210
      %v7243 = vadd.f32 %v6823, %v7211
      %v7244 = vadd.f32 %v6824, %v7212
      %v7245 = vadd.f32 %v6825, %v7213
      %v7246 = vadd.f32 %v6826, %v7214
      %v7247 = vadd.f32 %v6827, %v7215
      %v7248 = vadd.f32 %v6828, %v7216
      %v7249 = vadd.f32 %v6829, %v7217
      %v7250 = vadd.f32 %v6830, %v7218
      %v7251 = vadd.f32 %v6831, %v7219
      %v7252 = vadd.f32 %v6832, %v7220
      %v7253 = vadd.f32 %v6833, %v7221
      %v7254 = vadd.f32 %v6834, %v7222
      %v7255 = vadd.f32 %v6835, %v7223
      %v7256 = vadd.f32 %v6836, %v7224
      %v7257 = vadd.f32 %v6837, %v7225
      %v7258 = vadd.f32 %v6838, %v7226
      %v7259 = vadd.f32 %v6839, %v7227
      %v7260 = vadd.f32 %v6840, %v7228
      %v7261 = vadd.f32 %v6841, %v7229
      %s7262 = scalar_lea.vmem %s4, 48
      %v7263 = vld [vmem:[%s7262] sm:$0xff]
      %7264 = vmatprep.subr.mxu0 0.0
      %7265 = vmatpush1.msra.mxu0 0.0
      %7266 = vmatprep.subr.mxu0 0.0
      %7267 = vmatpush1.msra.mxu0 0.0
      %7268 = vmatprep.subr.mxu0 0.0
      %7269 = vmatpush1.msra.mxu0 0.0
      %7270 = vmatprep.subr.mxu0 0.0
      %7271 = vmatpush1.msra.mxu0 0.0
      %7272 = vmatprep.subr.mxu0 0.0
      %7273 = vmatpush1.msra.mxu0 0.0
      %7274 = vmatprep.subr.mxu0 0.0
      %7275 = vmatpush1.msra.mxu0 0.0
      %7276 = vmatprep.subr.mxu0 0.0
      %7277 = vmatpush1.msra.mxu0 0.0
      %7278 = vmatprep.subr.mxu0 0.0
      %7279 = vmatpush1.msra.mxu0 0.0
      %7280 = vmatprep.subr.mxu0 0.0
      %7281 = vmatpush1.msra.mxu0 0.0
      %7282 = vmatprep.subr.mxu0 0.0
      %7283 = vmatpush1.msra.mxu0 0.0
      %7284 = vmatprep.subr.mxu0 0.0
      %7285 = vmatpush1.msra.mxu0 0.0
      %7286 = vmatprep.subr.mxu0 0.0
      %7287 = vmatpush1.msra.mxu0 0.0
      %7288 = vmatprep.subr.mxu0 0.0
      %7289 = vmatpush1.msra.mxu0 0.0
      %7290 = vmatprep.subr.mxu0 0.0
      %7291 = vmatpush1.msra.mxu0 0.0
      %7292 = vmatprep.subr.mxu0 0.0
      %7293 = vmatpush1.msra.mxu0 0.0
      %7294 = vmatprep.subr.mxu0 0.0
      %7295 = vmatpush1.msra.mxu0 %v7263
      %7296 = vmatprep.subr.mxu0 0.0
      %7297 = vmatpush2.msra.mxu0 0.0
      %7298 = vmatprep.subr.mxu0 0.0
      %7299 = vmatpush2.msra.mxu0 0.0
      %7300 = vmatprep.subr.mxu0 0.0
      %7301 = vmatpush2.msra.mxu0 0.0
      %7302 = vmatprep.subr.mxu0 0.0
      %7303 = vmatpush2.msra.mxu0 0.0
      %7304 = vmatprep.subr.mxu0 0.0
      %7305 = vmatpush2.msra.mxu0 0.0
      %7306 = vmatprep.subr.mxu0 0.0
      %7307 = vmatpush2.msra.mxu0 0.0
      %7308 = vmatprep.subr.mxu0 0.0
      %7309 = vmatpush2.msra.mxu0 0.0
      %7310 = vmatprep.subr.mxu0 0.0
      %7311 = vmatpush2.msra.mxu0 0.0
      %7312 = vmatprep.subr.mxu0 0.0
      %7313 = vmatpush2.msra.mxu0 0.0
      %7314 = vmatprep.subr.mxu0 0.0
      %7315 = vmatpush2.msra.mxu0 0.0
      %7316 = vmatprep.subr.mxu0 0.0
      %7317 = vmatpush2.msra.mxu0 0.0
      %7318 = vmatprep.subr.mxu0 0.0
      %7319 = vmatpush2.msra.mxu0 0.0
      %7320 = vmatprep.subr.mxu0 0.0
      %7321 = vmatpush2.msra.mxu0 0.0
      %7322 = vmatprep.subr.mxu0 0.0
      %7323 = vmatpush2.msra.mxu0 0.0
      %7324 = vmatprep.subr.mxu0 0.0
      %7325 = vmatpush2.msra.mxu0 0.0
      %7326 = vmatprep.subr.mxu0 0.0
      %7327 = vmatpush2.msra.mxu0 0.0
      %7328 = vmatprep.mubr.f32.mxu0 0.0
      %7329 = vmatmul.mubr.f32.gmra.mxu0 %v5005
      %v7330 = vpop.f32.mrf.mxu0
      %v7331 = vadd.f32 0.0, %v7330
      %v7332 = vpop.f32.mrf.mxu0
      %7333 = vmatprep.mubr.f32.mxu0 0.0
      %7334 = vmatmul.mubr.f32.gmra.mxu0 %v5008
      %v7335 = vpop.f32.mrf.mxu0
      %v7336 = vadd.f32 0.0, %v7335
      %v7337 = vpop.f32.mrf.mxu0
      %7338 = vmatprep.mubr.f32.mxu0 0.0
      %7339 = vmatmul.mubr.f32.gmra.mxu0 %v5011
      %v7340 = vpop.f32.mrf.mxu0
      %v7341 = vadd.f32 0.0, %v7340
      %v7342 = vpop.f32.mrf.mxu0
      %7343 = vmatprep.mubr.f32.mxu0 0.0
      %7344 = vmatmul.mubr.f32.gmra.mxu0 %v5014
      %v7345 = vpop.f32.mrf.mxu0
      %v7346 = vadd.f32 0.0, %v7345
      %v7347 = vpop.f32.mrf.mxu0
      %7348 = vmatprep.mubr.f32.mxu0 0.0
      %7349 = vmatmul.mubr.f32.gmra.mxu0 %v5017
      %v7350 = vpop.f32.mrf.mxu0
      %v7351 = vadd.f32 0.0, %v7350
      %v7352 = vpop.f32.mrf.mxu0
      %7353 = vmatprep.mubr.f32.mxu0 0.0
      %7354 = vmatmul.mubr.f32.gmra.mxu0 %v5020
      %v7355 = vpop.f32.mrf.mxu0
      %v7356 = vadd.f32 0.0, %v7355
      %v7357 = vpop.f32.mrf.mxu0
      %7358 = vmatprep.mubr.f32.mxu0 0.0
      %7359 = vmatmul.mubr.f32.gmra.mxu0 %v5023
      %v7360 = vpop.f32.mrf.mxu0
      %v7361 = vadd.f32 0.0, %v7360
      %v7362 = vpop.f32.mrf.mxu0
      %7363 = vmatprep.mubr.f32.mxu0 0.0
      %7364 = vmatmul.mubr.f32.gmra.mxu0 %v5026
      %v7365 = vpop.f32.mrf.mxu0
      %v7366 = vadd.f32 0.0, %v7365
      %v7367 = vpop.f32.mrf.mxu0
      %7368 = vmatprep.mubr.f32.mxu0 0.0
      %7369 = vmatmul.mubr.f32.gmra.mxu0 %v5029
      %v7370 = vpop.f32.mrf.mxu0
      %v7371 = vadd.f32 0.0, %v7370
      %v7372 = vpop.f32.mrf.mxu0
      %7373 = vmatprep.mubr.f32.mxu0 0.0
      %7374 = vmatmul.mubr.f32.gmra.mxu0 %v5032
      %v7375 = vpop.f32.mrf.mxu0
      %v7376 = vadd.f32 0.0, %v7375
      %v7377 = vpop.f32.mrf.mxu0
      %7378 = vmatprep.mubr.f32.mxu0 0.0
      %7379 = vmatmul.mubr.f32.gmra.mxu0 %v5035
      %v7380 = vpop.f32.mrf.mxu0
      %v7381 = vadd.f32 0.0, %v7380
      %v7382 = vpop.f32.mrf.mxu0
      %7383 = vmatprep.mubr.f32.mxu0 0.0
      %7384 = vmatmul.mubr.f32.gmra.mxu0 %v5038
      %v7385 = vpop.f32.mrf.mxu0
      %v7386 = vadd.f32 0.0, %v7385
      %v7387 = vpop.f32.mrf.mxu0
      %7388 = vmatprep.mubr.f32.mxu0 0.0
      %7389 = vmatmul.mubr.f32.gmra.mxu0 %v5041
      %v7390 = vpop.f32.mrf.mxu0
      %v7391 = vadd.f32 0.0, %v7390
      %v7392 = vpop.f32.mrf.mxu0
      %7393 = vmatprep.mubr.f32.mxu0 0.0
      %7394 = vmatmul.mubr.f32.gmra.mxu0 %v5044
      %v7395 = vpop.f32.mrf.mxu0
      %v7396 = vadd.f32 0.0, %v7395
      %v7397 = vpop.f32.mrf.mxu0
      %7398 = vmatprep.mubr.f32.mxu0 0.0
      %7399 = vmatmul.mubr.f32.gmra.mxu0 %v5047
      %v7400 = vpop.f32.mrf.mxu0
      %v7401 = vadd.f32 0.0, %v7400
      %v7402 = vpop.f32.mrf.mxu0
      %7403 = vmatprep.mubr.f32.mxu0 0.0
      %7404 = vmatmul.mubr.f32.gmra.mxu0 %v5050
      %v7405 = vpop.f32.mrf.mxu0
      %v7406 = vadd.f32 0.0, %v7405
      %v7407 = vpop.f32.mrf.mxu0
      %7408 = vmatprep.mubr.f32.mxu0 0.0
      %7409 = vmatmul.mubr.f32.gmra.mxu0 %v5053
      %v7410 = vpop.f32.mrf.mxu0
      %v7411 = vadd.f32 0.0, %v7410
      %v7412 = vpop.f32.mrf.mxu0
      %7413 = vmatprep.mubr.f32.mxu0 0.0
      %7414 = vmatmul.mubr.f32.gmra.mxu0 %v5056
      %v7415 = vpop.f32.mrf.mxu0
      %v7416 = vadd.f32 0.0, %v7415
      %v7417 = vpop.f32.mrf.mxu0
      %7418 = vmatprep.mubr.f32.mxu0 0.0
      %7419 = vmatmul.mubr.f32.gmra.mxu0 %v5059
      %v7420 = vpop.f32.mrf.mxu0
      %v7421 = vadd.f32 0.0, %v7420
      %v7422 = vpop.f32.mrf.mxu0
      %7423 = vmatprep.mubr.f32.mxu0 0.0
      %7424 = vmatmul.mubr.f32.gmra.mxu0 %v5062
      %v7425 = vpop.f32.mrf.mxu0
      %v7426 = vadd.f32 0.0, %v7425
      %v7427 = vpop.f32.mrf.mxu0
      %7428 = vmatprep.mubr.f32.mxu0 0.0
      %7429 = vmatmul.mubr.f32.gmra.mxu0 %v5065
      %v7430 = vpop.f32.mrf.mxu0
      %v7431 = vadd.f32 0.0, %v7430
      %v7432 = vpop.f32.mrf.mxu0
      %7433 = vmatprep.mubr.f32.mxu0 0.0
      %7434 = vmatmul.mubr.f32.gmra.mxu0 %v5068
      %v7435 = vpop.f32.mrf.mxu0
      %v7436 = vadd.f32 0.0, %v7435
      %v7437 = vpop.f32.mrf.mxu0
      %7438 = vmatprep.mubr.f32.mxu0 0.0
      %7439 = vmatmul.mubr.f32.gmra.mxu0 %v5071
      %v7440 = vpop.f32.mrf.mxu0
      %v7441 = vadd.f32 0.0, %v7440
      %v7442 = vpop.f32.mrf.mxu0
      %7443 = vmatprep.mubr.f32.mxu0 0.0
      %7444 = vmatmul.mubr.f32.gmra.mxu0 %v5074
      %v7445 = vpop.f32.mrf.mxu0
      %v7446 = vadd.f32 0.0, %v7445
      %v7447 = vpop.f32.mrf.mxu0
      %7448 = vmatprep.mubr.f32.mxu0 0.0
      %7449 = vmatmul.mubr.f32.gmra.mxu0 %v5077
      %v7450 = vpop.f32.mrf.mxu0
      %v7451 = vadd.f32 0.0, %v7450
      %v7452 = vpop.f32.mrf.mxu0
      %7453 = vmatprep.mubr.f32.mxu0 0.0
      %7454 = vmatmul.mubr.f32.gmra.mxu0 %v5080
      %v7455 = vpop.f32.mrf.mxu0
      %v7456 = vadd.f32 0.0, %v7455
      %v7457 = vpop.f32.mrf.mxu0
      %7458 = vmatprep.mubr.f32.mxu0 0.0
      %7459 = vmatmul.mubr.f32.gmra.mxu0 %v5083
      %v7460 = vpop.f32.mrf.mxu0
      %v7461 = vadd.f32 0.0, %v7460
      %v7462 = vpop.f32.mrf.mxu0
      %7463 = vmatprep.mubr.f32.mxu0 0.0
      %7464 = vmatmul.mubr.f32.gmra.mxu0 %v5086
      %v7465 = vpop.f32.mrf.mxu0
      %v7466 = vadd.f32 0.0, %v7465
      %v7467 = vpop.f32.mrf.mxu0
      %7468 = vmatprep.mubr.f32.mxu0 0.0
      %7469 = vmatmul.mubr.f32.gmra.mxu0 %v5089
      %v7470 = vpop.f32.mrf.mxu0
      %v7471 = vadd.f32 0.0, %v7470
      %v7472 = vpop.f32.mrf.mxu0
      %7473 = vmatprep.mubr.f32.mxu0 0.0
      %7474 = vmatmul.mubr.f32.gmra.mxu0 %v5092
      %v7475 = vpop.f32.mrf.mxu0
      %v7476 = vadd.f32 0.0, %v7475
      %v7477 = vpop.f32.mrf.mxu0
      %7478 = vmatprep.mubr.f32.mxu0 0.0
      %7479 = vmatmul.mubr.f32.gmra.mxu0 %v5095
      %v7480 = vpop.f32.mrf.mxu0
      %v7481 = vadd.f32 0.0, %v7480
      %v7482 = vpop.f32.mrf.mxu0
      %7483 = vmatprep.mubr.f32.mxu0 0.0
      %7484 = vmatmul.mubr.f32.gmra.mxu0 %v5098
      %v7485 = vpop.f32.mrf.mxu0
      %v7486 = vadd.f32 0.0, %v7485
      %v7487 = vpop.f32.mrf.mxu0
      %7488 = vdwg.mxu0
      %v7520 = vrot.slane %v7336, 7
      %v7521 = vrot.slane %v7341, 7
      %v7522 = vsel %vm1184, %v7520, %v7521
      %v7523 = vrot.slane %v7346, 7
      %v7524 = vsel %vm1184, %v7521, %v7523
      %v7525 = vrot.slane %v7351, 7
      %v7526 = vsel %vm1184, %v7523, %v7525
      %v7527 = vrot.slane %v7356, 7
      %v7528 = vsel %vm1184, %v7525, %v7527
      %v7529 = vrot.slane %v7361, 7
      %v7530 = vsel %vm1184, %v7527, %v7529
      %v7531 = vrot.slane %v7366, 7
      %v7532 = vsel %vm1184, %v7529, %v7531
      %v7533 = vrot.slane %v7371, 7
      %v7534 = vsel %vm1184, %v7531, %v7533
      %v7535 = vrot.slane %v7376, 7
      %v7536 = vsel %vm1184, %v7533, %v7535
      %v7537 = vrot.slane %v7381, 7
      %v7538 = vsel %vm1184, %v7535, %v7537
      %v7539 = vrot.slane %v7386, 7
      %v7540 = vsel %vm1184, %v7537, %v7539
      %v7541 = vrot.slane %v7391, 7
      %v7542 = vsel %vm1184, %v7539, %v7541
      %v7543 = vrot.slane %v7396, 7
      %v7544 = vsel %vm1184, %v7541, %v7543
      %v7545 = vrot.slane %v7401, 7
      %v7546 = vsel %vm1184, %v7543, %v7545
      %v7547 = vrot.slane %v7406, 7
      %v7548 = vsel %vm1184, %v7545, %v7547
      %v7549 = vrot.slane %v7411, 7
      %v7550 = vsel %vm1184, %v7547, %v7549
      %v7551 = vrot.slane %v7416, 7
      %v7552 = vsel %vm1184, %v7549, %v7551
      %v7553 = vrot.slane %v7421, 7
      %v7554 = vsel %vm1184, %v7551, %v7553
      %v7555 = vrot.slane %v7426, 7
      %v7556 = vsel %vm1184, %v7553, %v7555
      %v7557 = vrot.slane %v7431, 7
      %v7558 = vsel %vm1184, %v7555, %v7557
      %v7559 = vrot.slane %v7436, 7
      %v7560 = vsel %vm1184, %v7557, %v7559
      %v7561 = vrot.slane %v7441, 7
      %v7562 = vsel %vm1184, %v7559, %v7561
      %v7563 = vrot.slane %v7446, 7
      %v7564 = vsel %vm1184, %v7561, %v7563
      %v7565 = vrot.slane %v7451, 7
      %v7566 = vsel %vm1184, %v7563, %v7565
      %v7567 = vrot.slane %v7456, 7
      %v7568 = vsel %vm1184, %v7565, %v7567
      %v7569 = vrot.slane %v7461, 7
      %v7570 = vsel %vm1184, %v7567, %v7569
      %v7571 = vrot.slane %v7466, 7
      %v7572 = vsel %vm1184, %v7569, %v7571
      %v7573 = vrot.slane %v7471, 7
      %v7574 = vsel %vm1184, %v7571, %v7573
      %v7575 = vrot.slane %v7476, 7
      %v7576 = vsel %vm1184, %v7573, %v7575
      %v7577 = vrot.slane %v7481, 7
      %v7578 = vsel %vm1184, %v7575, %v7577
      %v7579 = vrot.slane %v7486, 7
      %v7580 = vsel %vm1184, %v7577, %v7579
      %v7613 = vrot.slane %v7331, 7
      %v7614 = vsel %vm1184, %v7613, %v7520
      %v7617 = vsel %vm1184, %v7579, %v7613
      %v7618 = vsel %vm3924, %v7522, 0.0
      %v7619 = vsel %vm3925, %v7524, 0.0
      %v7620 = vsel %vm3926, %v7526, 0.0
      %v7621 = vsel %vm3927, %v7528, 0.0
      %v7622 = vsel %vm3928, %v7530, 0.0
      %v7623 = vsel %vm3929, %v7532, 0.0
      %v7624 = vsel %vm3930, %v7534, 0.0
      %v7625 = vsel %vm3931, %v7536, 0.0
      %v7626 = vsel %vm3932, %v7538, 0.0
      %v7627 = vsel %vm3933, %v7540, 0.0
      %v7628 = vsel %vm3934, %v7542, 0.0
      %v7629 = vsel %vm3935, %v7544, 0.0
      %v7630 = vsel %vm3936, %v7546, 0.0
      %v7631 = vsel %vm3937, %v7548, 0.0
      %v7632 = vsel %vm3938, %v7550, 0.0
      %v7633 = vsel %vm3939, %v7552, 0.0
      %v7634 = vsel %vm3940, %v7554, 0.0
      %v7635 = vsel %vm3941, %v7556, 0.0
      %v7636 = vsel %vm3942, %v7558, 0.0
      %v7637 = vsel %vm3943, %v7560, 0.0
      %v7638 = vsel %vm3944, %v7562, 0.0
      %v7639 = vsel %vm3945, %v7564, 0.0
      %v7640 = vsel %vm3946, %v7566, 0.0
      %v7641 = vsel %vm3947, %v7568, 0.0
      %v7642 = vsel %vm3948, %v7570, 0.0
      %v7643 = vsel %vm3949, %v7572, 0.0
      %v7644 = vsel %vm3950, %v7574, 0.0
      %v7645 = vsel %vm3951, %v7576, 0.0
      %v7646 = vsel %vm3952, %v7578, 0.0
      %v7647 = vsel %vm3953, %v7580, 0.0
      %v7648 = vsel %vm3954, %v7617, 0.0
      %v7649 = vsel %vm3955, %v7614, 0.0
      %v7650 = vadd.f32 %v7230, %v7618
      %v7651 = vadd.f32 %v7231, %v7619
      %v7652 = vadd.f32 %v7232, %v7620
      %v7653 = vadd.f32 %v7233, %v7621
      %v7654 = vadd.f32 %v7234, %v7622
      %v7655 = vadd.f32 %v7235, %v7623
      %v7656 = vadd.f32 %v7236, %v7624
      %v7657 = vadd.f32 %v7237, %v7625
      %v7658 = vadd.f32 %v7238, %v7626
      %v7659 = vadd.f32 %v7239, %v7627
      %v7660 = vadd.f32 %v7240, %v7628
      %v7661 = vadd.f32 %v7241, %v7629
      %v7662 = vadd.f32 %v7242, %v7630
      %v7663 = vadd.f32 %v7243, %v7631
      %v7664 = vadd.f32 %v7244, %v7632
      %v7665 = vadd.f32 %v7245, %v7633
      %v7666 = vadd.f32 %v7246, %v7634
      %v7667 = vadd.f32 %v7247, %v7635
      %v7668 = vadd.f32 %v7248, %v7636
      %v7669 = vadd.f32 %v7249, %v7637
      %v7670 = vadd.f32 %v7250, %v7638
      %v7671 = vadd.f32 %v7251, %v7639
      %v7672 = vadd.f32 %v7252, %v7640
      %v7673 = vadd.f32 %v7253, %v7641
      %v7674 = vadd.f32 %v7254, %v7642
      %v7675 = vadd.f32 %v7255, %v7643
      %v7676 = vadd.f32 %v7256, %v7644
      %v7677 = vadd.f32 %v7257, %v7645
      %v7678 = vadd.f32 %v7258, %v7646
      %v7679 = vadd.f32 %v7259, %v7647
      %v7680 = vadd.f32 %v7260, %v7648
      %v7681 = vadd.f32 %v7261, %v7649
      %s7682 = scalar_lea.vmem %s4, 56
      %v7683 = vld [vmem:[%s7682] sm:$0xff]
      %7684 = vmatprep.subr.mxu0 0.0
      %7685 = vmatpush1.msra.mxu0 0.0
      %7686 = vmatprep.subr.mxu0 0.0
      %7687 = vmatpush1.msra.mxu0 0.0
      %7688 = vmatprep.subr.mxu0 0.0
      %7689 = vmatpush1.msra.mxu0 0.0
      %7690 = vmatprep.subr.mxu0 0.0
      %7691 = vmatpush1.msra.mxu0 0.0
      %7692 = vmatprep.subr.mxu0 0.0
      %7693 = vmatpush1.msra.mxu0 0.0
      %7694 = vmatprep.subr.mxu0 0.0
      %7695 = vmatpush1.msra.mxu0 0.0
      %7696 = vmatprep.subr.mxu0 0.0
      %7697 = vmatpush1.msra.mxu0 0.0
      %7698 = vmatprep.subr.mxu0 0.0
      %7699 = vmatpush1.msra.mxu0 0.0
      %7700 = vmatprep.subr.mxu0 0.0
      %7701 = vmatpush1.msra.mxu0 0.0
      %7702 = vmatprep.subr.mxu0 0.0
      %7703 = vmatpush1.msra.mxu0 0.0
      %7704 = vmatprep.subr.mxu0 0.0
      %7705 = vmatpush1.msra.mxu0 0.0
      %7706 = vmatprep.subr.mxu0 0.0
      %7707 = vmatpush1.msra.mxu0 0.0
      %7708 = vmatprep.subr.mxu0 0.0
      %7709 = vmatpush1.msra.mxu0 0.0
      %7710 = vmatprep.subr.mxu0 0.0
      %7711 = vmatpush1.msra.mxu0 0.0
      %7712 = vmatprep.subr.mxu0 0.0
      %7713 = vmatpush1.msra.mxu0 0.0
      %7714 = vmatprep.subr.mxu0 0.0
      %7715 = vmatpush1.msra.mxu0 %v7683
      %7716 = vmatprep.subr.mxu0 0.0
      %7717 = vmatpush2.msra.mxu0 0.0
      %7718 = vmatprep.subr.mxu0 0.0
      %7719 = vmatpush2.msra.mxu0 0.0
      %7720 = vmatprep.subr.mxu0 0.0
      %7721 = vmatpush2.msra.mxu0 0.0
      %7722 = vmatprep.subr.mxu0 0.0
      %7723 = vmatpush2.msra.mxu0 0.0
      %7724 = vmatprep.subr.mxu0 0.0
      %7725 = vmatpush2.msra.mxu0 0.0
      %7726 = vmatprep.subr.mxu0 0.0
      %7727 = vmatpush2.msra.mxu0 0.0
      %7728 = vmatprep.subr.mxu0 0.0
      %7729 = vmatpush2.msra.mxu0 0.0
      %7730 = vmatprep.subr.mxu0 0.0
      %7731 = vmatpush2.msra.mxu0 0.0
      %7732 = vmatprep.subr.mxu0 0.0
      %7733 = vmatpush2.msra.mxu0 0.0
      %7734 = vmatprep.subr.mxu0 0.0
      %7735 = vmatpush2.msra.mxu0 0.0
      %7736 = vmatprep.subr.mxu0 0.0
      %7737 = vmatpush2.msra.mxu0 0.0
      %7738 = vmatprep.subr.mxu0 0.0
      %7739 = vmatpush2.msra.mxu0 0.0
      %7740 = vmatprep.subr.mxu0 0.0
      %7741 = vmatpush2.msra.mxu0 0.0
      %7742 = vmatprep.subr.mxu0 0.0
      %7743 = vmatpush2.msra.mxu0 0.0
      %7744 = vmatprep.subr.mxu0 0.0
      %7745 = vmatpush2.msra.mxu0 0.0
      %7746 = vmatprep.subr.mxu0 0.0
      %7747 = vmatpush2.msra.mxu0 0.0
      %7748 = vmatprep.mubr.f32.mxu0 0.0
      %7749 = vmatmul.mubr.f32.gmra.mxu0 %v5005
      %v7750 = vpop.f32.mrf.mxu0
      %v7751 = vadd.f32 0.0, %v7750
      %v7752 = vpop.f32.mrf.mxu0
      %7753 = vmatprep.mubr.f32.mxu0 0.0
      %7754 = vmatmul.mubr.f32.gmra.mxu0 %v5008
      %v7755 = vpop.f32.mrf.mxu0
      %v7756 = vadd.f32 0.0, %v7755
      %v7757 = vpop.f32.mrf.mxu0
      %7758 = vmatprep.mubr.f32.mxu0 0.0
      %7759 = vmatmul.mubr.f32.gmra.mxu0 %v5011
      %v7760 = vpop.f32.mrf.mxu0
      %v7761 = vadd.f32 0.0, %v7760
      %v7762 = vpop.f32.mrf.mxu0
      %7763 = vmatprep.mubr.f32.mxu0 0.0
      %7764 = vmatmul.mubr.f32.gmra.mxu0 %v5014
      %v7765 = vpop.f32.mrf.mxu0
      %v7766 = vadd.f32 0.0, %v7765
      %v7767 = vpop.f32.mrf.mxu0
      %7768 = vmatprep.mubr.f32.mxu0 0.0
      %7769 = vmatmul.mubr.f32.gmra.mxu0 %v5017
      %v7770 = vpop.f32.mrf.mxu0
      %v7771 = vadd.f32 0.0, %v7770
      %v7772 = vpop.f32.mrf.mxu0
      %7773 = vmatprep.mubr.f32.mxu0 0.0
      %7774 = vmatmul.mubr.f32.gmra.mxu0 %v5020
      %v7775 = vpop.f32.mrf.mxu0
      %v7776 = vadd.f32 0.0, %v7775
      %v7777 = vpop.f32.mrf.mxu0
      %7778 = vmatprep.mubr.f32.mxu0 0.0
      %7779 = vmatmul.mubr.f32.gmra.mxu0 %v5023
      %v7780 = vpop.f32.mrf.mxu0
      %v7781 = vadd.f32 0.0, %v7780
      %v7782 = vpop.f32.mrf.mxu0
      %7783 = vmatprep.mubr.f32.mxu0 0.0
      %7784 = vmatmul.mubr.f32.gmra.mxu0 %v5026
      %v7785 = vpop.f32.mrf.mxu0
      %v7786 = vadd.f32 0.0, %v7785
      %v7787 = vpop.f32.mrf.mxu0
      %7788 = vmatprep.mubr.f32.mxu0 0.0
      %7789 = vmatmul.mubr.f32.gmra.mxu0 %v5029
      %v7790 = vpop.f32.mrf.mxu0
      %v7791 = vadd.f32 0.0, %v7790
      %v7792 = vpop.f32.mrf.mxu0
      %7793 = vmatprep.mubr.f32.mxu0 0.0
      %7794 = vmatmul.mubr.f32.gmra.mxu0 %v5032
      %v7795 = vpop.f32.mrf.mxu0
      %v7796 = vadd.f32 0.0, %v7795
      %v7797 = vpop.f32.mrf.mxu0
      %7798 = vmatprep.mubr.f32.mxu0 0.0
      %7799 = vmatmul.mubr.f32.gmra.mxu0 %v5035
      %v7800 = vpop.f32.mrf.mxu0
      %v7801 = vadd.f32 0.0, %v7800
      %v7802 = vpop.f32.mrf.mxu0
      %7803 = vmatprep.mubr.f32.mxu0 0.0
      %7804 = vmatmul.mubr.f32.gmra.mxu0 %v5038
      %v7805 = vpop.f32.mrf.mxu0
      %v7806 = vadd.f32 0.0, %v7805
      %v7807 = vpop.f32.mrf.mxu0
      %7808 = vmatprep.mubr.f32.mxu0 0.0
      %7809 = vmatmul.mubr.f32.gmra.mxu0 %v5041
      %v7810 = vpop.f32.mrf.mxu0
      %v7811 = vadd.f32 0.0, %v7810
      %v7812 = vpop.f32.mrf.mxu0
      %7813 = vmatprep.mubr.f32.mxu0 0.0
      %7814 = vmatmul.mubr.f32.gmra.mxu0 %v5044
      %v7815 = vpop.f32.mrf.mxu0
      %v7816 = vadd.f32 0.0, %v7815
      %v7817 = vpop.f32.mrf.mxu0
      %7818 = vmatprep.mubr.f32.mxu0 0.0
      %7819 = vmatmul.mubr.f32.gmra.mxu0 %v5047
      %v7820 = vpop.f32.mrf.mxu0
      %v7821 = vadd.f32 0.0, %v7820
      %v7822 = vpop.f32.mrf.mxu0
      %7823 = vmatprep.mubr.f32.mxu0 0.0
      %7824 = vmatmul.mubr.f32.gmra.mxu0 %v5050
      %v7825 = vpop.f32.mrf.mxu0
      %v7826 = vadd.f32 0.0, %v7825
      %v7827 = vpop.f32.mrf.mxu0
      %7828 = vmatprep.mubr.f32.mxu0 0.0
      %7829 = vmatmul.mubr.f32.gmra.mxu0 %v5053
      %v7830 = vpop.f32.mrf.mxu0
      %v7831 = vadd.f32 0.0, %v7830
      %v7832 = vpop.f32.mrf.mxu0
      %7833 = vmatprep.mubr.f32.mxu0 0.0
      %7834 = vmatmul.mubr.f32.gmra.mxu0 %v5056
      %v7835 = vpop.f32.mrf.mxu0
      %v7836 = vadd.f32 0.0, %v7835
      %v7837 = vpop.f32.mrf.mxu0
      %7838 = vmatprep.mubr.f32.mxu0 0.0
      %7839 = vmatmul.mubr.f32.gmra.mxu0 %v5059
      %v7840 = vpop.f32.mrf.mxu0
      %v7841 = vadd.f32 0.0, %v7840
      %v7842 = vpop.f32.mrf.mxu0
      %7843 = vmatprep.mubr.f32.mxu0 0.0
      %7844 = vmatmul.mubr.f32.gmra.mxu0 %v5062
      %v7845 = vpop.f32.mrf.mxu0
      %v7846 = vadd.f32 0.0, %v7845
      %v7847 = vpop.f32.mrf.mxu0
      %7848 = vmatprep.mubr.f32.mxu0 0.0
      %7849 = vmatmul.mubr.f32.gmra.mxu0 %v5065
      %v7850 = vpop.f32.mrf.mxu0
      %v7851 = vadd.f32 0.0, %v7850
      %v7852 = vpop.f32.mrf.mxu0
      %7853 = vmatprep.mubr.f32.mxu0 0.0
      %7854 = vmatmul.mubr.f32.gmra.mxu0 %v5068
      %v7855 = vpop.f32.mrf.mxu0
      %v7856 = vadd.f32 0.0, %v7855
      %v7857 = vpop.f32.mrf.mxu0
      %7858 = vmatprep.mubr.f32.mxu0 0.0
      %7859 = vmatmul.mubr.f32.gmra.mxu0 %v5071
      %v7860 = vpop.f32.mrf.mxu0
      %v7861 = vadd.f32 0.0, %v7860
      %v7862 = vpop.f32.mrf.mxu0
      %7863 = vmatprep.mubr.f32.mxu0 0.0
      %7864 = vmatmul.mubr.f32.gmra.mxu0 %v5074
      %v7865 = vpop.f32.mrf.mxu0
      %v7866 = vadd.f32 0.0, %v7865
      %v7867 = vpop.f32.mrf.mxu0
      %7868 = vmatprep.mubr.f32.mxu0 0.0
      %7869 = vmatmul.mubr.f32.gmra.mxu0 %v5077
      %v7870 = vpop.f32.mrf.mxu0
      %v7871 = vadd.f32 0.0, %v7870
      %v7872 = vpop.f32.mrf.mxu0
      %7873 = vmatprep.mubr.f32.mxu0 0.0
      %7874 = vmatmul.mubr.f32.gmra.mxu0 %v5080
      %v7875 = vpop.f32.mrf.mxu0
      %v7876 = vadd.f32 0.0, %v7875
      %v7877 = vpop.f32.mrf.mxu0
      %7878 = vmatprep.mubr.f32.mxu0 0.0
      %7879 = vmatmul.mubr.f32.gmra.mxu0 %v5083
      %v7880 = vpop.f32.mrf.mxu0
      %v7881 = vadd.f32 0.0, %v7880
      %v7882 = vpop.f32.mrf.mxu0
      %7883 = vmatprep.mubr.f32.mxu0 0.0
      %7884 = vmatmul.mubr.f32.gmra.mxu0 %v5086
      %v7885 = vpop.f32.mrf.mxu0
      %v7886 = vadd.f32 0.0, %v7885
      %v7887 = vpop.f32.mrf.mxu0
      %7888 = vmatprep.mubr.f32.mxu0 0.0
      %7889 = vmatmul.mubr.f32.gmra.mxu0 %v5089
      %v7890 = vpop.f32.mrf.mxu0
      %v7891 = vadd.f32 0.0, %v7890
      %v7892 = vpop.f32.mrf.mxu0
      %7893 = vmatprep.mubr.f32.mxu0 0.0
      %7894 = vmatmul.mubr.f32.gmra.mxu0 %v5092
      %v7895 = vpop.f32.mrf.mxu0
      %v7896 = vadd.f32 0.0, %v7895
      %v7897 = vpop.f32.mrf.mxu0
      %7898 = vmatprep.mubr.f32.mxu0 0.0
      %7899 = vmatmul.mubr.f32.gmra.mxu0 %v5095
      %v7900 = vpop.f32.mrf.mxu0
      %v7901 = vadd.f32 0.0, %v7900
      %v7902 = vpop.f32.mrf.mxu0
      %7903 = vmatprep.mubr.f32.mxu0 0.0
      %7904 = vmatmul.mubr.f32.gmra.mxu0 %v5098
      %v7905 = vpop.f32.mrf.mxu0
      %v7906 = vadd.f32 0.0, %v7905
      %v7907 = vpop.f32.mrf.mxu0
      %7908 = vdwg.mxu0
      %v7909 = vsel %vm4279, %v7761, 0.0
      %v7910 = vsel %vm4280, %v7766, 0.0
      %v7911 = vsel %vm4281, %v7771, 0.0
      %v7912 = vsel %vm4282, %v7776, 0.0
      %v7913 = vsel %vm4283, %v7781, 0.0
      %v7914 = vsel %vm4284, %v7786, 0.0
      %v7915 = vsel %vm4285, %v7791, 0.0
      %v7916 = vsel %vm4286, %v7796, 0.0
      %v7917 = vsel %vm4287, %v7801, 0.0
      %v7918 = vsel %vm4288, %v7806, 0.0
      %v7919 = vsel %vm4289, %v7811, 0.0
      %v7920 = vsel %vm4290, %v7816, 0.0
      %v7921 = vsel %vm4291, %v7821, 0.0
      %v7922 = vsel %vm4292, %v7826, 0.0
      %v7923 = vsel %vm4293, %v7831, 0.0
      %v7924 = vsel %vm4294, %v7836, 0.0
      %v7925 = vsel %vm4295, %v7841, 0.0
      %v7926 = vsel %vm4296, %v7846, 0.0
      %v7927 = vsel %vm4297, %v7851, 0.0
      %v7928 = vsel %vm4298, %v7856, 0.0
      %v7929 = vsel %vm4299, %v7861, 0.0
      %v7930 = vsel %vm4300, %v7866, 0.0
      %v7931 = vsel %vm4301, %v7871, 0.0
      %v7932 = vsel %vm4302, %v7876, 0.0
      %v7933 = vsel %vm4303, %v7881, 0.0
      %v7934 = vsel %vm4304, %v7886, 0.0
      %v7935 = vsel %vm4305, %v7891, 0.0
      %v7936 = vsel %vm4306, %v7896, 0.0
      %v7937 = vsel %vm4307, %v7901, 0.0
      %v7938 = vsel %vm4308, %v7906, 0.0
      %v7939 = vsel %vm4309, %v7751, 0.0
      %v7940 = vsel %vm4310, %v7756, 0.0
      %v7941 = vadd.f32 %v7650, %v7909
      %v7942 = vadd.f32 %v7651, %v7910
      %v7943 = vadd.f32 %v7652, %v7911
      %v7944 = vadd.f32 %v7653, %v7912
      %v7945 = vadd.f32 %v7654, %v7913
      %v7946 = vadd.f32 %v7655, %v7914
      %v7947 = vadd.f32 %v7656, %v7915
      %v7948 = vadd.f32 %v7657, %v7916
      %v7949 = vadd.f32 %v7658, %v7917
      %v7950 = vadd.f32 %v7659, %v7918
      %v7951 = vadd.f32 %v7660, %v7919
      %v7952 = vadd.f32 %v7661, %v7920
      %v7953 = vadd.f32 %v7662, %v7921
      %v7954 = vadd.f32 %v7663, %v7922
      %v7955 = vadd.f32 %v7664, %v7923
      %v7956 = vadd.f32 %v7665, %v7924
      %v7957 = vadd.f32 %v7666, %v7925
      %v7958 = vadd.f32 %v7667, %v7926
      %v7959 = vadd.f32 %v7668, %v7927
      %v7960 = vadd.f32 %v7669, %v7928
      %v7961 = vadd.f32 %v7670, %v7929
      %v7962 = vadd.f32 %v7671, %v7930
      %v7963 = vadd.f32 %v7672, %v7931
      %v7964 = vadd.f32 %v7673, %v7932
      %v7965 = vadd.f32 %v7674, %v7933
      %v7966 = vadd.f32 %v7675, %v7934
      %v7967 = vadd.f32 %v7676, %v7935
      %v7968 = vadd.f32 %v7677, %v7936
      %v7969 = vadd.f32 %v7678, %v7937
      %v7970 = vadd.f32 %v7679, %v7938
      %v7971 = vadd.f32 %v7680, %v7939
      %v7972 = vadd.f32 %v7681, %v7940
      %s7973 = scalar_lea.vmem %s4, 64
      %v7974 = vld [vmem:[%s7973] sm:$0xff]
      %7975 = vmatprep.subr.mxu0 0.0
      %7976 = vmatpush1.msra.mxu0 0.0
      %7977 = vmatprep.subr.mxu0 0.0
      %7978 = vmatpush1.msra.mxu0 0.0
      %7979 = vmatprep.subr.mxu0 0.0
      %7980 = vmatpush1.msra.mxu0 0.0
      %7981 = vmatprep.subr.mxu0 0.0
      %7982 = vmatpush1.msra.mxu0 0.0
      %7983 = vmatprep.subr.mxu0 0.0
      %7984 = vmatpush1.msra.mxu0 0.0
      %7985 = vmatprep.subr.mxu0 0.0
      %7986 = vmatpush1.msra.mxu0 0.0
      %7987 = vmatprep.subr.mxu0 0.0
      %7988 = vmatpush1.msra.mxu0 0.0
      %7989 = vmatprep.subr.mxu0 0.0
      %7990 = vmatpush1.msra.mxu0 0.0
      %7991 = vmatprep.subr.mxu0 0.0
      %7992 = vmatpush1.msra.mxu0 0.0
      %7993 = vmatprep.subr.mxu0 0.0
      %7994 = vmatpush1.msra.mxu0 0.0
      %7995 = vmatprep.subr.mxu0 0.0
      %7996 = vmatpush1.msra.mxu0 0.0
      %7997 = vmatprep.subr.mxu0 0.0
      %7998 = vmatpush1.msra.mxu0 0.0
      %7999 = vmatprep.subr.mxu0 0.0
      %8000 = vmatpush1.msra.mxu0 0.0
      %8001 = vmatprep.subr.mxu0 0.0
      %8002 = vmatpush1.msra.mxu0 0.0
      %8003 = vmatprep.subr.mxu0 0.0
      %8004 = vmatpush1.msra.mxu0 0.0
      %8005 = vmatprep.subr.mxu0 0.0
      %8006 = vmatpush1.msra.mxu0 %v7974
      %8007 = vmatprep.subr.mxu0 0.0
      %8008 = vmatpush2.msra.mxu0 0.0
      %8009 = vmatprep.subr.mxu0 0.0
      %8010 = vmatpush2.msra.mxu0 0.0
      %8011 = vmatprep.subr.mxu0 0.0
      %8012 = vmatpush2.msra.mxu0 0.0
      %8013 = vmatprep.subr.mxu0 0.0
      %8014 = vmatpush2.msra.mxu0 0.0
      %8015 = vmatprep.subr.mxu0 0.0
      %8016 = vmatpush2.msra.mxu0 0.0
      %8017 = vmatprep.subr.mxu0 0.0
      %8018 = vmatpush2.msra.mxu0 0.0
      %8019 = vmatprep.subr.mxu0 0.0
      %8020 = vmatpush2.msra.mxu0 0.0
      %8021 = vmatprep.subr.mxu0 0.0
      %8022 = vmatpush2.msra.mxu0 0.0
      %8023 = vmatprep.subr.mxu0 0.0
      %8024 = vmatpush2.msra.mxu0 0.0
      %8025 = vmatprep.subr.mxu0 0.0
      %8026 = vmatpush2.msra.mxu0 0.0
      %8027 = vmatprep.subr.mxu0 0.0
      %8028 = vmatpush2.msra.mxu0 0.0
      %8029 = vmatprep.subr.mxu0 0.0
      %8030 = vmatpush2.msra.mxu0 0.0
      %8031 = vmatprep.subr.mxu0 0.0
      %8032 = vmatpush2.msra.mxu0 0.0
      %8033 = vmatprep.subr.mxu0 0.0
      %8034 = vmatpush2.msra.mxu0 0.0
      %8035 = vmatprep.subr.mxu0 0.0
      %8036 = vmatpush2.msra.mxu0 0.0
      %8037 = vmatprep.subr.mxu0 0.0
      %8038 = vmatpush2.msra.mxu0 0.0
      %8039 = vmatprep.mubr.f32.mxu0 0.0
      %8040 = vmatmul.mubr.f32.gmra.mxu0 %v5005
      %v8041 = vpop.f32.mrf.mxu0
      %v8042 = vadd.f32 0.0, %v8041
      %v8043 = vpop.f32.mrf.mxu0
      %8044 = vmatprep.mubr.f32.mxu0 0.0
      %8045 = vmatmul.mubr.f32.gmra.mxu0 %v5008
      %v8046 = vpop.f32.mrf.mxu0
      %v8047 = vadd.f32 0.0, %v8046
      %v8048 = vpop.f32.mrf.mxu0
      %8049 = vmatprep.mubr.f32.mxu0 0.0
      %8050 = vmatmul.mubr.f32.gmra.mxu0 %v5011
      %v8051 = vpop.f32.mrf.mxu0
      %v8052 = vadd.f32 0.0, %v8051
      %v8053 = vpop.f32.mrf.mxu0
      %8054 = vmatprep.mubr.f32.mxu0 0.0
      %8055 = vmatmul.mubr.f32.gmra.mxu0 %v5014
      %v8056 = vpop.f32.mrf.mxu0
      %v8057 = vadd.f32 0.0, %v8056
      %v8058 = vpop.f32.mrf.mxu0
      %8059 = vmatprep.mubr.f32.mxu0 0.0
      %8060 = vmatmul.mubr.f32.gmra.mxu0 %v5017
      %v8061 = vpop.f32.mrf.mxu0
      %v8062 = vadd.f32 0.0, %v8061
      %v8063 = vpop.f32.mrf.mxu0
      %8064 = vmatprep.mubr.f32.mxu0 0.0
      %8065 = vmatmul.mubr.f32.gmra.mxu0 %v5020
      %v8066 = vpop.f32.mrf.mxu0
      %v8067 = vadd.f32 0.0, %v8066
      %v8068 = vpop.f32.mrf.mxu0
      %8069 = vmatprep.mubr.f32.mxu0 0.0
      %8070 = vmatmul.mubr.f32.gmra.mxu0 %v5023
      %v8071 = vpop.f32.mrf.mxu0
      %v8072 = vadd.f32 0.0, %v8071
      %v8073 = vpop.f32.mrf.mxu0
      %8074 = vmatprep.mubr.f32.mxu0 0.0
      %8075 = vmatmul.mubr.f32.gmra.mxu0 %v5026
      %v8076 = vpop.f32.mrf.mxu0
      %v8077 = vadd.f32 0.0, %v8076
      %v8078 = vpop.f32.mrf.mxu0
      %8079 = vmatprep.mubr.f32.mxu0 0.0
      %8080 = vmatmul.mubr.f32.gmra.mxu0 %v5029
      %v8081 = vpop.f32.mrf.mxu0
      %v8082 = vadd.f32 0.0, %v8081
      %v8083 = vpop.f32.mrf.mxu0
      %8084 = vmatprep.mubr.f32.mxu0 0.0
      %8085 = vmatmul.mubr.f32.gmra.mxu0 %v5032
      %v8086 = vpop.f32.mrf.mxu0
      %v8087 = vadd.f32 0.0, %v8086
      %v8088 = vpop.f32.mrf.mxu0
      %8089 = vmatprep.mubr.f32.mxu0 0.0
      %8090 = vmatmul.mubr.f32.gmra.mxu0 %v5035
      %v8091 = vpop.f32.mrf.mxu0
      %v8092 = vadd.f32 0.0, %v8091
      %v8093 = vpop.f32.mrf.mxu0
      %8094 = vmatprep.mubr.f32.mxu0 0.0
      %8095 = vmatmul.mubr.f32.gmra.mxu0 %v5038
      %v8096 = vpop.f32.mrf.mxu0
      %v8097 = vadd.f32 0.0, %v8096
      %v8098 = vpop.f32.mrf.mxu0
      %8099 = vmatprep.mubr.f32.mxu0 0.0
      %8100 = vmatmul.mubr.f32.gmra.mxu0 %v5041
      %v8101 = vpop.f32.mrf.mxu0
      %v8102 = vadd.f32 0.0, %v8101
      %v8103 = vpop.f32.mrf.mxu0
      %8104 = vmatprep.mubr.f32.mxu0 0.0
      %8105 = vmatmul.mubr.f32.gmra.mxu0 %v5044
      %v8106 = vpop.f32.mrf.mxu0
      %v8107 = vadd.f32 0.0, %v8106
      %v8108 = vpop.f32.mrf.mxu0
      %8109 = vmatprep.mubr.f32.mxu0 0.0
      %8110 = vmatmul.mubr.f32.gmra.mxu0 %v5047
      %v8111 = vpop.f32.mrf.mxu0
      %v8112 = vadd.f32 0.0, %v8111
      %v8113 = vpop.f32.mrf.mxu0
      %8114 = vmatprep.mubr.f32.mxu0 0.0
      %8115 = vmatmul.mubr.f32.gmra.mxu0 %v5050
      %v8116 = vpop.f32.mrf.mxu0
      %v8117 = vadd.f32 0.0, %v8116
      %v8118 = vpop.f32.mrf.mxu0
      %8119 = vmatprep.mubr.f32.mxu0 0.0
      %8120 = vmatmul.mubr.f32.gmra.mxu0 %v5053
      %v8121 = vpop.f32.mrf.mxu0
      %v8122 = vadd.f32 0.0, %v8121
      %v8123 = vpop.f32.mrf.mxu0
      %8124 = vmatprep.mubr.f32.mxu0 0.0
      %8125 = vmatmul.mubr.f32.gmra.mxu0 %v5056
      %v8126 = vpop.f32.mrf.mxu0
      %v8127 = vadd.f32 0.0, %v8126
      %v8128 = vpop.f32.mrf.mxu0
      %8129 = vmatprep.mubr.f32.mxu0 0.0
      %8130 = vmatmul.mubr.f32.gmra.mxu0 %v5059
      %v8131 = vpop.f32.mrf.mxu0
      %v8132 = vadd.f32 0.0, %v8131
      %v8133 = vpop.f32.mrf.mxu0
      %8134 = vmatprep.mubr.f32.mxu0 0.0
      %8135 = vmatmul.mubr.f32.gmra.mxu0 %v5062
      %v8136 = vpop.f32.mrf.mxu0
      %v8137 = vadd.f32 0.0, %v8136
      %v8138 = vpop.f32.mrf.mxu0
      %8139 = vmatprep.mubr.f32.mxu0 0.0
      %8140 = vmatmul.mubr.f32.gmra.mxu0 %v5065
      %v8141 = vpop.f32.mrf.mxu0
      %v8142 = vadd.f32 0.0, %v8141
      %v8143 = vpop.f32.mrf.mxu0
      %8144 = vmatprep.mubr.f32.mxu0 0.0
      %8145 = vmatmul.mubr.f32.gmra.mxu0 %v5068
      %v8146 = vpop.f32.mrf.mxu0
      %v8147 = vadd.f32 0.0, %v8146
      %v8148 = vpop.f32.mrf.mxu0
      %8149 = vmatprep.mubr.f32.mxu0 0.0
      %8150 = vmatmul.mubr.f32.gmra.mxu0 %v5071
      %v8151 = vpop.f32.mrf.mxu0
      %v8152 = vadd.f32 0.0, %v8151
      %v8153 = vpop.f32.mrf.mxu0
      %8154 = vmatprep.mubr.f32.mxu0 0.0
      %8155 = vmatmul.mubr.f32.gmra.mxu0 %v5074
      %v8156 = vpop.f32.mrf.mxu0
      %v8157 = vadd.f32 0.0, %v8156
      %v8158 = vpop.f32.mrf.mxu0
      %8159 = vmatprep.mubr.f32.mxu0 0.0
      %8160 = vmatmul.mubr.f32.gmra.mxu0 %v5077
      %v8161 = vpop.f32.mrf.mxu0
      %v8162 = vadd.f32 0.0, %v8161
      %v8163 = vpop.f32.mrf.mxu0
      %8164 = vmatprep.mubr.f32.mxu0 0.0
      %8165 = vmatmul.mubr.f32.gmra.mxu0 %v5080
      %v8166 = vpop.f32.mrf.mxu0
      %v8167 = vadd.f32 0.0, %v8166
      %v8168 = vpop.f32.mrf.mxu0
      %8169 = vmatprep.mubr.f32.mxu0 0.0
      %8170 = vmatmul.mubr.f32.gmra.mxu0 %v5083
      %v8171 = vpop.f32.mrf.mxu0
      %v8172 = vadd.f32 0.0, %v8171
      %v8173 = vpop.f32.mrf.mxu0
      %8174 = vmatprep.mubr.f32.mxu0 0.0
      %8175 = vmatmul.mubr.f32.gmra.mxu0 %v5086
      %v8176 = vpop.f32.mrf.mxu0
      %v8177 = vadd.f32 0.0, %v8176
      %v8178 = vpop.f32.mrf.mxu0
      %8179 = vmatprep.mubr.f32.mxu0 0.0
      %8180 = vmatmul.mubr.f32.gmra.mxu0 %v5089
      %v8181 = vpop.f32.mrf.mxu0
      %v8182 = vadd.f32 0.0, %v8181
      %v8183 = vpop.f32.mrf.mxu0
      %8184 = vmatprep.mubr.f32.mxu0 0.0
      %8185 = vmatmul.mubr.f32.gmra.mxu0 %v5092
      %v8186 = vpop.f32.mrf.mxu0
      %v8187 = vadd.f32 0.0, %v8186
      %v8188 = vpop.f32.mrf.mxu0
      %8189 = vmatprep.mubr.f32.mxu0 0.0
      %8190 = vmatmul.mubr.f32.gmra.mxu0 %v5095
      %v8191 = vpop.f32.mrf.mxu0
      %v8192 = vadd.f32 0.0, %v8191
      %v8193 = vpop.f32.mrf.mxu0
      %8194 = vmatprep.mubr.f32.mxu0 0.0
      %8195 = vmatmul.mubr.f32.gmra.mxu0 %v5098
      %v8196 = vpop.f32.mrf.mxu0
      %v8197 = vadd.f32 0.0, %v8196
      %v8198 = vpop.f32.mrf.mxu0
      %8199 = vdwg.mxu0
      %v8230 = vrot.slane %v8052, 1
      %v8231 = vrot.slane %v8057, 1
      %v8232 = vsel %vm2248, %v8230, %v8231
      %v8233 = vrot.slane %v8062, 1
      %v8234 = vsel %vm2248, %v8231, %v8233
      %v8235 = vrot.slane %v8067, 1
      %v8236 = vsel %vm2248, %v8233, %v8235
      %v8237 = vrot.slane %v8072, 1
      %v8238 = vsel %vm2248, %v8235, %v8237
      %v8239 = vrot.slane %v8077, 1
      %v8240 = vsel %vm2248, %v8237, %v8239
      %v8241 = vrot.slane %v8082, 1
      %v8242 = vsel %vm2248, %v8239, %v8241
      %v8243 = vrot.slane %v8087, 1
      %v8244 = vsel %vm2248, %v8241, %v8243
      %v8245 = vrot.slane %v8092, 1
      %v8246 = vsel %vm2248, %v8243, %v8245
      %v8247 = vrot.slane %v8097, 1
      %v8248 = vsel %vm2248, %v8245, %v8247
      %v8249 = vrot.slane %v8102, 1
      %v8250 = vsel %vm2248, %v8247, %v8249
      %v8251 = vrot.slane %v8107, 1
      %v8252 = vsel %vm2248, %v8249, %v8251
      %v8253 = vrot.slane %v8112, 1
      %v8254 = vsel %vm2248, %v8251, %v8253
      %v8255 = vrot.slane %v8117, 1
      %v8256 = vsel %vm2248, %v8253, %v8255
      %v8257 = vrot.slane %v8122, 1
      %v8258 = vsel %vm2248, %v8255, %v8257
      %v8259 = vrot.slane %v8127, 1
      %v8260 = vsel %vm2248, %v8257, %v8259
      %v8261 = vrot.slane %v8132, 1
      %v8262 = vsel %vm2248, %v8259, %v8261
      %v8263 = vrot.slane %v8137, 1
      %v8264 = vsel %vm2248, %v8261, %v8263
      %v8265 = vrot.slane %v8142, 1
      %v8266 = vsel %vm2248, %v8263, %v8265
      %v8267 = vrot.slane %v8147, 1
      %v8268 = vsel %vm2248, %v8265, %v8267
      %v8269 = vrot.slane %v8152, 1
      %v8270 = vsel %vm2248, %v8267, %v8269
      %v8271 = vrot.slane %v8157, 1
      %v8272 = vsel %vm2248, %v8269, %v8271
      %v8273 = vrot.slane %v8162, 1
      %v8274 = vsel %vm2248, %v8271, %v8273
      %v8275 = vrot.slane %v8167, 1
      %v8276 = vsel %vm2248, %v8273, %v8275
      %v8277 = vrot.slane %v8172, 1
      %v8278 = vsel %vm2248, %v8275, %v8277
      %v8279 = vrot.slane %v8177, 1
      %v8280 = vsel %vm2248, %v8277, %v8279
      %v8281 = vrot.slane %v8182, 1
      %v8282 = vsel %vm2248, %v8279, %v8281
      %v8283 = vrot.slane %v8187, 1
      %v8284 = vsel %vm2248, %v8281, %v8283
      %v8285 = vrot.slane %v8192, 1
      %v8286 = vsel %vm2248, %v8283, %v8285
      %v8287 = vrot.slane %v8197, 1
      %v8288 = vsel %vm2248, %v8285, %v8287
      %v8321 = vrot.slane %v8042, 1
      %v8322 = vrot.slane %v8047, 1
      %v8323 = vsel %vm2248, %v8321, %v8322
      %v8324 = vsel %vm2248, %v8322, %v8230
      %v8328 = vsel %vm2248, %v8287, %v8321
      %v8329 = vsel %vm4795, %v8232, 0.0
      %v8330 = vsel %vm4796, %v8234, 0.0
      %v8331 = vsel %vm4797, %v8236, 0.0
      %v8332 = vsel %vm4798, %v8238, 0.0
      %v8333 = vsel %vm4799, %v8240, 0.0
      %v8334 = vsel %vm4800, %v8242, 0.0
      %v8335 = vsel %vm4801, %v8244, 0.0
      %v8336 = vsel %vm4802, %v8246, 0.0
      %v8337 = vsel %vm4803, %v8248, 0.0
      %v8338 = vsel %vm4804, %v8250, 0.0
      %v8339 = vsel %vm4805, %v8252, 0.0
      %v8340 = vsel %vm4806, %v8254, 0.0
      %v8341 = vsel %vm4807, %v8256, 0.0
      %v8342 = vsel %vm4808, %v8258, 0.0
      %v8343 = vsel %vm4809, %v8260, 0.0
      %v8344 = vsel %vm4810, %v8262, 0.0
      %v8345 = vsel %vm4811, %v8264, 0.0
      %v8346 = vsel %vm4812, %v8266, 0.0
      %v8347 = vsel %vm4813, %v8268, 0.0
      %v8348 = vsel %vm4814, %v8270, 0.0
      %v8349 = vsel %vm4815, %v8272, 0.0
      %v8350 = vsel %vm4816, %v8274, 0.0
      %v8351 = vsel %vm4817, %v8276, 0.0
      %v8352 = vsel %vm4818, %v8278, 0.0
      %v8353 = vsel %vm4819, %v8280, 0.0
      %v8354 = vsel %vm4820, %v8282, 0.0
      %v8355 = vsel %vm4821, %v8284, 0.0
      %v8356 = vsel %vm4822, %v8286, 0.0
      %v8357 = vsel %vm4823, %v8288, 0.0
      %v8358 = vsel %vm4824, %v8328, 0.0
      %v8359 = vsel %vm4825, %v8323, 0.0
      %v8360 = vsel %vm4826, %v8324, 0.0
      %v8361 = vadd.f32 %v7941, %v8329
      %v8362 = vadd.f32 %v7942, %v8330
      %v8363 = vadd.f32 %v7943, %v8331
      %v8364 = vadd.f32 %v7944, %v8332
      %v8365 = vadd.f32 %v7945, %v8333
      %v8366 = vadd.f32 %v7946, %v8334
      %v8367 = vadd.f32 %v7947, %v8335
      %v8368 = vadd.f32 %v7948, %v8336
      %v8369 = vadd.f32 %v7949, %v8337
      %v8370 = vadd.f32 %v7950, %v8338
      %v8371 = vadd.f32 %v7951, %v8339
      %v8372 = vadd.f32 %v7952, %v8340
      %v8373 = vadd.f32 %v7953, %v8341
      %v8374 = vadd.f32 %v7954, %v8342
      %v8375 = vadd.f32 %v7955, %v8343
      %v8376 = vadd.f32 %v7956, %v8344
      %v8377 = vadd.f32 %v7957, %v8345
      %v8378 = vadd.f32 %v7958, %v8346
      %v8379 = vadd.f32 %v7959, %v8347
      %v8380 = vadd.f32 %v7960, %v8348
      %v8381 = vadd.f32 %v7961, %v8349
      %v8382 = vadd.f32 %v7962, %v8350
      %v8383 = vadd.f32 %v7963, %v8351
      %v8384 = vadd.f32 %v7964, %v8352
      %v8385 = vadd.f32 %v7965, %v8353
      %v8386 = vadd.f32 %v7966, %v8354
      %v8387 = vadd.f32 %v7967, %v8355
      %v8388 = vadd.f32 %v7968, %v8356
      %v8389 = vadd.f32 %v7969, %v8357
      %v8390 = vadd.f32 %v7970, %v8358
      %v8391 = vadd.f32 %v7971, %v8359
      %v8392 = vadd.f32 %v7972, %v8360
      %v8393 = vld [vmem:[%s5] sm:$0x1]
      %v8395 = vlaneseq
      %v8396 = vshrl.u32 %v8395, 7
      %v8397 = vsub.s32 0, %v8396
      %v8398 = vrot.slane %v8393, %v8397
      %v8400 = vmul.f32 %v8361, %v8398
      %v8401 = vmul.f32 %v8362, %v8398
      %v8402 = vmul.f32 %v8363, %v8398
      %v8403 = vmul.f32 %v8364, %v8398
      %v8404 = vmul.f32 %v8365, %v8398
      %v8405 = vmul.f32 %v8366, %v8398
      %v8406 = vmul.f32 %v8367, %v8398
      %v8407 = vmul.f32 %v8368, %v8398
      %v8408 = vmul.f32 %v8369, %v8398
      %v8409 = vmul.f32 %v8370, %v8398
      %v8410 = vmul.f32 %v8371, %v8398
      %v8411 = vmul.f32 %v8372, %v8398
      %v8412 = vmul.f32 %v8373, %v8398
      %v8413 = vmul.f32 %v8374, %v8398
      %v8414 = vmul.f32 %v8375, %v8398
      %v8415 = vmul.f32 %v8376, %v8398
      %v8416 = vmul.f32 %v8377, %v8398
      %v8417 = vmul.f32 %v8378, %v8398
      %v8418 = vmul.f32 %v8379, %v8398
      %v8419 = vmul.f32 %v8380, %v8398
      %v8420 = vmul.f32 %v8381, %v8398
      %v8421 = vmul.f32 %v8382, %v8398
      %v8422 = vmul.f32 %v8383, %v8398
      %v8423 = vmul.f32 %v8384, %v8398
      %v8424 = vmul.f32 %v8385, %v8398
      %v8425 = vmul.f32 %v8386, %v8398
      %v8426 = vmul.f32 %v8387, %v8398
      %v8427 = vmul.f32 %v8388, %v8398
      %v8428 = vmul.f32 %v8389, %v8398
      %v8429 = vmul.f32 %v8390, %v8398
      %v8430 = vmul.f32 %v8391, %v8398
      %v8431 = vmul.f32 %v8392, %v8398
      %v8432 = vld [vmem:[%s6] sm:$0x1]
      %v8434 = vlaneseq
      %v8435 = vshrl.u32 %v8434, 7
      %v8436 = vsub.s32 0, %v8435
      %v8437 = vrot.slane %v8432, %v8436
      %v8439 = vadd.f32 %v8400, %v8437
      %v8440 = vadd.f32 %v8401, %v8437
      %v8441 = vadd.f32 %v8402, %v8437
      %v8442 = vadd.f32 %v8403, %v8437
      %v8443 = vadd.f32 %v8404, %v8437
      %v8444 = vadd.f32 %v8405, %v8437
      %v8445 = vadd.f32 %v8406, %v8437
      %v8446 = vadd.f32 %v8407, %v8437
      %v8447 = vadd.f32 %v8408, %v8437
      %v8448 = vadd.f32 %v8409, %v8437
      %v8449 = vadd.f32 %v8410, %v8437
      %v8450 = vadd.f32 %v8411, %v8437
      %v8451 = vadd.f32 %v8412, %v8437
      %v8452 = vadd.f32 %v8413, %v8437
      %v8453 = vadd.f32 %v8414, %v8437
      %v8454 = vadd.f32 %v8415, %v8437
      %v8455 = vadd.f32 %v8416, %v8437
      %v8456 = vadd.f32 %v8417, %v8437
      %v8457 = vadd.f32 %v8418, %v8437
      %v8458 = vadd.f32 %v8419, %v8437
      %v8459 = vadd.f32 %v8420, %v8437
      %v8460 = vadd.f32 %v8421, %v8437
      %v8461 = vadd.f32 %v8422, %v8437
      %v8462 = vadd.f32 %v8423, %v8437
      %v8463 = vadd.f32 %v8424, %v8437
      %v8464 = vadd.f32 %v8425, %v8437
      %v8465 = vadd.f32 %v8426, %v8437
      %v8466 = vadd.f32 %v8427, %v8437
      %v8467 = vadd.f32 %v8428, %v8437
      %v8468 = vadd.f32 %v8429, %v8437
      %v8469 = vadd.f32 %v8430, %v8437
      %v8470 = vadd.f32 %v8431, %v8437
      %v8471 = vadd.f32 %v8439, %v279
      %v8472 = vadd.f32 %v8440, %v280
      %v8473 = vadd.f32 %v8441, %v281
      %v8474 = vadd.f32 %v8442, %v282
      %v8475 = vadd.f32 %v8443, %v283
      %v8476 = vadd.f32 %v8444, %v284
      %v8477 = vadd.f32 %v8445, %v285
      %v8478 = vadd.f32 %v8446, %v286
      %v8479 = vadd.f32 %v8447, %v287
      %v8480 = vadd.f32 %v8448, %v288
      %v8481 = vadd.f32 %v8449, %v289
      %v8482 = vadd.f32 %v8450, %v290
      %v8483 = vadd.f32 %v8451, %v291
      %v8484 = vadd.f32 %v8452, %v292
      %v8485 = vadd.f32 %v8453, %v293
      %v8486 = vadd.f32 %v8454, %v294
      %v8487 = vadd.f32 %v8455, %v295
      %v8488 = vadd.f32 %v8456, %v296
      %v8489 = vadd.f32 %v8457, %v297
      %v8490 = vadd.f32 %v8458, %v298
      %v8491 = vadd.f32 %v8459, %v299
      %v8492 = vadd.f32 %v8460, %v300
      %v8493 = vadd.f32 %v8461, %v301
      %v8494 = vadd.f32 %v8462, %v302
      %v8495 = vadd.f32 %v8463, %v303
      %v8496 = vadd.f32 %v8464, %v304
      %v8497 = vadd.f32 %v8465, %v305
      %v8498 = vadd.f32 %v8466, %v306
      %v8499 = vadd.f32 %v8467, %v307
      %v8500 = vadd.f32 %v8468, %v308
      %v8501 = vadd.f32 %v8469, %v309
      %v8502 = vadd.f32 %v8470, %v310
      %v8503 = vmax.f32 %v8471, 0.0
      %v8504 = vmax.f32 %v8472, 0.0
      %v8505 = vmax.f32 %v8473, 0.0
      %v8506 = vmax.f32 %v8474, 0.0
      %v8507 = vmax.f32 %v8475, 0.0
      %v8508 = vmax.f32 %v8476, 0.0
      %v8509 = vmax.f32 %v8477, 0.0
      %v8510 = vmax.f32 %v8478, 0.0
      %v8511 = vmax.f32 %v8479, 0.0
      %v8512 = vmax.f32 %v8480, 0.0
      %v8513 = vmax.f32 %v8481, 0.0
      %v8514 = vmax.f32 %v8482, 0.0
      %v8515 = vmax.f32 %v8483, 0.0
      %v8516 = vmax.f32 %v8484, 0.0
      %v8517 = vmax.f32 %v8485, 0.0
      %v8518 = vmax.f32 %v8486, 0.0
      %v8519 = vmax.f32 %v8487, 0.0
      %v8520 = vmax.f32 %v8488, 0.0
      %v8521 = vmax.f32 %v8489, 0.0
      %v8522 = vmax.f32 %v8490, 0.0
      %v8523 = vmax.f32 %v8491, 0.0
      %v8524 = vmax.f32 %v8492, 0.0
      %v8525 = vmax.f32 %v8493, 0.0
      %v8526 = vmax.f32 %v8494, 0.0
      %v8527 = vmax.f32 %v8495, 0.0
      %v8528 = vmax.f32 %v8496, 0.0
      %v8529 = vmax.f32 %v8497, 0.0
      %v8530 = vmax.f32 %v8498, 0.0
      %v8531 = vmax.f32 %v8499, 0.0
      %v8532 = vmax.f32 %v8500, 0.0
      %v8533 = vmax.f32 %v8501, 0.0
      %v8534 = vmax.f32 %v8502, 0.0
      %8535 = vst.msk [vmem:[%s278] sm:$0xff] %vm859, %v8503
      %8536 = vst.msk [vmem:[%s278 + $0x8] sm:$0xff] %vm859, %v8504
      %8537 = vst.msk [vmem:[%s278 + $0x10] sm:$0xff] %vm859, %v8505
      %8538 = vst.msk [vmem:[%s278 + $0x18] sm:$0xff] %vm859, %v8506
      %8539 = vst.msk [vmem:[%s278 + $0x20] sm:$0xff] %vm859, %v8507
      %8540 = vst.msk [vmem:[%s278 + $0x28] sm:$0xff] %vm859, %v8508
      %8541 = vst.msk [vmem:[%s278 + $0x30] sm:$0xff] %vm859, %v8509
      %8542 = vst.msk [vmem:[%s278 + $0x38] sm:$0xff] %vm859, %v8510
      %8543 = vst.msk [vmem:[%s278 + $0x40] sm:$0xff] %vm859, %v8511
      %8544 = vst.msk [vmem:[%s278 + $0x48] sm:$0xff] %vm859, %v8512
      %8545 = vst.msk [vmem:[%s278 + $0x50] sm:$0xff] %vm859, %v8513
      %8546 = vst.msk [vmem:[%s278 + $0x58] sm:$0xff] %vm859, %v8514
      %8547 = vst.msk [vmem:[%s278 + $0x60] sm:$0xff] %vm859, %v8515
      %8548 = vst.msk [vmem:[%s278 + $0x68] sm:$0xff] %vm859, %v8516
      %8549 = vst.msk [vmem:[%s278 + $0x70] sm:$0xff] %vm859, %v8517
      %8550 = vst.msk [vmem:[%s278 + $0x78] sm:$0xff] %vm859, %v8518
      %8551 = vst.msk [vmem:[%s278 + $0x80] sm:$0xff] %vm859, %v8519
      %8552 = vst.msk [vmem:[%s278 + $0x88] sm:$0xff] %vm859, %v8520
      %8553 = vst.msk [vmem:[%s278 + $0x90] sm:$0xff] %vm859, %v8521
      %8554 = vst.msk [vmem:[%s278 + $0x98] sm:$0xff] %vm859, %v8522
      %8555 = vst.msk [vmem:[%s278 + $0xa0] sm:$0xff] %vm859, %v8523
      %8556 = vst.msk [vmem:[%s278 + $0xa8] sm:$0xff] %vm859, %v8524
      %8557 = vst.msk [vmem:[%s278 + $0xb0] sm:$0xff] %vm859, %v8525
      %8558 = vst.msk [vmem:[%s278 + $0xb8] sm:$0xff] %vm859, %v8526
      %8559 = vst.msk [vmem:[%s278 + $0xc0] sm:$0xff] %vm859, %v8527
      %8560 = vst.msk [vmem:[%s278 + $0xc8] sm:$0xff] %vm859, %v8528
      %8561 = vst.msk [vmem:[%s278 + $0xd0] sm:$0xff] %vm859, %v8529
      %8562 = vst.msk [vmem:[%s278 + $0xd8] sm:$0xff] %vm859, %v8530
      %8563 = vst.msk [vmem:[%s278 + $0xe0] sm:$0xff] %vm859, %v8531
      %8564 = vst.msk [vmem:[%s278 + $0xe8] sm:$0xff] %vm859, %v8532
      %8565 = vst.msk [vmem:[%s278 + $0xf0] sm:$0xff] %vm859, %v8533
      %8566 = vst.msk [vmem:[%s278 + $0xf8] sm:$0xff] %vm859, %v8534
      %p8567 = scmp.lt.s32.totalorder %s18, 1
      %s8568 = scalar_select %p8567, %s18, 1
      %s8569 = smul.addr %s8568, 32
      %s8570 = smul.addr %s8569, 8
      %s8571 = scalar_lea.vmem %s7, %s8570
      // Predicated region
      $region49: #{tpu_custom_call.1} parent=47 // pred_check
        %p8572 = pneg %p188
      $region50: #{tpu_custom_call.1} parent=47 // pred_check_branch
        %8574 = sbr.rel (%p8572) target = $region52
      $region51: #{tpu_custom_call.1} parent=47 // pred_region
        _
      $region52: #{tpu_custom_call.1} parent=47 // pred_fallthru
        _
    $region48: #{tpu_custom_call.1} parent=5 // pred_fallthru
      _
    %p8575 = scmp.le.s32.totalorder 2, %s13
    // Predicated region
    $region53: #{tpu_custom_call.1} parent=5 // pred_check
      %p8576 = pneg %p8575
    $region54: #{tpu_custom_call.1} parent=5 // pred_check_branch
      %8578 = sbr.rel (%p8576) target = $region56
    $region55: #{tpu_custom_call.1} parent=5 // pred_region
      %s8579 = ssub.s32 %s13, 2
      // Predicated region
      $region57: #{tpu_custom_call.1} parent=55 // pred_check
        %p8580 = pneg %p194
      $region58: #{tpu_custom_call.1} parent=55 // pred_check_branch
        %8582 = sbr.rel (%p8580) target = $region60
      $region59: #{tpu_custom_call.1} parent=55 // pred_region
        %p8583 = scmp.lt.s32.totalorder %s19, 1
        %s8584 = scalar_select %p8583, %s19, 1
        %s8585 = smul.addr %s8584, 32
        %s8586 = smul.addr %s8585, 8
        %s8587 = scalar_lea.vmem %s7, %s8586
      $region60: #{tpu_custom_call.1} parent=55 // pred_fallthru
        _
    $region56: #{tpu_custom_call.1} parent=5 // pred_fallthru
      _
  $region6: #{tpu_custom_call.1} parent=0 // loop_footer
    %s17 = sadd.s32 1, %s13
  $region7: #{tpu_custom_call.1} parent=0 // loop_footer_branch
    %12 = sbr.rel target = $region3
  $region8: #{tpu_custom_call.1} parent=0 // loop_exit
    _

</llo_original>
